<compile_context>
chip_gen: v6e
topology: v6e:2x2x1
jax: 0.10.0
libtpu: 0.0.40
codegen_flags: <defaults>
</compile_context>

<pallas_src>
import functools

import jax
import jax.numpy as jnp
from jax.experimental import pallas as pl
from jax.experimental.pallas import tpu as pltpu


# ----------------------------- fused Pallas kernel ---------------------------
def _rnd_fused_kernel(cols_ref, w1_ref, b1_ref, w2_ref, b2_ref, w3_ref, b3_ref,
                      fw1_ref, fb1_ref, fw2_ref, fb2_ref, out_ref, *, bt):
    """One grid step = one batch tile, BOTH nets (predictor, target).

    cols_ref : (1, 144*bt, 192) bf16  conv1 im2col rows, ordered within the tile
                                      as m = ij*(9*bt) + p*bt + b  with
                                      ij = i2*4 + j2 (conv2 tap), p = oh2*3 + ow2.
    w1  (2,192,32) bf16   b1  (2,1,32)  f32
    w2  (2,16,32,64) bf16 b2  (2,1,64)  f32
    w3  (2,9,64,64) bf16  b3  (2,1,64)  f32
    fw1 (2,64,512) bf16   fb1 (2,1,512) f32
    fw2 (2,512,512) bf16  fb2 (2,1,512) f32
    out_ref (2, bt, 512) f32
    """
    f32, bf16 = jnp.float32, jnp.bfloat16
    m2 = 9 * bt

    cols = cols_ref[0]                                   # (144*bt, 192) bf16

    for n in range(2):      # 0 = predictor, 1 = target (independent chains)
        # ---- conv1: ONE dense GEMM over all 16 duplicated tap blocks --------
        h1 = jnp.dot(cols, w1_ref[n], preferred_element_type=f32) + b1_ref[n]
        h1 = jnp.maximum(h1, 0.0)                        # (144*bt, 32) f32

        # ---- conv2: accumulate the 16 taps on the MXU (8-aligned slices) ----
        acc2 = jnp.zeros((m2, 64), f32)
        for ij in range(16):
            xij = h1[ij * m2:(ij + 1) * m2, :].astype(bf16)          # (m2, 32)
            acc2 = acc2 + jnp.dot(xij, w2_ref[n, ij],
                                  preferred_element_type=f32)
        h2 = jnp.maximum(acc2 + b2_ref[n], 0.0)          # (m2, 64) f32, rows p*bt+b

        # ---- conv3 (1x1 spatial output): accumulate the 9 taps --------------
        acc3 = jnp.zeros((bt, 64), f32)
        for p in range(9):
            xp = h2[p * bt:(p + 1) * bt, :].astype(bf16)             # (bt, 64)
            acc3 = acc3 + jnp.dot(xp, w3_ref[n, p],
                                  preferred_element_type=f32)
        h3 = jnp.maximum(acc3 + b3_ref[n], 0.0).astype(bf16)   # (bt,64) == Flatten

        # ---- fc1 + ReLU ------------------------------------------------------
        h4 = jnp.dot(h3, fw1_ref[n], preferred_element_type=f32) + fb1_ref[n]
        h4 = jnp.maximum(h4, 0.0).astype(bf16)           # (bt, 512)

        # ---- fc2 (no activation) ---------------------------------------------
        y = jnp.dot(h4, fw2_ref[n], preferred_element_type=f32) + fb2_ref[n]
        out_ref[n] = y.astype(out_ref.dtype)


# ------------------------------- JAX-side glue --------------------------------
def _round_up(x, m):
    return (x + m - 1) // m * m


def _conv_dims(h, w):
    h1, w1 = (h - 8) // 4 + 1, (w - 8) // 4 + 1
    h2, w2 = (h1 - 4) // 2 + 1, (w1 - 4) // 2 + 1
    h3, w3 = (h2 - 3) // 1 + 1, (w2 - 3) // 1 + 1
    return (h1, w1), (h2, w2), (h3, w3)


def _build_conv1_cols(x_nhwc, bt):
    """conv1 im2col in bf16, tiled/ordered for the fused kernel.

    Returns (n_tiles, 144*bt, K1):  within each batch tile, row
    m = ij*(9*bt) + p*bt + b  holds the conv1 input patch for conv1 output
    position (y, x) = (2*oh2 + i2, 2*ow2 + j2), with ij = i2*4 + j2 and
    p = oh2*3 + ow2; patch flattened (ky, kx, cin) to match HWIO weights.
    """
    Bp = x_nhwc.shape[0]
    C = x_nhwc.shape[-1]
    n_tiles = Bp // bt
    k, s, Ho, Wo = 8, 4, 8, 8

    pats = []
    for ky in range(k):
        for kx in range(k):
            pats.append(x_nhwc[:, ky:ky + s * Ho:s, kx:kx + s * Wo:s, :])  # (Bp,8,8,C)
    patches = jnp.stack(pats, axis=3)                      # (Bp,8,8,64,C)
    cols64 = patches.reshape(Bp, Ho, Wo, k * k * C)        # K = ky*8*C + kx*C + c

    subs = []
    for i2 in range(4):
        for j2 in range(4):
            blk = cols64[:, i2:i2 + 6:2, j2:j2 + 6:2, :]   # (Bp,3,3,K1) (b,oh2,ow2)
            subs.append(blk.reshape(Bp, 9, k * k * C))     # (b, p, K1)
    cols = jnp.stack(subs, axis=1)                         # (Bp, 16, 9, K1)
    cols = cols.reshape(n_tiles, bt, 16, 9, k * k * C)
    cols = jnp.transpose(cols, (0, 2, 3, 1, 4))            # (tile, ij, p, b, K1)
    return cols.reshape(n_tiles, 144 * bt, k * k * C)


def _pinned_spec(a):
    """Full-array block, constant index across the batch-tile grid."""
    nz = (0,) * a.ndim
    return pl.BlockSpec(a.shape, lambda t, nz=nz: nz)


@jax.jit
def rnd_model_forward(packed, x_nchw):
    """Equivalent of RNDModel.forward: returns (predictor(x), target(x))."""
    B, _, H, W = x_nchw.shape
    (c1h, c1w), (c2h, c2w), (c3h, c3w) = _conv_dims(H, W)
    # Fused kernel assumes the conv stack ends at 1x1 spatial (e.g. 36x36 input).
    assert (c1h, c1w) == (8, 8) and (c2h, c2w) == (3, 3) and (c3h, c3w) == (1, 1)

    # Pad batch to a sublane multiple and pick a batch tile (bounds VMEM on v7x).
    Bp = max(8, _round_up(B, 8))
    bt = min(Bp, 32)
    Bp = _round_up(Bp, bt)
    n_tiles = Bp // bt

    x_nhwc = jnp.transpose(x_nchw, (0, 2, 3, 1)).astype(jnp.bfloat16)
    if Bp != B:
        x_nhwc = jnp.pad(x_nhwc, ((0, Bp - B), (0, 0), (0, 0), (0, 0)))
    cols = _build_conv1_cols(x_nhwc, bt)                  # (n_tiles, 144*bt, K1) bf16
    k1 = cols.shape[-1]

    flops_per_elem = 2 * (144 * k1 * 32 + 9 * 16 * 32 * 64 + 9 * 64 * 64
                          + 64 * 512 + 512 * 512)
    flops = 2 * Bp * flops_per_elem                       # both nets
    bytes_weights = 2 * 2 * (k1 * 32 + 16 * 32 * 64 + 9 * 64 * 64
                             + 64 * 512 + 512 * 512)      # both nets, bf16
    bytes_accessed = int(bytes_weights + cols.size * 2 + 2 * Bp * 512 * 4)

    operands = (cols, packed["w1"], packed["b1"], packed["w2"], packed["b2"],
                packed["w3"], packed["b3"], packed["fw1"], packed["fb1"],
                packed["fw2"], packed["fb2"])

    in_specs = [pl.BlockSpec((1, 144 * bt, k1), lambda t: (t, 0, 0))]
    in_specs += [_pinned_spec(a) for a in operands[1:]]

    out = pl.pallas_call(
        functools.partial(_rnd_fused_kernel, bt=bt),
        out_shape=jax.ShapeDtypeStruct((2, Bp, 512), jnp.float32),
        grid=(n_tiles,),
        in_specs=in_specs,
        out_specs=pl.BlockSpec((2, bt, 512), lambda t: (0, t, 0)),
        compiler_params=pltpu.CompilerParams(
            dimension_semantics=("parallel",)),
        cost_estimate=pl.CostEstimate(flops=flops, transcendentals=0,
                                      bytes_accessed=bytes_accessed),
    )(*operands)
    return out[0, :B], out[1, :B]


# ------------------------------- parameters -----------------------------------
def init_net_params(key, input_shape):
    """One copy of the _build_net() parameter set (conv weights laid out HWIO)."""
    cin, H, W = input_shape
    (_, _), (_, _), (h3, w3) = _conv_dims(H, W)
    flat_dim = 64 * h3 * w3
    ks = jax.random.split(key, 10)

    def w_init(k, shape, fan_in):
        return jax.random.normal(k, shape, jnp.float32) * (1.0 / jnp.sqrt(fan_in))

    return {
        "c1_w": w_init(ks[0], (8, 8, cin, 32), 8 * 8 * cin),
        "c1_b": w_init(ks[1], (32,), 8 * 8 * cin),
        "c2_w": w_init(ks[2], (4, 4, 32, 64), 4 * 4 * 32),
        "c2_b": w_init(ks[3], (64,), 4 * 4 * 32),
        "c3_w": w_init(ks[4], (3, 3, 64, 64), 3 * 3 * 64),
        "c3_b": w_init(ks[5], (64,), 3 * 3 * 64),
        "fc1_w": w_init(ks[6], (flat_dim, 512), flat_dim),
        "fc1_b": w_init(ks[7], (512,), flat_dim),
        "fc2_w": w_init(ks[8], (512, 512), 512),
        "fc2_b": w_init(ks[9], (512,), 512),
    }


def pack_rnd_params(pred, targ):
    """Stack predictor/target on a leading axis of 2, reshape to GEMM layouts,
    cast weights to bf16 (biases stay f32).  Done once, outside the hot path."""
    bf16, f32 = jnp.bfloat16, jnp.float32

    def stk(f):
        return jnp.stack([f(pred), f(targ)], axis=0)

    return {
        "w1":  stk(lambda p: p["c1_w"].reshape(-1, 32).astype(bf16)),       # (2,192,32)
        "b1":  stk(lambda p: p["c1_b"].reshape(1, -1).astype(f32)),         # (2,1,32)
        "w2":  stk(lambda p: p["c2_w"].reshape(16, 32, 64).astype(bf16)),   # (2,16,32,64)
        "b2":  stk(lambda p: p["c2_b"].reshape(1, -1).astype(f32)),
        "w3":  stk(lambda p: p["c3_w"].reshape(9, 64, 64).astype(bf16)),    # (2,9,64,64)
        "b3":  stk(lambda p: p["c3_b"].reshape(1, -1).astype(f32)),
        "fw1": stk(lambda p: p["fc1_w"].astype(bf16)),                      # (2,64,512)
        "fb1": stk(lambda p: p["fc1_b"].reshape(1, -1).astype(f32)),
        "fw2": stk(lambda p: p["fc2_w"].astype(bf16)),                      # (2,512,512)
        "fb2": stk(lambda p: p["fc2_b"].reshape(1, -1).astype(f32)),
    }


# --------------------------- plain-JAX f32 reference ---------------------------
@jax.jit
def _reference_net(params, x_nchw):
    x = jnp.transpose(x_nchw, (0, 2, 3, 1)).astype(jnp.float32)

    def conv(h, w, b, s):
        y = jax.lax.conv_general_dilated(
            h, w, (s, s), "VALID",
            dimension_numbers=("NHWC", "HWIO", "NHWC"),
            precision=jax.lax.Precision.HIGHEST)
        return jax.nn.relu(y + b)

    h = conv(x, params["c1_w"], params["c1_b"], 4)
    h = conv(h, params["c2_w"], params["c2_b"], 2)
    h = conv(h, params["c3_w"], params["c3_b"], 1)
    h = jnp.transpose(h, (0, 3, 1, 2)).reshape(h.shape[0], -1)   # nn.Flatten on NCHW
    h = jax.nn.relu(jnp.matmul(h, params["fc1_w"],
                               precision=jax.lax.Precision.HIGHEST) + params["fc1_b"])
    return jnp.matmul(h, params["fc2_w"],
                      precision=jax.lax.Precision.HIGHEST) + params["fc2_b"]


# ------------------------------------ main -------------------------------------
if __name__ == "__main__":
    input_shape = (3, 36, 36)      # (C, H, W); conv stack -> 1x1x64 -> flat 64
    batch = 2

    key = jax.random.PRNGKey(0)
    k_pred, k_targ, k_x = jax.random.split(key, 3)
    predictor_params = init_net_params(k_pred, input_shape)
    target_params = init_net_params(k_targ, input_shape)
    packed = pack_rnd_params(predictor_params, target_params)

    x = jax.random.normal(k_x, (batch,) + input_shape, jnp.float32)

    pred_out, targ_out = rnd_model_forward(packed, x)
    pred_out = jax.block_until_ready(pred_out)
    targ_out = jax.block_until_ready(targ_out)

    assert pred_out.shape == (batch, 512) and targ_out.shape == (batch, 512)
    assert pred_out.dtype == jnp.float32 and targ_out.dtype == jnp.float32

    # Correctness check vs f32 reference (bf16 MXU inputs -> loose tolerance).
    pred_ref = _reference_net(predictor_params, x)
    targ_ref = _reference_net(target_params, x)
    err = max(float(jnp.max(jnp.abs(pred_out - pred_ref))),
              float(jnp.max(jnp.abs(targ_out - targ_ref))))
    assert err < 0.1, f"max abs error vs reference: {err}"

    print("KERNEL_OK")
</pallas_src>

<mosaic_0001>
module attributes {stable_mosaic.version = 11 : i64} {
  func.func @_rnd_fused_kernel(%arg0: i32, %arg1: memref<1x1152x192xbf16, #tpu.memory_space<vmem>>, %arg2: memref<2x192x32xbf16, #tpu.memory_space<vmem>>, %arg3: memref<2x1x32xf32, #tpu.memory_space<vmem>>, %arg4: memref<2x16x32x64xbf16, #tpu.memory_space<vmem>>, %arg5: memref<2x1x64xf32, #tpu.memory_space<vmem>>, %arg6: memref<2x9x64x64xbf16, #tpu.memory_space<vmem>>, %arg7: memref<2x1x64xf32, #tpu.memory_space<vmem>>, %arg8: memref<2x64x512xbf16, #tpu.memory_space<vmem>>, %arg9: memref<2x1x512xf32, #tpu.memory_space<vmem>>, %arg10: memref<2x512x512xbf16, #tpu.memory_space<vmem>>, %arg11: memref<2x1x512xf32, #tpu.memory_space<vmem>>, %arg12: memref<2x8x512xf32, #tpu.memory_space<vmem>>) attributes {dimension_semantics = [#tpu.dimension_semantics<parallel>], iteration_bounds = array<i64: 1>, scalar_prefetch = 0 : i64, scratch_operands = 0 : i64, tpu.core_type = #tpu.core_type<tc>, window_params = [{transform_indices = @transform_0, window_bounds = array<i64: 1, 1152, 192>}, {pipeline_mode = #tpu.pipeline_mode<synchronous>, transform_indices = @transform_1, window_bounds = array<i64: 2, 192, 32>}, {pipeline_mode = #tpu.pipeline_mode<synchronous>, transform_indices = @transform_2, window_bounds = array<i64: 2, 1, 32>}, {pipeline_mode = #tpu.pipeline_mode<synchronous>, transform_indices = @transform_3, window_bounds = array<i64: 2, 16, 32, 64>}, {pipeline_mode = #tpu.pipeline_mode<synchronous>, transform_indices = @transform_4, window_bounds = array<i64: 2, 1, 64>}, {pipeline_mode = #tpu.pipeline_mode<synchronous>, transform_indices = @transform_5, window_bounds = array<i64: 2, 9, 64, 64>}, {pipeline_mode = #tpu.pipeline_mode<synchronous>, transform_indices = @transform_6, window_bounds = array<i64: 2, 1, 64>}, {pipeline_mode = #tpu.pipeline_mode<synchronous>, transform_indices = @transform_7, window_bounds = array<i64: 2, 64, 512>}, {pipeline_mode = #tpu.pipeline_mode<synchronous>, transform_indices = @transform_8, window_bounds = array<i64: 2, 1, 512>}, {pipeline_mode = #tpu.pipeline_mode<synchronous>, transform_indices = @transform_9, window_bounds = array<i64: 2, 512, 512>}, {pipeline_mode = #tpu.pipeline_mode<synchronous>, transform_indices = @transform_10, window_bounds = array<i64: 2, 1, 512>}, {transform_indices = @transform_11, window_bounds = array<i64: 2, 8, 512>}]} {
    %c0 = arith.constant 0 : index
    %c0_0 = arith.constant 0 : index
    %c0_1 = arith.constant 0 : index
    %0 = vector.load %arg1[%c0, %c0_0, %c0_1] : memref<1x1152x192xbf16, #tpu.memory_space<vmem>>, vector<1x1152x192xbf16>
    %1 = vector.shape_cast %0 : vector<1x1152x192xbf16> to vector<1152x192xbf16>
    %c0_2 = arith.constant 0 : index
    %c0_3 = arith.constant 0 : index
    %c0_4 = arith.constant 0 : index
    %2 = vector.load %arg2[%c0_2, %c0_3, %c0_4] : memref<2x192x32xbf16, #tpu.memory_space<vmem>>, vector<1x192x32xbf16>
    %3 = vector.shape_cast %2 : vector<1x192x32xbf16> to vector<192x32xbf16>
    %cst = arith.constant dense<0.000000e+00> : vector<1152x32xf32>
    %4 = tpu.matmul %1, %3, %cst {dimension_numbers = #tpu.dot_dimension_numbers<[1], [0], [0], [1], [0, 0, 1, 1], [], []>} : vector<1152x192xbf16>, vector<192x32xbf16>, vector<1152x32xf32> -> vector<1152x32xf32>
    %c0_5 = arith.constant 0 : index
    %c0_6 = arith.constant 0 : index
    %c0_7 = arith.constant 0 : index
    %5 = vector.load %arg3[%c0_5, %c0_6, %c0_7] : memref<2x1x32xf32, #tpu.memory_space<vmem>>, vector<1x1x32xf32>
    %6 = vector.shape_cast %5 : vector<1x1x32xf32> to vector<1x32xf32>
    %7 = vector.broadcast %6 : vector<1x32xf32> to vector<1152x32xf32>
    %8 = arith.addf %4, %7 : vector<1152x32xf32>
    %cst_8 = arith.constant 0.000000e+00 : f32
    %9 = vector.broadcast %cst_8 : f32 to vector<1152x32xf32>
    %10 = arith.maximumf %8, %9 : vector<1152x32xf32>
    %cst_9 = arith.constant 0.000000e+00 : f32
    %11 = vector.broadcast %cst_9 : f32 to vector<72x64xf32>
    %12 = vector.extract_strided_slice %10 {offsets = [0, 0], sizes = [72, 32], strides = [1, 1]} : vector<1152x32xf32> to vector<72x32xf32>
    %13 = arith.truncf %12 : vector<72x32xf32> to vector<72x32xbf16>
    %c0_10 = arith.constant 0 : index
    %c0_11 = arith.constant 0 : index
    %c0_12 = arith.constant 0 : index
    %c0_13 = arith.constant 0 : index
    %14 = vector.load %arg4[%c0_10, %c0_11, %c0_12, %c0_13] : memref<2x16x32x64xbf16, #tpu.memory_space<vmem>>, vector<1x1x32x64xbf16>
    %15 = vector.shape_cast %14 : vector<1x1x32x64xbf16> to vector<32x64xbf16>
    %cst_14 = arith.constant dense<0.000000e+00> : vector<72x64xf32>
    %16 = tpu.matmul %13, %15, %cst_14 {dimension_numbers = #tpu.dot_dimension_numbers<[1], [0], [0], [1], [0, 0, 1, 1], [], []>} : vector<72x32xbf16>, vector<32x64xbf16>, vector<72x64xf32> -> vector<72x64xf32>
    %17 = arith.addf %11, %16 : vector<72x64xf32>
    %18 = vector.extract_strided_slice %10 {offsets = [72, 0], sizes = [72, 32], strides = [1, 1]} : vector<1152x32xf32> to vector<72x32xf32>
    %19 = arith.truncf %18 : vector<72x32xf32> to vector<72x32xbf16>
    %c0_15 = arith.constant 0 : index
    %c1 = arith.constant 1 : index
    %c0_16 = arith.constant 0 : index
    %c0_17 = arith.constant 0 : index
    %20 = vector.load %arg4[%c0_15, %c1, %c0_16, %c0_17] : memref<2x16x32x64xbf16, #tpu.memory_space<vmem>>, vector<1x1x32x64xbf16>
    %21 = vector.shape_cast %20 : vector<1x1x32x64xbf16> to vector<32x64xbf16>
    %cst_18 = arith.constant dense<0.000000e+00> : vector<72x64xf32>
    %22 = tpu.matmul %19, %21, %cst_18 {dimension_numbers = #tpu.dot_dimension_numbers<[1], [0], [0], [1], [0, 0, 1, 1], [], []>} : vector<72x32xbf16>, vector<32x64xbf16>, vector<72x64xf32> -> vector<72x64xf32>
    %23 = arith.addf %17, %22 : vector<72x64xf32>
    %24 = vector.extract_strided_slice %10 {offsets = [144, 0], sizes = [72, 32], strides = [1, 1]} : vector<1152x32xf32> to vector<72x32xf32>
    %25 = arith.truncf %24 : vector<72x32xf32> to vector<72x32xbf16>
    %c0_19 = arith.constant 0 : index
    %c2 = arith.constant 2 : index
    %c0_20 = arith.constant 0 : index
    %c0_21 = arith.constant 0 : index
    %26 = vector.load %arg4[%c0_19, %c2, %c0_20, %c0_21] : memref<2x16x32x64xbf16, #tpu.memory_space<vmem>>, vector<1x1x32x64xbf16>
    %27 = vector.shape_cast %26 : vector<1x1x32x64xbf16> to vector<32x64xbf16>
    %cst_22 = arith.constant dense<0.000000e+00> : vector<72x64xf32>
    %28 = tpu.matmul %25, %27, %cst_22 {dimension_numbers = #tpu.dot_dimension_numbers<[1], [0], [0], [1], [0, 0, 1, 1], [], []>} : vector<72x32xbf16>, vector<32x64xbf16>, vector<72x64xf32> -> vector<72x64xf32>
    %29 = arith.addf %23, %28 : vector<72x64xf32>
    %30 = vector.extract_strided_slice %10 {offsets = [216, 0], sizes = [72, 32], strides = [1, 1]} : vector<1152x32xf32> to vector<72x32xf32>
    %31 = arith.truncf %30 : vector<72x32xf32> to vector<72x32xbf16>
    %c0_23 = arith.constant 0 : index
    %c3 = arith.constant 3 : index
    %c0_24 = arith.constant 0 : index
    %c0_25 = arith.constant 0 : index
    %32 = vector.load %arg4[%c0_23, %c3, %c0_24, %c0_25] : memref<2x16x32x64xbf16, #tpu.memory_space<vmem>>, vector<1x1x32x64xbf16>
    %33 = vector.shape_cast %32 : vector<1x1x32x64xbf16> to vector<32x64xbf16>
    %cst_26 = arith.constant dense<0.000000e+00> : vector<72x64xf32>
    %34 = tpu.matmul %31, %33, %cst_26 {dimension_numbers = #tpu.dot_dimension_numbers<[1], [0], [0], [1], [0, 0, 1, 1], [], []>} : vector<72x32xbf16>, vector<32x64xbf16>, vector<72x64xf32> -> vector<72x64xf32>
    %35 = arith.addf %29, %34 : vector<72x64xf32>
    %36 = vector.extract_strided_slice %10 {offsets = [288, 0], sizes = [72, 32], strides = [1, 1]} : vector<1152x32xf32> to vector<72x32xf32>
    %37 = arith.truncf %36 : vector<72x32xf32> to vector<72x32xbf16>
    %c0_27 = arith.constant 0 : index
    %c4 = arith.constant 4 : index
    %c0_28 = arith.constant 0 : index
    %c0_29 = arith.constant 0 : index
    %38 = vector.load %arg4[%c0_27, %c4, %c0_28, %c0_29] : memref<2x16x32x64xbf16, #tpu.memory_space<vmem>>, vector<1x1x32x64xbf16>
    %39 = vector.shape_cast %38 : vector<1x1x32x64xbf16> to vector<32x64xbf16>
    %cst_30 = arith.constant dense<0.000000e+00> : vector<72x64xf32>
    %40 = tpu.matmul %37, %39, %cst_30 {dimension_numbers = #tpu.dot_dimension_numbers<[1], [0], [0], [1], [0, 0, 1, 1], [], []>} : vector<72x32xbf16>, vector<32x64xbf16>, vector<72x64xf32> -> vector<72x64xf32>
    %41 = arith.addf %35, %40 : vector<72x64xf32>
    %42 = vector.extract_strided_slice %10 {offsets = [360, 0], sizes = [72, 32], strides = [1, 1]} : vector<1152x32xf32> to vector<72x32xf32>
    %43 = arith.truncf %42 : vector<72x32xf32> to vector<72x32xbf16>
    %c0_31 = arith.constant 0 : index
    %c5 = arith.constant 5 : index
    %c0_32 = arith.constant 0 : index
    %c0_33 = arith.constant 0 : index
    %44 = vector.load %arg4[%c0_31, %c5, %c0_32, %c0_33] : memref<2x16x32x64xbf16, #tpu.memory_space<vmem>>, vector<1x1x32x64xbf16>
    %45 = vector.shape_cast %44 : vector<1x1x32x64xbf16> to vector<32x64xbf16>
    %cst_34 = arith.constant dense<0.000000e+00> : vector<72x64xf32>
    %46 = tpu.matmul %43, %45, %cst_34 {dimension_numbers = #tpu.dot_dimension_numbers<[1], [0], [0], [1], [0, 0, 1, 1], [], []>} : vector<72x32xbf16>, vector<32x64xbf16>, vector<72x64xf32> -> vector<72x64xf32>
    %47 = arith.addf %41, %46 : vector<72x64xf32>
    %48 = vector.extract_strided_slice %10 {offsets = [432, 0], sizes = [72, 32], strides = [1, 1]} : vector<1152x32xf32> to vector<72x32xf32>
    %49 = arith.truncf %48 : vector<72x32xf32> to vector<72x32xbf16>
    %c0_35 = arith.constant 0 : index
    %c6 = arith.constant 6 : index
    %c0_36 = arith.constant 0 : index
    %c0_37 = arith.constant 0 : index
    %50 = vector.load %arg4[%c0_35, %c6, %c0_36, %c0_37] : memref<2x16x32x64xbf16, #tpu.memory_space<vmem>>, vector<1x1x32x64xbf16>
    %51 = vector.shape_cast %50 : vector<1x1x32x64xbf16> to vector<32x64xbf16>
    %cst_38 = arith.constant dense<0.000000e+00> : vector<72x64xf32>
    %52 = tpu.matmul %49, %51, %cst_38 {dimension_numbers = #tpu.dot_dimension_numbers<[1], [0], [0], [1], [0, 0, 1, 1], [], []>} : vector<72x32xbf16>, vector<32x64xbf16>, vector<72x64xf32> -> vector<72x64xf32>
    %53 = arith.addf %47, %52 : vector<72x64xf32>
    %54 = vector.extract_strided_slice %10 {offsets = [504, 0], sizes = [72, 32], strides = [1, 1]} : vector<1152x32xf32> to vector<72x32xf32>
    %55 = arith.truncf %54 : vector<72x32xf32> to vector<72x32xbf16>
    %c0_39 = arith.constant 0 : index
    %c7 = arith.constant 7 : index
    %c0_40 = arith.constant 0 : index
    %c0_41 = arith.constant 0 : index
    %56 = vector.load %arg4[%c0_39, %c7, %c0_40, %c0_41] : memref<2x16x32x64xbf16, #tpu.memory_space<vmem>>, vector<1x1x32x64xbf16>
    %57 = vector.shape_cast %56 : vector<1x1x32x64xbf16> to vector<32x64xbf16>
    %cst_42 = arith.constant dense<0.000000e+00> : vector<72x64xf32>
    %58 = tpu.matmul %55, %57, %cst_42 {dimension_numbers = #tpu.dot_dimension_numbers<[1], [0], [0], [1], [0, 0, 1, 1], [], []>} : vector<72x32xbf16>, vector<32x64xbf16>, vector<72x64xf32> -> vector<72x64xf32>
    %59 = arith.addf %53, %58 : vector<72x64xf32>
    %60 = vector.extract_strided_slice %10 {offsets = [576, 0], sizes = [72, 32], strides = [1, 1]} : vector<1152x32xf32> to vector<72x32xf32>
    %61 = arith.truncf %60 : vector<72x32xf32> to vector<72x32xbf16>
    %c0_43 = arith.constant 0 : index
    %c8 = arith.constant 8 : index
    %c0_44 = arith.constant 0 : index
    %c0_45 = arith.constant 0 : index
    %62 = vector.load %arg4[%c0_43, %c8, %c0_44, %c0_45] : memref<2x16x32x64xbf16, #tpu.memory_space<vmem>>, vector<1x1x32x64xbf16>
    %63 = vector.shape_cast %62 : vector<1x1x32x64xbf16> to vector<32x64xbf16>
    %cst_46 = arith.constant dense<0.000000e+00> : vector<72x64xf32>
    %64 = tpu.matmul %61, %63, %cst_46 {dimension_numbers = #tpu.dot_dimension_numbers<[1], [0], [0], [1], [0, 0, 1, 1], [], []>} : vector<72x32xbf16>, vector<32x64xbf16>, vector<72x64xf32> -> vector<72x64xf32>
    %65 = arith.addf %59, %64 : vector<72x64xf32>
    %66 = vector.extract_strided_slice %10 {offsets = [648, 0], sizes = [72, 32], strides = [1, 1]} : vector<1152x32xf32> to vector<72x32xf32>
    %67 = arith.truncf %66 : vector<72x32xf32> to vector<72x32xbf16>
    %c0_47 = arith.constant 0 : index
    %c9 = arith.constant 9 : index
    %c0_48 = arith.constant 0 : index
    %c0_49 = arith.constant 0 : index
    %68 = vector.load %arg4[%c0_47, %c9, %c0_48, %c0_49] : memref<2x16x32x64xbf16, #tpu.memory_space<vmem>>, vector<1x1x32x64xbf16>
    %69 = vector.shape_cast %68 : vector<1x1x32x64xbf16> to vector<32x64xbf16>
    %cst_50 = arith.constant dense<0.000000e+00> : vector<72x64xf32>
    %70 = tpu.matmul %67, %69, %cst_50 {dimension_numbers = #tpu.dot_dimension_numbers<[1], [0], [0], [1], [0, 0, 1, 1], [], []>} : vector<72x32xbf16>, vector<32x64xbf16>, vector<72x64xf32> -> vector<72x64xf32>
    %71 = arith.addf %65, %70 : vector<72x64xf32>
    %72 = vector.extract_strided_slice %10 {offsets = [720, 0], sizes = [72, 32], strides = [1, 1]} : vector<1152x32xf32> to vector<72x32xf32>
    %73 = arith.truncf %72 : vector<72x32xf32> to vector<72x32xbf16>
    %c0_51 = arith.constant 0 : index
    %c10 = arith.constant 10 : index
    %c0_52 = arith.constant 0 : index
    %c0_53 = arith.constant 0 : index
    %74 = vector.load %arg4[%c0_51, %c10, %c0_52, %c0_53] : memref<2x16x32x64xbf16, #tpu.memory_space<vmem>>, vector<1x1x32x64xbf16>
    %75 = vector.shape_cast %74 : vector<1x1x32x64xbf16> to vector<32x64xbf16>
    %cst_54 = arith.constant dense<0.000000e+00> : vector<72x64xf32>
    %76 = tpu.matmul %73, %75, %cst_54 {dimension_numbers = #tpu.dot_dimension_numbers<[1], [0], [0], [1], [0, 0, 1, 1], [], []>} : vector<72x32xbf16>, vector<32x64xbf16>, vector<72x64xf32> -> vector<72x64xf32>
    %77 = arith.addf %71, %76 : vector<72x64xf32>
    %78 = vector.extract_strided_slice %10 {offsets = [792, 0], sizes = [72, 32], strides = [1, 1]} : vector<1152x32xf32> to vector<72x32xf32>
    %79 = arith.truncf %78 : vector<72x32xf32> to vector<72x32xbf16>
    %c0_55 = arith.constant 0 : index
    %c11 = arith.constant 11 : index
    %c0_56 = arith.constant 0 : index
    %c0_57 = arith.constant 0 : index
    %80 = vector.load %arg4[%c0_55, %c11, %c0_56, %c0_57] : memref<2x16x32x64xbf16, #tpu.memory_space<vmem>>, vector<1x1x32x64xbf16>
    %81 = vector.shape_cast %80 : vector<1x1x32x64xbf16> to vector<32x64xbf16>
    %cst_58 = arith.constant dense<0.000000e+00> : vector<72x64xf32>
    %82 = tpu.matmul %79, %81, %cst_58 {dimension_numbers = #tpu.dot_dimension_numbers<[1], [0], [0], [1], [0, 0, 1, 1], [], []>} : vector<72x32xbf16>, vector<32x64xbf16>, vector<72x64xf32> -> vector<72x64xf32>
    %83 = arith.addf %77, %82 : vector<72x64xf32>
    %84 = vector.extract_strided_slice %10 {offsets = [864, 0], sizes = [72, 32], strides = [1, 1]} : vector<1152x32xf32> to vector<72x32xf32>
    %85 = arith.truncf %84 : vector<72x32xf32> to vector<72x32xbf16>
    %c0_59 = arith.constant 0 : index
    %c12 = arith.constant 12 : index
    %c0_60 = arith.constant 0 : index
    %c0_61 = arith.constant 0 : index
    %86 = vector.load %arg4[%c0_59, %c12, %c0_60, %c0_61] : memref<2x16x32x64xbf16, #tpu.memory_space<vmem>>, vector<1x1x32x64xbf16>
    %87 = vector.shape_cast %86 : vector<1x1x32x64xbf16> to vector<32x64xbf16>
    %cst_62 = arith.constant dense<0.000000e+00> : vector<72x64xf32>
    %88 = tpu.matmul %85, %87, %cst_62 {dimension_numbers = #tpu.dot_dimension_numbers<[1], [0], [0], [1], [0, 0, 1, 1], [], []>} : vector<72x32xbf16>, vector<32x64xbf16>, vector<72x64xf32> -> vector<72x64xf32>
    %89 = arith.addf %83, %88 : vector<72x64xf32>
    %90 = vector.extract_strided_slice %10 {offsets = [936, 0], sizes = [72, 32], strides = [1, 1]} : vector<1152x32xf32> to vector<72x32xf32>
    %91 = arith.truncf %90 : vector<72x32xf32> to vector<72x32xbf16>
    %c0_63 = arith.constant 0 : index
    %c13 = arith.constant 13 : index
    %c0_64 = arith.constant 0 : index
    %c0_65 = arith.constant 0 : index
    %92 = vector.load %arg4[%c0_63, %c13, %c0_64, %c0_65] : memref<2x16x32x64xbf16, #tpu.memory_space<vmem>>, vector<1x1x32x64xbf16>
    %93 = vector.shape_cast %92 : vector<1x1x32x64xbf16> to vector<32x64xbf16>
    %cst_66 = arith.constant dense<0.000000e+00> : vector<72x64xf32>
    %94 = tpu.matmul %91, %93, %cst_66 {dimension_numbers = #tpu.dot_dimension_numbers<[1], [0], [0], [1], [0, 0, 1, 1], [], []>} : vector<72x32xbf16>, vector<32x64xbf16>, vector<72x64xf32> -> vector<72x64xf32>
    %95 = arith.addf %89, %94 : vector<72x64xf32>
    %96 = vector.extract_strided_slice %10 {offsets = [1008, 0], sizes = [72, 32], strides = [1, 1]} : vector<1152x32xf32> to vector<72x32xf32>
    %97 = arith.truncf %96 : vector<72x32xf32> to vector<72x32xbf16>
    %c0_67 = arith.constant 0 : index
    %c14 = arith.constant 14 : index
    %c0_68 = arith.constant 0 : index
    %c0_69 = arith.constant 0 : index
    %98 = vector.load %arg4[%c0_67, %c14, %c0_68, %c0_69] : memref<2x16x32x64xbf16, #tpu.memory_space<vmem>>, vector<1x1x32x64xbf16>
    %99 = vector.shape_cast %98 : vector<1x1x32x64xbf16> to vector<32x64xbf16>
    %cst_70 = arith.constant dense<0.000000e+00> : vector<72x64xf32>
    %100 = tpu.matmul %97, %99, %cst_70 {dimension_numbers = #tpu.dot_dimension_numbers<[1], [0], [0], [1], [0, 0, 1, 1], [], []>} : vector<72x32xbf16>, vector<32x64xbf16>, vector<72x64xf32> -> vector<72x64xf32>
    %101 = arith.addf %95, %100 : vector<72x64xf32>
    %102 = vector.extract_strided_slice %10 {offsets = [1080, 0], sizes = [72, 32], strides = [1, 1]} : vector<1152x32xf32> to vector<72x32xf32>
    %103 = arith.truncf %102 : vector<72x32xf32> to vector<72x32xbf16>
    %c0_71 = arith.constant 0 : index
    %c15 = arith.constant 15 : index
    %c0_72 = arith.constant 0 : index
    %c0_73 = arith.constant 0 : index
    %104 = vector.load %arg4[%c0_71, %c15, %c0_72, %c0_73] : memref<2x16x32x64xbf16, #tpu.memory_space<vmem>>, vector<1x1x32x64xbf16>
    %105 = vector.shape_cast %104 : vector<1x1x32x64xbf16> to vector<32x64xbf16>
    %cst_74 = arith.constant dense<0.000000e+00> : vector<72x64xf32>
    %106 = tpu.matmul %103, %105, %cst_74 {dimension_numbers = #tpu.dot_dimension_numbers<[1], [0], [0], [1], [0, 0, 1, 1], [], []>} : vector<72x32xbf16>, vector<32x64xbf16>, vector<72x64xf32> -> vector<72x64xf32>
    %107 = arith.addf %101, %106 : vector<72x64xf32>
    %c0_75 = arith.constant 0 : index
    %c0_76 = arith.constant 0 : index
    %c0_77 = arith.constant 0 : index
    %108 = vector.load %arg5[%c0_75, %c0_76, %c0_77] : memref<2x1x64xf32, #tpu.memory_space<vmem>>, vector<1x1x64xf32>
    %109 = vector.shape_cast %108 : vector<1x1x64xf32> to vector<1x64xf32>
    %110 = vector.broadcast %109 : vector<1x64xf32> to vector<72x64xf32>
    %111 = arith.addf %107, %110 : vector<72x64xf32>
    %cst_78 = arith.constant 0.000000e+00 : f32
    %112 = vector.broadcast %cst_78 : f32 to vector<72x64xf32>
    %113 = arith.maximumf %111, %112 : vector<72x64xf32>
    %cst_79 = arith.constant 0.000000e+00 : f32
    %114 = vector.broadcast %cst_79 : f32 to vector<8x64xf32>
    %115 = vector.extract_strided_slice %113 {offsets = [0, 0], sizes = [8, 64], strides = [1, 1]} : vector<72x64xf32> to vector<8x64xf32>
    %116 = arith.truncf %115 : vector<8x64xf32> to vector<8x64xbf16>
    %c0_80 = arith.constant 0 : index
    %c0_81 = arith.constant 0 : index
    %c0_82 = arith.constant 0 : index
    %c0_83 = arith.constant 0 : index
    %117 = vector.load %arg6[%c0_80, %c0_81, %c0_82, %c0_83] : memref<2x9x64x64xbf16, #tpu.memory_space<vmem>>, vector<1x1x64x64xbf16>
    %118 = vector.shape_cast %117 : vector<1x1x64x64xbf16> to vector<64x64xbf16>
    %cst_84 = arith.constant dense<0.000000e+00> : vector<8x64xf32>
    %119 = tpu.matmul %116, %118, %cst_84 {dimension_numbers = #tpu.dot_dimension_numbers<[1], [0], [0], [1], [0, 0, 1, 1], [], []>} : vector<8x64xbf16>, vector<64x64xbf16>, vector<8x64xf32> -> vector<8x64xf32>
    %120 = arith.addf %114, %119 : vector<8x64xf32>
    %121 = vector.extract_strided_slice %113 {offsets = [8, 0], sizes = [8, 64], strides = [1, 1]} : vector<72x64xf32> to vector<8x64xf32>
    %122 = arith.truncf %121 : vector<8x64xf32> to vector<8x64xbf16>
    %c0_85 = arith.constant 0 : index
    %c1_86 = arith.constant 1 : index
    %c0_87 = arith.constant 0 : index
    %c0_88 = arith.constant 0 : index
    %123 = vector.load %arg6[%c0_85, %c1_86, %c0_87, %c0_88] : memref<2x9x64x64xbf16, #tpu.memory_space<vmem>>, vector<1x1x64x64xbf16>
    %124 = vector.shape_cast %123 : vector<1x1x64x64xbf16> to vector<64x64xbf16>
    %cst_89 = arith.constant dense<0.000000e+00> : vector<8x64xf32>
    %125 = tpu.matmul %122, %124, %cst_89 {dimension_numbers = #tpu.dot_dimension_numbers<[1], [0], [0], [1], [0, 0, 1, 1], [], []>} : vector<8x64xbf16>, vector<64x64xbf16>, vector<8x64xf32> -> vector<8x64xf32>
    %126 = arith.addf %120, %125 : vector<8x64xf32>
    %127 = vector.extract_strided_slice %113 {offsets = [16, 0], sizes = [8, 64], strides = [1, 1]} : vector<72x64xf32> to vector<8x64xf32>
    %128 = arith.truncf %127 : vector<8x64xf32> to vector<8x64xbf16>
    %c0_90 = arith.constant 0 : index
    %c2_91 = arith.constant 2 : index
    %c0_92 = arith.constant 0 : index
    %c0_93 = arith.constant 0 : index
    %129 = vector.load %arg6[%c0_90, %c2_91, %c0_92, %c0_93] : memref<2x9x64x64xbf16, #tpu.memory_space<vmem>>, vector<1x1x64x64xbf16>
    %130 = vector.shape_cast %129 : vector<1x1x64x64xbf16> to vector<64x64xbf16>
    %cst_94 = arith.constant dense<0.000000e+00> : vector<8x64xf32>
    %131 = tpu.matmul %128, %130, %cst_94 {dimension_numbers = #tpu.dot_dimension_numbers<[1], [0], [0], [1], [0, 0, 1, 1], [], []>} : vector<8x64xbf16>, vector<64x64xbf16>, vector<8x64xf32> -> vector<8x64xf32>
    %132 = arith.addf %126, %131 : vector<8x64xf32>
    %133 = vector.extract_strided_slice %113 {offsets = [24, 0], sizes = [8, 64], strides = [1, 1]} : vector<72x64xf32> to vector<8x64xf32>
    %134 = arith.truncf %133 : vector<8x64xf32> to vector<8x64xbf16>
    %c0_95 = arith.constant 0 : index
    %c3_96 = arith.constant 3 : index
    %c0_97 = arith.constant 0 : index
    %c0_98 = arith.constant 0 : index
    %135 = vector.load %arg6[%c0_95, %c3_96, %c0_97, %c0_98] : memref<2x9x64x64xbf16, #tpu.memory_space<vmem>>, vector<1x1x64x64xbf16>
    %136 = vector.shape_cast %135 : vector<1x1x64x64xbf16> to vector<64x64xbf16>
    %cst_99 = arith.constant dense<0.000000e+00> : vector<8x64xf32>
    %137 = tpu.matmul %134, %136, %cst_99 {dimension_numbers = #tpu.dot_dimension_numbers<[1], [0], [0], [1], [0, 0, 1, 1], [], []>} : vector<8x64xbf16>, vector<64x64xbf16>, vector<8x64xf32> -> vector<8x64xf32>
    %138 = arith.addf %132, %137 : vector<8x64xf32>
    %139 = vector.extract_strided_slice %113 {offsets = [32, 0], sizes = [8, 64], strides = [1, 1]} : vector<72x64xf32> to vector<8x64xf32>
    %140 = arith.truncf %139 : vector<8x64xf32> to vector<8x64xbf16>
    %c0_100 = arith.constant 0 : index
    %c4_101 = arith.constant 4 : index
    %c0_102 = arith.constant 0 : index
    %c0_103 = arith.constant 0 : index
    %141 = vector.load %arg6[%c0_100, %c4_101, %c0_102, %c0_103] : memref<2x9x64x64xbf16, #tpu.memory_space<vmem>>, vector<1x1x64x64xbf16>
    %142 = vector.shape_cast %141 : vector<1x1x64x64xbf16> to vector<64x64xbf16>
    %cst_104 = arith.constant dense<0.000000e+00> : vector<8x64xf32>
    %143 = tpu.matmul %140, %142, %cst_104 {dimension_numbers = #tpu.dot_dimension_numbers<[1], [0], [0], [1], [0, 0, 1, 1], [], []>} : vector<8x64xbf16>, vector<64x64xbf16>, vector<8x64xf32> -> vector<8x64xf32>
    %144 = arith.addf %138, %143 : vector<8x64xf32>
    %145 = vector.extract_strided_slice %113 {offsets = [40, 0], sizes = [8, 64], strides = [1, 1]} : vector<72x64xf32> to vector<8x64xf32>
    %146 = arith.truncf %145 : vector<8x64xf32> to vector<8x64xbf16>
    %c0_105 = arith.constant 0 : index
    %c5_106 = arith.constant 5 : index
    %c0_107 = arith.constant 0 : index
    %c0_108 = arith.constant 0 : index
    %147 = vector.load %arg6[%c0_105, %c5_106, %c0_107, %c0_108] : memref<2x9x64x64xbf16, #tpu.memory_space<vmem>>, vector<1x1x64x64xbf16>
    %148 = vector.shape_cast %147 : vector<1x1x64x64xbf16> to vector<64x64xbf16>
    %cst_109 = arith.constant dense<0.000000e+00> : vector<8x64xf32>
    %149 = tpu.matmul %146, %148, %cst_109 {dimension_numbers = #tpu.dot_dimension_numbers<[1], [0], [0], [1], [0, 0, 1, 1], [], []>} : vector<8x64xbf16>, vector<64x64xbf16>, vector<8x64xf32> -> vector<8x64xf32>
    %150 = arith.addf %144, %149 : vector<8x64xf32>
    %151 = vector.extract_strided_slice %113 {offsets = [48, 0], sizes = [8, 64], strides = [1, 1]} : vector<72x64xf32> to vector<8x64xf32>
    %152 = arith.truncf %151 : vector<8x64xf32> to vector<8x64xbf16>
    %c0_110 = arith.constant 0 : index
    %c6_111 = arith.constant 6 : index
    %c0_112 = arith.constant 0 : index
    %c0_113 = arith.constant 0 : index
    %153 = vector.load %arg6[%c0_110, %c6_111, %c0_112, %c0_113] : memref<2x9x64x64xbf16, #tpu.memory_space<vmem>>, vector<1x1x64x64xbf16>
    %154 = vector.shape_cast %153 : vector<1x1x64x64xbf16> to vector<64x64xbf16>
    %cst_114 = arith.constant dense<0.000000e+00> : vector<8x64xf32>
    %155 = tpu.matmul %152, %154, %cst_114 {dimension_numbers = #tpu.dot_dimension_numbers<[1], [0], [0], [1], [0, 0, 1, 1], [], []>} : vector<8x64xbf16>, vector<64x64xbf16>, vector<8x64xf32> -> vector<8x64xf32>
    %156 = arith.addf %150, %155 : vector<8x64xf32>
    %157 = vector.extract_strided_slice %113 {offsets = [56, 0], sizes = [8, 64], strides = [1, 1]} : vector<72x64xf32> to vector<8x64xf32>
    %158 = arith.truncf %157 : vector<8x64xf32> to vector<8x64xbf16>
    %c0_115 = arith.constant 0 : index
    %c7_116 = arith.constant 7 : index
    %c0_117 = arith.constant 0 : index
    %c0_118 = arith.constant 0 : index
    %159 = vector.load %arg6[%c0_115, %c7_116, %c0_117, %c0_118] : memref<2x9x64x64xbf16, #tpu.memory_space<vmem>>, vector<1x1x64x64xbf16>
    %160 = vector.shape_cast %159 : vector<1x1x64x64xbf16> to vector<64x64xbf16>
    %cst_119 = arith.constant dense<0.000000e+00> : vector<8x64xf32>
    %161 = tpu.matmul %158, %160, %cst_119 {dimension_numbers = #tpu.dot_dimension_numbers<[1], [0], [0], [1], [0, 0, 1, 1], [], []>} : vector<8x64xbf16>, vector<64x64xbf16>, vector<8x64xf32> -> vector<8x64xf32>
    %162 = arith.addf %156, %161 : vector<8x64xf32>
    %163 = vector.extract_strided_slice %113 {offsets = [64, 0], sizes = [8, 64], strides = [1, 1]} : vector<72x64xf32> to vector<8x64xf32>
    %164 = arith.truncf %163 : vector<8x64xf32> to vector<8x64xbf16>
    %c0_120 = arith.constant 0 : index
    %c8_121 = arith.constant 8 : index
    %c0_122 = arith.constant 0 : index
    %c0_123 = arith.constant 0 : index
    %165 = vector.load %arg6[%c0_120, %c8_121, %c0_122, %c0_123] : memref<2x9x64x64xbf16, #tpu.memory_space<vmem>>, vector<1x1x64x64xbf16>
    %166 = vector.shape_cast %165 : vector<1x1x64x64xbf16> to vector<64x64xbf16>
    %cst_124 = arith.constant dense<0.000000e+00> : vector<8x64xf32>
    %167 = tpu.matmul %164, %166, %cst_124 {dimension_numbers = #tpu.dot_dimension_numbers<[1], [0], [0], [1], [0, 0, 1, 1], [], []>} : vector<8x64xbf16>, vector<64x64xbf16>, vector<8x64xf32> -> vector<8x64xf32>
    %168 = arith.addf %162, %167 : vector<8x64xf32>
    %c0_125 = arith.constant 0 : index
    %c0_126 = arith.constant 0 : index
    %c0_127 = arith.constant 0 : index
    %169 = vector.load %arg7[%c0_125, %c0_126, %c0_127] : memref<2x1x64xf32, #tpu.memory_space<vmem>>, vector<1x1x64xf32>
    %170 = vector.shape_cast %169 : vector<1x1x64xf32> to vector<1x64xf32>
    %171 = vector.broadcast %170 : vector<1x64xf32> to vector<8x64xf32>
    %172 = arith.addf %168, %171 : vector<8x64xf32>
    %cst_128 = arith.constant 0.000000e+00 : f32
    %173 = vector.broadcast %cst_128 : f32 to vector<8x64xf32>
    %174 = arith.maximumf %172, %173 : vector<8x64xf32>
    %175 = arith.truncf %174 : vector<8x64xf32> to vector<8x64xbf16>
    %c0_129 = arith.constant 0 : index
    %c0_130 = arith.constant 0 : index
    %c0_131 = arith.constant 0 : index
    %176 = vector.load %arg8[%c0_129, %c0_130, %c0_131] : memref<2x64x512xbf16, #tpu.memory_space<vmem>>, vector<1x64x512xbf16>
    %177 = vector.shape_cast %176 : vector<1x64x512xbf16> to vector<64x512xbf16>
    %cst_132 = arith.constant dense<0.000000e+00> : vector<8x512xf32>
    %178 = tpu.matmul %175, %177, %cst_132 {dimension_numbers = #tpu.dot_dimension_numbers<[1], [0], [0], [1], [0, 0, 1, 1], [], []>} : vector<8x64xbf16>, vector<64x512xbf16>, vector<8x512xf32> -> vector<8x512xf32>
    %c0_133 = arith.constant 0 : index
    %c0_134 = arith.constant 0 : index
    %c0_135 = arith.constant 0 : index
    %179 = vector.load %arg9[%c0_133, %c0_134, %c0_135] : memref<2x1x512xf32, #tpu.memory_space<vmem>>, vector<1x1x512xf32>
    %180 = vector.shape_cast %179 : vector<1x1x512xf32> to vector<1x512xf32>
    %181 = vector.broadcast %180 : vector<1x512xf32> to vector<8x512xf32>
    %182 = arith.addf %178, %181 : vector<8x512xf32>
    %cst_136 = arith.constant 0.000000e+00 : f32
    %183 = vector.broadcast %cst_136 : f32 to vector<8x512xf32>
    %184 = arith.maximumf %182, %183 : vector<8x512xf32>
    %185 = arith.truncf %184 : vector<8x512xf32> to vector<8x512xbf16>
    %c0_137 = arith.constant 0 : index
    %c0_138 = arith.constant 0 : index
    %c0_139 = arith.constant 0 : index
    %186 = vector.load %arg10[%c0_137, %c0_138, %c0_139] : memref<2x512x512xbf16, #tpu.memory_space<vmem>>, vector<1x512x512xbf16>
    %187 = vector.shape_cast %186 : vector<1x512x512xbf16> to vector<512x512xbf16>
    %cst_140 = arith.constant dense<0.000000e+00> : vector<8x512xf32>
    %188 = tpu.matmul %185, %187, %cst_140 {dimension_numbers = #tpu.dot_dimension_numbers<[1], [0], [0], [1], [0, 0, 1, 1], [], []>} : vector<8x512xbf16>, vector<512x512xbf16>, vector<8x512xf32> -> vector<8x512xf32>
    %c0_141 = arith.constant 0 : index
    %c0_142 = arith.constant 0 : index
    %c0_143 = arith.constant 0 : index
    %189 = vector.load %arg11[%c0_141, %c0_142, %c0_143] : memref<2x1x512xf32, #tpu.memory_space<vmem>>, vector<1x1x512xf32>
    %190 = vector.shape_cast %189 : vector<1x1x512xf32> to vector<1x512xf32>
    %191 = vector.broadcast %190 : vector<1x512xf32> to vector<8x512xf32>
    %192 = arith.addf %188, %191 : vector<8x512xf32>
    %c0_144 = arith.constant 0 : index
    %c0_145 = arith.constant 0 : index
    %c0_146 = arith.constant 0 : index
    %193 = vector.load %arg12[%c0_144, %c0_145, %c0_146] : memref<2x8x512xf32, #tpu.memory_space<vmem>>, vector<1x8x512xf32>
    %194 = vector.shape_cast %193 : vector<1x8x512xf32> to vector<8x512xf32>
    %195 = vector.shape_cast %192 : vector<8x512xf32> to vector<1x8x512xf32>
    tpu.vector_store %arg12[%c0_144, %c0_145, %c0_146], %195 {strides = array<i32>} : memref<2x8x512xf32, #tpu.memory_space<vmem>>, vector<1x8x512xf32>,
    %c1_147 = arith.constant 1 : index
    %c0_148 = arith.constant 0 : index
    %c0_149 = arith.constant 0 : index
    %196 = vector.load %arg2[%c1_147, %c0_148, %c0_149] : memref<2x192x32xbf16, #tpu.memory_space<vmem>>, vector<1x192x32xbf16>
    %197 = vector.shape_cast %196 : vector<1x192x32xbf16> to vector<192x32xbf16>
    %cst_150 = arith.constant dense<0.000000e+00> : vector<1152x32xf32>
    %198 = tpu.matmul %1, %197, %cst_150 {dimension_numbers = #tpu.dot_dimension_numbers<[1], [0], [0], [1], [0, 0, 1, 1], [], []>} : vector<1152x192xbf16>, vector<192x32xbf16>, vector<1152x32xf32> -> vector<1152x32xf32>
    %c1_151 = arith.constant 1 : index
    %c0_152 = arith.constant 0 : index
    %c0_153 = arith.constant 0 : index
    %199 = vector.load %arg3[%c1_151, %c0_152, %c0_153] : memref<2x1x32xf32, #tpu.memory_space<vmem>>, vector<1x1x32xf32>
    %200 = vector.shape_cast %199 : vector<1x1x32xf32> to vector<1x32xf32>
    %201 = vector.broadcast %200 : vector<1x32xf32> to vector<1152x32xf32>
    %202 = arith.addf %198, %201 : vector<1152x32xf32>
    %cst_154 = arith.constant 0.000000e+00 : f32
    %203 = vector.broadcast %cst_154 : f32 to vector<1152x32xf32>
    %204 = arith.maximumf %202, %203 : vector<1152x32xf32>
    %cst_155 = arith.constant 0.000000e+00 : f32
    %205 = vector.broadcast %cst_155 : f32 to vector<72x64xf32>
    %206 = vector.extract_strided_slice %204 {offsets = [0, 0], sizes = [72, 32], strides = [1, 1]} : vector<1152x32xf32> to vector<72x32xf32>
    %207 = arith.truncf %206 : vector<72x32xf32> to vector<72x32xbf16>
    %c1_156 = arith.constant 1 : index
    %c0_157 = arith.constant 0 : index
    %c0_158 = arith.constant 0 : index
    %c0_159 = arith.constant 0 : index
    %208 = vector.load %arg4[%c1_156, %c0_157, %c0_158, %c0_159] : memref<2x16x32x64xbf16, #tpu.memory_space<vmem>>, vector<1x1x32x64xbf16>
    %209 = vector.shape_cast %208 : vector<1x1x32x64xbf16> to vector<32x64xbf16>
    %cst_160 = arith.constant dense<0.000000e+00> : vector<72x64xf32>
    %210 = tpu.matmul %207, %209, %cst_160 {dimension_numbers = #tpu.dot_dimension_numbers<[1], [0], [0], [1], [0, 0, 1, 1], [], []>} : vector<72x32xbf16>, vector<32x64xbf16>, vector<72x64xf32> -> vector<72x64xf32>
    %211 = arith.addf %205, %210 : vector<72x64xf32>
    %212 = vector.extract_strided_slice %204 {offsets = [72, 0], sizes = [72, 32], strides = [1, 1]} : vector<1152x32xf32> to vector<72x32xf32>
    %213 = arith.truncf %212 : vector<72x32xf32> to vector<72x32xbf16>
    %c1_161 = arith.constant 1 : index
    %c1_162 = arith.constant 1 : index
    %c0_163 = arith.constant 0 : index
    %c0_164 = arith.constant 0 : index
    %214 = vector.load %arg4[%c1_161, %c1_162, %c0_163, %c0_164] : memref<2x16x32x64xbf16, #tpu.memory_space<vmem>>, vector<1x1x32x64xbf16>
    %215 = vector.shape_cast %214 : vector<1x1x32x64xbf16> to vector<32x64xbf16>
    %cst_165 = arith.constant dense<0.000000e+00> : vector<72x64xf32>
    %216 = tpu.matmul %213, %215, %cst_165 {dimension_numbers = #tpu.dot_dimension_numbers<[1], [0], [0], [1], [0, 0, 1, 1], [], []>} : vector<72x32xbf16>, vector<32x64xbf16>, vector<72x64xf32> -> vector<72x64xf32>
    %217 = arith.addf %211, %216 : vector<72x64xf32>
    %218 = vector.extract_strided_slice %204 {offsets = [144, 0], sizes = [72, 32], strides = [1, 1]} : vector<1152x32xf32> to vector<72x32xf32>
    %219 = arith.truncf %218 : vector<72x32xf32> to vector<72x32xbf16>
    %c1_166 = arith.constant 1 : index
    %c2_167 = arith.constant 2 : index
    %c0_168 = arith.constant 0 : index
    %c0_169 = arith.constant 0 : index
    %220 = vector.load %arg4[%c1_166, %c2_167, %c0_168, %c0_169] : memref<2x16x32x64xbf16, #tpu.memory_space<vmem>>, vector<1x1x32x64xbf16>
    %221 = vector.shape_cast %220 : vector<1x1x32x64xbf16> to vector<32x64xbf16>
    %cst_170 = arith.constant dense<0.000000e+00> : vector<72x64xf32>
    %222 = tpu.matmul %219, %221, %cst_170 {dimension_numbers = #tpu.dot_dimension_numbers<[1], [0], [0], [1], [0, 0, 1, 1], [], []>} : vector<72x32xbf16>, vector<32x64xbf16>, vector<72x64xf32> -> vector<72x64xf32>
    %223 = arith.addf %217, %222 : vector<72x64xf32>
    %224 = vector.extract_strided_slice %204 {offsets = [216, 0], sizes = [72, 32], strides = [1, 1]} : vector<1152x32xf32> to vector<72x32xf32>
    %225 = arith.truncf %224 : vector<72x32xf32> to vector<72x32xbf16>
    %c1_171 = arith.constant 1 : index
    %c3_172 = arith.constant 3 : index
    %c0_173 = arith.constant 0 : index
    %c0_174 = arith.constant 0 : index
    %226 = vector.load %arg4[%c1_171, %c3_172, %c0_173, %c0_174] : memref<2x16x32x64xbf16, #tpu.memory_space<vmem>>, vector<1x1x32x64xbf16>
    %227 = vector.shape_cast %226 : vector<1x1x32x64xbf16> to vector<32x64xbf16>
    %cst_175 = arith.constant dense<0.000000e+00> : vector<72x64xf32>
    %228 = tpu.matmul %225, %227, %cst_175 {dimension_numbers = #tpu.dot_dimension_numbers<[1], [0], [0], [1], [0, 0, 1, 1], [], []>} : vector<72x32xbf16>, vector<32x64xbf16>, vector<72x64xf32> -> vector<72x64xf32>
    %229 = arith.addf %223, %228 : vector<72x64xf32>
    %230 = vector.extract_strided_slice %204 {offsets = [288, 0], sizes = [72, 32], strides = [1, 1]} : vector<1152x32xf32> to vector<72x32xf32>
    %231 = arith.truncf %230 : vector<72x32xf32> to vector<72x32xbf16>
    %c1_176 = arith.constant 1 : index
    %c4_177 = arith.constant 4 : index
    %c0_178 = arith.constant 0 : index
    %c0_179 = arith.constant 0 : index
    %232 = vector.load %arg4[%c1_176, %c4_177, %c0_178, %c0_179] : memref<2x16x32x64xbf16, #tpu.memory_space<vmem>>, vector<1x1x32x64xbf16>
    %233 = vector.shape_cast %232 : vector<1x1x32x64xbf16> to vector<32x64xbf16>
    %cst_180 = arith.constant dense<0.000000e+00> : vector<72x64xf32>
    %234 = tpu.matmul %231, %233, %cst_180 {dimension_numbers = #tpu.dot_dimension_numbers<[1], [0], [0], [1], [0, 0, 1, 1], [], []>} : vector<72x32xbf16>, vector<32x64xbf16>, vector<72x64xf32> -> vector<72x64xf32>
    %235 = arith.addf %229, %234 : vector<72x64xf32>
    %236 = vector.extract_strided_slice %204 {offsets = [360, 0], sizes = [72, 32], strides = [1, 1]} : vector<1152x32xf32> to vector<72x32xf32>
    %237 = arith.truncf %236 : vector<72x32xf32> to vector<72x32xbf16>
    %c1_181 = arith.constant 1 : index
    %c5_182 = arith.constant 5 : index
    %c0_183 = arith.constant 0 : index
    %c0_184 = arith.constant 0 : index
    %238 = vector.load %arg4[%c1_181, %c5_182, %c0_183, %c0_184] : memref<2x16x32x64xbf16, #tpu.memory_space<vmem>>, vector<1x1x32x64xbf16>
    %239 = vector.shape_cast %238 : vector<1x1x32x64xbf16> to vector<32x64xbf16>
    %cst_185 = arith.constant dense<0.000000e+00> : vector<72x64xf32>
    %240 = tpu.matmul %237, %239, %cst_185 {dimension_numbers = #tpu.dot_dimension_numbers<[1], [0], [0], [1], [0, 0, 1, 1], [], []>} : vector<72x32xbf16>, vector<32x64xbf16>, vector<72x64xf32> -> vector<72x64xf32>
    %241 = arith.addf %235, %240 : vector<72x64xf32>
    %242 = vector.extract_strided_slice %204 {offsets = [432, 0], sizes = [72, 32], strides = [1, 1]} : vector<1152x32xf32> to vector<72x32xf32>
    %243 = arith.truncf %242 : vector<72x32xf32> to vector<72x32xbf16>
    %c1_186 = arith.constant 1 : index
    %c6_187 = arith.constant 6 : index
    %c0_188 = arith.constant 0 : index
    %c0_189 = arith.constant 0 : index
    %244 = vector.load %arg4[%c1_186, %c6_187, %c0_188, %c0_189] : memref<2x16x32x64xbf16, #tpu.memory_space<vmem>>, vector<1x1x32x64xbf16>
    %245 = vector.shape_cast %244 : vector<1x1x32x64xbf16> to vector<32x64xbf16>
    %cst_190 = arith.constant dense<0.000000e+00> : vector<72x64xf32>
    %246 = tpu.matmul %243, %245, %cst_190 {dimension_numbers = #tpu.dot_dimension_numbers<[1], [0], [0], [1], [0, 0, 1, 1], [], []>} : vector<72x32xbf16>, vector<32x64xbf16>, vector<72x64xf32> -> vector<72x64xf32>
    %247 = arith.addf %241, %246 : vector<72x64xf32>
    %248 = vector.extract_strided_slice %204 {offsets = [504, 0], sizes = [72, 32], strides = [1, 1]} : vector<1152x32xf32> to vector<72x32xf32>
    %249 = arith.truncf %248 : vector<72x32xf32> to vector<72x32xbf16>
    %c1_191 = arith.constant 1 : index
    %c7_192 = arith.constant 7 : index
    %c0_193 = arith.constant 0 : index
    %c0_194 = arith.constant 0 : index
    %250 = vector.load %arg4[%c1_191, %c7_192, %c0_193, %c0_194] : memref<2x16x32x64xbf16, #tpu.memory_space<vmem>>, vector<1x1x32x64xbf16>
    %251 = vector.shape_cast %250 : vector<1x1x32x64xbf16> to vector<32x64xbf16>
    %cst_195 = arith.constant dense<0.000000e+00> : vector<72x64xf32>
    %252 = tpu.matmul %249, %251, %cst_195 {dimension_numbers = #tpu.dot_dimension_numbers<[1], [0], [0], [1], [0, 0, 1, 1], [], []>} : vector<72x32xbf16>, vector<32x64xbf16>, vector<72x64xf32> -> vector<72x64xf32>
    %253 = arith.addf %247, %252 : vector<72x64xf32>
    %254 = vector.extract_strided_slice %204 {offsets = [576, 0], sizes = [72, 32], strides = [1, 1]} : vector<1152x32xf32> to vector<72x32xf32>
    %255 = arith.truncf %254 : vector<72x32xf32> to vector<72x32xbf16>
    %c1_196 = arith.constant 1 : index
    %c8_197 = arith.constant 8 : index
    %c0_198 = arith.constant 0 : index
    %c0_199 = arith.constant 0 : index
    %256 = vector.load %arg4[%c1_196, %c8_197, %c0_198, %c0_199] : memref<2x16x32x64xbf16, #tpu.memory_space<vmem>>, vector<1x1x32x64xbf16>
    %257 = vector.shape_cast %256 : vector<1x1x32x64xbf16> to vector<32x64xbf16>
    %cst_200 = arith.constant dense<0.000000e+00> : vector<72x64xf32>
    %258 = tpu.matmul %255, %257, %cst_200 {dimension_numbers = #tpu.dot_dimension_numbers<[1], [0], [0], [1], [0, 0, 1, 1], [], []>} : vector<72x32xbf16>, vector<32x64xbf16>, vector<72x64xf32> -> vector<72x64xf32>
    %259 = arith.addf %253, %258 : vector<72x64xf32>
    %260 = vector.extract_strided_slice %204 {offsets = [648, 0], sizes = [72, 32], strides = [1, 1]} : vector<1152x32xf32> to vector<72x32xf32>
    %261 = arith.truncf %260 : vector<72x32xf32> to vector<72x32xbf16>
    %c1_201 = arith.constant 1 : index
    %c9_202 = arith.constant 9 : index
    %c0_203 = arith.constant 0 : index
    %c0_204 = arith.constant 0 : index
    %262 = vector.load %arg4[%c1_201, %c9_202, %c0_203, %c0_204] : memref<2x16x32x64xbf16, #tpu.memory_space<vmem>>, vector<1x1x32x64xbf16>
    %263 = vector.shape_cast %262 : vector<1x1x32x64xbf16> to vector<32x64xbf16>
    %cst_205 = arith.constant dense<0.000000e+00> : vector<72x64xf32>
    %264 = tpu.matmul %261, %263, %cst_205 {dimension_numbers = #tpu.dot_dimension_numbers<[1], [0], [0], [1], [0, 0, 1, 1], [], []>} : vector<72x32xbf16>, vector<32x64xbf16>, vector<72x64xf32> -> vector<72x64xf32>
    %265 = arith.addf %259, %264 : vector<72x64xf32>
    %266 = vector.extract_strided_slice %204 {offsets = [720, 0], sizes = [72, 32], strides = [1, 1]} : vector<1152x32xf32> to vector<72x32xf32>
    %267 = arith.truncf %266 : vector<72x32xf32> to vector<72x32xbf16>
    %c1_206 = arith.constant 1 : index
    %c10_207 = arith.constant 10 : index
    %c0_208 = arith.constant 0 : index
    %c0_209 = arith.constant 0 : index
    %268 = vector.load %arg4[%c1_206, %c10_207, %c0_208, %c0_209] : memref<2x16x32x64xbf16, #tpu.memory_space<vmem>>, vector<1x1x32x64xbf16>
    %269 = vector.shape_cast %268 : vector<1x1x32x64xbf16> to vector<32x64xbf16>
    %cst_210 = arith.constant dense<0.000000e+00> : vector<72x64xf32>
    %270 = tpu.matmul %267, %269, %cst_210 {dimension_numbers = #tpu.dot_dimension_numbers<[1], [0], [0], [1], [0, 0, 1, 1], [], []>} : vector<72x32xbf16>, vector<32x64xbf16>, vector<72x64xf32> -> vector<72x64xf32>
    %271 = arith.addf %265, %270 : vector<72x64xf32>
    %272 = vector.extract_strided_slice %204 {offsets = [792, 0], sizes = [72, 32], strides = [1, 1]} : vector<1152x32xf32> to vector<72x32xf32>
    %273 = arith.truncf %272 : vector<72x32xf32> to vector<72x32xbf16>
    %c1_211 = arith.constant 1 : index
    %c11_212 = arith.constant 11 : index
    %c0_213 = arith.constant 0 : index
    %c0_214 = arith.constant 0 : index
    %274 = vector.load %arg4[%c1_211, %c11_212, %c0_213, %c0_214] : memref<2x16x32x64xbf16, #tpu.memory_space<vmem>>, vector<1x1x32x64xbf16>
    %275 = vector.shape_cast %274 : vector<1x1x32x64xbf16> to vector<32x64xbf16>
    %cst_215 = arith.constant dense<0.000000e+00> : vector<72x64xf32>
    %276 = tpu.matmul %273, %275, %cst_215 {dimension_numbers = #tpu.dot_dimension_numbers<[1], [0], [0], [1], [0, 0, 1, 1], [], []>} : vector<72x32xbf16>, vector<32x64xbf16>, vector<72x64xf32> -> vector<72x64xf32>
    %277 = arith.addf %271, %276 : vector<72x64xf32>
    %278 = vector.extract_strided_slice %204 {offsets = [864, 0], sizes = [72, 32], strides = [1, 1]} : vector<1152x32xf32> to vector<72x32xf32>
    %279 = arith.truncf %278 : vector<72x32xf32> to vector<72x32xbf16>
    %c1_216 = arith.constant 1 : index
    %c12_217 = arith.constant 12 : index
    %c0_218 = arith.constant 0 : index
    %c0_219 = arith.constant 0 : index
    %280 = vector.load %arg4[%c1_216, %c12_217, %c0_218, %c0_219] : memref<2x16x32x64xbf16, #tpu.memory_space<vmem>>, vector<1x1x32x64xbf16>
    %281 = vector.shape_cast %280 : vector<1x1x32x64xbf16> to vector<32x64xbf16>
    %cst_220 = arith.constant dense<0.000000e+00> : vector<72x64xf32>
    %282 = tpu.matmul %279, %281, %cst_220 {dimension_numbers = #tpu.dot_dimension_numbers<[1], [0], [0], [1], [0, 0, 1, 1], [], []>} : vector<72x32xbf16>, vector<32x64xbf16>, vector<72x64xf32> -> vector<72x64xf32>
    %283 = arith.addf %277, %282 : vector<72x64xf32>
    %284 = vector.extract_strided_slice %204 {offsets = [936, 0], sizes = [72, 32], strides = [1, 1]} : vector<1152x32xf32> to vector<72x32xf32>
    %285 = arith.truncf %284 : vector<72x32xf32> to vector<72x32xbf16>
    %c1_221 = arith.constant 1 : index
    %c13_222 = arith.constant 13 : index
    %c0_223 = arith.constant 0 : index
    %c0_224 = arith.constant 0 : index
    %286 = vector.load %arg4[%c1_221, %c13_222, %c0_223, %c0_224] : memref<2x16x32x64xbf16, #tpu.memory_space<vmem>>, vector<1x1x32x64xbf16>
    %287 = vector.shape_cast %286 : vector<1x1x32x64xbf16> to vector<32x64xbf16>
    %cst_225 = arith.constant dense<0.000000e+00> : vector<72x64xf32>
    %288 = tpu.matmul %285, %287, %cst_225 {dimension_numbers = #tpu.dot_dimension_numbers<[1], [0], [0], [1], [0, 0, 1, 1], [], []>} : vector<72x32xbf16>, vector<32x64xbf16>, vector<72x64xf32> -> vector<72x64xf32>
    %289 = arith.addf %283, %288 : vector<72x64xf32>
    %290 = vector.extract_strided_slice %204 {offsets = [1008, 0], sizes = [72, 32], strides = [1, 1]} : vector<1152x32xf32> to vector<72x32xf32>
    %291 = arith.truncf %290 : vector<72x32xf32> to vector<72x32xbf16>
    %c1_226 = arith.constant 1 : index
    %c14_227 = arith.constant 14 : index
    %c0_228 = arith.constant 0 : index
    %c0_229 = arith.constant 0 : index
    %292 = vector.load %arg4[%c1_226, %c14_227, %c0_228, %c0_229] : memref<2x16x32x64xbf16, #tpu.memory_space<vmem>>, vector<1x1x32x64xbf16>
    %293 = vector.shape_cast %292 : vector<1x1x32x64xbf16> to vector<32x64xbf16>
    %cst_230 = arith.constant dense<0.000000e+00> : vector<72x64xf32>
    %294 = tpu.matmul %291, %293, %cst_230 {dimension_numbers = #tpu.dot_dimension_numbers<[1], [0], [0], [1], [0, 0, 1, 1], [], []>} : vector<72x32xbf16>, vector<32x64xbf16>, vector<72x64xf32> -> vector<72x64xf32>
    %295 = arith.addf %289, %294 : vector<72x64xf32>
    %296 = vector.extract_strided_slice %204 {offsets = [1080, 0], sizes = [72, 32], strides = [1, 1]} : vector<1152x32xf32> to vector<72x32xf32>
    %297 = arith.truncf %296 : vector<72x32xf32> to vector<72x32xbf16>
    %c1_231 = arith.constant 1 : index
    %c15_232 = arith.constant 15 : index
    %c0_233 = arith.constant 0 : index
    %c0_234 = arith.constant 0 : index
    %298 = vector.load %arg4[%c1_231, %c15_232, %c0_233, %c0_234] : memref<2x16x32x64xbf16, #tpu.memory_space<vmem>>, vector<1x1x32x64xbf16>
    %299 = vector.shape_cast %298 : vector<1x1x32x64xbf16> to vector<32x64xbf16>
    %cst_235 = arith.constant dense<0.000000e+00> : vector<72x64xf32>
    %300 = tpu.matmul %297, %299, %cst_235 {dimension_numbers = #tpu.dot_dimension_numbers<[1], [0], [0], [1], [0, 0, 1, 1], [], []>} : vector<72x32xbf16>, vector<32x64xbf16>, vector<72x64xf32> -> vector<72x64xf32>
    %301 = arith.addf %295, %300 : vector<72x64xf32>
    %c1_236 = arith.constant 1 : index
    %c0_237 = arith.constant 0 : index
    %c0_238 = arith.constant 0 : index
    %302 = vector.load %arg5[%c1_236, %c0_237, %c0_238] : memref<2x1x64xf32, #tpu.memory_space<vmem>>, vector<1x1x64xf32>
    %303 = vector.shape_cast %302 : vector<1x1x64xf32> to vector<1x64xf32>
    %304 = vector.broadcast %303 : vector<1x64xf32> to vector<72x64xf32>
    %305 = arith.addf %301, %304 : vector<72x64xf32>
    %cst_239 = arith.constant 0.000000e+00 : f32
    %306 = vector.broadcast %cst_239 : f32 to vector<72x64xf32>
    %307 = arith.maximumf %305, %306 : vector<72x64xf32>
    %cst_240 = arith.constant 0.000000e+00 : f32
    %308 = vector.broadcast %cst_240 : f32 to vector<8x64xf32>
    %309 = vector.extract_strided_slice %307 {offsets = [0, 0], sizes = [8, 64], strides = [1, 1]} : vector<72x64xf32> to vector<8x64xf32>
    %310 = arith.truncf %309 : vector<8x64xf32> to vector<8x64xbf16>
    %c1_241 = arith.constant 1 : index
    %c0_242 = arith.constant 0 : index
    %c0_243 = arith.constant 0 : index
    %c0_244 = arith.constant 0 : index
    %311 = vector.load %arg6[%c1_241, %c0_242, %c0_243, %c0_244] : memref<2x9x64x64xbf16, #tpu.memory_space<vmem>>, vector<1x1x64x64xbf16>
    %312 = vector.shape_cast %311 : vector<1x1x64x64xbf16> to vector<64x64xbf16>
    %cst_245 = arith.constant dense<0.000000e+00> : vector<8x64xf32>
    %313 = tpu.matmul %310, %312, %cst_245 {dimension_numbers = #tpu.dot_dimension_numbers<[1], [0], [0], [1], [0, 0, 1, 1], [], []>} : vector<8x64xbf16>, vector<64x64xbf16>, vector<8x64xf32> -> vector<8x64xf32>
    %314 = arith.addf %308, %313 : vector<8x64xf32>
    %315 = vector.extract_strided_slice %307 {offsets = [8, 0], sizes = [8, 64], strides = [1, 1]} : vector<72x64xf32> to vector<8x64xf32>
    %316 = arith.truncf %315 : vector<8x64xf32> to vector<8x64xbf16>
    %c1_246 = arith.constant 1 : index
    %c1_247 = arith.constant 1 : index
    %c0_248 = arith.constant 0 : index
    %c0_249 = arith.constant 0 : index
    %317 = vector.load %arg6[%c1_246, %c1_247, %c0_248, %c0_249] : memref<2x9x64x64xbf16, #tpu.memory_space<vmem>>, vector<1x1x64x64xbf16>
    %318 = vector.shape_cast %317 : vector<1x1x64x64xbf16> to vector<64x64xbf16>
    %cst_250 = arith.constant dense<0.000000e+00> : vector<8x64xf32>
    %319 = tpu.matmul %316, %318, %cst_250 {dimension_numbers = #tpu.dot_dimension_numbers<[1], [0], [0], [1], [0, 0, 1, 1], [], []>} : vector<8x64xbf16>, vector<64x64xbf16>, vector<8x64xf32> -> vector<8x64xf32>
    %320 = arith.addf %314, %319 : vector<8x64xf32>
    %321 = vector.extract_strided_slice %307 {offsets = [16, 0], sizes = [8, 64], strides = [1, 1]} : vector<72x64xf32> to vector<8x64xf32>
    %322 = arith.truncf %321 : vector<8x64xf32> to vector<8x64xbf16>
    %c1_251 = arith.constant 1 : index
    %c2_252 = arith.constant 2 : index
    %c0_253 = arith.constant 0 : index
    %c0_254 = arith.constant 0 : index
    %323 = vector.load %arg6[%c1_251, %c2_252, %c0_253, %c0_254] : memref<2x9x64x64xbf16, #tpu.memory_space<vmem>>, vector<1x1x64x64xbf16>
    %324 = vector.shape_cast %323 : vector<1x1x64x64xbf16> to vector<64x64xbf16>
    %cst_255 = arith.constant dense<0.000000e+00> : vector<8x64xf32>
    %325 = tpu.matmul %322, %324, %cst_255 {dimension_numbers = #tpu.dot_dimension_numbers<[1], [0], [0], [1], [0, 0, 1, 1], [], []>} : vector<8x64xbf16>, vector<64x64xbf16>, vector<8x64xf32> -> vector<8x64xf32>
    %326 = arith.addf %320, %325 : vector<8x64xf32>
    %327 = vector.extract_strided_slice %307 {offsets = [24, 0], sizes = [8, 64], strides = [1, 1]} : vector<72x64xf32> to vector<8x64xf32>
    %328 = arith.truncf %327 : vector<8x64xf32> to vector<8x64xbf16>
    %c1_256 = arith.constant 1 : index
    %c3_257 = arith.constant 3 : index
    %c0_258 = arith.constant 0 : index
    %c0_259 = arith.constant 0 : index
    %329 = vector.load %arg6[%c1_256, %c3_257, %c0_258, %c0_259] : memref<2x9x64x64xbf16, #tpu.memory_space<vmem>>, vector<1x1x64x64xbf16>
    %330 = vector.shape_cast %329 : vector<1x1x64x64xbf16> to vector<64x64xbf16>
    %cst_260 = arith.constant dense<0.000000e+00> : vector<8x64xf32>
    %331 = tpu.matmul %328, %330, %cst_260 {dimension_numbers = #tpu.dot_dimension_numbers<[1], [0], [0], [1], [0, 0, 1, 1], [], []>} : vector<8x64xbf16>, vector<64x64xbf16>, vector<8x64xf32> -> vector<8x64xf32>
    %332 = arith.addf %326, %331 : vector<8x64xf32>
    %333 = vector.extract_strided_slice %307 {offsets = [32, 0], sizes = [8, 64], strides = [1, 1]} : vector<72x64xf32> to vector<8x64xf32>
    %334 = arith.truncf %333 : vector<8x64xf32> to vector<8x64xbf16>
    %c1_261 = arith.constant 1 : index
    %c4_262 = arith.constant 4 : index
    %c0_263 = arith.constant 0 : index
    %c0_264 = arith.constant 0 : index
    %335 = vector.load %arg6[%c1_261, %c4_262, %c0_263, %c0_264] : memref<2x9x64x64xbf16, #tpu.memory_space<vmem>>, vector<1x1x64x64xbf16>
    %336 = vector.shape_cast %335 : vector<1x1x64x64xbf16> to vector<64x64xbf16>
    %cst_265 = arith.constant dense<0.000000e+00> : vector<8x64xf32>
    %337 = tpu.matmul %334, %336, %cst_265 {dimension_numbers = #tpu.dot_dimension_numbers<[1], [0], [0], [1], [0, 0, 1, 1], [], []>} : vector<8x64xbf16>, vector<64x64xbf16>, vector<8x64xf32> -> vector<8x64xf32>
    %338 = arith.addf %332, %337 : vector<8x64xf32>
    %339 = vector.extract_strided_slice %307 {offsets = [40, 0], sizes = [8, 64], strides = [1, 1]} : vector<72x64xf32> to vector<8x64xf32>
    %340 = arith.truncf %339 : vector<8x64xf32> to vector<8x64xbf16>
    %c1_266 = arith.constant 1 : index
    %c5_267 = arith.constant 5 : index
    %c0_268 = arith.constant 0 : index
    %c0_269 = arith.constant 0 : index
    %341 = vector.load %arg6[%c1_266, %c5_267, %c0_268, %c0_269] : memref<2x9x64x64xbf16, #tpu.memory_space<vmem>>, vector<1x1x64x64xbf16>
    %342 = vector.shape_cast %341 : vector<1x1x64x64xbf16> to vector<64x64xbf16>
    %cst_270 = arith.constant dense<0.000000e+00> : vector<8x64xf32>
    %343 = tpu.matmul %340, %342, %cst_270 {dimension_numbers = #tpu.dot_dimension_numbers<[1], [0], [0], [1], [0, 0, 1, 1], [], []>} : vector<8x64xbf16>, vector<64x64xbf16>, vector<8x64xf32> -> vector<8x64xf32>
    %344 = arith.addf %338, %343 : vector<8x64xf32>
    %345 = vector.extract_strided_slice %307 {offsets = [48, 0], sizes = [8, 64], strides = [1, 1]} : vector<72x64xf32> to vector<8x64xf32>
    %346 = arith.truncf %345 : vector<8x64xf32> to vector<8x64xbf16>
    %c1_271 = arith.constant 1 : index
    %c6_272 = arith.constant 6 : index
    %c0_273 = arith.constant 0 : index
    %c0_274 = arith.constant 0 : index
    %347 = vector.load %arg6[%c1_271, %c6_272, %c0_273, %c0_274] : memref<2x9x64x64xbf16, #tpu.memory_space<vmem>>, vector<1x1x64x64xbf16>
    %348 = vector.shape_cast %347 : vector<1x1x64x64xbf16> to vector<64x64xbf16>
    %cst_275 = arith.constant dense<0.000000e+00> : vector<8x64xf32>
    %349 = tpu.matmul %346, %348, %cst_275 {dimension_numbers = #tpu.dot_dimension_numbers<[1], [0], [0], [1], [0, 0, 1, 1], [], []>} : vector<8x64xbf16>, vector<64x64xbf16>, vector<8x64xf32> -> vector<8x64xf32>
    %350 = arith.addf %344, %349 : vector<8x64xf32>
    %351 = vector.extract_strided_slice %307 {offsets = [56, 0], sizes = [8, 64], strides = [1, 1]} : vector<72x64xf32> to vector<8x64xf32>
    %352 = arith.truncf %351 : vector<8x64xf32> to vector<8x64xbf16>
    %c1_276 = arith.constant 1 : index
    %c7_277 = arith.constant 7 : index
    %c0_278 = arith.constant 0 : index
    %c0_279 = arith.constant 0 : index
    %353 = vector.load %arg6[%c1_276, %c7_277, %c0_278, %c0_279] : memref<2x9x64x64xbf16, #tpu.memory_space<vmem>>, vector<1x1x64x64xbf16>
    %354 = vector.shape_cast %353 : vector<1x1x64x64xbf16> to vector<64x64xbf16>
    %cst_280 = arith.constant dense<0.000000e+00> : vector<8x64xf32>
    %355 = tpu.matmul %352, %354, %cst_280 {dimension_numbers = #tpu.dot_dimension_numbers<[1], [0], [0], [1], [0, 0, 1, 1], [], []>} : vector<8x64xbf16>, vector<64x64xbf16>, vector<8x64xf32> -> vector<8x64xf32>
    %356 = arith.addf %350, %355 : vector<8x64xf32>
    %357 = vector.extract_strided_slice %307 {offsets = [64, 0], sizes = [8, 64], strides = [1, 1]} : vector<72x64xf32> to vector<8x64xf32>
    %358 = arith.truncf %357 : vector<8x64xf32> to vector<8x64xbf16>
    %c1_281 = arith.constant 1 : index
    %c8_282 = arith.constant 8 : index
    %c0_283 = arith.constant 0 : index
    %c0_284 = arith.constant 0 : index
    %359 = vector.load %arg6[%c1_281, %c8_282, %c0_283, %c0_284] : memref<2x9x64x64xbf16, #tpu.memory_space<vmem>>, vector<1x1x64x64xbf16>
    %360 = vector.shape_cast %359 : vector<1x1x64x64xbf16> to vector<64x64xbf16>
    %cst_285 = arith.constant dense<0.000000e+00> : vector<8x64xf32>
    %361 = tpu.matmul %358, %360, %cst_285 {dimension_numbers = #tpu.dot_dimension_numbers<[1], [0], [0], [1], [0, 0, 1, 1], [], []>} : vector<8x64xbf16>, vector<64x64xbf16>, vector<8x64xf32> -> vector<8x64xf32>
    %362 = arith.addf %356, %361 : vector<8x64xf32>
    %c1_286 = arith.constant 1 : index
    %c0_287 = arith.constant 0 : index
    %c0_288 = arith.constant 0 : index
    %363 = vector.load %arg7[%c1_286, %c0_287, %c0_288] : memref<2x1x64xf32, #tpu.memory_space<vmem>>, vector<1x1x64xf32>
    %364 = vector.shape_cast %363 : vector<1x1x64xf32> to vector<1x64xf32>
    %365 = vector.broadcast %364 : vector<1x64xf32> to vector<8x64xf32>
    %366 = arith.addf %362, %365 : vector<8x64xf32>
    %cst_289 = arith.constant 0.000000e+00 : f32
    %367 = vector.broadcast %cst_289 : f32 to vector<8x64xf32>
    %368 = arith.maximumf %366, %367 : vector<8x64xf32>
    %369 = arith.truncf %368 : vector<8x64xf32> to vector<8x64xbf16>
    %c1_290 = arith.constant 1 : index
    %c0_291 = arith.constant 0 : index
    %c0_292 = arith.constant 0 : index
    %370 = vector.load %arg8[%c1_290, %c0_291, %c0_292] : memref<2x64x512xbf16, #tpu.memory_space<vmem>>, vector<1x64x512xbf16>
    %371 = vector.shape_cast %370 : vector<1x64x512xbf16> to vector<64x512xbf16>
    %cst_293 = arith.constant dense<0.000000e+00> : vector<8x512xf32>
    %372 = tpu.matmul %369, %371, %cst_293 {dimension_numbers = #tpu.dot_dimension_numbers<[1], [0], [0], [1], [0, 0, 1, 1], [], []>} : vector<8x64xbf16>, vector<64x512xbf16>, vector<8x512xf32> -> vector<8x512xf32>
    %c1_294 = arith.constant 1 : index
    %c0_295 = arith.constant 0 : index
    %c0_296 = arith.constant 0 : index
    %373 = vector.load %arg9[%c1_294, %c0_295, %c0_296] : memref<2x1x512xf32, #tpu.memory_space<vmem>>, vector<1x1x512xf32>
    %374 = vector.shape_cast %373 : vector<1x1x512xf32> to vector<1x512xf32>
    %375 = vector.broadcast %374 : vector<1x512xf32> to vector<8x512xf32>
    %376 = arith.addf %372, %375 : vector<8x512xf32>
    %cst_297 = arith.constant 0.000000e+00 : f32
    %377 = vector.broadcast %cst_297 : f32 to vector<8x512xf32>
    %378 = arith.maximumf %376, %377 : vector<8x512xf32>
    %379 = arith.truncf %378 : vector<8x512xf32> to vector<8x512xbf16>
    %c1_298 = arith.constant 1 : index
    %c0_299 = arith.constant 0 : index
    %c0_300 = arith.constant 0 : index
    %380 = vector.load %arg10[%c1_298, %c0_299, %c0_300] : memref<2x512x512xbf16, #tpu.memory_space<vmem>>, vector<1x512x512xbf16>
    %381 = vector.shape_cast %380 : vector<1x512x512xbf16> to vector<512x512xbf16>
    %cst_301 = arith.constant dense<0.000000e+00> : vector<8x512xf32>
    %382 = tpu.matmul %379, %381, %cst_301 {dimension_numbers = #tpu.dot_dimension_numbers<[1], [0], [0], [1], [0, 0, 1, 1], [], []>} : vector<8x512xbf16>, vector<512x512xbf16>, vector<8x512xf32> -> vector<8x512xf32>
    %c1_302 = arith.constant 1 : index
    %c0_303 = arith.constant 0 : index
    %c0_304 = arith.constant 0 : index
    %383 = vector.load %arg11[%c1_302, %c0_303, %c0_304] : memref<2x1x512xf32, #tpu.memory_space<vmem>>, vector<1x1x512xf32>
    %384 = vector.shape_cast %383 : vector<1x1x512xf32> to vector<1x512xf32>
    %385 = vector.broadcast %384 : vector<1x512xf32> to vector<8x512xf32>
    %386 = arith.addf %382, %385 : vector<8x512xf32>
    %c1_305 = arith.constant 1 : index
    %c0_306 = arith.constant 0 : index
    %c0_307 = arith.constant 0 : index
    %387 = vector.load %arg12[%c1_305, %c0_306, %c0_307] : memref<2x8x512xf32, #tpu.memory_space<vmem>>, vector<1x8x512xf32>
    %388 = vector.shape_cast %387 : vector<1x8x512xf32> to vector<8x512xf32>
    %389 = vector.shape_cast %386 : vector<8x512xf32> to vector<1x8x512xf32>
    tpu.vector_store %arg12[%c1_305, %c0_306, %c0_307], %389 {strides = array<i32>} : memref<2x8x512xf32, #tpu.memory_space<vmem>>, vector<1x8x512xf32>,
    return
  }
  func.func @transform_0(%arg0: i32) -> (i32, i32, i32) {
    %c0_i32 = arith.constant 0 : i32
    %c0_i32_0 = arith.constant 0 : i32
    %c0_i32_1 = arith.constant 0 : i32
    return %arg0, %c0_i32, %c0_i32_0 : i32, i32, i32
  }
  func.func @transform_1(%arg0: i32) -> (i32, i32, i32) {
    %c0_i32 = arith.constant 0 : i32
    %c0_i32_0 = arith.constant 0 : i32
    %c0_i32_1 = arith.constant 0 : i32
    %c0_i32_2 = arith.constant 0 : i32
    return %c0_i32, %c0_i32_0, %c0_i32_1 : i32, i32, i32
  }
  func.func @transform_2(%arg0: i32) -> (i32, i32, i32) {
    %c0_i32 = arith.constant 0 : i32
    %c0_i32_0 = arith.constant 0 : i32
    %c0_i32_1 = arith.constant 0 : i32
    %c0_i32_2 = arith.constant 0 : i32
    return %c0_i32, %c0_i32_0, %c0_i32_1 : i32, i32, i32
  }
  func.func @transform_3(%arg0: i32) -> (i32, i32, i32, i32) {
    %c0_i32 = arith.constant 0 : i32
    %c0_i32_0 = arith.constant 0 : i32
    %c0_i32_1 = arith.constant 0 : i32
    %c0_i32_2 = arith.constant 0 : i32
    %c0_i32_3 = arith.constant 0 : i32
    return %c0_i32, %c0_i32_0, %c0_i32_1, %c0_i32_2 : i32, i32, i32, i32
  }
  func.func @transform_4(%arg0: i32) -> (i32, i32, i32) {
    %c0_i32 = arith.constant 0 : i32
    %c0_i32_0 = arith.constant 0 : i32
    %c0_i32_1 = arith.constant 0 : i32
    %c0_i32_2 = arith.constant 0 : i32
    return %c0_i32, %c0_i32_0, %c0_i32_1 : i32, i32, i32
  }
  func.func @transform_5(%arg0: i32) -> (i32, i32, i32, i32) {
    %c0_i32 = arith.constant 0 : i32
    %c0_i32_0 = arith.constant 0 : i32
    %c0_i32_1 = arith.constant 0 : i32
    %c0_i32_2 = arith.constant 0 : i32
    %c0_i32_3 = arith.constant 0 : i32
    return %c0_i32, %c0_i32_0, %c0_i32_1, %c0_i32_2 : i32, i32, i32, i32
  }
  func.func @transform_6(%arg0: i32) -> (i32, i32, i32) {
    %c0_i32 = arith.constant 0 : i32
    %c0_i32_0 = arith.constant 0 : i32
    %c0_i32_1 = arith.constant 0 : i32
    %c0_i32_2 = arith.constant 0 : i32
    return %c0_i32, %c0_i32_0, %c0_i32_1 : i32, i32, i32
  }
  func.func @transform_7(%arg0: i32) -> (i32, i32, i32) {
    %c0_i32 = arith.constant 0 : i32
    %c0_i32_0 = arith.constant 0 : i32
    %c0_i32_1 = arith.constant 0 : i32
    %c0_i32_2 = arith.constant 0 : i32
    return %c0_i32, %c0_i32_0, %c0_i32_1 : i32, i32, i32
  }
  func.func @transform_8(%arg0: i32) -> (i32, i32, i32) {
    %c0_i32 = arith.constant 0 : i32
    %c0_i32_0 = arith.constant 0 : i32
    %c0_i32_1 = arith.constant 0 : i32
    %c0_i32_2 = arith.constant 0 : i32
    return %c0_i32, %c0_i32_0, %c0_i32_1 : i32, i32, i32
  }
  func.func @transform_9(%arg0: i32) -> (i32, i32, i32) {
    %c0_i32 = arith.constant 0 : i32
    %c0_i32_0 = arith.constant 0 : i32
    %c0_i32_1 = arith.constant 0 : i32
    %c0_i32_2 = arith.constant 0 : i32
    return %c0_i32, %c0_i32_0, %c0_i32_1 : i32, i32, i32
  }
  func.func @transform_10(%arg0: i32) -> (i32, i32, i32) {
    %c0_i32 = arith.constant 0 : i32
    %c0_i32_0 = arith.constant 0 : i32
    %c0_i32_1 = arith.constant 0 : i32
    %c0_i32_2 = arith.constant 0 : i32
    return %c0_i32, %c0_i32_0, %c0_i32_1 : i32, i32, i32
  }
  func.func @transform_11(%arg0: i32) -> (i32, i32, i32) {
    %c0_i32 = arith.constant 0 : i32
    %c0_i32_0 = arith.constant 0 : i32
    %c0_i32_1 = arith.constant 0 : i32
    return %c0_i32, %arg0, %c0_i32_0 : i32, i32, i32
  }
}

</mosaic_0001>

<llo_original>
// kernel: rnd_model_forward.1
$region0: #{rnd_model_forward.1}
  #allocation0 [shape = 'u32[]', space=smem, size = 0x4, offset = 0x4, fixed_abs, tag = 'smem constant byte address 0x4 - core index']
  #allocation1 [shape = 'u32[144,128]{1,0:T(1,128)}', space=vmem, size = 0x12000, scoped, tag = 'internal scratch']
  %s0 = inlined_call_operand.vmem [shape: bf16[1,1152,192], index: 0, kind: input, shape index: {}]
  %s1 = inlined_call_operand.vmem [shape: bf16[2,192,32], index: 1, kind: input, shape index: {}]
  %s2 = inlined_call_operand.vmem [shape: f32[2,1,32], index: 2, kind: input, shape index: {}]
  %s3 = inlined_call_operand.vmem [shape: bf16[2,16,32,64], index: 3, kind: input, shape index: {}]
  %s4 = inlined_call_operand.vmem [shape: f32[2,1,64], index: 4, kind: input, shape index: {}]
  %s5 = inlined_call_operand.vmem [shape: bf16[2,9,64,64], index: 5, kind: input, shape index: {}]
  %s6 = inlined_call_operand.vmem [shape: f32[2,1,64], index: 6, kind: input, shape index: {}]
  %s7 = inlined_call_operand.vmem [shape: bf16[2,64,512], index: 7, kind: input, shape index: {}]
  %s8 = inlined_call_operand.vmem [shape: f32[2,1,512], index: 8, kind: input, shape index: {}]
  %s9 = inlined_call_operand.vmem [shape: bf16[2,512,512], index: 9, kind: input, shape index: {}]
  %s10 = inlined_call_operand.vmem [shape: f32[2,1,512], index: 10, kind: input, shape index: {}]
  %s11 = inlined_call_operand.vmem [shape: f32[2,8,512], index: 11, kind: output, shape index: {}]
  %s12 = sld [smem:[#allocation0]]
  $region54: #{rnd_model_forward.1} parent=0
    _
  %s14 = ssub.s32 1, %s12
  %s15 = scalar_select 0, %s14, %s12
  // Predicated region
  $region2: #{rnd_model_forward.1} parent=0 // pred_check
    _
  $region3: #{rnd_model_forward.1} parent=0 // pred_check_branch
    %17 = sbr.rel (0) target = $region5
  $region4: #{rnd_model_forward.1} parent=0 // pred_region
    _
  $region5: #{rnd_model_forward.1} parent=0 // pred_fallthru
    _
  // Predicated region
  $region6: #{rnd_model_forward.1} parent=0 // pred_check
    _
  $region7: #{rnd_model_forward.1} parent=0 // pred_check_branch
    %19 = sbr.rel (0) target = $region9
  $region8: #{rnd_model_forward.1} parent=0 // pred_region
    _
  $region9: #{rnd_model_forward.1} parent=0 // pred_fallthru
    _
  // Predicated region
  $region10: #{rnd_model_forward.1} parent=0 // pred_check
    _
  $region11: #{rnd_model_forward.1} parent=0 // pred_check_branch
    %21 = sbr.rel (0) target = $region13
  $region12: #{rnd_model_forward.1} parent=0 // pred_region
    _
  $region13: #{rnd_model_forward.1} parent=0 // pred_fallthru
    _
  // Predicated region
  $region14: #{rnd_model_forward.1} parent=0 // pred_check
    _
  $region15: #{rnd_model_forward.1} parent=0 // pred_check_branch
    %23 = sbr.rel (0) target = $region17
  $region16: #{rnd_model_forward.1} parent=0 // pred_region
    _
  $region17: #{rnd_model_forward.1} parent=0 // pred_fallthru
    _
  // Predicated region
  $region18: #{rnd_model_forward.1} parent=0 // pred_check
    _
  $region19: #{rnd_model_forward.1} parent=0 // pred_check_branch
    %25 = sbr.rel (0) target = $region21
  $region20: #{rnd_model_forward.1} parent=0 // pred_region
    _
  $region21: #{rnd_model_forward.1} parent=0 // pred_fallthru
    _
  // Predicated region
  $region22: #{rnd_model_forward.1} parent=0 // pred_check
    _
  $region23: #{rnd_model_forward.1} parent=0 // pred_check_branch
    %27 = sbr.rel (0) target = $region25
  $region24: #{rnd_model_forward.1} parent=0 // pred_region
    _
  $region25: #{rnd_model_forward.1} parent=0 // pred_fallthru
    _
  // Predicated region
  $region26: #{rnd_model_forward.1} parent=0 // pred_check
    _
  $region27: #{rnd_model_forward.1} parent=0 // pred_check_branch
    %29 = sbr.rel (0) target = $region29
  $region28: #{rnd_model_forward.1} parent=0 // pred_region
    _
  $region29: #{rnd_model_forward.1} parent=0 // pred_fallthru
    _
  // Predicated region
  $region30: #{rnd_model_forward.1} parent=0 // pred_check
    _
  $region31: #{rnd_model_forward.1} parent=0 // pred_check_branch
    %31 = sbr.rel (0) target = $region33
  $region32: #{rnd_model_forward.1} parent=0 // pred_region
    _
  $region33: #{rnd_model_forward.1} parent=0 // pred_fallthru
    _
  // Predicated region
  $region34: #{rnd_model_forward.1} parent=0 // pred_check
    _
  $region35: #{rnd_model_forward.1} parent=0 // pred_check_branch
    %33 = sbr.rel (0) target = $region37
  $region36: #{rnd_model_forward.1} parent=0 // pred_region
    _
  $region37: #{rnd_model_forward.1} parent=0 // pred_fallthru
    _
  // Predicated region
  $region38: #{rnd_model_forward.1} parent=0 // pred_check
    _
  $region39: #{rnd_model_forward.1} parent=0 // pred_check_branch
    %35 = sbr.rel (0) target = $region41
  $region40: #{rnd_model_forward.1} parent=0 // pred_region
    _
  $region41: #{rnd_model_forward.1} parent=0 // pred_fallthru
    _
  // Predicated region
  $region42: #{rnd_model_forward.1} parent=0 // pred_check
    _
  $region43: #{rnd_model_forward.1} parent=0 // pred_check_branch
    %37 = sbr.rel (0) target = $region45
  $region44: #{rnd_model_forward.1} parent=0 // pred_region
    _
  $region45: #{rnd_model_forward.1} parent=0 // pred_fallthru
    _
  %v39 = vld [vmem:[%s0] sm:$0xff]
  %v40 = vld [vmem:[%s0 + $0x8] sm:$0xff]
  %v41 = vld [vmem:[%s0 + $0x10] sm:$0xff]
  %v42 = vld [vmem:[%s0 + $0x18] sm:$0xff]
  %v43 = vld [vmem:[%s0 + $0x20] sm:$0xff]
  %v44 = vld [vmem:[%s0 + $0x28] sm:$0xff]
  %v45 = vld [vmem:[%s0 + $0x30] sm:$0xff]
  %v46 = vld [vmem:[%s0 + $0x38] sm:$0xff]
  %v47 = vld [vmem:[%s0 + $0x40] sm:$0xff]
  %v48 = vld [vmem:[%s0 + $0x48] sm:$0xff]
  %v49 = vld [vmem:[%s0 + $0x50] sm:$0xff]
  %v50 = vld [vmem:[%s0 + $0x58] sm:$0xff]
  %v51 = vld [vmem:[%s0 + $0x60] sm:$0xff]
  %v52 = vld [vmem:[%s0 + $0x68] sm:$0xff]
  %v53 = vld [vmem:[%s0 + $0x70] sm:$0xff]
  %v54 = vld [vmem:[%s0 + $0x78] sm:$0xff]
  %v55 = vld [vmem:[%s0 + $0x80] sm:$0xff]
  %v56 = vld [vmem:[%s0 + $0x88] sm:$0xff]
  %v57 = vld [vmem:[%s0 + $0x90] sm:$0xff]
  %v58 = vld [vmem:[%s0 + $0x98] sm:$0xff]
  %v59 = vld [vmem:[%s0 + $0xa0] sm:$0xff]
  %v60 = vld [vmem:[%s0 + $0xa8] sm:$0xff]
  %v61 = vld [vmem:[%s0 + $0xb0] sm:$0xff]
  %v62 = vld [vmem:[%s0 + $0xb8] sm:$0xff]
  %v63 = vld [vmem:[%s0 + $0xc0] sm:$0xff]
  %v64 = vld [vmem:[%s0 + $0xc8] sm:$0xff]
  %v65 = vld [vmem:[%s0 + $0xd0] sm:$0xff]
  %v66 = vld [vmem:[%s0 + $0xd8] sm:$0xff]
  %v67 = vld [vmem:[%s0 + $0xe0] sm:$0xff]
  %v68 = vld [vmem:[%s0 + $0xe8] sm:$0xff]
  %v69 = vld [vmem:[%s0 + $0xf0] sm:$0xff]
  %v70 = vld [vmem:[%s0 + $0xf8] sm:$0xff]
  %v71 = vld [vmem:[%s0 + $0x100] sm:$0xff]
  %v72 = vld [vmem:[%s0 + $0x108] sm:$0xff]
  %v73 = vld [vmem:[%s0 + $0x110] sm:$0xff]
  %v74 = vld [vmem:[%s0 + $0x118] sm:$0xff]
  %v75 = vld [vmem:[%s0 + $0x120] sm:$0xff]
  %v76 = vld [vmem:[%s0 + $0x128] sm:$0xff]
  %v77 = vld [vmem:[%s0 + $0x130] sm:$0xff]
  %v78 = vld [vmem:[%s0 + $0x138] sm:$0xff]
  %v79 = vld [vmem:[%s0 + $0x140] sm:$0xff]
  %v80 = vld [vmem:[%s0 + $0x148] sm:$0xff]
  %v81 = vld [vmem:[%s0 + $0x150] sm:$0xff]
  %v82 = vld [vmem:[%s0 + $0x158] sm:$0xff]
  %v83 = vld [vmem:[%s0 + $0x160] sm:$0xff]
  %v84 = vld [vmem:[%s0 + $0x168] sm:$0xff]
  %v85 = vld [vmem:[%s0 + $0x170] sm:$0xff]
  %v86 = vld [vmem:[%s0 + $0x178] sm:$0xff]
  %v87 = vld [vmem:[%s0 + $0x180] sm:$0xff]
  %v88 = vld [vmem:[%s0 + $0x188] sm:$0xff]
  %v89 = vld [vmem:[%s0 + $0x190] sm:$0xff]
  %v90 = vld [vmem:[%s0 + $0x198] sm:$0xff]
  %v91 = vld [vmem:[%s0 + $0x1a0] sm:$0xff]
  %v92 = vld [vmem:[%s0 + $0x1a8] sm:$0xff]
  %v93 = vld [vmem:[%s0 + $0x1b0] sm:$0xff]
  %v94 = vld [vmem:[%s0 + $0x1b8] sm:$0xff]
  %v95 = vld [vmem:[%s0 + $0x1c0] sm:$0xff]
  %v96 = vld [vmem:[%s0 + $0x1c8] sm:$0xff]
  %v97 = vld [vmem:[%s0 + $0x1d0] sm:$0xff]
  %v98 = vld [vmem:[%s0 + $0x1d8] sm:$0xff]
  %v99 = vld [vmem:[%s0 + $0x1e0] sm:$0xff]
  %v100 = vld [vmem:[%s0 + $0x1e8] sm:$0xff]
  %v101 = vld [vmem:[%s0 + $0x1f0] sm:$0xff]
  %v102 = vld [vmem:[%s0 + $0x1f8] sm:$0xff]
  %v103 = vld [vmem:[%s0 + $0x200] sm:$0xff]
  %v104 = vld [vmem:[%s0 + $0x208] sm:$0xff]
  %v105 = vld [vmem:[%s0 + $0x210] sm:$0xff]
  %v106 = vld [vmem:[%s0 + $0x218] sm:$0xff]
  %v107 = vld [vmem:[%s0 + $0x220] sm:$0xff]
  %v108 = vld [vmem:[%s0 + $0x228] sm:$0xff]
  %v109 = vld [vmem:[%s0 + $0x230] sm:$0xff]
  %v110 = vld [vmem:[%s0 + $0x238] sm:$0xff]
  %v111 = vld [vmem:[%s0 + $0x240] sm:$0xff]
  %v112 = vld [vmem:[%s0 + $0x248] sm:$0xff]
  %v113 = vld [vmem:[%s0 + $0x250] sm:$0xff]
  %v114 = vld [vmem:[%s0 + $0x258] sm:$0xff]
  %v115 = vld [vmem:[%s0 + $0x260] sm:$0xff]
  %v116 = vld [vmem:[%s0 + $0x268] sm:$0xff]
  %v117 = vld [vmem:[%s0 + $0x270] sm:$0xff]
  %v118 = vld [vmem:[%s0 + $0x278] sm:$0xff]
  %v119 = vld [vmem:[%s0 + $0x280] sm:$0xff]
  %v120 = vld [vmem:[%s0 + $0x288] sm:$0xff]
  %v121 = vld [vmem:[%s0 + $0x290] sm:$0xff]
  %v122 = vld [vmem:[%s0 + $0x298] sm:$0xff]
  %v123 = vld [vmem:[%s0 + $0x2a0] sm:$0xff]
  %v124 = vld [vmem:[%s0 + $0x2a8] sm:$0xff]
  %v125 = vld [vmem:[%s0 + $0x2b0] sm:$0xff]
  %v126 = vld [vmem:[%s0 + $0x2b8] sm:$0xff]
  %v127 = vld [vmem:[%s0 + $0x2c0] sm:$0xff]
  %v128 = vld [vmem:[%s0 + $0x2c8] sm:$0xff]
  %v129 = vld [vmem:[%s0 + $0x2d0] sm:$0xff]
  %v130 = vld [vmem:[%s0 + $0x2d8] sm:$0xff]
  %v131 = vld [vmem:[%s0 + $0x2e0] sm:$0xff]
  %v132 = vld [vmem:[%s0 + $0x2e8] sm:$0xff]
  %v133 = vld [vmem:[%s0 + $0x2f0] sm:$0xff]
  %v134 = vld [vmem:[%s0 + $0x2f8] sm:$0xff]
  %v135 = vld [vmem:[%s0 + $0x300] sm:$0xff]
  %v136 = vld [vmem:[%s0 + $0x308] sm:$0xff]
  %v137 = vld [vmem:[%s0 + $0x310] sm:$0xff]
  %v138 = vld [vmem:[%s0 + $0x318] sm:$0xff]
  %v139 = vld [vmem:[%s0 + $0x320] sm:$0xff]
  %v140 = vld [vmem:[%s0 + $0x328] sm:$0xff]
  %v141 = vld [vmem:[%s0 + $0x330] sm:$0xff]
  %v142 = vld [vmem:[%s0 + $0x338] sm:$0xff]
  %v143 = vld [vmem:[%s0 + $0x340] sm:$0xff]
  %v144 = vld [vmem:[%s0 + $0x348] sm:$0xff]
  %v145 = vld [vmem:[%s0 + $0x350] sm:$0xff]
  %v146 = vld [vmem:[%s0 + $0x358] sm:$0xff]
  %v147 = vld [vmem:[%s0 + $0x360] sm:$0xff]
  %v148 = vld [vmem:[%s0 + $0x368] sm:$0xff]
  %v149 = vld [vmem:[%s0 + $0x370] sm:$0xff]
  %v150 = vld [vmem:[%s0 + $0x378] sm:$0xff]
  %v151 = vld [vmem:[%s0 + $0x380] sm:$0xff]
  %v152 = vld [vmem:[%s0 + $0x388] sm:$0xff]
  %v153 = vld [vmem:[%s0 + $0x390] sm:$0xff]
  %v154 = vld [vmem:[%s0 + $0x398] sm:$0xff]
  %v155 = vld [vmem:[%s0 + $0x3a0] sm:$0xff]
  %v156 = vld [vmem:[%s0 + $0x3a8] sm:$0xff]
  %v157 = vld [vmem:[%s0 + $0x3b0] sm:$0xff]
  %v158 = vld [vmem:[%s0 + $0x3b8] sm:$0xff]
  %v159 = vld [vmem:[%s0 + $0x3c0] sm:$0xff]
  %v160 = vld [vmem:[%s0 + $0x3c8] sm:$0xff]
  %v161 = vld [vmem:[%s0 + $0x3d0] sm:$0xff]
  %v162 = vld [vmem:[%s0 + $0x3d8] sm:$0xff]
  %v163 = vld [vmem:[%s0 + $0x3e0] sm:$0xff]
  %v164 = vld [vmem:[%s0 + $0x3e8] sm:$0xff]
  %v165 = vld [vmem:[%s0 + $0x3f0] sm:$0xff]
  %v166 = vld [vmem:[%s0 + $0x3f8] sm:$0xff]
  %v167 = vld [vmem:[%s0 + $0x400] sm:$0xff]
  %v168 = vld [vmem:[%s0 + $0x408] sm:$0xff]
  %v169 = vld [vmem:[%s0 + $0x410] sm:$0xff]
  %v170 = vld [vmem:[%s0 + $0x418] sm:$0xff]
  %v171 = vld [vmem:[%s0 + $0x420] sm:$0xff]
  %v172 = vld [vmem:[%s0 + $0x428] sm:$0xff]
  %v173 = vld [vmem:[%s0 + $0x430] sm:$0xff]
  %v174 = vld [vmem:[%s0 + $0x438] sm:$0xff]
  %v175 = vld [vmem:[%s0 + $0x440] sm:$0xff]
  %v176 = vld [vmem:[%s0 + $0x448] sm:$0xff]
  %v177 = vld [vmem:[%s0 + $0x450] sm:$0xff]
  %v178 = vld [vmem:[%s0 + $0x458] sm:$0xff]
  %v179 = vld [vmem:[%s0 + $0x460] sm:$0xff]
  %v180 = vld [vmem:[%s0 + $0x468] sm:$0xff]
  %v181 = vld [vmem:[%s0 + $0x470] sm:$0xff]
  %v182 = vld [vmem:[%s0 + $0x478] sm:$0xff]
  %v183 = vld [vmem:[%s1] sm:$0xf]
  %v184 = vld [vmem:[%s1 + $0x4] sm:$0xf]
  %v185 = vld [vmem:[%s1 + $0x8] sm:$0xf]
  %v186 = vld [vmem:[%s1 + $0xc] sm:$0xf]
  %v187 = vld [vmem:[%s1 + $0x10] sm:$0xf]
  %v188 = vld [vmem:[%s1 + $0x14] sm:$0xf]
  %v189 = vld [vmem:[%s1 + $0x18] sm:$0xf]
  %v190 = vld [vmem:[%s1 + $0x1c] sm:$0xf]
  %v191 = vld [vmem:[%s1 + $0x20] sm:$0xf]
  %v192 = vld [vmem:[%s1 + $0x24] sm:$0xf]
  %v193 = vld [vmem:[%s1 + $0x28] sm:$0xf]
  %v194 = vld [vmem:[%s1 + $0x2c] sm:$0xf]
  %v195 = vld [vmem:[%s1 + $0x30] sm:$0xf]
  %v196 = vld [vmem:[%s1 + $0x34] sm:$0xf]
  %v197 = vld [vmem:[%s1 + $0x38] sm:$0xf]
  %v198 = vld [vmem:[%s1 + $0x3c] sm:$0xf]
  %v199 = vld [vmem:[%s1 + $0x40] sm:$0xf]
  %v200 = vld [vmem:[%s1 + $0x44] sm:$0xf]
  %v201 = vld [vmem:[%s1 + $0x48] sm:$0xf]
  %v202 = vld [vmem:[%s1 + $0x4c] sm:$0xf]
  %v203 = vld [vmem:[%s1 + $0x50] sm:$0xf]
  %v204 = vld [vmem:[%s1 + $0x54] sm:$0xf]
  %v205 = vld [vmem:[%s1 + $0x58] sm:$0xf]
  %v206 = vld [vmem:[%s1 + $0x5c] sm:$0xf]
  %v207 = vld [vmem:[%s2] sm:$0x1]
  %v209 = vlaneseq
  %v210 = vshrl.u32 %v209, 7
  %v211 = vsub.s32 0, %v210
  %v212 = vrot.slane %v207, %v211
  %v358 = vunpack.c.l.b16 %v39
  %v359 = vunpack.c.h.b16 %v39
  %v360 = vunpack.c.l.b16 %v40
  %v361 = vunpack.c.h.b16 %v40
  %v362 = vunpack.c.l.b16 %v41
  %v363 = vunpack.c.h.b16 %v41
  %v364 = vunpack.c.l.b16 %v42
  %v365 = vunpack.c.h.b16 %v42
  %v366 = vunpack.c.l.b16 %v43
  %v367 = vunpack.c.h.b16 %v43
  %v368 = vunpack.c.l.b16 %v44
  %v369 = vunpack.c.h.b16 %v44
  %v370 = vunpack.c.l.b16 %v45
  %v371 = vunpack.c.h.b16 %v45
  %v372 = vunpack.c.l.b16 %v46
  %v373 = vunpack.c.h.b16 %v46
  %v374 = vunpack.c.l.b16 %v47
  %v375 = vunpack.c.h.b16 %v47
  %v376 = vunpack.c.l.b16 %v48
  %v377 = vunpack.c.h.b16 %v48
  %v378 = vunpack.c.l.b16 %v49
  %v379 = vunpack.c.h.b16 %v49
  %v380 = vunpack.c.l.b16 %v50
  %v381 = vunpack.c.h.b16 %v50
  %v382 = vunpack.c.l.b16 %v51
  %v383 = vunpack.c.h.b16 %v51
  %v384 = vunpack.c.l.b16 %v52
  %v385 = vunpack.c.h.b16 %v52
  %v386 = vunpack.c.l.b16 %v53
  %v387 = vunpack.c.h.b16 %v53
  %v388 = vunpack.c.l.b16 %v54
  %v389 = vunpack.c.h.b16 %v54
  %v390 = vunpack.c.l.b16 %v55
  %v391 = vunpack.c.h.b16 %v55
  %v392 = vunpack.c.l.b16 %v56
  %v393 = vunpack.c.h.b16 %v56
  %v394 = vunpack.c.l.b16 %v57
  %v395 = vunpack.c.h.b16 %v57
  %v396 = vunpack.c.l.b16 %v58
  %v397 = vunpack.c.h.b16 %v58
  %v398 = vunpack.c.l.b16 %v59
  %v399 = vunpack.c.h.b16 %v59
  %v400 = vunpack.c.l.b16 %v60
  %v401 = vunpack.c.h.b16 %v60
  %v402 = vunpack.c.l.b16 %v61
  %v403 = vunpack.c.h.b16 %v61
  %v404 = vunpack.c.l.b16 %v62
  %v405 = vunpack.c.h.b16 %v62
  %v406 = vunpack.c.l.b16 %v63
  %v407 = vunpack.c.h.b16 %v63
  %v408 = vunpack.c.l.b16 %v64
  %v409 = vunpack.c.h.b16 %v64
  %v410 = vunpack.c.l.b16 %v65
  %v411 = vunpack.c.h.b16 %v65
  %v412 = vunpack.c.l.b16 %v66
  %v413 = vunpack.c.h.b16 %v66
  %v414 = vunpack.c.l.b16 %v67
  %v415 = vunpack.c.h.b16 %v67
  %v416 = vunpack.c.l.b16 %v68
  %v417 = vunpack.c.h.b16 %v68
  %v418 = vunpack.c.l.b16 %v69
  %v419 = vunpack.c.h.b16 %v69
  %v420 = vunpack.c.l.b16 %v70
  %v421 = vunpack.c.h.b16 %v70
  %v422 = vunpack.c.l.b16 %v71
  %v423 = vunpack.c.h.b16 %v71
  %v424 = vunpack.c.l.b16 %v72
  %v425 = vunpack.c.h.b16 %v72
  %v426 = vunpack.c.l.b16 %v73
  %v427 = vunpack.c.h.b16 %v73
  %v428 = vunpack.c.l.b16 %v74
  %v429 = vunpack.c.h.b16 %v74
  %v430 = vunpack.c.l.b16 %v75
  %v431 = vunpack.c.h.b16 %v75
  %v432 = vunpack.c.l.b16 %v76
  %v433 = vunpack.c.h.b16 %v76
  %v434 = vunpack.c.l.b16 %v77
  %v435 = vunpack.c.h.b16 %v77
  %v436 = vunpack.c.l.b16 %v78
  %v437 = vunpack.c.h.b16 %v78
  %v438 = vunpack.c.l.b16 %v79
  %v439 = vunpack.c.h.b16 %v79
  %v440 = vunpack.c.l.b16 %v80
  %v441 = vunpack.c.h.b16 %v80
  %v442 = vunpack.c.l.b16 %v81
  %v443 = vunpack.c.h.b16 %v81
  %v444 = vunpack.c.l.b16 %v82
  %v445 = vunpack.c.h.b16 %v82
  %v446 = vunpack.c.l.b16 %v83
  %v447 = vunpack.c.h.b16 %v83
  %v448 = vunpack.c.l.b16 %v84
  %v449 = vunpack.c.h.b16 %v84
  %v450 = vunpack.c.l.b16 %v85
  %v451 = vunpack.c.h.b16 %v85
  %v452 = vunpack.c.l.b16 %v86
  %v453 = vunpack.c.h.b16 %v86
  %v454 = vunpack.c.l.b16 %v87
  %v455 = vunpack.c.h.b16 %v87
  %v456 = vunpack.c.l.b16 %v88
  %v457 = vunpack.c.h.b16 %v88
  %v458 = vunpack.c.l.b16 %v89
  %v459 = vunpack.c.h.b16 %v89
  %v460 = vunpack.c.l.b16 %v90
  %v461 = vunpack.c.h.b16 %v90
  %v462 = vunpack.c.l.b16 %v91
  %v463 = vunpack.c.h.b16 %v91
  %v464 = vunpack.c.l.b16 %v92
  %v465 = vunpack.c.h.b16 %v92
  %v466 = vunpack.c.l.b16 %v93
  %v467 = vunpack.c.h.b16 %v93
  %v468 = vunpack.c.l.b16 %v94
  %v469 = vunpack.c.h.b16 %v94
  %v470 = vunpack.c.l.b16 %v95
  %v471 = vunpack.c.h.b16 %v95
  %v472 = vunpack.c.l.b16 %v96
  %v473 = vunpack.c.h.b16 %v96
  %v474 = vunpack.c.l.b16 %v97
  %v475 = vunpack.c.h.b16 %v97
  %v476 = vunpack.c.l.b16 %v98
  %v477 = vunpack.c.h.b16 %v98
  %v478 = vunpack.c.l.b16 %v99
  %v479 = vunpack.c.h.b16 %v99
  %v480 = vunpack.c.l.b16 %v100
  %v481 = vunpack.c.h.b16 %v100
  %v482 = vunpack.c.l.b16 %v101
  %v483 = vunpack.c.h.b16 %v101
  %v484 = vunpack.c.l.b16 %v102
  %v485 = vunpack.c.h.b16 %v102
  %v486 = vunpack.c.l.b16 %v103
  %v487 = vunpack.c.h.b16 %v103
  %v488 = vunpack.c.l.b16 %v104
  %v489 = vunpack.c.h.b16 %v104
  %v490 = vunpack.c.l.b16 %v105
  %v491 = vunpack.c.h.b16 %v105
  %v492 = vunpack.c.l.b16 %v106
  %v493 = vunpack.c.h.b16 %v106
  %v494 = vunpack.c.l.b16 %v107
  %v495 = vunpack.c.h.b16 %v107
  %v496 = vunpack.c.l.b16 %v108
  %v497 = vunpack.c.h.b16 %v108
  %v498 = vunpack.c.l.b16 %v109
  %v499 = vunpack.c.h.b16 %v109
  %v500 = vunpack.c.l.b16 %v110
  %v501 = vunpack.c.h.b16 %v110
  %v502 = vunpack.c.l.b16 %v111
  %v503 = vunpack.c.h.b16 %v111
  %v504 = vunpack.c.l.b16 %v112
  %v505 = vunpack.c.h.b16 %v112
  %v506 = vunpack.c.l.b16 %v113
  %v507 = vunpack.c.h.b16 %v113
  %v508 = vunpack.c.l.b16 %v114
  %v509 = vunpack.c.h.b16 %v114
  %v510 = vunpack.c.l.b16 %v115
  %v511 = vunpack.c.h.b16 %v115
  %v512 = vunpack.c.l.b16 %v116
  %v513 = vunpack.c.h.b16 %v116
  %v514 = vunpack.c.l.b16 %v117
  %v515 = vunpack.c.h.b16 %v117
  %v516 = vunpack.c.l.b16 %v118
  %v517 = vunpack.c.h.b16 %v118
  %v518 = vunpack.c.l.b16 %v119
  %v519 = vunpack.c.h.b16 %v119
  %v520 = vunpack.c.l.b16 %v120
  %v521 = vunpack.c.h.b16 %v120
  %v522 = vunpack.c.l.b16 %v121
  %v523 = vunpack.c.h.b16 %v121
  %v524 = vunpack.c.l.b16 %v122
  %v525 = vunpack.c.h.b16 %v122
  %v526 = vunpack.c.l.b16 %v123
  %v527 = vunpack.c.h.b16 %v123
  %v528 = vunpack.c.l.b16 %v124
  %v529 = vunpack.c.h.b16 %v124
  %v530 = vunpack.c.l.b16 %v125
  %v531 = vunpack.c.h.b16 %v125
  %v532 = vunpack.c.l.b16 %v126
  %v533 = vunpack.c.h.b16 %v126
  %v534 = vunpack.c.l.b16 %v127
  %v535 = vunpack.c.h.b16 %v127
  %v536 = vunpack.c.l.b16 %v128
  %v537 = vunpack.c.h.b16 %v128
  %v538 = vunpack.c.l.b16 %v129
  %v539 = vunpack.c.h.b16 %v129
  %v540 = vunpack.c.l.b16 %v130
  %v541 = vunpack.c.h.b16 %v130
  %v542 = vunpack.c.l.b16 %v131
  %v543 = vunpack.c.h.b16 %v131
  %v544 = vunpack.c.l.b16 %v132
  %v545 = vunpack.c.h.b16 %v132
  %v546 = vunpack.c.l.b16 %v133
  %v547 = vunpack.c.h.b16 %v133
  %v548 = vunpack.c.l.b16 %v134
  %v549 = vunpack.c.h.b16 %v134
  %v550 = vunpack.c.l.b16 %v135
  %v551 = vunpack.c.h.b16 %v135
  %v552 = vunpack.c.l.b16 %v136
  %v553 = vunpack.c.h.b16 %v136
  %v554 = vunpack.c.l.b16 %v137
  %v555 = vunpack.c.h.b16 %v137
  %v556 = vunpack.c.l.b16 %v138
  %v557 = vunpack.c.h.b16 %v138
  %v558 = vunpack.c.l.b16 %v139
  %v559 = vunpack.c.h.b16 %v139
  %v560 = vunpack.c.l.b16 %v140
  %v561 = vunpack.c.h.b16 %v140
  %v562 = vunpack.c.l.b16 %v141
  %v563 = vunpack.c.h.b16 %v141
  %v564 = vunpack.c.l.b16 %v142
  %v565 = vunpack.c.h.b16 %v142
  %v566 = vunpack.c.l.b16 %v143
  %v567 = vunpack.c.h.b16 %v143
  %v568 = vunpack.c.l.b16 %v144
  %v569 = vunpack.c.h.b16 %v144
  %v570 = vunpack.c.l.b16 %v145
  %v571 = vunpack.c.h.b16 %v145
  %v572 = vunpack.c.l.b16 %v146
  %v573 = vunpack.c.h.b16 %v146
  %v574 = vunpack.c.l.b16 %v147
  %v575 = vunpack.c.h.b16 %v147
  %v576 = vunpack.c.l.b16 %v148
  %v577 = vunpack.c.h.b16 %v148
  %v578 = vunpack.c.l.b16 %v149
  %v579 = vunpack.c.h.b16 %v149
  %v580 = vunpack.c.l.b16 %v150
  %v581 = vunpack.c.h.b16 %v150
  %v582 = vunpack.c.l.b16 %v151
  %v583 = vunpack.c.h.b16 %v151
  %v584 = vunpack.c.l.b16 %v152
  %v585 = vunpack.c.h.b16 %v152
  %v586 = vunpack.c.l.b16 %v153
  %v587 = vunpack.c.h.b16 %v153
  %v588 = vunpack.c.l.b16 %v154
  %v589 = vunpack.c.h.b16 %v154
  %v590 = vunpack.c.l.b16 %v155
  %v591 = vunpack.c.h.b16 %v155
  %v592 = vunpack.c.l.b16 %v156
  %v593 = vunpack.c.h.b16 %v156
  %v594 = vunpack.c.l.b16 %v157
  %v595 = vunpack.c.h.b16 %v157
  %v596 = vunpack.c.l.b16 %v158
  %v597 = vunpack.c.h.b16 %v158
  %v598 = vunpack.c.l.b16 %v159
  %v599 = vunpack.c.h.b16 %v159
  %v600 = vunpack.c.l.b16 %v160
  %v601 = vunpack.c.h.b16 %v160
  %v602 = vunpack.c.l.b16 %v161
  %v603 = vunpack.c.h.b16 %v161
  %v604 = vunpack.c.l.b16 %v162
  %v605 = vunpack.c.h.b16 %v162
  %v606 = vunpack.c.l.b16 %v163
  %v607 = vunpack.c.h.b16 %v163
  %v608 = vunpack.c.l.b16 %v164
  %v609 = vunpack.c.h.b16 %v164
  %v610 = vunpack.c.l.b16 %v165
  %v611 = vunpack.c.h.b16 %v165
  %v612 = vunpack.c.l.b16 %v166
  %v613 = vunpack.c.h.b16 %v166
  %v614 = vunpack.c.l.b16 %v167
  %v615 = vunpack.c.h.b16 %v167
  %v616 = vunpack.c.l.b16 %v168
  %v617 = vunpack.c.h.b16 %v168
  %v618 = vunpack.c.l.b16 %v169
  %v619 = vunpack.c.h.b16 %v169
  %v620 = vunpack.c.l.b16 %v170
  %v621 = vunpack.c.h.b16 %v170
  %v622 = vunpack.c.l.b16 %v171
  %v623 = vunpack.c.h.b16 %v171
  %v624 = vunpack.c.l.b16 %v172
  %v625 = vunpack.c.h.b16 %v172
  %v626 = vunpack.c.l.b16 %v173
  %v627 = vunpack.c.h.b16 %v173
  %v628 = vunpack.c.l.b16 %v174
  %v629 = vunpack.c.h.b16 %v174
  %v630 = vunpack.c.l.b16 %v175
  %v631 = vunpack.c.h.b16 %v175
  %v632 = vunpack.c.l.b16 %v176
  %v633 = vunpack.c.h.b16 %v176
  %v634 = vunpack.c.l.b16 %v177
  %v635 = vunpack.c.h.b16 %v177
  %v636 = vunpack.c.l.b16 %v178
  %v637 = vunpack.c.h.b16 %v178
  %v638 = vunpack.c.l.b16 %v179
  %v639 = vunpack.c.h.b16 %v179
  %v640 = vunpack.c.l.b16 %v180
  %v641 = vunpack.c.h.b16 %v180
  %v642 = vunpack.c.l.b16 %v181
  %v643 = vunpack.c.h.b16 %v181
  %v644 = vunpack.c.l.b16 %v182
  %v645 = vunpack.c.h.b16 %v182
  %v646 = vpack.c.b16 %v360, %v358
  %v647 = vpack.c.b16 %v361, %v359
  %v648 = vpack.c.b16 %v364, %v362
  %v649 = vpack.c.b16 %v365, %v363
  %v650 = vpack.c.b16 %v368, %v366
  %v651 = vpack.c.b16 %v369, %v367
  %v652 = vpack.c.b16 %v372, %v370
  %v653 = vpack.c.b16 %v373, %v371
  %v654 = vpack.c.b16 %v376, %v374
  %v655 = vpack.c.b16 %v377, %v375
  %v656 = vpack.c.b16 %v380, %v378
  %v657 = vpack.c.b16 %v381, %v379
  %v658 = vpack.c.b16 %v384, %v382
  %v659 = vpack.c.b16 %v385, %v383
  %v660 = vpack.c.b16 %v388, %v386
  %v661 = vpack.c.b16 %v389, %v387
  %v662 = vpack.c.b16 %v392, %v390
  %v663 = vpack.c.b16 %v393, %v391
  %v664 = vpack.c.b16 %v396, %v394
  %v665 = vpack.c.b16 %v397, %v395
  %v666 = vpack.c.b16 %v400, %v398
  %v667 = vpack.c.b16 %v401, %v399
  %v668 = vpack.c.b16 %v404, %v402
  %v669 = vpack.c.b16 %v405, %v403
  %v670 = vpack.c.b16 %v408, %v406
  %v671 = vpack.c.b16 %v409, %v407
  %v672 = vpack.c.b16 %v412, %v410
  %v673 = vpack.c.b16 %v413, %v411
  %v674 = vpack.c.b16 %v416, %v414
  %v675 = vpack.c.b16 %v417, %v415
  %v676 = vpack.c.b16 %v420, %v418
  %v677 = vpack.c.b16 %v421, %v419
  %v678 = vpack.c.b16 %v424, %v422
  %v679 = vpack.c.b16 %v425, %v423
  %v680 = vpack.c.b16 %v428, %v426
  %v681 = vpack.c.b16 %v429, %v427
  %v682 = vpack.c.b16 %v432, %v430
  %v683 = vpack.c.b16 %v433, %v431
  %v684 = vpack.c.b16 %v436, %v434
  %v685 = vpack.c.b16 %v437, %v435
  %v686 = vpack.c.b16 %v440, %v438
  %v687 = vpack.c.b16 %v441, %v439
  %v688 = vpack.c.b16 %v444, %v442
  %v689 = vpack.c.b16 %v445, %v443
  %v690 = vpack.c.b16 %v448, %v446
  %v691 = vpack.c.b16 %v449, %v447
  %v692 = vpack.c.b16 %v452, %v450
  %v693 = vpack.c.b16 %v453, %v451
  %v694 = vpack.c.b16 %v456, %v454
  %v695 = vpack.c.b16 %v457, %v455
  %v696 = vpack.c.b16 %v460, %v458
  %v697 = vpack.c.b16 %v461, %v459
  %v698 = vpack.c.b16 %v464, %v462
  %v699 = vpack.c.b16 %v465, %v463
  %v700 = vpack.c.b16 %v468, %v466
  %v701 = vpack.c.b16 %v469, %v467
  %v702 = vpack.c.b16 %v472, %v470
  %v703 = vpack.c.b16 %v473, %v471
  %v704 = vpack.c.b16 %v476, %v474
  %v705 = vpack.c.b16 %v477, %v475
  %v706 = vpack.c.b16 %v480, %v478
  %v707 = vpack.c.b16 %v481, %v479
  %v708 = vpack.c.b16 %v484, %v482
  %v709 = vpack.c.b16 %v485, %v483
  %v710 = vpack.c.b16 %v488, %v486
  %v711 = vpack.c.b16 %v489, %v487
  %v712 = vpack.c.b16 %v492, %v490
  %v713 = vpack.c.b16 %v493, %v491
  %v714 = vpack.c.b16 %v496, %v494
  %v715 = vpack.c.b16 %v497, %v495
  %v716 = vpack.c.b16 %v500, %v498
  %v717 = vpack.c.b16 %v501, %v499
  %v718 = vpack.c.b16 %v504, %v502
  %v719 = vpack.c.b16 %v505, %v503
  %v720 = vpack.c.b16 %v508, %v506
  %v721 = vpack.c.b16 %v509, %v507
  %v722 = vpack.c.b16 %v512, %v510
  %v723 = vpack.c.b16 %v513, %v511
  %v724 = vpack.c.b16 %v516, %v514
  %v725 = vpack.c.b16 %v517, %v515
  %v726 = vpack.c.b16 %v520, %v518
  %v727 = vpack.c.b16 %v521, %v519
  %v728 = vpack.c.b16 %v524, %v522
  %v729 = vpack.c.b16 %v525, %v523
  %v730 = vpack.c.b16 %v528, %v526
  %v731 = vpack.c.b16 %v529, %v527
  %v732 = vpack.c.b16 %v532, %v530
  %v733 = vpack.c.b16 %v533, %v531
  %v734 = vpack.c.b16 %v536, %v534
  %v735 = vpack.c.b16 %v537, %v535
  %v736 = vpack.c.b16 %v540, %v538
  %v737 = vpack.c.b16 %v541, %v539
  %v738 = vpack.c.b16 %v544, %v542
  %v739 = vpack.c.b16 %v545, %v543
  %v740 = vpack.c.b16 %v548, %v546
  %v741 = vpack.c.b16 %v549, %v547
  %v742 = vpack.c.b16 %v552, %v550
  %v743 = vpack.c.b16 %v553, %v551
  %v744 = vpack.c.b16 %v556, %v554
  %v745 = vpack.c.b16 %v557, %v555
  %v746 = vpack.c.b16 %v560, %v558
  %v747 = vpack.c.b16 %v561, %v559
  %v748 = vpack.c.b16 %v564, %v562
  %v749 = vpack.c.b16 %v565, %v563
  %v750 = vpack.c.b16 %v568, %v566
  %v751 = vpack.c.b16 %v569, %v567
  %v752 = vpack.c.b16 %v572, %v570
  %v753 = vpack.c.b16 %v573, %v571
  %v754 = vpack.c.b16 %v576, %v574
  %v755 = vpack.c.b16 %v577, %v575
  %v756 = vpack.c.b16 %v580, %v578
  %v757 = vpack.c.b16 %v581, %v579
  %v758 = vpack.c.b16 %v584, %v582
  %v759 = vpack.c.b16 %v585, %v583
  %v760 = vpack.c.b16 %v588, %v586
  %v761 = vpack.c.b16 %v589, %v587
  %v762 = vpack.c.b16 %v592, %v590
  %v763 = vpack.c.b16 %v593, %v591
  %v764 = vpack.c.b16 %v596, %v594
  %v765 = vpack.c.b16 %v597, %v595
  %v766 = vpack.c.b16 %v600, %v598
  %v767 = vpack.c.b16 %v601, %v599
  %v768 = vpack.c.b16 %v604, %v602
  %v769 = vpack.c.b16 %v605, %v603
  %v770 = vpack.c.b16 %v608, %v606
  %v771 = vpack.c.b16 %v609, %v607
  %v772 = vpack.c.b16 %v612, %v610
  %v773 = vpack.c.b16 %v613, %v611
  %v774 = vpack.c.b16 %v616, %v614
  %v775 = vpack.c.b16 %v617, %v615
  %v776 = vpack.c.b16 %v620, %v618
  %v777 = vpack.c.b16 %v621, %v619
  %v778 = vpack.c.b16 %v624, %v622
  %v779 = vpack.c.b16 %v625, %v623
  %v780 = vpack.c.b16 %v628, %v626
  %v781 = vpack.c.b16 %v629, %v627
  %v782 = vpack.c.b16 %v632, %v630
  %v783 = vpack.c.b16 %v633, %v631
  %v784 = vpack.c.b16 %v636, %v634
  %v785 = vpack.c.b16 %v637, %v635
  %v786 = vpack.c.b16 %v640, %v638
  %v787 = vpack.c.b16 %v641, %v639
  %v788 = vpack.c.b16 %v644, %v642
  %v789 = vpack.c.b16 %v645, %v643
  %v886 = vunpack.c.l.b16 %v183
  %v887 = vunpack.c.l.b16 %v184
  %v888 = vunpack.c.l.b16 %v185
  %v889 = vunpack.c.l.b16 %v186
  %v890 = vunpack.c.l.b16 %v187
  %v891 = vunpack.c.l.b16 %v188
  %v892 = vunpack.c.l.b16 %v189
  %v893 = vunpack.c.l.b16 %v190
  %v894 = vunpack.c.l.b16 %v191
  %v895 = vunpack.c.l.b16 %v192
  %v896 = vunpack.c.l.b16 %v193
  %v897 = vunpack.c.l.b16 %v194
  %v898 = vunpack.c.l.b16 %v195
  %v899 = vunpack.c.l.b16 %v196
  %v900 = vunpack.c.l.b16 %v197
  %v901 = vunpack.c.l.b16 %v198
  %v902 = vunpack.c.l.b16 %v199
  %v903 = vunpack.c.l.b16 %v200
  %v904 = vunpack.c.l.b16 %v201
  %v905 = vunpack.c.l.b16 %v202
  %v906 = vunpack.c.l.b16 %v203
  %v907 = vunpack.c.l.b16 %v204
  %v908 = vunpack.c.l.b16 %v205
  %v909 = vunpack.c.l.b16 %v206
  %v910 = vpack.c.b16 %v887, %v886
  %v911 = vpack.c.b16 %v889, %v888
  %v912 = vpack.c.b16 %v891, %v890
  %v913 = vpack.c.b16 %v893, %v892
  %v914 = vpack.c.b16 %v895, %v894
  %v915 = vpack.c.b16 %v897, %v896
  %v916 = vpack.c.b16 %v899, %v898
  %v917 = vpack.c.b16 %v901, %v900
  %v918 = vpack.c.b16 %v903, %v902
  %v919 = vpack.c.b16 %v905, %v904
  %v920 = vpack.c.b16 %v907, %v906
  %v921 = vpack.c.b16 %v909, %v908
  %vm934 = vcmask 523264
  %v936 = vsel %vm934, %v647, 0
  %v939 = vsel %vm934, %v649, 0
  %v942 = vsel %vm934, %v651, 0
  %v945 = vsel %vm934, %v653, 0
  %v948 = vsel %vm934, %v655, 0
  %v951 = vsel %vm934, %v657, 0
  %v954 = vsel %vm934, %v659, 0
  %v957 = vsel %vm934, %v661, 0
  %v960 = vsel %vm934, %v663, 0
  %v963 = vsel %vm934, %v665, 0
  %v966 = vsel %vm934, %v667, 0
  %v969 = vsel %vm934, %v669, 0
  %v972 = vsel %vm934, %v671, 0
  %v975 = vsel %vm934, %v673, 0
  %v978 = vsel %vm934, %v675, 0
  %v981 = vsel %vm934, %v677, 0
  %v984 = vsel %vm934, %v679, 0
  %v987 = vsel %vm934, %v681, 0
  %v990 = vsel %vm934, %v683, 0
  %v993 = vsel %vm934, %v685, 0
  %v996 = vsel %vm934, %v687, 0
  %v999 = vsel %vm934, %v689, 0
  %v1002 = vsel %vm934, %v691, 0
  %v1005 = vsel %vm934, %v693, 0
  %v1008 = vsel %vm934, %v695, 0
  %v1011 = vsel %vm934, %v697, 0
  %v1014 = vsel %vm934, %v699, 0
  %v1017 = vsel %vm934, %v701, 0
  %v1020 = vsel %vm934, %v703, 0
  %v1023 = vsel %vm934, %v705, 0
  %v1026 = vsel %vm934, %v707, 0
  %v1029 = vsel %vm934, %v709, 0
  %v1032 = vsel %vm934, %v711, 0
  %v1035 = vsel %vm934, %v713, 0
  %v1038 = vsel %vm934, %v715, 0
  %v1041 = vsel %vm934, %v717, 0
  %v1044 = vsel %vm934, %v719, 0
  %v1047 = vsel %vm934, %v721, 0
  %v1050 = vsel %vm934, %v723, 0
  %v1053 = vsel %vm934, %v725, 0
  %v1056 = vsel %vm934, %v727, 0
  %v1059 = vsel %vm934, %v729, 0
  %v1062 = vsel %vm934, %v731, 0
  %v1065 = vsel %vm934, %v733, 0
  %v1068 = vsel %vm934, %v735, 0
  %v1071 = vsel %vm934, %v737, 0
  %v1074 = vsel %vm934, %v739, 0
  %v1077 = vsel %vm934, %v741, 0
  %v1080 = vsel %vm934, %v743, 0
  %v1083 = vsel %vm934, %v745, 0
  %v1086 = vsel %vm934, %v747, 0
  %v1089 = vsel %vm934, %v749, 0
  %v1092 = vsel %vm934, %v751, 0
  %v1095 = vsel %vm934, %v753, 0
  %v1098 = vsel %vm934, %v755, 0
  %v1101 = vsel %vm934, %v757, 0
  %v1104 = vsel %vm934, %v759, 0
  %v1107 = vsel %vm934, %v761, 0
  %v1110 = vsel %vm934, %v763, 0
  %v1113 = vsel %vm934, %v765, 0
  %v1116 = vsel %vm934, %v767, 0
  %v1119 = vsel %vm934, %v769, 0
  %v1122 = vsel %vm934, %v771, 0
  %v1125 = vsel %vm934, %v773, 0
  %v1128 = vsel %vm934, %v775, 0
  %v1131 = vsel %vm934, %v777, 0
  %v1134 = vsel %vm934, %v779, 0
  %v1137 = vsel %vm934, %v781, 0
  %v1140 = vsel %vm934, %v783, 0
  %v1143 = vsel %vm934, %v785, 0
  %v1146 = vsel %vm934, %v787, 0
  %v1149 = vsel %vm934, %v789, 0
  %1151 = vmatprep.subr.bf16.mxu0 0
  %1152 = vmatpush1.bf16.msra.mxu0 %v917
  %1153 = vmatprep.subr.bf16.mxu0 0
  %1154 = vmatpush1.bf16.msra.mxu0 %v916
  %1155 = vmatprep.subr.bf16.mxu0 0
  %1156 = vmatpush1.bf16.msra.mxu0 %v915
  %1157 = vmatprep.subr.bf16.mxu0 0
  %1158 = vmatpush1.bf16.msra.mxu0 %v914
  %1159 = vmatprep.subr.bf16.mxu0 0
  %1160 = vmatpush1.bf16.msra.mxu0 %v913
  %1161 = vmatprep.subr.bf16.mxu0 0
  %1162 = vmatpush1.bf16.msra.mxu0 %v912
  %1163 = vmatprep.subr.bf16.mxu0 0
  %1164 = vmatpush1.bf16.msra.mxu0 %v911
  %1165 = vmatprep.subr.bf16.mxu0 0
  %1166 = vmatpush1.bf16.msra.mxu0 %v910
  %1167 = vmatprep.subr.bf16.mxu0 0
  %1168 = vmatpush2.bf16.msra.mxu0 0
  %1169 = vmatprep.subr.bf16.mxu0 0
  %1170 = vmatpush2.bf16.msra.mxu0 0
  %1171 = vmatprep.subr.bf16.mxu0 0
  %1172 = vmatpush2.bf16.msra.mxu0 0
  %1173 = vmatprep.subr.bf16.mxu0 0
  %1174 = vmatpush2.bf16.msra.mxu0 0
  %1175 = vmatprep.subr.bf16.mxu0 0
  %1176 = vmatpush2.bf16.msra.mxu0 %v921
  %1177 = vmatprep.subr.bf16.mxu0 0
  %1178 = vmatpush2.bf16.msra.mxu0 %v920
  %1179 = vmatprep.subr.bf16.mxu0 0
  %1180 = vmatpush2.bf16.msra.mxu0 %v919
  %1181 = vmatprep.subr.bf16.mxu0 0
  %1182 = vmatpush2.bf16.msra.mxu0 %v918
  %1183 = vmatprep.mubr.bf16.mxu0 %v936
  %1184 = vmatmul.mubr.bf16.gmra.mxu0 %v646
  %v1185 = vpop.f32.mrf.mxu0
  %v1186 = vadd.f32 %v212, %v1185
  %v1187 = vpop.f32.mrf.mxu0
  %v1188 = vpop.f32.mrf.mxu0
  %v1189 = vadd.f32 %v212, %v1188
  %v1190 = vpop.f32.mrf.mxu0
  %1191 = vmatprep.mubr.bf16.mxu0 %v939
  %1192 = vmatmul.mubr.bf16.gmra.mxu0 %v648
  %v1193 = vpop.f32.mrf.mxu0
  %v1194 = vadd.f32 %v212, %v1193
  %v1195 = vpop.f32.mrf.mxu0
  %v1196 = vpop.f32.mrf.mxu0
  %v1197 = vadd.f32 %v212, %v1196
  %v1198 = vpop.f32.mrf.mxu0
  %1199 = vmatprep.mubr.bf16.mxu0 %v942
  %1200 = vmatmul.mubr.bf16.gmra.mxu0 %v650
  %v1201 = vpop.f32.mrf.mxu0
  %v1202 = vadd.f32 %v212, %v1201
  %v1203 = vpop.f32.mrf.mxu0
  %v1204 = vpop.f32.mrf.mxu0
  %v1205 = vadd.f32 %v212, %v1204
  %v1206 = vpop.f32.mrf.mxu0
  %1207 = vmatprep.mubr.bf16.mxu0 %v945
  %1208 = vmatmul.mubr.bf16.gmra.mxu0 %v652
  %v1209 = vpop.f32.mrf.mxu0
  %v1210 = vadd.f32 %v212, %v1209
  %v1211 = vpop.f32.mrf.mxu0
  %v1212 = vpop.f32.mrf.mxu0
  %v1213 = vadd.f32 %v212, %v1212
  %v1214 = vpop.f32.mrf.mxu0
  %1215 = vmatprep.mubr.bf16.mxu0 %v948
  %1216 = vmatmul.mubr.bf16.gmra.mxu0 %v654
  %v1217 = vpop.f32.mrf.mxu0
  %v1218 = vadd.f32 %v212, %v1217
  %v1219 = vpop.f32.mrf.mxu0
  %v1220 = vpop.f32.mrf.mxu0
  %v1221 = vadd.f32 %v212, %v1220
  %v1222 = vpop.f32.mrf.mxu0
  %1223 = vmatprep.mubr.bf16.mxu0 %v951
  %1224 = vmatmul.mubr.bf16.gmra.mxu0 %v656
  %v1225 = vpop.f32.mrf.mxu0
  %v1226 = vadd.f32 %v212, %v1225
  %v1227 = vpop.f32.mrf.mxu0
  %v1228 = vpop.f32.mrf.mxu0
  %v1229 = vadd.f32 %v212, %v1228
  %v1230 = vpop.f32.mrf.mxu0
  %1231 = vmatprep.mubr.bf16.mxu0 %v954
  %1232 = vmatmul.mubr.bf16.gmra.mxu0 %v658
  %v1233 = vpop.f32.mrf.mxu0
  %v1234 = vadd.f32 %v212, %v1233
  %v1235 = vpop.f32.mrf.mxu0
  %v1236 = vpop.f32.mrf.mxu0
  %v1237 = vadd.f32 %v212, %v1236
  %v1238 = vpop.f32.mrf.mxu0
  %1239 = vmatprep.mubr.bf16.mxu0 %v957
  %1240 = vmatmul.mubr.bf16.gmra.mxu0 %v660
  %v1241 = vpop.f32.mrf.mxu0
  %v1242 = vadd.f32 %v212, %v1241
  %v1243 = vpop.f32.mrf.mxu0
  %v1244 = vpop.f32.mrf.mxu0
  %v1245 = vadd.f32 %v212, %v1244
  %v1246 = vpop.f32.mrf.mxu0
  %1247 = vmatprep.mubr.bf16.mxu0 %v960
  %1248 = vmatmul.mubr.bf16.gmra.mxu0 %v662
  %v1249 = vpop.f32.mrf.mxu0
  %v1250 = vadd.f32 %v212, %v1249
  %v1251 = vpop.f32.mrf.mxu0
  %v1252 = vpop.f32.mrf.mxu0
  %v1253 = vadd.f32 %v212, %v1252
  %v1254 = vpop.f32.mrf.mxu0
  %1255 = vmatprep.mubr.bf16.mxu0 %v963
  %1256 = vmatmul.mubr.bf16.gmra.mxu0 %v664
  %v1257 = vpop.f32.mrf.mxu0
  %v1258 = vadd.f32 %v212, %v1257
  %v1259 = vpop.f32.mrf.mxu0
  %v1260 = vpop.f32.mrf.mxu0
  %v1261 = vadd.f32 %v212, %v1260
  %v1262 = vpop.f32.mrf.mxu0
  %1263 = vmatprep.mubr.bf16.mxu0 %v966
  %1264 = vmatmul.mubr.bf16.gmra.mxu0 %v666
  %v1265 = vpop.f32.mrf.mxu0
  %v1266 = vadd.f32 %v212, %v1265
  %v1267 = vpop.f32.mrf.mxu0
  %v1268 = vpop.f32.mrf.mxu0
  %v1269 = vadd.f32 %v212, %v1268
  %v1270 = vpop.f32.mrf.mxu0
  %1271 = vmatprep.mubr.bf16.mxu0 %v969
  %1272 = vmatmul.mubr.bf16.gmra.mxu0 %v668
  %v1273 = vpop.f32.mrf.mxu0
  %v1274 = vadd.f32 %v212, %v1273
  %v1275 = vpop.f32.mrf.mxu0
  %v1276 = vpop.f32.mrf.mxu0
  %v1277 = vadd.f32 %v212, %v1276
  %v1278 = vpop.f32.mrf.mxu0
  %1279 = vmatprep.mubr.bf16.mxu0 %v972
  %1280 = vmatmul.mubr.bf16.gmra.mxu0 %v670
  %v1281 = vpop.f32.mrf.mxu0
  %v1282 = vadd.f32 %v212, %v1281
  %v1283 = vpop.f32.mrf.mxu0
  %v1284 = vpop.f32.mrf.mxu0
  %v1285 = vadd.f32 %v212, %v1284
  %v1286 = vpop.f32.mrf.mxu0
  %1287 = vmatprep.mubr.bf16.mxu0 %v975
  %1288 = vmatmul.mubr.bf16.gmra.mxu0 %v672
  %v1289 = vpop.f32.mrf.mxu0
  %v1290 = vadd.f32 %v212, %v1289
  %v1291 = vpop.f32.mrf.mxu0
  %v1292 = vpop.f32.mrf.mxu0
  %v1293 = vadd.f32 %v212, %v1292
  %v1294 = vpop.f32.mrf.mxu0
  %1295 = vmatprep.mubr.bf16.mxu0 %v978
  %1296 = vmatmul.mubr.bf16.gmra.mxu0 %v674
  %v1297 = vpop.f32.mrf.mxu0
  %v1298 = vadd.f32 %v212, %v1297
  %v1299 = vpop.f32.mrf.mxu0
  %v1300 = vpop.f32.mrf.mxu0
  %v1301 = vadd.f32 %v212, %v1300
  %v1302 = vpop.f32.mrf.mxu0
  %1303 = vmatprep.mubr.bf16.mxu0 %v981
  %1304 = vmatmul.mubr.bf16.gmra.mxu0 %v676
  %v1305 = vpop.f32.mrf.mxu0
  %v1306 = vadd.f32 %v212, %v1305
  %v1307 = vpop.f32.mrf.mxu0
  %v1308 = vpop.f32.mrf.mxu0
  %v1309 = vadd.f32 %v212, %v1308
  %v1310 = vpop.f32.mrf.mxu0
  %1311 = vmatprep.mubr.bf16.mxu0 %v984
  %1312 = vmatmul.mubr.bf16.gmra.mxu0 %v678
  %v1313 = vpop.f32.mrf.mxu0
  %v1314 = vadd.f32 %v212, %v1313
  %v1315 = vpop.f32.mrf.mxu0
  %v1316 = vpop.f32.mrf.mxu0
  %v1317 = vadd.f32 %v212, %v1316
  %v1318 = vpop.f32.mrf.mxu0
  %1319 = vmatprep.mubr.bf16.mxu0 %v987
  %1320 = vmatmul.mubr.bf16.gmra.mxu0 %v680
  %v1321 = vpop.f32.mrf.mxu0
  %v1322 = vadd.f32 %v212, %v1321
  %v1323 = vpop.f32.mrf.mxu0
  %v1324 = vpop.f32.mrf.mxu0
  %v1325 = vadd.f32 %v212, %v1324
  %v1326 = vpop.f32.mrf.mxu0
  %1327 = vmatprep.mubr.bf16.mxu0 %v990
  %1328 = vmatmul.mubr.bf16.gmra.mxu0 %v682
  %v1329 = vpop.f32.mrf.mxu0
  %v1330 = vadd.f32 %v212, %v1329
  %v1331 = vpop.f32.mrf.mxu0
  %v1332 = vpop.f32.mrf.mxu0
  %v1333 = vadd.f32 %v212, %v1332
  %v1334 = vpop.f32.mrf.mxu0
  %1335 = vmatprep.mubr.bf16.mxu0 %v993
  %1336 = vmatmul.mubr.bf16.gmra.mxu0 %v684
  %v1337 = vpop.f32.mrf.mxu0
  %v1338 = vadd.f32 %v212, %v1337
  %v1339 = vpop.f32.mrf.mxu0
  %v1340 = vpop.f32.mrf.mxu0
  %v1341 = vadd.f32 %v212, %v1340
  %v1342 = vpop.f32.mrf.mxu0
  %1343 = vmatprep.mubr.bf16.mxu0 %v996
  %1344 = vmatmul.mubr.bf16.gmra.mxu0 %v686
  %v1345 = vpop.f32.mrf.mxu0
  %v1346 = vadd.f32 %v212, %v1345
  %v1347 = vpop.f32.mrf.mxu0
  %v1348 = vpop.f32.mrf.mxu0
  %v1349 = vadd.f32 %v212, %v1348
  %v1350 = vpop.f32.mrf.mxu0
  %1351 = vmatprep.mubr.bf16.mxu0 %v999
  %1352 = vmatmul.mubr.bf16.gmra.mxu0 %v688
  %v1353 = vpop.f32.mrf.mxu0
  %v1354 = vadd.f32 %v212, %v1353
  %v1355 = vpop.f32.mrf.mxu0
  %v1356 = vpop.f32.mrf.mxu0
  %v1357 = vadd.f32 %v212, %v1356
  %v1358 = vpop.f32.mrf.mxu0
  %1359 = vmatprep.mubr.bf16.mxu0 %v1002
  %1360 = vmatmul.mubr.bf16.gmra.mxu0 %v690
  %v1361 = vpop.f32.mrf.mxu0
  %v1362 = vadd.f32 %v212, %v1361
  %v1363 = vpop.f32.mrf.mxu0
  %v1364 = vpop.f32.mrf.mxu0
  %v1365 = vadd.f32 %v212, %v1364
  %v1366 = vpop.f32.mrf.mxu0
  %1367 = vmatprep.mubr.bf16.mxu0 %v1005
  %1368 = vmatmul.mubr.bf16.gmra.mxu0 %v692
  %v1369 = vpop.f32.mrf.mxu0
  %v1370 = vadd.f32 %v212, %v1369
  %v1371 = vpop.f32.mrf.mxu0
  %v1372 = vpop.f32.mrf.mxu0
  %v1373 = vadd.f32 %v212, %v1372
  %v1374 = vpop.f32.mrf.mxu0
  %1375 = vmatprep.mubr.bf16.mxu0 %v1008
  %1376 = vmatmul.mubr.bf16.gmra.mxu0 %v694
  %v1377 = vpop.f32.mrf.mxu0
  %v1378 = vadd.f32 %v212, %v1377
  %v1379 = vpop.f32.mrf.mxu0
  %v1380 = vpop.f32.mrf.mxu0
  %v1381 = vadd.f32 %v212, %v1380
  %v1382 = vpop.f32.mrf.mxu0
  %1383 = vmatprep.mubr.bf16.mxu0 %v1011
  %1384 = vmatmul.mubr.bf16.gmra.mxu0 %v696
  %v1385 = vpop.f32.mrf.mxu0
  %v1386 = vadd.f32 %v212, %v1385
  %v1387 = vpop.f32.mrf.mxu0
  %v1388 = vpop.f32.mrf.mxu0
  %v1389 = vadd.f32 %v212, %v1388
  %v1390 = vpop.f32.mrf.mxu0
  %1391 = vmatprep.mubr.bf16.mxu0 %v1014
  %1392 = vmatmul.mubr.bf16.gmra.mxu0 %v698
  %v1393 = vpop.f32.mrf.mxu0
  %v1394 = vadd.f32 %v212, %v1393
  %v1395 = vpop.f32.mrf.mxu0
  %v1396 = vpop.f32.mrf.mxu0
  %v1397 = vadd.f32 %v212, %v1396
  %v1398 = vpop.f32.mrf.mxu0
  %1399 = vmatprep.mubr.bf16.mxu0 %v1017
  %1400 = vmatmul.mubr.bf16.gmra.mxu0 %v700
  %v1401 = vpop.f32.mrf.mxu0
  %v1402 = vadd.f32 %v212, %v1401
  %v1403 = vpop.f32.mrf.mxu0
  %v1404 = vpop.f32.mrf.mxu0
  %v1405 = vadd.f32 %v212, %v1404
  %v1406 = vpop.f32.mrf.mxu0
  %1407 = vmatprep.mubr.bf16.mxu0 %v1020
  %1408 = vmatmul.mubr.bf16.gmra.mxu0 %v702
  %v1409 = vpop.f32.mrf.mxu0
  %v1410 = vadd.f32 %v212, %v1409
  %v1411 = vpop.f32.mrf.mxu0
  %v1412 = vpop.f32.mrf.mxu0
  %v1413 = vadd.f32 %v212, %v1412
  %v1414 = vpop.f32.mrf.mxu0
  %1415 = vmatprep.mubr.bf16.mxu0 %v1023
  %1416 = vmatmul.mubr.bf16.gmra.mxu0 %v704
  %v1417 = vpop.f32.mrf.mxu0
  %v1418 = vadd.f32 %v212, %v1417
  %v1419 = vpop.f32.mrf.mxu0
  %v1420 = vpop.f32.mrf.mxu0
  %v1421 = vadd.f32 %v212, %v1420
  %v1422 = vpop.f32.mrf.mxu0
  %1423 = vmatprep.mubr.bf16.mxu0 %v1026
  %1424 = vmatmul.mubr.bf16.gmra.mxu0 %v706
  %v1425 = vpop.f32.mrf.mxu0
  %v1426 = vadd.f32 %v212, %v1425
  %v1427 = vpop.f32.mrf.mxu0
  %v1428 = vpop.f32.mrf.mxu0
  %v1429 = vadd.f32 %v212, %v1428
  %v1430 = vpop.f32.mrf.mxu0
  %1431 = vmatprep.mubr.bf16.mxu0 %v1029
  %1432 = vmatmul.mubr.bf16.gmra.mxu0 %v708
  %v1433 = vpop.f32.mrf.mxu0
  %v1434 = vadd.f32 %v212, %v1433
  %v1435 = vpop.f32.mrf.mxu0
  %v1436 = vpop.f32.mrf.mxu0
  %v1437 = vadd.f32 %v212, %v1436
  %v1438 = vpop.f32.mrf.mxu0
  %1439 = vmatprep.mubr.bf16.mxu0 %v1032
  %1440 = vmatmul.mubr.bf16.gmra.mxu0 %v710
  %v1441 = vpop.f32.mrf.mxu0
  %v1442 = vadd.f32 %v212, %v1441
  %v1443 = vpop.f32.mrf.mxu0
  %v1444 = vpop.f32.mrf.mxu0
  %v1445 = vadd.f32 %v212, %v1444
  %v1446 = vpop.f32.mrf.mxu0
  %1447 = vmatprep.mubr.bf16.mxu0 %v1035
  %1448 = vmatmul.mubr.bf16.gmra.mxu0 %v712
  %v1449 = vpop.f32.mrf.mxu0
  %v1450 = vadd.f32 %v212, %v1449
  %v1451 = vpop.f32.mrf.mxu0
  %v1452 = vpop.f32.mrf.mxu0
  %v1453 = vadd.f32 %v212, %v1452
  %v1454 = vpop.f32.mrf.mxu0
  %1455 = vmatprep.mubr.bf16.mxu0 %v1038
  %1456 = vmatmul.mubr.bf16.gmra.mxu0 %v714
  %v1457 = vpop.f32.mrf.mxu0
  %v1458 = vadd.f32 %v212, %v1457
  %v1459 = vpop.f32.mrf.mxu0
  %v1460 = vpop.f32.mrf.mxu0
  %v1461 = vadd.f32 %v212, %v1460
  %v1462 = vpop.f32.mrf.mxu0
  %1463 = vmatprep.mubr.bf16.mxu0 %v1041
  %1464 = vmatmul.mubr.bf16.gmra.mxu0 %v716
  %v1465 = vpop.f32.mrf.mxu0
  %v1466 = vadd.f32 %v212, %v1465
  %v1467 = vpop.f32.mrf.mxu0
  %v1468 = vpop.f32.mrf.mxu0
  %v1469 = vadd.f32 %v212, %v1468
  %v1470 = vpop.f32.mrf.mxu0
  %1471 = vmatprep.mubr.bf16.mxu0 %v1044
  %1472 = vmatmul.mubr.bf16.gmra.mxu0 %v718
  %v1473 = vpop.f32.mrf.mxu0
  %v1474 = vadd.f32 %v212, %v1473
  %v1475 = vpop.f32.mrf.mxu0
  %v1476 = vpop.f32.mrf.mxu0
  %v1477 = vadd.f32 %v212, %v1476
  %v1478 = vpop.f32.mrf.mxu0
  %1479 = vmatprep.mubr.bf16.mxu0 %v1047
  %1480 = vmatmul.mubr.bf16.gmra.mxu0 %v720
  %v1481 = vpop.f32.mrf.mxu0
  %v1482 = vadd.f32 %v212, %v1481
  %v1483 = vpop.f32.mrf.mxu0
  %v1484 = vpop.f32.mrf.mxu0
  %v1485 = vadd.f32 %v212, %v1484
  %v1486 = vpop.f32.mrf.mxu0
  %1487 = vmatprep.mubr.bf16.mxu0 %v1050
  %1488 = vmatmul.mubr.bf16.gmra.mxu0 %v722
  %v1489 = vpop.f32.mrf.mxu0
  %v1490 = vadd.f32 %v212, %v1489
  %v1491 = vpop.f32.mrf.mxu0
  %v1492 = vpop.f32.mrf.mxu0
  %v1493 = vadd.f32 %v212, %v1492
  %v1494 = vpop.f32.mrf.mxu0
  %1495 = vmatprep.mubr.bf16.mxu0 %v1053
  %1496 = vmatmul.mubr.bf16.gmra.mxu0 %v724
  %v1497 = vpop.f32.mrf.mxu0
  %v1498 = vadd.f32 %v212, %v1497
  %v1499 = vpop.f32.mrf.mxu0
  %v1500 = vpop.f32.mrf.mxu0
  %v1501 = vadd.f32 %v212, %v1500
  %v1502 = vpop.f32.mrf.mxu0
  %1503 = vmatprep.mubr.bf16.mxu0 %v1056
  %1504 = vmatmul.mubr.bf16.gmra.mxu0 %v726
  %v1505 = vpop.f32.mrf.mxu0
  %v1506 = vadd.f32 %v212, %v1505
  %v1507 = vpop.f32.mrf.mxu0
  %v1508 = vpop.f32.mrf.mxu0
  %v1509 = vadd.f32 %v212, %v1508
  %v1510 = vpop.f32.mrf.mxu0
  %1511 = vmatprep.mubr.bf16.mxu0 %v1059
  %1512 = vmatmul.mubr.bf16.gmra.mxu0 %v728
  %v1513 = vpop.f32.mrf.mxu0
  %v1514 = vadd.f32 %v212, %v1513
  %v1515 = vpop.f32.mrf.mxu0
  %v1516 = vpop.f32.mrf.mxu0
  %v1517 = vadd.f32 %v212, %v1516
  %v1518 = vpop.f32.mrf.mxu0
  %1519 = vmatprep.mubr.bf16.mxu0 %v1062
  %1520 = vmatmul.mubr.bf16.gmra.mxu0 %v730
  %v1521 = vpop.f32.mrf.mxu0
  %v1522 = vadd.f32 %v212, %v1521
  %v1523 = vpop.f32.mrf.mxu0
  %v1524 = vpop.f32.mrf.mxu0
  %v1525 = vadd.f32 %v212, %v1524
  %v1526 = vpop.f32.mrf.mxu0
  %1527 = vmatprep.mubr.bf16.mxu0 %v1065
  %1528 = vmatmul.mubr.bf16.gmra.mxu0 %v732
  %v1529 = vpop.f32.mrf.mxu0
  %v1530 = vadd.f32 %v212, %v1529
  %v1531 = vpop.f32.mrf.mxu0
  %v1532 = vpop.f32.mrf.mxu0
  %v1533 = vadd.f32 %v212, %v1532
  %v1534 = vpop.f32.mrf.mxu0
  %1535 = vmatprep.mubr.bf16.mxu0 %v1068
  %1536 = vmatmul.mubr.bf16.gmra.mxu0 %v734
  %v1537 = vpop.f32.mrf.mxu0
  %v1538 = vadd.f32 %v212, %v1537
  %v1539 = vpop.f32.mrf.mxu0
  %v1540 = vpop.f32.mrf.mxu0
  %v1541 = vadd.f32 %v212, %v1540
  %v1542 = vpop.f32.mrf.mxu0
  %1543 = vmatprep.mubr.bf16.mxu0 %v1071
  %1544 = vmatmul.mubr.bf16.gmra.mxu0 %v736
  %v1545 = vpop.f32.mrf.mxu0
  %v1546 = vadd.f32 %v212, %v1545
  %v1547 = vpop.f32.mrf.mxu0
  %v1548 = vpop.f32.mrf.mxu0
  %v1549 = vadd.f32 %v212, %v1548
  %v1550 = vpop.f32.mrf.mxu0
  %1551 = vmatprep.mubr.bf16.mxu0 %v1074
  %1552 = vmatmul.mubr.bf16.gmra.mxu0 %v738
  %v1553 = vpop.f32.mrf.mxu0
  %v1554 = vadd.f32 %v212, %v1553
  %v1555 = vpop.f32.mrf.mxu0
  %v1556 = vpop.f32.mrf.mxu0
  %v1557 = vadd.f32 %v212, %v1556
  %v1558 = vpop.f32.mrf.mxu0
  %1559 = vmatprep.mubr.bf16.mxu0 %v1077
  %1560 = vmatmul.mubr.bf16.gmra.mxu0 %v740
  %v1561 = vpop.f32.mrf.mxu0
  %v1562 = vadd.f32 %v212, %v1561
  %v1563 = vpop.f32.mrf.mxu0
  %v1564 = vpop.f32.mrf.mxu0
  %v1565 = vadd.f32 %v212, %v1564
  %v1566 = vpop.f32.mrf.mxu0
  %1567 = vmatprep.mubr.bf16.mxu0 %v1080
  %1568 = vmatmul.mubr.bf16.gmra.mxu0 %v742
  %v1569 = vpop.f32.mrf.mxu0
  %v1570 = vadd.f32 %v212, %v1569
  %v1571 = vpop.f32.mrf.mxu0
  %v1572 = vpop.f32.mrf.mxu0
  %v1573 = vadd.f32 %v212, %v1572
  %v1574 = vpop.f32.mrf.mxu0
  %1575 = vmatprep.mubr.bf16.mxu0 %v1083
  %1576 = vmatmul.mubr.bf16.gmra.mxu0 %v744
  %v1577 = vpop.f32.mrf.mxu0
  %v1578 = vadd.f32 %v212, %v1577
  %v1579 = vpop.f32.mrf.mxu0
  %v1580 = vpop.f32.mrf.mxu0
  %v1581 = vadd.f32 %v212, %v1580
  %v1582 = vpop.f32.mrf.mxu0
  %1583 = vmatprep.mubr.bf16.mxu0 %v1086
  %1584 = vmatmul.mubr.bf16.gmra.mxu0 %v746
  %v1585 = vpop.f32.mrf.mxu0
  %v1586 = vadd.f32 %v212, %v1585
  %v1587 = vpop.f32.mrf.mxu0
  %v1588 = vpop.f32.mrf.mxu0
  %v1589 = vadd.f32 %v212, %v1588
  %v1590 = vpop.f32.mrf.mxu0
  %1591 = vmatprep.mubr.bf16.mxu0 %v1089
  %1592 = vmatmul.mubr.bf16.gmra.mxu0 %v748
  %v1593 = vpop.f32.mrf.mxu0
  %v1594 = vadd.f32 %v212, %v1593
  %v1595 = vpop.f32.mrf.mxu0
  %v1596 = vpop.f32.mrf.mxu0
  %v1597 = vadd.f32 %v212, %v1596
  %v1598 = vpop.f32.mrf.mxu0
  %1599 = vmatprep.mubr.bf16.mxu0 %v1092
  %1600 = vmatmul.mubr.bf16.gmra.mxu0 %v750
  %v1601 = vpop.f32.mrf.mxu0
  %v1602 = vadd.f32 %v212, %v1601
  %v1603 = vpop.f32.mrf.mxu0
  %v1604 = vpop.f32.mrf.mxu0
  %v1605 = vadd.f32 %v212, %v1604
  %v1606 = vpop.f32.mrf.mxu0
  %1607 = vmatprep.mubr.bf16.mxu0 %v1095
  %1608 = vmatmul.mubr.bf16.gmra.mxu0 %v752
  %v1609 = vpop.f32.mrf.mxu0
  %v1610 = vadd.f32 %v212, %v1609
  %v1611 = vpop.f32.mrf.mxu0
  %v1612 = vpop.f32.mrf.mxu0
  %v1613 = vadd.f32 %v212, %v1612
  %v1614 = vpop.f32.mrf.mxu0
  %1615 = vmatprep.mubr.bf16.mxu0 %v1098
  %1616 = vmatmul.mubr.bf16.gmra.mxu0 %v754
  %v1617 = vpop.f32.mrf.mxu0
  %v1618 = vadd.f32 %v212, %v1617
  %v1619 = vpop.f32.mrf.mxu0
  %v1620 = vpop.f32.mrf.mxu0
  %v1621 = vadd.f32 %v212, %v1620
  %v1622 = vpop.f32.mrf.mxu0
  %1623 = vmatprep.mubr.bf16.mxu0 %v1101
  %1624 = vmatmul.mubr.bf16.gmra.mxu0 %v756
  %v1625 = vpop.f32.mrf.mxu0
  %v1626 = vadd.f32 %v212, %v1625
  %v1627 = vpop.f32.mrf.mxu0
  %v1628 = vpop.f32.mrf.mxu0
  %v1629 = vadd.f32 %v212, %v1628
  %v1630 = vpop.f32.mrf.mxu0
  %1631 = vmatprep.mubr.bf16.mxu0 %v1104
  %1632 = vmatmul.mubr.bf16.gmra.mxu0 %v758
  %v1633 = vpop.f32.mrf.mxu0
  %v1634 = vadd.f32 %v212, %v1633
  %v1635 = vpop.f32.mrf.mxu0
  %v1636 = vpop.f32.mrf.mxu0
  %v1637 = vadd.f32 %v212, %v1636
  %v1638 = vpop.f32.mrf.mxu0
  %1639 = vmatprep.mubr.bf16.mxu0 %v1107
  %1640 = vmatmul.mubr.bf16.gmra.mxu0 %v760
  %v1641 = vpop.f32.mrf.mxu0
  %v1642 = vadd.f32 %v212, %v1641
  %v1643 = vpop.f32.mrf.mxu0
  %v1644 = vpop.f32.mrf.mxu0
  %v1645 = vadd.f32 %v212, %v1644
  %v1646 = vpop.f32.mrf.mxu0
  %1647 = vmatprep.mubr.bf16.mxu0 %v1110
  %1648 = vmatmul.mubr.bf16.gmra.mxu0 %v762
  %v1649 = vpop.f32.mrf.mxu0
  %v1650 = vadd.f32 %v212, %v1649
  %v1651 = vpop.f32.mrf.mxu0
  %v1652 = vpop.f32.mrf.mxu0
  %v1653 = vadd.f32 %v212, %v1652
  %v1654 = vpop.f32.mrf.mxu0
  %1655 = vmatprep.mubr.bf16.mxu0 %v1113
  %1656 = vmatmul.mubr.bf16.gmra.mxu0 %v764
  %v1657 = vpop.f32.mrf.mxu0
  %v1658 = vadd.f32 %v212, %v1657
  %v1659 = vpop.f32.mrf.mxu0
  %v1660 = vpop.f32.mrf.mxu0
  %v1661 = vadd.f32 %v212, %v1660
  %v1662 = vpop.f32.mrf.mxu0
  %1663 = vmatprep.mubr.bf16.mxu0 %v1116
  %1664 = vmatmul.mubr.bf16.gmra.mxu0 %v766
  %v1665 = vpop.f32.mrf.mxu0
  %v1666 = vadd.f32 %v212, %v1665
  %v1667 = vpop.f32.mrf.mxu0
  %v1668 = vpop.f32.mrf.mxu0
  %v1669 = vadd.f32 %v212, %v1668
  %v1670 = vpop.f32.mrf.mxu0
  %1671 = vmatprep.mubr.bf16.mxu0 %v1119
  %1672 = vmatmul.mubr.bf16.gmra.mxu0 %v768
  %v1673 = vpop.f32.mrf.mxu0
  %v1674 = vadd.f32 %v212, %v1673
  %v1675 = vpop.f32.mrf.mxu0
  %v1676 = vpop.f32.mrf.mxu0
  %v1677 = vadd.f32 %v212, %v1676
  %v1678 = vpop.f32.mrf.mxu0
  %1679 = vmatprep.mubr.bf16.mxu0 %v1122
  %1680 = vmatmul.mubr.bf16.gmra.mxu0 %v770
  %v1681 = vpop.f32.mrf.mxu0
  %v1682 = vadd.f32 %v212, %v1681
  %v1683 = vpop.f32.mrf.mxu0
  %v1684 = vpop.f32.mrf.mxu0
  %v1685 = vadd.f32 %v212, %v1684
  %v1686 = vpop.f32.mrf.mxu0
  %1687 = vmatprep.mubr.bf16.mxu0 %v1125
  %1688 = vmatmul.mubr.bf16.gmra.mxu0 %v772
  %v1689 = vpop.f32.mrf.mxu0
  %v1690 = vadd.f32 %v212, %v1689
  %v1691 = vpop.f32.mrf.mxu0
  %v1692 = vpop.f32.mrf.mxu0
  %v1693 = vadd.f32 %v212, %v1692
  %v1694 = vpop.f32.mrf.mxu0
  %1695 = vmatprep.mubr.bf16.mxu0 %v1128
  %1696 = vmatmul.mubr.bf16.gmra.mxu0 %v774
  %v1697 = vpop.f32.mrf.mxu0
  %v1698 = vadd.f32 %v212, %v1697
  %v1699 = vpop.f32.mrf.mxu0
  %v1700 = vpop.f32.mrf.mxu0
  %v1701 = vadd.f32 %v212, %v1700
  %v1702 = vpop.f32.mrf.mxu0
  %1703 = vmatprep.mubr.bf16.mxu0 %v1131
  %1704 = vmatmul.mubr.bf16.gmra.mxu0 %v776
  %v1705 = vpop.f32.mrf.mxu0
  %v1706 = vadd.f32 %v212, %v1705
  %v1707 = vpop.f32.mrf.mxu0
  %v1708 = vpop.f32.mrf.mxu0
  %v1709 = vadd.f32 %v212, %v1708
  %v1710 = vpop.f32.mrf.mxu0
  %1711 = vmatprep.mubr.bf16.mxu0 %v1134
  %1712 = vmatmul.mubr.bf16.gmra.mxu0 %v778
  %v1713 = vpop.f32.mrf.mxu0
  %v1714 = vadd.f32 %v212, %v1713
  %v1715 = vpop.f32.mrf.mxu0
  %v1716 = vpop.f32.mrf.mxu0
  %v1717 = vadd.f32 %v212, %v1716
  %v1718 = vpop.f32.mrf.mxu0
  %1719 = vmatprep.mubr.bf16.mxu0 %v1137
  %1720 = vmatmul.mubr.bf16.gmra.mxu0 %v780
  %v1721 = vpop.f32.mrf.mxu0
  %v1722 = vadd.f32 %v212, %v1721
  %v1723 = vpop.f32.mrf.mxu0
  %v1724 = vpop.f32.mrf.mxu0
  %v1725 = vadd.f32 %v212, %v1724
  %v1726 = vpop.f32.mrf.mxu0
  %1727 = vmatprep.mubr.bf16.mxu0 %v1140
  %1728 = vmatmul.mubr.bf16.gmra.mxu0 %v782
  %v1729 = vpop.f32.mrf.mxu0
  %v1730 = vadd.f32 %v212, %v1729
  %v1731 = vpop.f32.mrf.mxu0
  %v1732 = vpop.f32.mrf.mxu0
  %v1733 = vadd.f32 %v212, %v1732
  %v1734 = vpop.f32.mrf.mxu0
  %1735 = vmatprep.mubr.bf16.mxu0 %v1143
  %1736 = vmatmul.mubr.bf16.gmra.mxu0 %v784
  %v1737 = vpop.f32.mrf.mxu0
  %v1738 = vadd.f32 %v212, %v1737
  %v1739 = vpop.f32.mrf.mxu0
  %v1740 = vpop.f32.mrf.mxu0
  %v1741 = vadd.f32 %v212, %v1740
  %v1742 = vpop.f32.mrf.mxu0
  %1743 = vmatprep.mubr.bf16.mxu0 %v1146
  %1744 = vmatmul.mubr.bf16.gmra.mxu0 %v786
  %v1745 = vpop.f32.mrf.mxu0
  %v1746 = vadd.f32 %v212, %v1745
  %v1747 = vpop.f32.mrf.mxu0
  %v1748 = vpop.f32.mrf.mxu0
  %v1749 = vadd.f32 %v212, %v1748
  %v1750 = vpop.f32.mrf.mxu0
  %1751 = vmatprep.mubr.bf16.mxu0 %v1149
  %1752 = vmatmul.mubr.bf16.gmra.mxu0 %v788
  %v1753 = vpop.f32.mrf.mxu0
  %v1754 = vadd.f32 %v212, %v1753
  %v1755 = vpop.f32.mrf.mxu0
  %v1756 = vpop.f32.mrf.mxu0
  %v1757 = vadd.f32 %v212, %v1756
  %v1758 = vpop.f32.mrf.mxu0
  %1759 = vdwg.mxu0
  %v1760 = vmax.f32 %v1186, 0.0
  %v1761 = vmax.f32 %v1189, 0.0
  %v1762 = vmax.f32 %v1194, 0.0
  %v1763 = vmax.f32 %v1197, 0.0
  %v1764 = vmax.f32 %v1202, 0.0
  %v1765 = vmax.f32 %v1205, 0.0
  %v1766 = vmax.f32 %v1210, 0.0
  %v1767 = vmax.f32 %v1213, 0.0
  %v1768 = vmax.f32 %v1218, 0.0
  %v1769 = vmax.f32 %v1221, 0.0
  %v1770 = vmax.f32 %v1226, 0.0
  %v1771 = vmax.f32 %v1229, 0.0
  %v1772 = vmax.f32 %v1234, 0.0
  %v1773 = vmax.f32 %v1237, 0.0
  %v1774 = vmax.f32 %v1242, 0.0
  %v1775 = vmax.f32 %v1245, 0.0
  %v1776 = vmax.f32 %v1250, 0.0
  %v1777 = vmax.f32 %v1253, 0.0
  %v1778 = vmax.f32 %v1258, 0.0
  %v1779 = vmax.f32 %v1261, 0.0
  %v1780 = vmax.f32 %v1266, 0.0
  %v1781 = vmax.f32 %v1269, 0.0
  %v1782 = vmax.f32 %v1274, 0.0
  %v1783 = vmax.f32 %v1277, 0.0
  %v1784 = vmax.f32 %v1282, 0.0
  %v1785 = vmax.f32 %v1285, 0.0
  %v1786 = vmax.f32 %v1290, 0.0
  %v1787 = vmax.f32 %v1293, 0.0
  %v1788 = vmax.f32 %v1298, 0.0
  %v1789 = vmax.f32 %v1301, 0.0
  %v1790 = vmax.f32 %v1306, 0.0
  %v1791 = vmax.f32 %v1309, 0.0
  %v1792 = vmax.f32 %v1314, 0.0
  %v1793 = vmax.f32 %v1317, 0.0
  %v1794 = vmax.f32 %v1322, 0.0
  %v1795 = vmax.f32 %v1325, 0.0
  %v1796 = vmax.f32 %v1330, 0.0
  %v1797 = vmax.f32 %v1333, 0.0
  %v1798 = vmax.f32 %v1338, 0.0
  %v1799 = vmax.f32 %v1341, 0.0
  %v1800 = vmax.f32 %v1346, 0.0
  %v1801 = vmax.f32 %v1349, 0.0
  %v1802 = vmax.f32 %v1354, 0.0
  %v1803 = vmax.f32 %v1357, 0.0
  %v1804 = vmax.f32 %v1362, 0.0
  %v1805 = vmax.f32 %v1365, 0.0
  %v1806 = vmax.f32 %v1370, 0.0
  %v1807 = vmax.f32 %v1373, 0.0
  %v1808 = vmax.f32 %v1378, 0.0
  %v1809 = vmax.f32 %v1381, 0.0
  %v1810 = vmax.f32 %v1386, 0.0
  %v1811 = vmax.f32 %v1389, 0.0
  %v1812 = vmax.f32 %v1394, 0.0
  %v1813 = vmax.f32 %v1397, 0.0
  %v1814 = vmax.f32 %v1402, 0.0
  %v1815 = vmax.f32 %v1405, 0.0
  %v1816 = vmax.f32 %v1410, 0.0
  %v1817 = vmax.f32 %v1413, 0.0
  %v1818 = vmax.f32 %v1418, 0.0
  %v1819 = vmax.f32 %v1421, 0.0
  %v1820 = vmax.f32 %v1426, 0.0
  %v1821 = vmax.f32 %v1429, 0.0
  %v1822 = vmax.f32 %v1434, 0.0
  %v1823 = vmax.f32 %v1437, 0.0
  %v1824 = vmax.f32 %v1442, 0.0
  %v1825 = vmax.f32 %v1445, 0.0
  %v1826 = vmax.f32 %v1450, 0.0
  %v1827 = vmax.f32 %v1453, 0.0
  %v1828 = vmax.f32 %v1458, 0.0
  %v1829 = vmax.f32 %v1461, 0.0
  %v1830 = vmax.f32 %v1466, 0.0
  %v1831 = vmax.f32 %v1469, 0.0
  %v1832 = vmax.f32 %v1474, 0.0
  %v1833 = vmax.f32 %v1477, 0.0
  %v1834 = vmax.f32 %v1482, 0.0
  %v1835 = vmax.f32 %v1485, 0.0
  %v1836 = vmax.f32 %v1490, 0.0
  %v1837 = vmax.f32 %v1493, 0.0
  %v1838 = vmax.f32 %v1498, 0.0
  %v1839 = vmax.f32 %v1501, 0.0
  %v1840 = vmax.f32 %v1506, 0.0
  %v1841 = vmax.f32 %v1509, 0.0
  %v1842 = vmax.f32 %v1514, 0.0
  %v1843 = vmax.f32 %v1517, 0.0
  %v1844 = vmax.f32 %v1522, 0.0
  %v1845 = vmax.f32 %v1525, 0.0
  %v1846 = vmax.f32 %v1530, 0.0
  %v1847 = vmax.f32 %v1533, 0.0
  %v1848 = vmax.f32 %v1538, 0.0
  %v1849 = vmax.f32 %v1541, 0.0
  %v1850 = vmax.f32 %v1546, 0.0
  %v1851 = vmax.f32 %v1549, 0.0
  %v1852 = vmax.f32 %v1554, 0.0
  %v1853 = vmax.f32 %v1557, 0.0
  %v1854 = vmax.f32 %v1562, 0.0
  %v1855 = vmax.f32 %v1565, 0.0
  %v1856 = vmax.f32 %v1570, 0.0
  %v1857 = vmax.f32 %v1573, 0.0
  %v1858 = vmax.f32 %v1578, 0.0
  %v1859 = vmax.f32 %v1581, 0.0
  %v1860 = vmax.f32 %v1586, 0.0
  %v1861 = vmax.f32 %v1589, 0.0
  %v1862 = vmax.f32 %v1594, 0.0
  %v1863 = vmax.f32 %v1597, 0.0
  %v1864 = vmax.f32 %v1602, 0.0
  %v1865 = vmax.f32 %v1605, 0.0
  %v1866 = vmax.f32 %v1610, 0.0
  %v1867 = vmax.f32 %v1613, 0.0
  %v1868 = vmax.f32 %v1618, 0.0
  %v1869 = vmax.f32 %v1621, 0.0
  %v1870 = vmax.f32 %v1626, 0.0
  %v1871 = vmax.f32 %v1629, 0.0
  %v1872 = vmax.f32 %v1634, 0.0
  %v1873 = vmax.f32 %v1637, 0.0
  %v1874 = vmax.f32 %v1642, 0.0
  %v1875 = vmax.f32 %v1645, 0.0
  %v1876 = vmax.f32 %v1650, 0.0
  %v1877 = vmax.f32 %v1653, 0.0
  %v1878 = vmax.f32 %v1658, 0.0
  %v1879 = vmax.f32 %v1661, 0.0
  %v1880 = vmax.f32 %v1666, 0.0
  %v1881 = vmax.f32 %v1669, 0.0
  %v1882 = vmax.f32 %v1674, 0.0
  %v1883 = vmax.f32 %v1677, 0.0
  %v1884 = vmax.f32 %v1682, 0.0
  %v1885 = vmax.f32 %v1685, 0.0
  %v1886 = vmax.f32 %v1690, 0.0
  %v1887 = vmax.f32 %v1693, 0.0
  %v1888 = vmax.f32 %v1698, 0.0
  %v1889 = vmax.f32 %v1701, 0.0
  %v1890 = vmax.f32 %v1706, 0.0
  %v1891 = vmax.f32 %v1709, 0.0
  %v1892 = vmax.f32 %v1714, 0.0
  %v1893 = vmax.f32 %v1717, 0.0
  %v1894 = vmax.f32 %v1722, 0.0
  %v1895 = vmax.f32 %v1725, 0.0
  %v1896 = vmax.f32 %v1730, 0.0
  %v1897 = vmax.f32 %v1733, 0.0
  %v1898 = vmax.f32 %v1738, 0.0
  %v1899 = vmax.f32 %v1741, 0.0
  %v1900 = vmax.f32 %v1746, 0.0
  %v1901 = vmax.f32 %v1749, 0.0
  %v1902 = vmax.f32 %v1754, 0.0
  %v1903 = vmax.f32 %v1757, 0.0
  %v1904 = vpack.c.bf16 %v1761, %v1760
  %v1905 = vpack.c.bf16 %v1763, %v1762
  %v1906 = vpack.c.bf16 %v1765, %v1764
  %v1907 = vpack.c.bf16 %v1767, %v1766
  %v1908 = vpack.c.bf16 %v1768, %v1768
  %v1909 = vld [vmem:[%s3] sm:$0xf]
  %v1910 = vld [vmem:[%s3 + $0x4] sm:$0xf]
  %v1911 = vld [vmem:[%s3 + $0x8] sm:$0xf]
  %v1912 = vld [vmem:[%s3 + $0xc] sm:$0xf]
  %v1913 = vpack.c.bf16 %v1770, %v1769
  %v1914 = vpack.c.bf16 %v1772, %v1771
  %v1915 = vpack.c.bf16 %v1774, %v1773
  %v1916 = vpack.c.bf16 %v1776, %v1775
  %v1917 = vpack.c.bf16 %v1777, %v1777
  %s1918 = scalar_lea.vmem %s3, 16
  %v1919 = vld [vmem:[%s1918] sm:$0xf]
  %v1920 = vld [vmem:[%s1918 + $0x4] sm:$0xf]
  %v1921 = vld [vmem:[%s1918 + $0x8] sm:$0xf]
  %v1922 = vld [vmem:[%s1918 + $0xc] sm:$0xf]
  %v1927 = vunpack.c.l.b16 %v1919
  %v1928 = vunpack.c.l.b16 %v1920
  %v1929 = vunpack.c.l.b16 %v1921
  %v1930 = vunpack.c.l.b16 %v1922
  %v1931 = vpack.c.b16 %v1928, %v1927
  %v1932 = vpack.c.b16 %v1930, %v1929
  %vm1935 = vcmask 261120
  %v1937 = vsel %vm1935, %v1913, 0
  %v1940 = vsel %vm1935, %v1914, 0
  %v1943 = vsel %vm1935, %v1915, 0
  %v1946 = vsel %vm1935, %v1916, 0
  %v1949 = vsel %vm1935, %v1917, 0
  %1951 = vmatprep.subr.bf16.mxu0 0
  %1952 = vmatpush1.bf16.msra.mxu0 0
  %1953 = vmatprep.subr.bf16.mxu0 0
  %1954 = vmatpush1.bf16.msra.mxu0 0
  %1955 = vmatprep.subr.bf16.mxu0 0
  %1956 = vmatpush1.bf16.msra.mxu0 0
  %1957 = vmatprep.subr.bf16.mxu0 0
  %1958 = vmatpush1.bf16.msra.mxu0 0
  %1959 = vmatprep.subr.bf16.mxu0 0
  %1960 = vmatpush1.bf16.msra.mxu0 0
  %1961 = vmatprep.subr.bf16.mxu0 0
  %1962 = vmatpush1.bf16.msra.mxu0 0
  %1963 = vmatprep.subr.bf16.mxu0 0
  %1964 = vmatpush1.bf16.msra.mxu0 %v1932
  %1965 = vmatprep.subr.bf16.mxu0 0
  %1966 = vmatpush1.bf16.msra.mxu0 %v1931
  %1967 = vmatprep.subr.bf16.mxu0 0
  %1968 = vmatpush2.bf16.msra.mxu0 0
  %1969 = vmatprep.subr.bf16.mxu0 0
  %1970 = vmatpush2.bf16.msra.mxu0 0
  %1971 = vmatprep.subr.bf16.mxu0 0
  %1972 = vmatpush2.bf16.msra.mxu0 0
  %1973 = vmatprep.subr.bf16.mxu0 0
  %1974 = vmatpush2.bf16.msra.mxu0 0
  %1975 = vmatprep.subr.bf16.mxu0 0
  %1976 = vmatpush2.bf16.msra.mxu0 0
  %1977 = vmatprep.subr.bf16.mxu0 0
  %1978 = vmatpush2.bf16.msra.mxu0 0
  %1979 = vmatprep.subr.bf16.mxu0 0
  %1980 = vmatpush2.bf16.msra.mxu0 0
  %1981 = vmatprep.subr.bf16.mxu0 0
  %1982 = vmatpush2.bf16.msra.mxu0 0
  %1983 = vmatprep.mubr.bf16.mxu0 0
  %1984 = vmatmul.mubr.bf16.gmra.mxu0 %v1937
  %v1985 = vpop.f32.mrf.mxu0
  %v1986 = vadd.f32 0.0, %v1985
  %v1987 = vpop.f32.mrf.mxu0
  %v1988 = vpop.f32.mrf.mxu0
  %v1989 = vadd.f32 0.0, %v1988
  %v1990 = vpop.f32.mrf.mxu0
  %1991 = vmatprep.mubr.bf16.mxu0 0
  %1992 = vmatmul.mubr.bf16.gmra.mxu0 %v1940
  %v1993 = vpop.f32.mrf.mxu0
  %v1994 = vadd.f32 0.0, %v1993
  %v1995 = vpop.f32.mrf.mxu0
  %v1996 = vpop.f32.mrf.mxu0
  %v1997 = vadd.f32 0.0, %v1996
  %v1998 = vpop.f32.mrf.mxu0
  %1999 = vmatprep.mubr.bf16.mxu0 0
  %2000 = vmatmul.mubr.bf16.gmra.mxu0 %v1943
  %v2001 = vpop.f32.mrf.mxu0
  %v2002 = vadd.f32 0.0, %v2001
  %v2003 = vpop.f32.mrf.mxu0
  %v2004 = vpop.f32.mrf.mxu0
  %v2005 = vadd.f32 0.0, %v2004
  %v2006 = vpop.f32.mrf.mxu0
  %2007 = vmatprep.mubr.bf16.mxu0 0
  %2008 = vmatmul.mubr.bf16.gmra.mxu0 %v1946
  %v2009 = vpop.f32.mrf.mxu0
  %v2010 = vadd.f32 0.0, %v2009
  %v2011 = vpop.f32.mrf.mxu0
  %v2012 = vpop.f32.mrf.mxu0
  %v2013 = vadd.f32 0.0, %v2012
  %v2014 = vpop.f32.mrf.mxu0
  %2015 = vmatprep.mubr.bf16.mxu0 0
  %2016 = vmatmul.mubr.bf16.gmra.mxu0 %v1949
  %v2017 = vpop.f32.mrf.mxu0
  %v2018 = vadd.f32 0.0, %v2017
  %v2019 = vpop.f32.mrf.mxu0
  %v2020 = vpop.f32.mrf.mxu0
  %v2021 = vpop.f32.mrf.mxu0
  %2022 = vdwg.mxu0
  %v2027 = vunpack.c.l.b16 %v1909
  %v2028 = vunpack.c.l.b16 %v1910
  %v2029 = vunpack.c.l.b16 %v1911
  %v2030 = vunpack.c.l.b16 %v1912
  %v2031 = vpack.c.b16 %v2028, %v2027
  %v2032 = vpack.c.b16 %v2030, %v2029
  %v2036 = vsel %vm1935, %v1904, 0
  %v2039 = vsel %vm1935, %v1905, 0
  %v2042 = vsel %vm1935, %v1906, 0
  %v2045 = vsel %vm1935, %v1907, 0
  %v2048 = vsel %vm1935, %v1908, 0
  %2050 = vmatprep.subr.bf16.mxu0 0
  %2051 = vmatpush1.bf16.msra.mxu0 0
  %2052 = vmatprep.subr.bf16.mxu0 0
  %2053 = vmatpush1.bf16.msra.mxu0 0
  %2054 = vmatprep.subr.bf16.mxu0 0
  %2055 = vmatpush1.bf16.msra.mxu0 0
  %2056 = vmatprep.subr.bf16.mxu0 0
  %2057 = vmatpush1.bf16.msra.mxu0 0
  %2058 = vmatprep.subr.bf16.mxu0 0
  %2059 = vmatpush1.bf16.msra.mxu0 0
  %2060 = vmatprep.subr.bf16.mxu0 0
  %2061 = vmatpush1.bf16.msra.mxu0 0
  %2062 = vmatprep.subr.bf16.mxu0 0
  %2063 = vmatpush1.bf16.msra.mxu0 %v2032
  %2064 = vmatprep.subr.bf16.mxu0 0
  %2065 = vmatpush1.bf16.msra.mxu0 %v2031
  %2066 = vmatprep.subr.bf16.mxu0 0
  %2067 = vmatpush2.bf16.msra.mxu0 0
  %2068 = vmatprep.subr.bf16.mxu0 0
  %2069 = vmatpush2.bf16.msra.mxu0 0
  %2070 = vmatprep.subr.bf16.mxu0 0
  %2071 = vmatpush2.bf16.msra.mxu0 0
  %2072 = vmatprep.subr.bf16.mxu0 0
  %2073 = vmatpush2.bf16.msra.mxu0 0
  %2074 = vmatprep.subr.bf16.mxu0 0
  %2075 = vmatpush2.bf16.msra.mxu0 0
  %2076 = vmatprep.subr.bf16.mxu0 0
  %2077 = vmatpush2.bf16.msra.mxu0 0
  %2078 = vmatprep.subr.bf16.mxu0 0
  %2079 = vmatpush2.bf16.msra.mxu0 0
  %2080 = vmatprep.subr.bf16.mxu0 0
  %2081 = vmatpush2.bf16.msra.mxu0 0
  %2082 = vmatprep.mubr.bf16.mxu0 0
  %2083 = vmatmul.mubr.bf16.gmra.mxu0 %v2036
  %v2084 = vpop.f32.mrf.mxu0
  %v2085 = vadd.f32 %v1986, %v2084
  %v2086 = vpop.f32.mrf.mxu0
  %v2087 = vpop.f32.mrf.mxu0
  %v2088 = vadd.f32 %v1989, %v2087
  %v2089 = vpop.f32.mrf.mxu0
  %2090 = vmatprep.mubr.bf16.mxu0 0
  %2091 = vmatmul.mubr.bf16.gmra.mxu0 %v2039
  %v2092 = vpop.f32.mrf.mxu0
  %v2093 = vadd.f32 %v1994, %v2092
  %v2094 = vpop.f32.mrf.mxu0
  %v2095 = vpop.f32.mrf.mxu0
  %v2096 = vadd.f32 %v1997, %v2095
  %v2097 = vpop.f32.mrf.mxu0
  %2098 = vmatprep.mubr.bf16.mxu0 0
  %2099 = vmatmul.mubr.bf16.gmra.mxu0 %v2042
  %v2100 = vpop.f32.mrf.mxu0
  %v2101 = vadd.f32 %v2002, %v2100
  %v2102 = vpop.f32.mrf.mxu0
  %v2103 = vpop.f32.mrf.mxu0
  %v2104 = vadd.f32 %v2005, %v2103
  %v2105 = vpop.f32.mrf.mxu0
  %2106 = vmatprep.mubr.bf16.mxu0 0
  %2107 = vmatmul.mubr.bf16.gmra.mxu0 %v2045
  %v2108 = vpop.f32.mrf.mxu0
  %v2109 = vadd.f32 %v2010, %v2108
  %v2110 = vpop.f32.mrf.mxu0
  %v2111 = vpop.f32.mrf.mxu0
  %v2112 = vadd.f32 %v2013, %v2111
  %v2113 = vpop.f32.mrf.mxu0
  %2114 = vmatprep.mubr.bf16.mxu0 0
  %2115 = vmatmul.mubr.bf16.gmra.mxu0 %v2048
  %v2116 = vpop.f32.mrf.mxu0
  %v2117 = vadd.f32 %v2018, %v2116
  %v2118 = vpop.f32.mrf.mxu0
  %v2119 = vpop.f32.mrf.mxu0
  %v2120 = vpop.f32.mrf.mxu0
  %2121 = vdwg.mxu0
  %v2122 = vpack.c.bf16 %v1779, %v1778
  %v2123 = vpack.c.bf16 %v1781, %v1780
  %v2124 = vpack.c.bf16 %v1783, %v1782
  %v2125 = vpack.c.bf16 %v1785, %v1784
  %v2126 = vpack.c.bf16 %v1786, %v1786
  %s2127 = scalar_lea.vmem %s3, 32
  %v2128 = vld [vmem:[%s2127] sm:$0xf]
  %v2129 = vld [vmem:[%s2127 + $0x4] sm:$0xf]
  %v2130 = vld [vmem:[%s2127 + $0x8] sm:$0xf]
  %v2131 = vld [vmem:[%s2127 + $0xc] sm:$0xf]
  %v2136 = vunpack.c.l.b16 %v2128
  %v2137 = vunpack.c.l.b16 %v2129
  %v2138 = vunpack.c.l.b16 %v2130
  %v2139 = vunpack.c.l.b16 %v2131
  %v2140 = vpack.c.b16 %v2137, %v2136
  %v2141 = vpack.c.b16 %v2139, %v2138
  %v2145 = vsel %vm1935, %v2122, 0
  %v2148 = vsel %vm1935, %v2123, 0
  %v2151 = vsel %vm1935, %v2124, 0
  %v2154 = vsel %vm1935, %v2125, 0
  %v2157 = vsel %vm1935, %v2126, 0
  %2159 = vmatprep.subr.bf16.mxu0 0
  %2160 = vmatpush1.bf16.msra.mxu0 0
  %2161 = vmatprep.subr.bf16.mxu0 0
  %2162 = vmatpush1.bf16.msra.mxu0 0
  %2163 = vmatprep.subr.bf16.mxu0 0
  %2164 = vmatpush1.bf16.msra.mxu0 0
  %2165 = vmatprep.subr.bf16.mxu0 0
  %2166 = vmatpush1.bf16.msra.mxu0 0
  %2167 = vmatprep.subr.bf16.mxu0 0
  %2168 = vmatpush1.bf16.msra.mxu0 0
  %2169 = vmatprep.subr.bf16.mxu0 0
  %2170 = vmatpush1.bf16.msra.mxu0 0
  %2171 = vmatprep.subr.bf16.mxu0 0
  %2172 = vmatpush1.bf16.msra.mxu0 %v2141
  %2173 = vmatprep.subr.bf16.mxu0 0
  %2174 = vmatpush1.bf16.msra.mxu0 %v2140
  %2175 = vmatprep.subr.bf16.mxu0 0
  %2176 = vmatpush2.bf16.msra.mxu0 0
  %2177 = vmatprep.subr.bf16.mxu0 0
  %2178 = vmatpush2.bf16.msra.mxu0 0
  %2179 = vmatprep.subr.bf16.mxu0 0
  %2180 = vmatpush2.bf16.msra.mxu0 0
  %2181 = vmatprep.subr.bf16.mxu0 0
  %2182 = vmatpush2.bf16.msra.mxu0 0
  %2183 = vmatprep.subr.bf16.mxu0 0
  %2184 = vmatpush2.bf16.msra.mxu0 0
  %2185 = vmatprep.subr.bf16.mxu0 0
  %2186 = vmatpush2.bf16.msra.mxu0 0
  %2187 = vmatprep.subr.bf16.mxu0 0
  %2188 = vmatpush2.bf16.msra.mxu0 0
  %2189 = vmatprep.subr.bf16.mxu0 0
  %2190 = vmatpush2.bf16.msra.mxu0 0
  %2191 = vmatprep.mubr.bf16.mxu0 0
  %2192 = vmatmul.mubr.bf16.gmra.mxu0 %v2145
  %v2193 = vpop.f32.mrf.mxu0
  %v2194 = vadd.f32 0.0, %v2193
  %v2195 = vpop.f32.mrf.mxu0
  %v2196 = vpop.f32.mrf.mxu0
  %v2197 = vadd.f32 0.0, %v2196
  %v2198 = vpop.f32.mrf.mxu0
  %2199 = vmatprep.mubr.bf16.mxu0 0
  %2200 = vmatmul.mubr.bf16.gmra.mxu0 %v2148
  %v2201 = vpop.f32.mrf.mxu0
  %v2202 = vadd.f32 0.0, %v2201
  %v2203 = vpop.f32.mrf.mxu0
  %v2204 = vpop.f32.mrf.mxu0
  %v2205 = vadd.f32 0.0, %v2204
  %v2206 = vpop.f32.mrf.mxu0
  %2207 = vmatprep.mubr.bf16.mxu0 0
  %2208 = vmatmul.mubr.bf16.gmra.mxu0 %v2151
  %v2209 = vpop.f32.mrf.mxu0
  %v2210 = vadd.f32 0.0, %v2209
  %v2211 = vpop.f32.mrf.mxu0
  %v2212 = vpop.f32.mrf.mxu0
  %v2213 = vadd.f32 0.0, %v2212
  %v2214 = vpop.f32.mrf.mxu0
  %2215 = vmatprep.mubr.bf16.mxu0 0
  %2216 = vmatmul.mubr.bf16.gmra.mxu0 %v2154
  %v2217 = vpop.f32.mrf.mxu0
  %v2218 = vadd.f32 0.0, %v2217
  %v2219 = vpop.f32.mrf.mxu0
  %v2220 = vpop.f32.mrf.mxu0
  %v2221 = vadd.f32 0.0, %v2220
  %v2222 = vpop.f32.mrf.mxu0
  %2223 = vmatprep.mubr.bf16.mxu0 0
  %2224 = vmatmul.mubr.bf16.gmra.mxu0 %v2157
  %v2225 = vpop.f32.mrf.mxu0
  %v2226 = vadd.f32 0.0, %v2225
  %v2227 = vpop.f32.mrf.mxu0
  %v2228 = vpop.f32.mrf.mxu0
  %v2229 = vpop.f32.mrf.mxu0
  %2230 = vdwg.mxu0
  %v2231 = vadd.f32 %v2085, %v2194
  %v2232 = vadd.f32 %v2088, %v2197
  %v2233 = vadd.f32 %v2093, %v2202
  %v2234 = vadd.f32 %v2096, %v2205
  %v2235 = vadd.f32 %v2101, %v2210
  %v2236 = vadd.f32 %v2104, %v2213
  %v2237 = vadd.f32 %v2109, %v2218
  %v2238 = vadd.f32 %v2112, %v2221
  %v2239 = vadd.f32 %v2117, %v2226
  %v2240 = vpack.c.bf16 %v1788, %v1787
  %v2241 = vpack.c.bf16 %v1790, %v1789
  %v2242 = vpack.c.bf16 %v1792, %v1791
  %v2243 = vpack.c.bf16 %v1794, %v1793
  %v2244 = vpack.c.bf16 %v1795, %v1795
  %s2245 = scalar_lea.vmem %s3, 48
  %v2246 = vld [vmem:[%s2245] sm:$0xf]
  %v2247 = vld [vmem:[%s2245 + $0x4] sm:$0xf]
  %v2248 = vld [vmem:[%s2245 + $0x8] sm:$0xf]
  %v2249 = vld [vmem:[%s2245 + $0xc] sm:$0xf]
  %v2254 = vunpack.c.l.b16 %v2246
  %v2255 = vunpack.c.l.b16 %v2247
  %v2256 = vunpack.c.l.b16 %v2248
  %v2257 = vunpack.c.l.b16 %v2249
  %v2258 = vpack.c.b16 %v2255, %v2254
  %v2259 = vpack.c.b16 %v2257, %v2256
  %v2263 = vsel %vm1935, %v2240, 0
  %v2266 = vsel %vm1935, %v2241, 0
  %v2269 = vsel %vm1935, %v2242, 0
  %v2272 = vsel %vm1935, %v2243, 0
  %v2275 = vsel %vm1935, %v2244, 0
  %2277 = vmatprep.subr.bf16.mxu0 0
  %2278 = vmatpush1.bf16.msra.mxu0 0
  %2279 = vmatprep.subr.bf16.mxu0 0
  %2280 = vmatpush1.bf16.msra.mxu0 0
  %2281 = vmatprep.subr.bf16.mxu0 0
  %2282 = vmatpush1.bf16.msra.mxu0 0
  %2283 = vmatprep.subr.bf16.mxu0 0
  %2284 = vmatpush1.bf16.msra.mxu0 0
  %2285 = vmatprep.subr.bf16.mxu0 0
  %2286 = vmatpush1.bf16.msra.mxu0 0
  %2287 = vmatprep.subr.bf16.mxu0 0
  %2288 = vmatpush1.bf16.msra.mxu0 0
  %2289 = vmatprep.subr.bf16.mxu0 0
  %2290 = vmatpush1.bf16.msra.mxu0 %v2259
  %2291 = vmatprep.subr.bf16.mxu0 0
  %2292 = vmatpush1.bf16.msra.mxu0 %v2258
  %2293 = vmatprep.subr.bf16.mxu0 0
  %2294 = vmatpush2.bf16.msra.mxu0 0
  %2295 = vmatprep.subr.bf16.mxu0 0
  %2296 = vmatpush2.bf16.msra.mxu0 0
  %2297 = vmatprep.subr.bf16.mxu0 0
  %2298 = vmatpush2.bf16.msra.mxu0 0
  %2299 = vmatprep.subr.bf16.mxu0 0
  %2300 = vmatpush2.bf16.msra.mxu0 0
  %2301 = vmatprep.subr.bf16.mxu0 0
  %2302 = vmatpush2.bf16.msra.mxu0 0
  %2303 = vmatprep.subr.bf16.mxu0 0
  %2304 = vmatpush2.bf16.msra.mxu0 0
  %2305 = vmatprep.subr.bf16.mxu0 0
  %2306 = vmatpush2.bf16.msra.mxu0 0
  %2307 = vmatprep.subr.bf16.mxu0 0
  %2308 = vmatpush2.bf16.msra.mxu0 0
  %2309 = vmatprep.mubr.bf16.mxu0 0
  %2310 = vmatmul.mubr.bf16.gmra.mxu0 %v2263
  %v2311 = vpop.f32.mrf.mxu0
  %v2312 = vadd.f32 0.0, %v2311
  %v2313 = vpop.f32.mrf.mxu0
  %v2314 = vpop.f32.mrf.mxu0
  %v2315 = vadd.f32 0.0, %v2314
  %v2316 = vpop.f32.mrf.mxu0
  %2317 = vmatprep.mubr.bf16.mxu0 0
  %2318 = vmatmul.mubr.bf16.gmra.mxu0 %v2266
  %v2319 = vpop.f32.mrf.mxu0
  %v2320 = vadd.f32 0.0, %v2319
  %v2321 = vpop.f32.mrf.mxu0
  %v2322 = vpop.f32.mrf.mxu0
  %v2323 = vadd.f32 0.0, %v2322
  %v2324 = vpop.f32.mrf.mxu0
  %2325 = vmatprep.mubr.bf16.mxu0 0
  %2326 = vmatmul.mubr.bf16.gmra.mxu0 %v2269
  %v2327 = vpop.f32.mrf.mxu0
  %v2328 = vadd.f32 0.0, %v2327
  %v2329 = vpop.f32.mrf.mxu0
  %v2330 = vpop.f32.mrf.mxu0
  %v2331 = vadd.f32 0.0, %v2330
  %v2332 = vpop.f32.mrf.mxu0
  %2333 = vmatprep.mubr.bf16.mxu0 0
  %2334 = vmatmul.mubr.bf16.gmra.mxu0 %v2272
  %v2335 = vpop.f32.mrf.mxu0
  %v2336 = vadd.f32 0.0, %v2335
  %v2337 = vpop.f32.mrf.mxu0
  %v2338 = vpop.f32.mrf.mxu0
  %v2339 = vadd.f32 0.0, %v2338
  %v2340 = vpop.f32.mrf.mxu0
  %2341 = vmatprep.mubr.bf16.mxu0 0
  %2342 = vmatmul.mubr.bf16.gmra.mxu0 %v2275
  %v2343 = vpop.f32.mrf.mxu0
  %v2344 = vadd.f32 0.0, %v2343
  %v2345 = vpop.f32.mrf.mxu0
  %v2346 = vpop.f32.mrf.mxu0
  %v2347 = vpop.f32.mrf.mxu0
  %2348 = vdwg.mxu0
  %v2349 = vadd.f32 %v2231, %v2312
  %v2350 = vadd.f32 %v2232, %v2315
  %v2351 = vadd.f32 %v2233, %v2320
  %v2352 = vadd.f32 %v2234, %v2323
  %v2353 = vadd.f32 %v2235, %v2328
  %v2354 = vadd.f32 %v2236, %v2331
  %v2355 = vadd.f32 %v2237, %v2336
  %v2356 = vadd.f32 %v2238, %v2339
  %v2357 = vadd.f32 %v2239, %v2344
  %v2358 = vpack.c.bf16 %v1797, %v1796
  %v2359 = vpack.c.bf16 %v1799, %v1798
  %v2360 = vpack.c.bf16 %v1801, %v1800
  %v2361 = vpack.c.bf16 %v1803, %v1802
  %v2362 = vpack.c.bf16 %v1804, %v1804
  %s2363 = scalar_lea.vmem %s3, 64
  %v2364 = vld [vmem:[%s2363] sm:$0xf]
  %v2365 = vld [vmem:[%s2363 + $0x4] sm:$0xf]
  %v2366 = vld [vmem:[%s2363 + $0x8] sm:$0xf]
  %v2367 = vld [vmem:[%s2363 + $0xc] sm:$0xf]
  %v2372 = vunpack.c.l.b16 %v2364
  %v2373 = vunpack.c.l.b16 %v2365
  %v2374 = vunpack.c.l.b16 %v2366
  %v2375 = vunpack.c.l.b16 %v2367
  %v2376 = vpack.c.b16 %v2373, %v2372
  %v2377 = vpack.c.b16 %v2375, %v2374
  %v2381 = vsel %vm1935, %v2358, 0
  %v2384 = vsel %vm1935, %v2359, 0
  %v2387 = vsel %vm1935, %v2360, 0
  %v2390 = vsel %vm1935, %v2361, 0
  %v2393 = vsel %vm1935, %v2362, 0
  %2395 = vmatprep.subr.bf16.mxu0 0
  %2396 = vmatpush1.bf16.msra.mxu0 0
  %2397 = vmatprep.subr.bf16.mxu0 0
  %2398 = vmatpush1.bf16.msra.mxu0 0
  %2399 = vmatprep.subr.bf16.mxu0 0
  %2400 = vmatpush1.bf16.msra.mxu0 0
  %2401 = vmatprep.subr.bf16.mxu0 0
  %2402 = vmatpush1.bf16.msra.mxu0 0
  %2403 = vmatprep.subr.bf16.mxu0 0
  %2404 = vmatpush1.bf16.msra.mxu0 0
  %2405 = vmatprep.subr.bf16.mxu0 0
  %2406 = vmatpush1.bf16.msra.mxu0 0
  %2407 = vmatprep.subr.bf16.mxu0 0
  %2408 = vmatpush1.bf16.msra.mxu0 %v2377
  %2409 = vmatprep.subr.bf16.mxu0 0
  %2410 = vmatpush1.bf16.msra.mxu0 %v2376
  %2411 = vmatprep.subr.bf16.mxu0 0
  %2412 = vmatpush2.bf16.msra.mxu0 0
  %2413 = vmatprep.subr.bf16.mxu0 0
  %2414 = vmatpush2.bf16.msra.mxu0 0
  %2415 = vmatprep.subr.bf16.mxu0 0
  %2416 = vmatpush2.bf16.msra.mxu0 0
  %2417 = vmatprep.subr.bf16.mxu0 0
  %2418 = vmatpush2.bf16.msra.mxu0 0
  %2419 = vmatprep.subr.bf16.mxu0 0
  %2420 = vmatpush2.bf16.msra.mxu0 0
  %2421 = vmatprep.subr.bf16.mxu0 0
  %2422 = vmatpush2.bf16.msra.mxu0 0
  %2423 = vmatprep.subr.bf16.mxu0 0
  %2424 = vmatpush2.bf16.msra.mxu0 0
  %2425 = vmatprep.subr.bf16.mxu0 0
  %2426 = vmatpush2.bf16.msra.mxu0 0
  %2427 = vmatprep.mubr.bf16.mxu0 0
  %2428 = vmatmul.mubr.bf16.gmra.mxu0 %v2381
  %v2429 = vpop.f32.mrf.mxu0
  %v2430 = vadd.f32 0.0, %v2429
  %v2431 = vpop.f32.mrf.mxu0
  %v2432 = vpop.f32.mrf.mxu0
  %v2433 = vadd.f32 0.0, %v2432
  %v2434 = vpop.f32.mrf.mxu0
  %2435 = vmatprep.mubr.bf16.mxu0 0
  %2436 = vmatmul.mubr.bf16.gmra.mxu0 %v2384
  %v2437 = vpop.f32.mrf.mxu0
  %v2438 = vadd.f32 0.0, %v2437
  %v2439 = vpop.f32.mrf.mxu0
  %v2440 = vpop.f32.mrf.mxu0
  %v2441 = vadd.f32 0.0, %v2440
  %v2442 = vpop.f32.mrf.mxu0
  %2443 = vmatprep.mubr.bf16.mxu0 0
  %2444 = vmatmul.mubr.bf16.gmra.mxu0 %v2387
  %v2445 = vpop.f32.mrf.mxu0
  %v2446 = vadd.f32 0.0, %v2445
  %v2447 = vpop.f32.mrf.mxu0
  %v2448 = vpop.f32.mrf.mxu0
  %v2449 = vadd.f32 0.0, %v2448
  %v2450 = vpop.f32.mrf.mxu0
  %2451 = vmatprep.mubr.bf16.mxu0 0
  %2452 = vmatmul.mubr.bf16.gmra.mxu0 %v2390
  %v2453 = vpop.f32.mrf.mxu0
  %v2454 = vadd.f32 0.0, %v2453
  %v2455 = vpop.f32.mrf.mxu0
  %v2456 = vpop.f32.mrf.mxu0
  %v2457 = vadd.f32 0.0, %v2456
  %v2458 = vpop.f32.mrf.mxu0
  %2459 = vmatprep.mubr.bf16.mxu0 0
  %2460 = vmatmul.mubr.bf16.gmra.mxu0 %v2393
  %v2461 = vpop.f32.mrf.mxu0
  %v2462 = vadd.f32 0.0, %v2461
  %v2463 = vpop.f32.mrf.mxu0
  %v2464 = vpop.f32.mrf.mxu0
  %v2465 = vpop.f32.mrf.mxu0
  %2466 = vdwg.mxu0
  %v2467 = vadd.f32 %v2349, %v2430
  %v2468 = vadd.f32 %v2350, %v2433
  %v2469 = vadd.f32 %v2351, %v2438
  %v2470 = vadd.f32 %v2352, %v2441
  %v2471 = vadd.f32 %v2353, %v2446
  %v2472 = vadd.f32 %v2354, %v2449
  %v2473 = vadd.f32 %v2355, %v2454
  %v2474 = vadd.f32 %v2356, %v2457
  %v2475 = vadd.f32 %v2357, %v2462
  %v2476 = vpack.c.bf16 %v1806, %v1805
  %v2477 = vpack.c.bf16 %v1808, %v1807
  %v2478 = vpack.c.bf16 %v1810, %v1809
  %v2479 = vpack.c.bf16 %v1812, %v1811
  %v2480 = vpack.c.bf16 %v1813, %v1813
  %s2481 = scalar_lea.vmem %s3, 80
  %v2482 = vld [vmem:[%s2481] sm:$0xf]
  %v2483 = vld [vmem:[%s2481 + $0x4] sm:$0xf]
  %v2484 = vld [vmem:[%s2481 + $0x8] sm:$0xf]
  %v2485 = vld [vmem:[%s2481 + $0xc] sm:$0xf]
  %v2490 = vunpack.c.l.b16 %v2482
  %v2491 = vunpack.c.l.b16 %v2483
  %v2492 = vunpack.c.l.b16 %v2484
  %v2493 = vunpack.c.l.b16 %v2485
  %v2494 = vpack.c.b16 %v2491, %v2490
  %v2495 = vpack.c.b16 %v2493, %v2492
  %v2499 = vsel %vm1935, %v2476, 0
  %v2502 = vsel %vm1935, %v2477, 0
  %v2505 = vsel %vm1935, %v2478, 0
  %v2508 = vsel %vm1935, %v2479, 0
  %v2511 = vsel %vm1935, %v2480, 0
  %2513 = vmatprep.subr.bf16.mxu0 0
  %2514 = vmatpush1.bf16.msra.mxu0 0
  %2515 = vmatprep.subr.bf16.mxu0 0
  %2516 = vmatpush1.bf16.msra.mxu0 0
  %2517 = vmatprep.subr.bf16.mxu0 0
  %2518 = vmatpush1.bf16.msra.mxu0 0
  %2519 = vmatprep.subr.bf16.mxu0 0
  %2520 = vmatpush1.bf16.msra.mxu0 0
  %2521 = vmatprep.subr.bf16.mxu0 0
  %2522 = vmatpush1.bf16.msra.mxu0 0
  %2523 = vmatprep.subr.bf16.mxu0 0
  %2524 = vmatpush1.bf16.msra.mxu0 0
  %2525 = vmatprep.subr.bf16.mxu0 0
  %2526 = vmatpush1.bf16.msra.mxu0 %v2495
  %2527 = vmatprep.subr.bf16.mxu0 0
  %2528 = vmatpush1.bf16.msra.mxu0 %v2494
  %2529 = vmatprep.subr.bf16.mxu0 0
  %2530 = vmatpush2.bf16.msra.mxu0 0
  %2531 = vmatprep.subr.bf16.mxu0 0
  %2532 = vmatpush2.bf16.msra.mxu0 0
  %2533 = vmatprep.subr.bf16.mxu0 0
  %2534 = vmatpush2.bf16.msra.mxu0 0
  %2535 = vmatprep.subr.bf16.mxu0 0
  %2536 = vmatpush2.bf16.msra.mxu0 0
  %2537 = vmatprep.subr.bf16.mxu0 0
  %2538 = vmatpush2.bf16.msra.mxu0 0
  %2539 = vmatprep.subr.bf16.mxu0 0
  %2540 = vmatpush2.bf16.msra.mxu0 0
  %2541 = vmatprep.subr.bf16.mxu0 0
  %2542 = vmatpush2.bf16.msra.mxu0 0
  %2543 = vmatprep.subr.bf16.mxu0 0
  %2544 = vmatpush2.bf16.msra.mxu0 0
  %2545 = vmatprep.mubr.bf16.mxu0 0
  %2546 = vmatmul.mubr.bf16.gmra.mxu0 %v2499
  %v2547 = vpop.f32.mrf.mxu0
  %v2548 = vadd.f32 0.0, %v2547
  %v2549 = vpop.f32.mrf.mxu0
  %v2550 = vpop.f32.mrf.mxu0
  %v2551 = vadd.f32 0.0, %v2550
  %v2552 = vpop.f32.mrf.mxu0
  %2553 = vmatprep.mubr.bf16.mxu0 0
  %2554 = vmatmul.mubr.bf16.gmra.mxu0 %v2502
  %v2555 = vpop.f32.mrf.mxu0
  %v2556 = vadd.f32 0.0, %v2555
  %v2557 = vpop.f32.mrf.mxu0
  %v2558 = vpop.f32.mrf.mxu0
  %v2559 = vadd.f32 0.0, %v2558
  %v2560 = vpop.f32.mrf.mxu0
  %2561 = vmatprep.mubr.bf16.mxu0 0
  %2562 = vmatmul.mubr.bf16.gmra.mxu0 %v2505
  %v2563 = vpop.f32.mrf.mxu0
  %v2564 = vadd.f32 0.0, %v2563
  %v2565 = vpop.f32.mrf.mxu0
  %v2566 = vpop.f32.mrf.mxu0
  %v2567 = vadd.f32 0.0, %v2566
  %v2568 = vpop.f32.mrf.mxu0
  %2569 = vmatprep.mubr.bf16.mxu0 0
  %2570 = vmatmul.mubr.bf16.gmra.mxu0 %v2508
  %v2571 = vpop.f32.mrf.mxu0
  %v2572 = vadd.f32 0.0, %v2571
  %v2573 = vpop.f32.mrf.mxu0
  %v2574 = vpop.f32.mrf.mxu0
  %v2575 = vadd.f32 0.0, %v2574
  %v2576 = vpop.f32.mrf.mxu0
  %2577 = vmatprep.mubr.bf16.mxu0 0
  %2578 = vmatmul.mubr.bf16.gmra.mxu0 %v2511
  %v2579 = vpop.f32.mrf.mxu0
  %v2580 = vadd.f32 0.0, %v2579
  %v2581 = vpop.f32.mrf.mxu0
  %v2582 = vpop.f32.mrf.mxu0
  %v2583 = vpop.f32.mrf.mxu0
  %2584 = vdwg.mxu0
  %v2585 = vadd.f32 %v2467, %v2548
  %v2586 = vadd.f32 %v2468, %v2551
  %v2587 = vadd.f32 %v2469, %v2556
  %v2588 = vadd.f32 %v2470, %v2559
  %v2589 = vadd.f32 %v2471, %v2564
  %v2590 = vadd.f32 %v2472, %v2567
  %v2591 = vadd.f32 %v2473, %v2572
  %v2592 = vadd.f32 %v2474, %v2575
  %v2593 = vadd.f32 %v2475, %v2580
  %v2594 = vpack.c.bf16 %v1815, %v1814
  %v2595 = vpack.c.bf16 %v1817, %v1816
  %v2596 = vpack.c.bf16 %v1819, %v1818
  %v2597 = vpack.c.bf16 %v1821, %v1820
  %v2598 = vpack.c.bf16 %v1822, %v1822
  %s2599 = scalar_lea.vmem %s3, 96
  %v2600 = vld [vmem:[%s2599] sm:$0xf]
  %v2601 = vld [vmem:[%s2599 + $0x4] sm:$0xf]
  %v2602 = vld [vmem:[%s2599 + $0x8] sm:$0xf]
  %v2603 = vld [vmem:[%s2599 + $0xc] sm:$0xf]
  %v2608 = vunpack.c.l.b16 %v2600
  %v2609 = vunpack.c.l.b16 %v2601
  %v2610 = vunpack.c.l.b16 %v2602
  %v2611 = vunpack.c.l.b16 %v2603
  %v2612 = vpack.c.b16 %v2609, %v2608
  %v2613 = vpack.c.b16 %v2611, %v2610
  %v2617 = vsel %vm1935, %v2594, 0
  %v2620 = vsel %vm1935, %v2595, 0
  %v2623 = vsel %vm1935, %v2596, 0
  %v2626 = vsel %vm1935, %v2597, 0
  %v2629 = vsel %vm1935, %v2598, 0
  %2631 = vmatprep.subr.bf16.mxu0 0
  %2632 = vmatpush1.bf16.msra.mxu0 0
  %2633 = vmatprep.subr.bf16.mxu0 0
  %2634 = vmatpush1.bf16.msra.mxu0 0
  %2635 = vmatprep.subr.bf16.mxu0 0
  %2636 = vmatpush1.bf16.msra.mxu0 0
  %2637 = vmatprep.subr.bf16.mxu0 0
  %2638 = vmatpush1.bf16.msra.mxu0 0
  %2639 = vmatprep.subr.bf16.mxu0 0
  %2640 = vmatpush1.bf16.msra.mxu0 0
  %2641 = vmatprep.subr.bf16.mxu0 0
  %2642 = vmatpush1.bf16.msra.mxu0 0
  %2643 = vmatprep.subr.bf16.mxu0 0
  %2644 = vmatpush1.bf16.msra.mxu0 %v2613
  %2645 = vmatprep.subr.bf16.mxu0 0
  %2646 = vmatpush1.bf16.msra.mxu0 %v2612
  %2647 = vmatprep.subr.bf16.mxu0 0
  %2648 = vmatpush2.bf16.msra.mxu0 0
  %2649 = vmatprep.subr.bf16.mxu0 0
  %2650 = vmatpush2.bf16.msra.mxu0 0
  %2651 = vmatprep.subr.bf16.mxu0 0
  %2652 = vmatpush2.bf16.msra.mxu0 0
  %2653 = vmatprep.subr.bf16.mxu0 0
  %2654 = vmatpush2.bf16.msra.mxu0 0
  %2655 = vmatprep.subr.bf16.mxu0 0
  %2656 = vmatpush2.bf16.msra.mxu0 0
  %2657 = vmatprep.subr.bf16.mxu0 0
  %2658 = vmatpush2.bf16.msra.mxu0 0
  %2659 = vmatprep.subr.bf16.mxu0 0
  %2660 = vmatpush2.bf16.msra.mxu0 0
  %2661 = vmatprep.subr.bf16.mxu0 0
  %2662 = vmatpush2.bf16.msra.mxu0 0
  %2663 = vmatprep.mubr.bf16.mxu0 0
  %2664 = vmatmul.mubr.bf16.gmra.mxu0 %v2617
  %v2665 = vpop.f32.mrf.mxu0
  %v2666 = vadd.f32 0.0, %v2665
  %v2667 = vpop.f32.mrf.mxu0
  %v2668 = vpop.f32.mrf.mxu0
  %v2669 = vadd.f32 0.0, %v2668
  %v2670 = vpop.f32.mrf.mxu0
  %2671 = vmatprep.mubr.bf16.mxu0 0
  %2672 = vmatmul.mubr.bf16.gmra.mxu0 %v2620
  %v2673 = vpop.f32.mrf.mxu0
  %v2674 = vadd.f32 0.0, %v2673
  %v2675 = vpop.f32.mrf.mxu0
  %v2676 = vpop.f32.mrf.mxu0
  %v2677 = vadd.f32 0.0, %v2676
  %v2678 = vpop.f32.mrf.mxu0
  %2679 = vmatprep.mubr.bf16.mxu0 0
  %2680 = vmatmul.mubr.bf16.gmra.mxu0 %v2623
  %v2681 = vpop.f32.mrf.mxu0
  %v2682 = vadd.f32 0.0, %v2681
  %v2683 = vpop.f32.mrf.mxu0
  %v2684 = vpop.f32.mrf.mxu0
  %v2685 = vadd.f32 0.0, %v2684
  %v2686 = vpop.f32.mrf.mxu0
  %2687 = vmatprep.mubr.bf16.mxu0 0
  %2688 = vmatmul.mubr.bf16.gmra.mxu0 %v2626
  %v2689 = vpop.f32.mrf.mxu0
  %v2690 = vadd.f32 0.0, %v2689
  %v2691 = vpop.f32.mrf.mxu0
  %v2692 = vpop.f32.mrf.mxu0
  %v2693 = vadd.f32 0.0, %v2692
  %v2694 = vpop.f32.mrf.mxu0
  %2695 = vmatprep.mubr.bf16.mxu0 0
  %2696 = vmatmul.mubr.bf16.gmra.mxu0 %v2629
  %v2697 = vpop.f32.mrf.mxu0
  %v2698 = vadd.f32 0.0, %v2697
  %v2699 = vpop.f32.mrf.mxu0
  %v2700 = vpop.f32.mrf.mxu0
  %v2701 = vpop.f32.mrf.mxu0
  %2702 = vdwg.mxu0
  %v2703 = vadd.f32 %v2585, %v2666
  %v2704 = vadd.f32 %v2586, %v2669
  %v2705 = vadd.f32 %v2587, %v2674
  %v2706 = vadd.f32 %v2588, %v2677
  %v2707 = vadd.f32 %v2589, %v2682
  %v2708 = vadd.f32 %v2590, %v2685
  %v2709 = vadd.f32 %v2591, %v2690
  %v2710 = vadd.f32 %v2592, %v2693
  %v2711 = vadd.f32 %v2593, %v2698
  %v2712 = vpack.c.bf16 %v1824, %v1823
  %v2713 = vpack.c.bf16 %v1826, %v1825
  %v2714 = vpack.c.bf16 %v1828, %v1827
  %v2715 = vpack.c.bf16 %v1830, %v1829
  %v2716 = vpack.c.bf16 %v1831, %v1831
  %s2717 = scalar_lea.vmem %s3, 112
  %v2718 = vld [vmem:[%s2717] sm:$0xf]
  %v2719 = vld [vmem:[%s2717 + $0x4] sm:$0xf]
  %v2720 = vld [vmem:[%s2717 + $0x8] sm:$0xf]
  %v2721 = vld [vmem:[%s2717 + $0xc] sm:$0xf]
  %v2726 = vunpack.c.l.b16 %v2718
  %v2727 = vunpack.c.l.b16 %v2719
  %v2728 = vunpack.c.l.b16 %v2720
  %v2729 = vunpack.c.l.b16 %v2721
  %v2730 = vpack.c.b16 %v2727, %v2726
  %v2731 = vpack.c.b16 %v2729, %v2728
  %v2735 = vsel %vm1935, %v2712, 0
  %v2738 = vsel %vm1935, %v2713, 0
  %v2741 = vsel %vm1935, %v2714, 0
  %v2744 = vsel %vm1935, %v2715, 0
  %v2747 = vsel %vm1935, %v2716, 0
  %2749 = vmatprep.subr.bf16.mxu0 0
  %2750 = vmatpush1.bf16.msra.mxu0 0
  %2751 = vmatprep.subr.bf16.mxu0 0
  %2752 = vmatpush1.bf16.msra.mxu0 0
  %2753 = vmatprep.subr.bf16.mxu0 0
  %2754 = vmatpush1.bf16.msra.mxu0 0
  %2755 = vmatprep.subr.bf16.mxu0 0
  %2756 = vmatpush1.bf16.msra.mxu0 0
  %2757 = vmatprep.subr.bf16.mxu0 0
  %2758 = vmatpush1.bf16.msra.mxu0 0
  %2759 = vmatprep.subr.bf16.mxu0 0
  %2760 = vmatpush1.bf16.msra.mxu0 0
  %2761 = vmatprep.subr.bf16.mxu0 0
  %2762 = vmatpush1.bf16.msra.mxu0 %v2731
  %2763 = vmatprep.subr.bf16.mxu0 0
  %2764 = vmatpush1.bf16.msra.mxu0 %v2730
  %2765 = vmatprep.subr.bf16.mxu0 0
  %2766 = vmatpush2.bf16.msra.mxu0 0
  %2767 = vmatprep.subr.bf16.mxu0 0
  %2768 = vmatpush2.bf16.msra.mxu0 0
  %2769 = vmatprep.subr.bf16.mxu0 0
  %2770 = vmatpush2.bf16.msra.mxu0 0
  %2771 = vmatprep.subr.bf16.mxu0 0
  %2772 = vmatpush2.bf16.msra.mxu0 0
  %2773 = vmatprep.subr.bf16.mxu0 0
  %2774 = vmatpush2.bf16.msra.mxu0 0
  %2775 = vmatprep.subr.bf16.mxu0 0
  %2776 = vmatpush2.bf16.msra.mxu0 0
  %2777 = vmatprep.subr.bf16.mxu0 0
  %2778 = vmatpush2.bf16.msra.mxu0 0
  %2779 = vmatprep.subr.bf16.mxu0 0
  %2780 = vmatpush2.bf16.msra.mxu0 0
  %2781 = vmatprep.mubr.bf16.mxu0 0
  %2782 = vmatmul.mubr.bf16.gmra.mxu0 %v2735
  %v2783 = vpop.f32.mrf.mxu0
  %v2784 = vadd.f32 0.0, %v2783
  %v2785 = vpop.f32.mrf.mxu0
  %v2786 = vpop.f32.mrf.mxu0
  %v2787 = vadd.f32 0.0, %v2786
  %v2788 = vpop.f32.mrf.mxu0
  %2789 = vmatprep.mubr.bf16.mxu0 0
  %2790 = vmatmul.mubr.bf16.gmra.mxu0 %v2738
  %v2791 = vpop.f32.mrf.mxu0
  %v2792 = vadd.f32 0.0, %v2791
  %v2793 = vpop.f32.mrf.mxu0
  %v2794 = vpop.f32.mrf.mxu0
  %v2795 = vadd.f32 0.0, %v2794
  %v2796 = vpop.f32.mrf.mxu0
  %2797 = vmatprep.mubr.bf16.mxu0 0
  %2798 = vmatmul.mubr.bf16.gmra.mxu0 %v2741
  %v2799 = vpop.f32.mrf.mxu0
  %v2800 = vadd.f32 0.0, %v2799
  %v2801 = vpop.f32.mrf.mxu0
  %v2802 = vpop.f32.mrf.mxu0
  %v2803 = vadd.f32 0.0, %v2802
  %v2804 = vpop.f32.mrf.mxu0
  %2805 = vmatprep.mubr.bf16.mxu0 0
  %2806 = vmatmul.mubr.bf16.gmra.mxu0 %v2744
  %v2807 = vpop.f32.mrf.mxu0
  %v2808 = vadd.f32 0.0, %v2807
  %v2809 = vpop.f32.mrf.mxu0
  %v2810 = vpop.f32.mrf.mxu0
  %v2811 = vadd.f32 0.0, %v2810
  %v2812 = vpop.f32.mrf.mxu0
  %2813 = vmatprep.mubr.bf16.mxu0 0
  %2814 = vmatmul.mubr.bf16.gmra.mxu0 %v2747
  %v2815 = vpop.f32.mrf.mxu0
  %v2816 = vadd.f32 0.0, %v2815
  %v2817 = vpop.f32.mrf.mxu0
  %v2818 = vpop.f32.mrf.mxu0
  %v2819 = vpop.f32.mrf.mxu0
  %2820 = vdwg.mxu0
  %v2821 = vadd.f32 %v2703, %v2784
  %v2822 = vadd.f32 %v2704, %v2787
  %v2823 = vadd.f32 %v2705, %v2792
  %v2824 = vadd.f32 %v2706, %v2795
  %v2825 = vadd.f32 %v2707, %v2800
  %v2826 = vadd.f32 %v2708, %v2803
  %v2827 = vadd.f32 %v2709, %v2808
  %v2828 = vadd.f32 %v2710, %v2811
  %v2829 = vadd.f32 %v2711, %v2816
  %v2830 = vpack.c.bf16 %v1833, %v1832
  %v2831 = vpack.c.bf16 %v1835, %v1834
  %v2832 = vpack.c.bf16 %v1837, %v1836
  %v2833 = vpack.c.bf16 %v1839, %v1838
  %v2834 = vpack.c.bf16 %v1840, %v1840
  %s2835 = scalar_lea.vmem %s3, 128
  %v2836 = vld [vmem:[%s2835] sm:$0xf]
  %v2837 = vld [vmem:[%s2835 + $0x4] sm:$0xf]
  %v2838 = vld [vmem:[%s2835 + $0x8] sm:$0xf]
  %v2839 = vld [vmem:[%s2835 + $0xc] sm:$0xf]
  %v2844 = vunpack.c.l.b16 %v2836
  %v2845 = vunpack.c.l.b16 %v2837
  %v2846 = vunpack.c.l.b16 %v2838
  %v2847 = vunpack.c.l.b16 %v2839
  %v2848 = vpack.c.b16 %v2845, %v2844
  %v2849 = vpack.c.b16 %v2847, %v2846
  %v2853 = vsel %vm1935, %v2830, 0
  %v2856 = vsel %vm1935, %v2831, 0
  %v2859 = vsel %vm1935, %v2832, 0
  %v2862 = vsel %vm1935, %v2833, 0
  %v2865 = vsel %vm1935, %v2834, 0
  %2867 = vmatprep.subr.bf16.mxu0 0
  %2868 = vmatpush1.bf16.msra.mxu0 0
  %2869 = vmatprep.subr.bf16.mxu0 0
  %2870 = vmatpush1.bf16.msra.mxu0 0
  %2871 = vmatprep.subr.bf16.mxu0 0
  %2872 = vmatpush1.bf16.msra.mxu0 0
  %2873 = vmatprep.subr.bf16.mxu0 0
  %2874 = vmatpush1.bf16.msra.mxu0 0
  %2875 = vmatprep.subr.bf16.mxu0 0
  %2876 = vmatpush1.bf16.msra.mxu0 0
  %2877 = vmatprep.subr.bf16.mxu0 0
  %2878 = vmatpush1.bf16.msra.mxu0 0
  %2879 = vmatprep.subr.bf16.mxu0 0
  %2880 = vmatpush1.bf16.msra.mxu0 %v2849
  %2881 = vmatprep.subr.bf16.mxu0 0
  %2882 = vmatpush1.bf16.msra.mxu0 %v2848
  %2883 = vmatprep.subr.bf16.mxu0 0
  %2884 = vmatpush2.bf16.msra.mxu0 0
  %2885 = vmatprep.subr.bf16.mxu0 0
  %2886 = vmatpush2.bf16.msra.mxu0 0
  %2887 = vmatprep.subr.bf16.mxu0 0
  %2888 = vmatpush2.bf16.msra.mxu0 0
  %2889 = vmatprep.subr.bf16.mxu0 0
  %2890 = vmatpush2.bf16.msra.mxu0 0
  %2891 = vmatprep.subr.bf16.mxu0 0
  %2892 = vmatpush2.bf16.msra.mxu0 0
  %2893 = vmatprep.subr.bf16.mxu0 0
  %2894 = vmatpush2.bf16.msra.mxu0 0
  %2895 = vmatprep.subr.bf16.mxu0 0
  %2896 = vmatpush2.bf16.msra.mxu0 0
  %2897 = vmatprep.subr.bf16.mxu0 0
  %2898 = vmatpush2.bf16.msra.mxu0 0
  %2899 = vmatprep.mubr.bf16.mxu0 0
  %2900 = vmatmul.mubr.bf16.gmra.mxu0 %v2853
  %v2901 = vpop.f32.mrf.mxu0
  %v2902 = vadd.f32 0.0, %v2901
  %v2903 = vpop.f32.mrf.mxu0
  %v2904 = vpop.f32.mrf.mxu0
  %v2905 = vadd.f32 0.0, %v2904
  %v2906 = vpop.f32.mrf.mxu0
  %2907 = vmatprep.mubr.bf16.mxu0 0
  %2908 = vmatmul.mubr.bf16.gmra.mxu0 %v2856
  %v2909 = vpop.f32.mrf.mxu0
  %v2910 = vadd.f32 0.0, %v2909
  %v2911 = vpop.f32.mrf.mxu0
  %v2912 = vpop.f32.mrf.mxu0
  %v2913 = vadd.f32 0.0, %v2912
  %v2914 = vpop.f32.mrf.mxu0
  %2915 = vmatprep.mubr.bf16.mxu0 0
  %2916 = vmatmul.mubr.bf16.gmra.mxu0 %v2859
  %v2917 = vpop.f32.mrf.mxu0
  %v2918 = vadd.f32 0.0, %v2917
  %v2919 = vpop.f32.mrf.mxu0
  %v2920 = vpop.f32.mrf.mxu0
  %v2921 = vadd.f32 0.0, %v2920
  %v2922 = vpop.f32.mrf.mxu0
  %2923 = vmatprep.mubr.bf16.mxu0 0
  %2924 = vmatmul.mubr.bf16.gmra.mxu0 %v2862
  %v2925 = vpop.f32.mrf.mxu0
  %v2926 = vadd.f32 0.0, %v2925
  %v2927 = vpop.f32.mrf.mxu0
  %v2928 = vpop.f32.mrf.mxu0
  %v2929 = vadd.f32 0.0, %v2928
  %v2930 = vpop.f32.mrf.mxu0
  %2931 = vmatprep.mubr.bf16.mxu0 0
  %2932 = vmatmul.mubr.bf16.gmra.mxu0 %v2865
  %v2933 = vpop.f32.mrf.mxu0
  %v2934 = vadd.f32 0.0, %v2933
  %v2935 = vpop.f32.mrf.mxu0
  %v2936 = vpop.f32.mrf.mxu0
  %v2937 = vpop.f32.mrf.mxu0
  %2938 = vdwg.mxu0
  %v2939 = vadd.f32 %v2821, %v2902
  %v2940 = vadd.f32 %v2822, %v2905
  %v2941 = vadd.f32 %v2823, %v2910
  %v2942 = vadd.f32 %v2824, %v2913
  %v2943 = vadd.f32 %v2825, %v2918
  %v2944 = vadd.f32 %v2826, %v2921
  %v2945 = vadd.f32 %v2827, %v2926
  %v2946 = vadd.f32 %v2828, %v2929
  %v2947 = vadd.f32 %v2829, %v2934
  %v2948 = vpack.c.bf16 %v1842, %v1841
  %v2949 = vpack.c.bf16 %v1844, %v1843
  %v2950 = vpack.c.bf16 %v1846, %v1845
  %v2951 = vpack.c.bf16 %v1848, %v1847
  %v2952 = vpack.c.bf16 %v1849, %v1849
  %s2953 = scalar_lea.vmem %s3, 144
  %v2954 = vld [vmem:[%s2953] sm:$0xf]
  %v2955 = vld [vmem:[%s2953 + $0x4] sm:$0xf]
  %v2956 = vld [vmem:[%s2953 + $0x8] sm:$0xf]
  %v2957 = vld [vmem:[%s2953 + $0xc] sm:$0xf]
  %v2962 = vunpack.c.l.b16 %v2954
  %v2963 = vunpack.c.l.b16 %v2955
  %v2964 = vunpack.c.l.b16 %v2956
  %v2965 = vunpack.c.l.b16 %v2957
  %v2966 = vpack.c.b16 %v2963, %v2962
  %v2967 = vpack.c.b16 %v2965, %v2964
  %v2971 = vsel %vm1935, %v2948, 0
  %v2974 = vsel %vm1935, %v2949, 0
  %v2977 = vsel %vm1935, %v2950, 0
  %v2980 = vsel %vm1935, %v2951, 0
  %v2983 = vsel %vm1935, %v2952, 0
  %2985 = vmatprep.subr.bf16.mxu0 0
  %2986 = vmatpush1.bf16.msra.mxu0 0
  %2987 = vmatprep.subr.bf16.mxu0 0
  %2988 = vmatpush1.bf16.msra.mxu0 0
  %2989 = vmatprep.subr.bf16.mxu0 0
  %2990 = vmatpush1.bf16.msra.mxu0 0
  %2991 = vmatprep.subr.bf16.mxu0 0
  %2992 = vmatpush1.bf16.msra.mxu0 0
  %2993 = vmatprep.subr.bf16.mxu0 0
  %2994 = vmatpush1.bf16.msra.mxu0 0
  %2995 = vmatprep.subr.bf16.mxu0 0
  %2996 = vmatpush1.bf16.msra.mxu0 0
  %2997 = vmatprep.subr.bf16.mxu0 0
  %2998 = vmatpush1.bf16.msra.mxu0 %v2967
  %2999 = vmatprep.subr.bf16.mxu0 0
  %3000 = vmatpush1.bf16.msra.mxu0 %v2966
  %3001 = vmatprep.subr.bf16.mxu0 0
  %3002 = vmatpush2.bf16.msra.mxu0 0
  %3003 = vmatprep.subr.bf16.mxu0 0
  %3004 = vmatpush2.bf16.msra.mxu0 0
  %3005 = vmatprep.subr.bf16.mxu0 0
  %3006 = vmatpush2.bf16.msra.mxu0 0
  %3007 = vmatprep.subr.bf16.mxu0 0
  %3008 = vmatpush2.bf16.msra.mxu0 0
  %3009 = vmatprep.subr.bf16.mxu0 0
  %3010 = vmatpush2.bf16.msra.mxu0 0
  %3011 = vmatprep.subr.bf16.mxu0 0
  %3012 = vmatpush2.bf16.msra.mxu0 0
  %3013 = vmatprep.subr.bf16.mxu0 0
  %3014 = vmatpush2.bf16.msra.mxu0 0
  %3015 = vmatprep.subr.bf16.mxu0 0
  %3016 = vmatpush2.bf16.msra.mxu0 0
  %3017 = vmatprep.mubr.bf16.mxu0 0
  %3018 = vmatmul.mubr.bf16.gmra.mxu0 %v2971
  %v3019 = vpop.f32.mrf.mxu0
  %v3020 = vadd.f32 0.0, %v3019
  %v3021 = vpop.f32.mrf.mxu0
  %v3022 = vpop.f32.mrf.mxu0
  %v3023 = vadd.f32 0.0, %v3022
  %v3024 = vpop.f32.mrf.mxu0
  %3025 = vmatprep.mubr.bf16.mxu0 0
  %3026 = vmatmul.mubr.bf16.gmra.mxu0 %v2974
  %v3027 = vpop.f32.mrf.mxu0
  %v3028 = vadd.f32 0.0, %v3027
  %v3029 = vpop.f32.mrf.mxu0
  %v3030 = vpop.f32.mrf.mxu0
  %v3031 = vadd.f32 0.0, %v3030
  %v3032 = vpop.f32.mrf.mxu0
  %3033 = vmatprep.mubr.bf16.mxu0 0
  %3034 = vmatmul.mubr.bf16.gmra.mxu0 %v2977
  %v3035 = vpop.f32.mrf.mxu0
  %v3036 = vadd.f32 0.0, %v3035
  %v3037 = vpop.f32.mrf.mxu0
  %v3038 = vpop.f32.mrf.mxu0
  %v3039 = vadd.f32 0.0, %v3038
  %v3040 = vpop.f32.mrf.mxu0
  %3041 = vmatprep.mubr.bf16.mxu0 0
  %3042 = vmatmul.mubr.bf16.gmra.mxu0 %v2980
  %v3043 = vpop.f32.mrf.mxu0
  %v3044 = vadd.f32 0.0, %v3043
  %v3045 = vpop.f32.mrf.mxu0
  %v3046 = vpop.f32.mrf.mxu0
  %v3047 = vadd.f32 0.0, %v3046
  %v3048 = vpop.f32.mrf.mxu0
  %3049 = vmatprep.mubr.bf16.mxu0 0
  %3050 = vmatmul.mubr.bf16.gmra.mxu0 %v2983
  %v3051 = vpop.f32.mrf.mxu0
  %v3052 = vadd.f32 0.0, %v3051
  %v3053 = vpop.f32.mrf.mxu0
  %v3054 = vpop.f32.mrf.mxu0
  %v3055 = vpop.f32.mrf.mxu0
  %3056 = vdwg.mxu0
  %v3057 = vadd.f32 %v2939, %v3020
  %v3058 = vadd.f32 %v2940, %v3023
  %v3059 = vadd.f32 %v2941, %v3028
  %v3060 = vadd.f32 %v2942, %v3031
  %v3061 = vadd.f32 %v2943, %v3036
  %v3062 = vadd.f32 %v2944, %v3039
  %v3063 = vadd.f32 %v2945, %v3044
  %v3064 = vadd.f32 %v2946, %v3047
  %v3065 = vadd.f32 %v2947, %v3052
  %v3066 = vpack.c.bf16 %v1851, %v1850
  %v3067 = vpack.c.bf16 %v1853, %v1852
  %v3068 = vpack.c.bf16 %v1855, %v1854
  %v3069 = vpack.c.bf16 %v1857, %v1856
  %v3070 = vpack.c.bf16 %v1858, %v1858
  %s3071 = scalar_lea.vmem %s3, 160
  %v3072 = vld [vmem:[%s3071] sm:$0xf]
  %v3073 = vld [vmem:[%s3071 + $0x4] sm:$0xf]
  %v3074 = vld [vmem:[%s3071 + $0x8] sm:$0xf]
  %v3075 = vld [vmem:[%s3071 + $0xc] sm:$0xf]
  %v3080 = vunpack.c.l.b16 %v3072
  %v3081 = vunpack.c.l.b16 %v3073
  %v3082 = vunpack.c.l.b16 %v3074
  %v3083 = vunpack.c.l.b16 %v3075
  %v3084 = vpack.c.b16 %v3081, %v3080
  %v3085 = vpack.c.b16 %v3083, %v3082
  %v3089 = vsel %vm1935, %v3066, 0
  %v3092 = vsel %vm1935, %v3067, 0
  %v3095 = vsel %vm1935, %v3068, 0
  %v3098 = vsel %vm1935, %v3069, 0
  %v3101 = vsel %vm1935, %v3070, 0
  %3103 = vmatprep.subr.bf16.mxu0 0
  %3104 = vmatpush1.bf16.msra.mxu0 0
  %3105 = vmatprep.subr.bf16.mxu0 0
  %3106 = vmatpush1.bf16.msra.mxu0 0
  %3107 = vmatprep.subr.bf16.mxu0 0
  %3108 = vmatpush1.bf16.msra.mxu0 0
  %3109 = vmatprep.subr.bf16.mxu0 0
  %3110 = vmatpush1.bf16.msra.mxu0 0
  %3111 = vmatprep.subr.bf16.mxu0 0
  %3112 = vmatpush1.bf16.msra.mxu0 0
  %3113 = vmatprep.subr.bf16.mxu0 0
  %3114 = vmatpush1.bf16.msra.mxu0 0
  %3115 = vmatprep.subr.bf16.mxu0 0
  %3116 = vmatpush1.bf16.msra.mxu0 %v3085
  %3117 = vmatprep.subr.bf16.mxu0 0
  %3118 = vmatpush1.bf16.msra.mxu0 %v3084
  %3119 = vmatprep.subr.bf16.mxu0 0
  %3120 = vmatpush2.bf16.msra.mxu0 0
  %3121 = vmatprep.subr.bf16.mxu0 0
  %3122 = vmatpush2.bf16.msra.mxu0 0
  %3123 = vmatprep.subr.bf16.mxu0 0
  %3124 = vmatpush2.bf16.msra.mxu0 0
  %3125 = vmatprep.subr.bf16.mxu0 0
  %3126 = vmatpush2.bf16.msra.mxu0 0
  %3127 = vmatprep.subr.bf16.mxu0 0
  %3128 = vmatpush2.bf16.msra.mxu0 0
  %3129 = vmatprep.subr.bf16.mxu0 0
  %3130 = vmatpush2.bf16.msra.mxu0 0
  %3131 = vmatprep.subr.bf16.mxu0 0
  %3132 = vmatpush2.bf16.msra.mxu0 0
  %3133 = vmatprep.subr.bf16.mxu0 0
  %3134 = vmatpush2.bf16.msra.mxu0 0
  %3135 = vmatprep.mubr.bf16.mxu0 0
  %3136 = vmatmul.mubr.bf16.gmra.mxu0 %v3089
  %v3137 = vpop.f32.mrf.mxu0
  %v3138 = vadd.f32 0.0, %v3137
  %v3139 = vpop.f32.mrf.mxu0
  %v3140 = vpop.f32.mrf.mxu0
  %v3141 = vadd.f32 0.0, %v3140
  %v3142 = vpop.f32.mrf.mxu0
  %3143 = vmatprep.mubr.bf16.mxu0 0
  %3144 = vmatmul.mubr.bf16.gmra.mxu0 %v3092
  %v3145 = vpop.f32.mrf.mxu0
  %v3146 = vadd.f32 0.0, %v3145
  %v3147 = vpop.f32.mrf.mxu0
  %v3148 = vpop.f32.mrf.mxu0
  %v3149 = vadd.f32 0.0, %v3148
  %v3150 = vpop.f32.mrf.mxu0
  %3151 = vmatprep.mubr.bf16.mxu0 0
  %3152 = vmatmul.mubr.bf16.gmra.mxu0 %v3095
  %v3153 = vpop.f32.mrf.mxu0
  %v3154 = vadd.f32 0.0, %v3153
  %v3155 = vpop.f32.mrf.mxu0
  %v3156 = vpop.f32.mrf.mxu0
  %v3157 = vadd.f32 0.0, %v3156
  %v3158 = vpop.f32.mrf.mxu0
  %3159 = vmatprep.mubr.bf16.mxu0 0
  %3160 = vmatmul.mubr.bf16.gmra.mxu0 %v3098
  %v3161 = vpop.f32.mrf.mxu0
  %v3162 = vadd.f32 0.0, %v3161
  %v3163 = vpop.f32.mrf.mxu0
  %v3164 = vpop.f32.mrf.mxu0
  %v3165 = vadd.f32 0.0, %v3164
  %v3166 = vpop.f32.mrf.mxu0
  %3167 = vmatprep.mubr.bf16.mxu0 0
  %3168 = vmatmul.mubr.bf16.gmra.mxu0 %v3101
  %v3169 = vpop.f32.mrf.mxu0
  %v3170 = vadd.f32 0.0, %v3169
  %v3171 = vpop.f32.mrf.mxu0
  %v3172 = vpop.f32.mrf.mxu0
  %v3173 = vpop.f32.mrf.mxu0
  %3174 = vdwg.mxu0
  %v3175 = vadd.f32 %v3057, %v3138
  %v3176 = vadd.f32 %v3058, %v3141
  %v3177 = vadd.f32 %v3059, %v3146
  %v3178 = vadd.f32 %v3060, %v3149
  %v3179 = vadd.f32 %v3061, %v3154
  %v3180 = vadd.f32 %v3062, %v3157
  %v3181 = vadd.f32 %v3063, %v3162
  %v3182 = vadd.f32 %v3064, %v3165
  %v3183 = vadd.f32 %v3065, %v3170
  %v3184 = vpack.c.bf16 %v1860, %v1859
  %v3185 = vpack.c.bf16 %v1862, %v1861
  %v3186 = vpack.c.bf16 %v1864, %v1863
  %v3187 = vpack.c.bf16 %v1866, %v1865
  %v3188 = vpack.c.bf16 %v1867, %v1867
  %s3189 = scalar_lea.vmem %s3, 176
  %v3190 = vld [vmem:[%s3189] sm:$0xf]
  %v3191 = vld [vmem:[%s3189 + $0x4] sm:$0xf]
  %v3192 = vld [vmem:[%s3189 + $0x8] sm:$0xf]
  %v3193 = vld [vmem:[%s3189 + $0xc] sm:$0xf]
  %v3198 = vunpack.c.l.b16 %v3190
  %v3199 = vunpack.c.l.b16 %v3191
  %v3200 = vunpack.c.l.b16 %v3192
  %v3201 = vunpack.c.l.b16 %v3193
  %v3202 = vpack.c.b16 %v3199, %v3198
  %v3203 = vpack.c.b16 %v3201, %v3200
  %v3207 = vsel %vm1935, %v3184, 0
  %v3210 = vsel %vm1935, %v3185, 0
  %v3213 = vsel %vm1935, %v3186, 0
  %v3216 = vsel %vm1935, %v3187, 0
  %v3219 = vsel %vm1935, %v3188, 0
  %3221 = vmatprep.subr.bf16.mxu0 0
  %3222 = vmatpush1.bf16.msra.mxu0 0
  %3223 = vmatprep.subr.bf16.mxu0 0
  %3224 = vmatpush1.bf16.msra.mxu0 0
  %3225 = vmatprep.subr.bf16.mxu0 0
  %3226 = vmatpush1.bf16.msra.mxu0 0
  %3227 = vmatprep.subr.bf16.mxu0 0
  %3228 = vmatpush1.bf16.msra.mxu0 0
  %3229 = vmatprep.subr.bf16.mxu0 0
  %3230 = vmatpush1.bf16.msra.mxu0 0
  %3231 = vmatprep.subr.bf16.mxu0 0
  %3232 = vmatpush1.bf16.msra.mxu0 0
  %3233 = vmatprep.subr.bf16.mxu0 0
  %3234 = vmatpush1.bf16.msra.mxu0 %v3203
  %3235 = vmatprep.subr.bf16.mxu0 0
  %3236 = vmatpush1.bf16.msra.mxu0 %v3202
  %3237 = vmatprep.subr.bf16.mxu0 0
  %3238 = vmatpush2.bf16.msra.mxu0 0
  %3239 = vmatprep.subr.bf16.mxu0 0
  %3240 = vmatpush2.bf16.msra.mxu0 0
  %3241 = vmatprep.subr.bf16.mxu0 0
  %3242 = vmatpush2.bf16.msra.mxu0 0
  %3243 = vmatprep.subr.bf16.mxu0 0
  %3244 = vmatpush2.bf16.msra.mxu0 0
  %3245 = vmatprep.subr.bf16.mxu0 0
  %3246 = vmatpush2.bf16.msra.mxu0 0
  %3247 = vmatprep.subr.bf16.mxu0 0
  %3248 = vmatpush2.bf16.msra.mxu0 0
  %3249 = vmatprep.subr.bf16.mxu0 0
  %3250 = vmatpush2.bf16.msra.mxu0 0
  %3251 = vmatprep.subr.bf16.mxu0 0
  %3252 = vmatpush2.bf16.msra.mxu0 0
  %3253 = vmatprep.mubr.bf16.mxu0 0
  %3254 = vmatmul.mubr.bf16.gmra.mxu0 %v3207
  %v3255 = vpop.f32.mrf.mxu0
  %v3256 = vadd.f32 0.0, %v3255
  %v3257 = vpop.f32.mrf.mxu0
  %v3258 = vpop.f32.mrf.mxu0
  %v3259 = vadd.f32 0.0, %v3258
  %v3260 = vpop.f32.mrf.mxu0
  %3261 = vmatprep.mubr.bf16.mxu0 0
  %3262 = vmatmul.mubr.bf16.gmra.mxu0 %v3210
  %v3263 = vpop.f32.mrf.mxu0
  %v3264 = vadd.f32 0.0, %v3263
  %v3265 = vpop.f32.mrf.mxu0
  %v3266 = vpop.f32.mrf.mxu0
  %v3267 = vadd.f32 0.0, %v3266
  %v3268 = vpop.f32.mrf.mxu0
  %3269 = vmatprep.mubr.bf16.mxu0 0
  %3270 = vmatmul.mubr.bf16.gmra.mxu0 %v3213
  %v3271 = vpop.f32.mrf.mxu0
  %v3272 = vadd.f32 0.0, %v3271
  %v3273 = vpop.f32.mrf.mxu0
  %v3274 = vpop.f32.mrf.mxu0
  %v3275 = vadd.f32 0.0, %v3274
  %v3276 = vpop.f32.mrf.mxu0
  %3277 = vmatprep.mubr.bf16.mxu0 0
  %3278 = vmatmul.mubr.bf16.gmra.mxu0 %v3216
  %v3279 = vpop.f32.mrf.mxu0
  %v3280 = vadd.f32 0.0, %v3279
  %v3281 = vpop.f32.mrf.mxu0
  %v3282 = vpop.f32.mrf.mxu0
  %v3283 = vadd.f32 0.0, %v3282
  %v3284 = vpop.f32.mrf.mxu0
  %3285 = vmatprep.mubr.bf16.mxu0 0
  %3286 = vmatmul.mubr.bf16.gmra.mxu0 %v3219
  %v3287 = vpop.f32.mrf.mxu0
  %v3288 = vadd.f32 0.0, %v3287
  %v3289 = vpop.f32.mrf.mxu0
  %v3290 = vpop.f32.mrf.mxu0
  %v3291 = vpop.f32.mrf.mxu0
  %3292 = vdwg.mxu0
  %v3293 = vadd.f32 %v3175, %v3256
  %v3294 = vadd.f32 %v3176, %v3259
  %v3295 = vadd.f32 %v3177, %v3264
  %v3296 = vadd.f32 %v3178, %v3267
  %v3297 = vadd.f32 %v3179, %v3272
  %v3298 = vadd.f32 %v3180, %v3275
  %v3299 = vadd.f32 %v3181, %v3280
  %v3300 = vadd.f32 %v3182, %v3283
  %v3301 = vadd.f32 %v3183, %v3288
  %v3302 = vpack.c.bf16 %v1869, %v1868
  %v3303 = vpack.c.bf16 %v1871, %v1870
  %v3304 = vpack.c.bf16 %v1873, %v1872
  %v3305 = vpack.c.bf16 %v1875, %v1874
  %v3306 = vpack.c.bf16 %v1876, %v1876
  %s3307 = scalar_lea.vmem %s3, 192
  %v3308 = vld [vmem:[%s3307] sm:$0xf]
  %v3309 = vld [vmem:[%s3307 + $0x4] sm:$0xf]
  %v3310 = vld [vmem:[%s3307 + $0x8] sm:$0xf]
  %v3311 = vld [vmem:[%s3307 + $0xc] sm:$0xf]
  %v3316 = vunpack.c.l.b16 %v3308
  %v3317 = vunpack.c.l.b16 %v3309
  %v3318 = vunpack.c.l.b16 %v3310
  %v3319 = vunpack.c.l.b16 %v3311
  %v3320 = vpack.c.b16 %v3317, %v3316
  %v3321 = vpack.c.b16 %v3319, %v3318
  %v3325 = vsel %vm1935, %v3302, 0
  %v3328 = vsel %vm1935, %v3303, 0
  %v3331 = vsel %vm1935, %v3304, 0
  %v3334 = vsel %vm1935, %v3305, 0
  %v3337 = vsel %vm1935, %v3306, 0
  %3339 = vmatprep.subr.bf16.mxu0 0
  %3340 = vmatpush1.bf16.msra.mxu0 0
  %3341 = vmatprep.subr.bf16.mxu0 0
  %3342 = vmatpush1.bf16.msra.mxu0 0
  %3343 = vmatprep.subr.bf16.mxu0 0
  %3344 = vmatpush1.bf16.msra.mxu0 0
  %3345 = vmatprep.subr.bf16.mxu0 0
  %3346 = vmatpush1.bf16.msra.mxu0 0
  %3347 = vmatprep.subr.bf16.mxu0 0
  %3348 = vmatpush1.bf16.msra.mxu0 0
  %3349 = vmatprep.subr.bf16.mxu0 0
  %3350 = vmatpush1.bf16.msra.mxu0 0
  %3351 = vmatprep.subr.bf16.mxu0 0
  %3352 = vmatpush1.bf16.msra.mxu0 %v3321
  %3353 = vmatprep.subr.bf16.mxu0 0
  %3354 = vmatpush1.bf16.msra.mxu0 %v3320
  %3355 = vmatprep.subr.bf16.mxu0 0
  %3356 = vmatpush2.bf16.msra.mxu0 0
  %3357 = vmatprep.subr.bf16.mxu0 0
  %3358 = vmatpush2.bf16.msra.mxu0 0
  %3359 = vmatprep.subr.bf16.mxu0 0
  %3360 = vmatpush2.bf16.msra.mxu0 0
  %3361 = vmatprep.subr.bf16.mxu0 0
  %3362 = vmatpush2.bf16.msra.mxu0 0
  %3363 = vmatprep.subr.bf16.mxu0 0
  %3364 = vmatpush2.bf16.msra.mxu0 0
  %3365 = vmatprep.subr.bf16.mxu0 0
  %3366 = vmatpush2.bf16.msra.mxu0 0
  %3367 = vmatprep.subr.bf16.mxu0 0
  %3368 = vmatpush2.bf16.msra.mxu0 0
  %3369 = vmatprep.subr.bf16.mxu0 0
  %3370 = vmatpush2.bf16.msra.mxu0 0
  %3371 = vmatprep.mubr.bf16.mxu0 0
  %3372 = vmatmul.mubr.bf16.gmra.mxu0 %v3325
  %v3373 = vpop.f32.mrf.mxu0
  %v3374 = vadd.f32 0.0, %v3373
  %v3375 = vpop.f32.mrf.mxu0
  %v3376 = vpop.f32.mrf.mxu0
  %v3377 = vadd.f32 0.0, %v3376
  %v3378 = vpop.f32.mrf.mxu0
  %3379 = vmatprep.mubr.bf16.mxu0 0
  %3380 = vmatmul.mubr.bf16.gmra.mxu0 %v3328
  %v3381 = vpop.f32.mrf.mxu0
  %v3382 = vadd.f32 0.0, %v3381
  %v3383 = vpop.f32.mrf.mxu0
  %v3384 = vpop.f32.mrf.mxu0
  %v3385 = vadd.f32 0.0, %v3384
  %v3386 = vpop.f32.mrf.mxu0
  %3387 = vmatprep.mubr.bf16.mxu0 0
  %3388 = vmatmul.mubr.bf16.gmra.mxu0 %v3331
  %v3389 = vpop.f32.mrf.mxu0
  %v3390 = vadd.f32 0.0, %v3389
  %v3391 = vpop.f32.mrf.mxu0
  %v3392 = vpop.f32.mrf.mxu0
  %v3393 = vadd.f32 0.0, %v3392
  %v3394 = vpop.f32.mrf.mxu0
  %3395 = vmatprep.mubr.bf16.mxu0 0
  %3396 = vmatmul.mubr.bf16.gmra.mxu0 %v3334
  %v3397 = vpop.f32.mrf.mxu0
  %v3398 = vadd.f32 0.0, %v3397
  %v3399 = vpop.f32.mrf.mxu0
  %v3400 = vpop.f32.mrf.mxu0
  %v3401 = vadd.f32 0.0, %v3400
  %v3402 = vpop.f32.mrf.mxu0
  %3403 = vmatprep.mubr.bf16.mxu0 0
  %3404 = vmatmul.mubr.bf16.gmra.mxu0 %v3337
  %v3405 = vpop.f32.mrf.mxu0
  %v3406 = vadd.f32 0.0, %v3405
  %v3407 = vpop.f32.mrf.mxu0
  %v3408 = vpop.f32.mrf.mxu0
  %v3409 = vpop.f32.mrf.mxu0
  %3410 = vdwg.mxu0
  %v3411 = vadd.f32 %v3293, %v3374
  %v3412 = vadd.f32 %v3294, %v3377
  %v3413 = vadd.f32 %v3295, %v3382
  %v3414 = vadd.f32 %v3296, %v3385
  %v3415 = vadd.f32 %v3297, %v3390
  %v3416 = vadd.f32 %v3298, %v3393
  %v3417 = vadd.f32 %v3299, %v3398
  %v3418 = vadd.f32 %v3300, %v3401
  %v3419 = vadd.f32 %v3301, %v3406
  %v3420 = vpack.c.bf16 %v1878, %v1877
  %v3421 = vpack.c.bf16 %v1880, %v1879
  %v3422 = vpack.c.bf16 %v1882, %v1881
  %v3423 = vpack.c.bf16 %v1884, %v1883
  %v3424 = vpack.c.bf16 %v1885, %v1885
  %s3425 = scalar_lea.vmem %s3, 208
  %v3426 = vld [vmem:[%s3425] sm:$0xf]
  %v3427 = vld [vmem:[%s3425 + $0x4] sm:$0xf]
  %v3428 = vld [vmem:[%s3425 + $0x8] sm:$0xf]
  %v3429 = vld [vmem:[%s3425 + $0xc] sm:$0xf]
  %v3434 = vunpack.c.l.b16 %v3426
  %v3435 = vunpack.c.l.b16 %v3427
  %v3436 = vunpack.c.l.b16 %v3428
  %v3437 = vunpack.c.l.b16 %v3429
  %v3438 = vpack.c.b16 %v3435, %v3434
  %v3439 = vpack.c.b16 %v3437, %v3436
  %v3443 = vsel %vm1935, %v3420, 0
  %v3446 = vsel %vm1935, %v3421, 0
  %v3449 = vsel %vm1935, %v3422, 0
  %v3452 = vsel %vm1935, %v3423, 0
  %v3455 = vsel %vm1935, %v3424, 0
  %3457 = vmatprep.subr.bf16.mxu0 0
  %3458 = vmatpush1.bf16.msra.mxu0 0
  %3459 = vmatprep.subr.bf16.mxu0 0
  %3460 = vmatpush1.bf16.msra.mxu0 0
  %3461 = vmatprep.subr.bf16.mxu0 0
  %3462 = vmatpush1.bf16.msra.mxu0 0
  %3463 = vmatprep.subr.bf16.mxu0 0
  %3464 = vmatpush1.bf16.msra.mxu0 0
  %3465 = vmatprep.subr.bf16.mxu0 0
  %3466 = vmatpush1.bf16.msra.mxu0 0
  %3467 = vmatprep.subr.bf16.mxu0 0
  %3468 = vmatpush1.bf16.msra.mxu0 0
  %3469 = vmatprep.subr.bf16.mxu0 0
  %3470 = vmatpush1.bf16.msra.mxu0 %v3439
  %3471 = vmatprep.subr.bf16.mxu0 0
  %3472 = vmatpush1.bf16.msra.mxu0 %v3438
  %3473 = vmatprep.subr.bf16.mxu0 0
  %3474 = vmatpush2.bf16.msra.mxu0 0
  %3475 = vmatprep.subr.bf16.mxu0 0
  %3476 = vmatpush2.bf16.msra.mxu0 0
  %3477 = vmatprep.subr.bf16.mxu0 0
  %3478 = vmatpush2.bf16.msra.mxu0 0
  %3479 = vmatprep.subr.bf16.mxu0 0
  %3480 = vmatpush2.bf16.msra.mxu0 0
  %3481 = vmatprep.subr.bf16.mxu0 0
  %3482 = vmatpush2.bf16.msra.mxu0 0
  %3483 = vmatprep.subr.bf16.mxu0 0
  %3484 = vmatpush2.bf16.msra.mxu0 0
  %3485 = vmatprep.subr.bf16.mxu0 0
  %3486 = vmatpush2.bf16.msra.mxu0 0
  %3487 = vmatprep.subr.bf16.mxu0 0
  %3488 = vmatpush2.bf16.msra.mxu0 0
  %3489 = vmatprep.mubr.bf16.mxu0 0
  %3490 = vmatmul.mubr.bf16.gmra.mxu0 %v3443
  %v3491 = vpop.f32.mrf.mxu0
  %v3492 = vadd.f32 0.0, %v3491
  %v3493 = vpop.f32.mrf.mxu0
  %v3494 = vpop.f32.mrf.mxu0
  %v3495 = vadd.f32 0.0, %v3494
  %v3496 = vpop.f32.mrf.mxu0
  %3497 = vmatprep.mubr.bf16.mxu0 0
  %3498 = vmatmul.mubr.bf16.gmra.mxu0 %v3446
  %v3499 = vpop.f32.mrf.mxu0
  %v3500 = vadd.f32 0.0, %v3499
  %v3501 = vpop.f32.mrf.mxu0
  %v3502 = vpop.f32.mrf.mxu0
  %v3503 = vadd.f32 0.0, %v3502
  %v3504 = vpop.f32.mrf.mxu0
  %3505 = vmatprep.mubr.bf16.mxu0 0
  %3506 = vmatmul.mubr.bf16.gmra.mxu0 %v3449
  %v3507 = vpop.f32.mrf.mxu0
  %v3508 = vadd.f32 0.0, %v3507
  %v3509 = vpop.f32.mrf.mxu0
  %v3510 = vpop.f32.mrf.mxu0
  %v3511 = vadd.f32 0.0, %v3510
  %v3512 = vpop.f32.mrf.mxu0
  %3513 = vmatprep.mubr.bf16.mxu0 0
  %3514 = vmatmul.mubr.bf16.gmra.mxu0 %v3452
  %v3515 = vpop.f32.mrf.mxu0
  %v3516 = vadd.f32 0.0, %v3515
  %v3517 = vpop.f32.mrf.mxu0
  %v3518 = vpop.f32.mrf.mxu0
  %v3519 = vadd.f32 0.0, %v3518
  %v3520 = vpop.f32.mrf.mxu0
  %3521 = vmatprep.mubr.bf16.mxu0 0
  %3522 = vmatmul.mubr.bf16.gmra.mxu0 %v3455
  %v3523 = vpop.f32.mrf.mxu0
  %v3524 = vadd.f32 0.0, %v3523
  %v3525 = vpop.f32.mrf.mxu0
  %v3526 = vpop.f32.mrf.mxu0
  %v3527 = vpop.f32.mrf.mxu0
  %3528 = vdwg.mxu0
  %v3529 = vadd.f32 %v3411, %v3492
  %v3530 = vadd.f32 %v3412, %v3495
  %v3531 = vadd.f32 %v3413, %v3500
  %v3532 = vadd.f32 %v3414, %v3503
  %v3533 = vadd.f32 %v3415, %v3508
  %v3534 = vadd.f32 %v3416, %v3511
  %v3535 = vadd.f32 %v3417, %v3516
  %v3536 = vadd.f32 %v3418, %v3519
  %v3537 = vadd.f32 %v3419, %v3524
  %v3538 = vpack.c.bf16 %v1887, %v1886
  %v3539 = vpack.c.bf16 %v1889, %v1888
  %v3540 = vpack.c.bf16 %v1891, %v1890
  %v3541 = vpack.c.bf16 %v1893, %v1892
  %v3542 = vpack.c.bf16 %v1894, %v1894
  %s3543 = scalar_lea.vmem %s3, 224
  %v3544 = vld [vmem:[%s3543] sm:$0xf]
  %v3545 = vld [vmem:[%s3543 + $0x4] sm:$0xf]
  %v3546 = vld [vmem:[%s3543 + $0x8] sm:$0xf]
  %v3547 = vld [vmem:[%s3543 + $0xc] sm:$0xf]
  %v3552 = vunpack.c.l.b16 %v3544
  %v3553 = vunpack.c.l.b16 %v3545
  %v3554 = vunpack.c.l.b16 %v3546
  %v3555 = vunpack.c.l.b16 %v3547
  %v3556 = vpack.c.b16 %v3553, %v3552
  %v3557 = vpack.c.b16 %v3555, %v3554
  %v3561 = vsel %vm1935, %v3538, 0
  %v3564 = vsel %vm1935, %v3539, 0
  %v3567 = vsel %vm1935, %v3540, 0
  %v3570 = vsel %vm1935, %v3541, 0
  %v3573 = vsel %vm1935, %v3542, 0
  %3575 = vmatprep.subr.bf16.mxu0 0
  %3576 = vmatpush1.bf16.msra.mxu0 0
  %3577 = vmatprep.subr.bf16.mxu0 0
  %3578 = vmatpush1.bf16.msra.mxu0 0
  %3579 = vmatprep.subr.bf16.mxu0 0
  %3580 = vmatpush1.bf16.msra.mxu0 0
  %3581 = vmatprep.subr.bf16.mxu0 0
  %3582 = vmatpush1.bf16.msra.mxu0 0
  %3583 = vmatprep.subr.bf16.mxu0 0
  %3584 = vmatpush1.bf16.msra.mxu0 0
  %3585 = vmatprep.subr.bf16.mxu0 0
  %3586 = vmatpush1.bf16.msra.mxu0 0
  %3587 = vmatprep.subr.bf16.mxu0 0
  %3588 = vmatpush1.bf16.msra.mxu0 %v3557
  %3589 = vmatprep.subr.bf16.mxu0 0
  %3590 = vmatpush1.bf16.msra.mxu0 %v3556
  %3591 = vmatprep.subr.bf16.mxu0 0
  %3592 = vmatpush2.bf16.msra.mxu0 0
  %3593 = vmatprep.subr.bf16.mxu0 0
  %3594 = vmatpush2.bf16.msra.mxu0 0
  %3595 = vmatprep.subr.bf16.mxu0 0
  %3596 = vmatpush2.bf16.msra.mxu0 0
  %3597 = vmatprep.subr.bf16.mxu0 0
  %3598 = vmatpush2.bf16.msra.mxu0 0
  %3599 = vmatprep.subr.bf16.mxu0 0
  %3600 = vmatpush2.bf16.msra.mxu0 0
  %3601 = vmatprep.subr.bf16.mxu0 0
  %3602 = vmatpush2.bf16.msra.mxu0 0
  %3603 = vmatprep.subr.bf16.mxu0 0
  %3604 = vmatpush2.bf16.msra.mxu0 0
  %3605 = vmatprep.subr.bf16.mxu0 0
  %3606 = vmatpush2.bf16.msra.mxu0 0
  %3607 = vmatprep.mubr.bf16.mxu0 0
  %3608 = vmatmul.mubr.bf16.gmra.mxu0 %v3561
  %v3609 = vpop.f32.mrf.mxu0
  %v3610 = vadd.f32 0.0, %v3609
  %v3611 = vpop.f32.mrf.mxu0
  %v3612 = vpop.f32.mrf.mxu0
  %v3613 = vadd.f32 0.0, %v3612
  %v3614 = vpop.f32.mrf.mxu0
  %3615 = vmatprep.mubr.bf16.mxu0 0
  %3616 = vmatmul.mubr.bf16.gmra.mxu0 %v3564
  %v3617 = vpop.f32.mrf.mxu0
  %v3618 = vadd.f32 0.0, %v3617
  %v3619 = vpop.f32.mrf.mxu0
  %v3620 = vpop.f32.mrf.mxu0
  %v3621 = vadd.f32 0.0, %v3620
  %v3622 = vpop.f32.mrf.mxu0
  %3623 = vmatprep.mubr.bf16.mxu0 0
  %3624 = vmatmul.mubr.bf16.gmra.mxu0 %v3567
  %v3625 = vpop.f32.mrf.mxu0
  %v3626 = vadd.f32 0.0, %v3625
  %v3627 = vpop.f32.mrf.mxu0
  %v3628 = vpop.f32.mrf.mxu0
  %v3629 = vadd.f32 0.0, %v3628
  %v3630 = vpop.f32.mrf.mxu0
  %3631 = vmatprep.mubr.bf16.mxu0 0
  %3632 = vmatmul.mubr.bf16.gmra.mxu0 %v3570
  %v3633 = vpop.f32.mrf.mxu0
  %v3634 = vadd.f32 0.0, %v3633
  %v3635 = vpop.f32.mrf.mxu0
  %v3636 = vpop.f32.mrf.mxu0
  %v3637 = vadd.f32 0.0, %v3636
  %v3638 = vpop.f32.mrf.mxu0
  %3639 = vmatprep.mubr.bf16.mxu0 0
  %3640 = vmatmul.mubr.bf16.gmra.mxu0 %v3573
  %v3641 = vpop.f32.mrf.mxu0
  %v3642 = vadd.f32 0.0, %v3641
  %v3643 = vpop.f32.mrf.mxu0
  %v3644 = vpop.f32.mrf.mxu0
  %v3645 = vpop.f32.mrf.mxu0
  %3646 = vdwg.mxu0
  %v3647 = vadd.f32 %v3529, %v3610
  %v3648 = vadd.f32 %v3530, %v3613
  %v3649 = vadd.f32 %v3531, %v3618
  %v3650 = vadd.f32 %v3532, %v3621
  %v3651 = vadd.f32 %v3533, %v3626
  %v3652 = vadd.f32 %v3534, %v3629
  %v3653 = vadd.f32 %v3535, %v3634
  %v3654 = vadd.f32 %v3536, %v3637
  %v3655 = vadd.f32 %v3537, %v3642
  %v3656 = vpack.c.bf16 %v1896, %v1895
  %v3657 = vpack.c.bf16 %v1898, %v1897
  %v3658 = vpack.c.bf16 %v1900, %v1899
  %v3659 = vpack.c.bf16 %v1902, %v1901
  %v3660 = vpack.c.bf16 %v1903, %v1903
  %s3661 = scalar_lea.vmem %s3, 240
  %v3662 = vld [vmem:[%s3661] sm:$0xf]
  %v3663 = vld [vmem:[%s3661 + $0x4] sm:$0xf]
  %v3664 = vld [vmem:[%s3661 + $0x8] sm:$0xf]
  %v3665 = vld [vmem:[%s3661 + $0xc] sm:$0xf]
  %v3670 = vunpack.c.l.b16 %v3662
  %v3671 = vunpack.c.l.b16 %v3663
  %v3672 = vunpack.c.l.b16 %v3664
  %v3673 = vunpack.c.l.b16 %v3665
  %v3674 = vpack.c.b16 %v3671, %v3670
  %v3675 = vpack.c.b16 %v3673, %v3672
  %v3679 = vsel %vm1935, %v3656, 0
  %v3682 = vsel %vm1935, %v3657, 0
  %v3685 = vsel %vm1935, %v3658, 0
  %v3688 = vsel %vm1935, %v3659, 0
  %v3691 = vsel %vm1935, %v3660, 0
  %3693 = vmatprep.subr.bf16.mxu0 0
  %3694 = vmatpush1.bf16.msra.mxu0 0
  %3695 = vmatprep.subr.bf16.mxu0 0
  %3696 = vmatpush1.bf16.msra.mxu0 0
  %3697 = vmatprep.subr.bf16.mxu0 0
  %3698 = vmatpush1.bf16.msra.mxu0 0
  %3699 = vmatprep.subr.bf16.mxu0 0
  %3700 = vmatpush1.bf16.msra.mxu0 0
  %3701 = vmatprep.subr.bf16.mxu0 0
  %3702 = vmatpush1.bf16.msra.mxu0 0
  %3703 = vmatprep.subr.bf16.mxu0 0
  %3704 = vmatpush1.bf16.msra.mxu0 0
  %3705 = vmatprep.subr.bf16.mxu0 0
  %3706 = vmatpush1.bf16.msra.mxu0 %v3675
  %3707 = vmatprep.subr.bf16.mxu0 0
  %3708 = vmatpush1.bf16.msra.mxu0 %v3674
  %3709 = vmatprep.subr.bf16.mxu0 0
  %3710 = vmatpush2.bf16.msra.mxu0 0
  %3711 = vmatprep.subr.bf16.mxu0 0
  %3712 = vmatpush2.bf16.msra.mxu0 0
  %3713 = vmatprep.subr.bf16.mxu0 0
  %3714 = vmatpush2.bf16.msra.mxu0 0
  %3715 = vmatprep.subr.bf16.mxu0 0
  %3716 = vmatpush2.bf16.msra.mxu0 0
  %3717 = vmatprep.subr.bf16.mxu0 0
  %3718 = vmatpush2.bf16.msra.mxu0 0
  %3719 = vmatprep.subr.bf16.mxu0 0
  %3720 = vmatpush2.bf16.msra.mxu0 0
  %3721 = vmatprep.subr.bf16.mxu0 0
  %3722 = vmatpush2.bf16.msra.mxu0 0
  %3723 = vmatprep.subr.bf16.mxu0 0
  %3724 = vmatpush2.bf16.msra.mxu0 0
  %3725 = vmatprep.mubr.bf16.mxu0 0
  %3726 = vmatmul.mubr.bf16.gmra.mxu0 %v3679
  %v3727 = vpop.f32.mrf.mxu0
  %v3728 = vadd.f32 0.0, %v3727
  %v3729 = vpop.f32.mrf.mxu0
  %v3730 = vpop.f32.mrf.mxu0
  %v3731 = vadd.f32 0.0, %v3730
  %v3732 = vpop.f32.mrf.mxu0
  %3733 = vmatprep.mubr.bf16.mxu0 0
  %3734 = vmatmul.mubr.bf16.gmra.mxu0 %v3682
  %v3735 = vpop.f32.mrf.mxu0
  %v3736 = vadd.f32 0.0, %v3735
  %v3737 = vpop.f32.mrf.mxu0
  %v3738 = vpop.f32.mrf.mxu0
  %v3739 = vadd.f32 0.0, %v3738
  %v3740 = vpop.f32.mrf.mxu0
  %3741 = vmatprep.mubr.bf16.mxu0 0
  %3742 = vmatmul.mubr.bf16.gmra.mxu0 %v3685
  %v3743 = vpop.f32.mrf.mxu0
  %v3744 = vadd.f32 0.0, %v3743
  %v3745 = vpop.f32.mrf.mxu0
  %v3746 = vpop.f32.mrf.mxu0
  %v3747 = vadd.f32 0.0, %v3746
  %v3748 = vpop.f32.mrf.mxu0
  %3749 = vmatprep.mubr.bf16.mxu0 0
  %3750 = vmatmul.mubr.bf16.gmra.mxu0 %v3688
  %v3751 = vpop.f32.mrf.mxu0
  %v3752 = vadd.f32 0.0, %v3751
  %v3753 = vpop.f32.mrf.mxu0
  %v3754 = vpop.f32.mrf.mxu0
  %v3755 = vadd.f32 0.0, %v3754
  %v3756 = vpop.f32.mrf.mxu0
  %3757 = vmatprep.mubr.bf16.mxu0 0
  %3758 = vmatmul.mubr.bf16.gmra.mxu0 %v3691
  %v3759 = vpop.f32.mrf.mxu0
  %v3760 = vadd.f32 0.0, %v3759
  %v3761 = vpop.f32.mrf.mxu0
  %v3762 = vpop.f32.mrf.mxu0
  %v3763 = vpop.f32.mrf.mxu0
  %3764 = vdwg.mxu0
  %v3765 = vadd.f32 %v3647, %v3728
  %v3766 = vadd.f32 %v3648, %v3731
  %v3767 = vadd.f32 %v3649, %v3736
  %v3768 = vadd.f32 %v3650, %v3739
  %v3769 = vadd.f32 %v3651, %v3744
  %v3770 = vadd.f32 %v3652, %v3747
  %v3771 = vadd.f32 %v3653, %v3752
  %v3772 = vadd.f32 %v3654, %v3755
  %v3773 = vadd.f32 %v3655, %v3760
  %v3774 = vld [vmem:[%s4] sm:$0x1]
  %v3776 = vlaneseq
  %v3777 = vshrl.u32 %v3776, 7
  %v3778 = vsub.s32 0, %v3777
  %v3779 = vrot.slane %v3774, %v3778
  %v3781 = vadd.f32 %v3765, %v3779
  %v3782 = vadd.f32 %v3766, %v3779
  %v3783 = vadd.f32 %v3767, %v3779
  %v3784 = vadd.f32 %v3768, %v3779
  %v3785 = vadd.f32 %v3769, %v3779
  %v3786 = vadd.f32 %v3770, %v3779
  %v3787 = vadd.f32 %v3771, %v3779
  %v3788 = vadd.f32 %v3772, %v3779
  %v3789 = vadd.f32 %v3773, %v3779
  %v3790 = vmax.f32 %v3781, 0.0
  %v3791 = vmax.f32 %v3782, 0.0
  %v3792 = vmax.f32 %v3783, 0.0
  %v3793 = vmax.f32 %v3784, 0.0
  %v3794 = vmax.f32 %v3785, 0.0
  %v3795 = vmax.f32 %v3786, 0.0
  %v3796 = vmax.f32 %v3787, 0.0
  %v3797 = vmax.f32 %v3788, 0.0
  %v3798 = vmax.f32 %v3789, 0.0
  %v3799 = vpack.c.bf16 %v3790, %v3790
  %v3800 = vld [vmem:[%s5] sm:$0xf]
  %v3801 = vld [vmem:[%s5 + $0x4] sm:$0xf]
  %v3802 = vld [vmem:[%s5 + $0x8] sm:$0xf]
  %v3803 = vld [vmem:[%s5 + $0xc] sm:$0xf]
  %v3804 = vld [vmem:[%s5 + $0x10] sm:$0xf]
  %v3805 = vld [vmem:[%s5 + $0x14] sm:$0xf]
  %v3806 = vld [vmem:[%s5 + $0x18] sm:$0xf]
  %v3807 = vld [vmem:[%s5 + $0x1c] sm:$0xf]
  %v3808 = vpack.c.bf16 %v3791, %v3791
  %s3809 = scalar_lea.vmem %s5, 32
  %v3810 = vld [vmem:[%s3809] sm:$0xf]
  %v3811 = vld [vmem:[%s3809 + $0x4] sm:$0xf]
  %v3812 = vld [vmem:[%s3809 + $0x8] sm:$0xf]
  %v3813 = vld [vmem:[%s3809 + $0xc] sm:$0xf]
  %v3814 = vld [vmem:[%s3809 + $0x10] sm:$0xf]
  %v3815 = vld [vmem:[%s3809 + $0x14] sm:$0xf]
  %v3816 = vld [vmem:[%s3809 + $0x18] sm:$0xf]
  %v3817 = vld [vmem:[%s3809 + $0x1c] sm:$0xf]
  %v3826 = vunpack.c.l.b16 %v3810
  %v3827 = vunpack.c.l.b16 %v3811
  %v3828 = vunpack.c.l.b16 %v3812
  %v3829 = vunpack.c.l.b16 %v3813
  %v3830 = vunpack.c.l.b16 %v3814
  %v3831 = vunpack.c.l.b16 %v3815
  %v3832 = vunpack.c.l.b16 %v3816
  %v3833 = vunpack.c.l.b16 %v3817
  %v3834 = vpack.c.b16 %v3827, %v3826
  %v3835 = vpack.c.b16 %v3829, %v3828
  %v3836 = vpack.c.b16 %v3831, %v3830
  %v3837 = vpack.c.b16 %v3833, %v3832
  %v3843 = vsel %vm934, %v3808, 0
  %3845 = vmatprep.subr.bf16.mxu0 0
  %3846 = vmatpush1.bf16.msra.mxu0 0
  %3847 = vmatprep.subr.bf16.mxu0 0
  %3848 = vmatpush1.bf16.msra.mxu0 0
  %3849 = vmatprep.subr.bf16.mxu0 0
  %3850 = vmatpush1.bf16.msra.mxu0 0
  %3851 = vmatprep.subr.bf16.mxu0 0
  %3852 = vmatpush1.bf16.msra.mxu0 0
  %3853 = vmatprep.subr.bf16.mxu0 0
  %3854 = vmatpush1.bf16.msra.mxu0 %v3837
  %3855 = vmatprep.subr.bf16.mxu0 0
  %3856 = vmatpush1.bf16.msra.mxu0 %v3836
  %3857 = vmatprep.subr.bf16.mxu0 0
  %3858 = vmatpush1.bf16.msra.mxu0 %v3835
  %3859 = vmatprep.subr.bf16.mxu0 0
  %3860 = vmatpush1.bf16.msra.mxu0 %v3834
  %3861 = vmatprep.subr.bf16.mxu0 0
  %3862 = vmatpush2.bf16.msra.mxu0 0
  %3863 = vmatprep.subr.bf16.mxu0 0
  %3864 = vmatpush2.bf16.msra.mxu0 0
  %3865 = vmatprep.subr.bf16.mxu0 0
  %3866 = vmatpush2.bf16.msra.mxu0 0
  %3867 = vmatprep.subr.bf16.mxu0 0
  %3868 = vmatpush2.bf16.msra.mxu0 0
  %3869 = vmatprep.subr.bf16.mxu0 0
  %3870 = vmatpush2.bf16.msra.mxu0 0
  %3871 = vmatprep.subr.bf16.mxu0 0
  %3872 = vmatpush2.bf16.msra.mxu0 0
  %3873 = vmatprep.subr.bf16.mxu0 0
  %3874 = vmatpush2.bf16.msra.mxu0 0
  %3875 = vmatprep.subr.bf16.mxu0 0
  %3876 = vmatpush2.bf16.msra.mxu0 0
  %3877 = vmatprep.mubr.bf16.mxu0 0
  %3878 = vmatmul.mubr.bf16.gmra.mxu0 %v3843
  %v3879 = vpop.f32.mrf.mxu0
  %v3880 = vadd.f32 0.0, %v3879
  %v3881 = vpop.f32.mrf.mxu0
  %v3882 = vpop.f32.mrf.mxu0
  %v3883 = vpop.f32.mrf.mxu0
  %3884 = vdwg.mxu0
  %v3893 = vunpack.c.l.b16 %v3800
  %v3894 = vunpack.c.l.b16 %v3801
  %v3895 = vunpack.c.l.b16 %v3802
  %v3896 = vunpack.c.l.b16 %v3803
  %v3897 = vunpack.c.l.b16 %v3804
  %v3898 = vunpack.c.l.b16 %v3805
  %v3899 = vunpack.c.l.b16 %v3806
  %v3900 = vunpack.c.l.b16 %v3807
  %v3901 = vpack.c.b16 %v3894, %v3893
  %v3902 = vpack.c.b16 %v3896, %v3895
  %v3903 = vpack.c.b16 %v3898, %v3897
  %v3904 = vpack.c.b16 %v3900, %v3899
  %v3910 = vsel %vm934, %v3799, 0
  %3912 = vmatprep.subr.bf16.mxu0 0
  %3913 = vmatpush1.bf16.msra.mxu0 0
  %3914 = vmatprep.subr.bf16.mxu0 0
  %3915 = vmatpush1.bf16.msra.mxu0 0
  %3916 = vmatprep.subr.bf16.mxu0 0
  %3917 = vmatpush1.bf16.msra.mxu0 0
  %3918 = vmatprep.subr.bf16.mxu0 0
  %3919 = vmatpush1.bf16.msra.mxu0 0
  %3920 = vmatprep.subr.bf16.mxu0 0
  %3921 = vmatpush1.bf16.msra.mxu0 %v3904
  %3922 = vmatprep.subr.bf16.mxu0 0
  %3923 = vmatpush1.bf16.msra.mxu0 %v3903
  %3924 = vmatprep.subr.bf16.mxu0 0
  %3925 = vmatpush1.bf16.msra.mxu0 %v3902
  %3926 = vmatprep.subr.bf16.mxu0 0
  %3927 = vmatpush1.bf16.msra.mxu0 %v3901
  %3928 = vmatprep.subr.bf16.mxu0 0
  %3929 = vmatpush2.bf16.msra.mxu0 0
  %3930 = vmatprep.subr.bf16.mxu0 0
  %3931 = vmatpush2.bf16.msra.mxu0 0
  %3932 = vmatprep.subr.bf16.mxu0 0
  %3933 = vmatpush2.bf16.msra.mxu0 0
  %3934 = vmatprep.subr.bf16.mxu0 0
  %3935 = vmatpush2.bf16.msra.mxu0 0
  %3936 = vmatprep.subr.bf16.mxu0 0
  %3937 = vmatpush2.bf16.msra.mxu0 0
  %3938 = vmatprep.subr.bf16.mxu0 0
  %3939 = vmatpush2.bf16.msra.mxu0 0
  %3940 = vmatprep.subr.bf16.mxu0 0
  %3941 = vmatpush2.bf16.msra.mxu0 0
  %3942 = vmatprep.subr.bf16.mxu0 0
  %3943 = vmatpush2.bf16.msra.mxu0 0
  %3944 = vmatprep.mubr.bf16.mxu0 0
  %3945 = vmatmul.mubr.bf16.gmra.mxu0 %v3910
  %v3946 = vpop.f32.mrf.mxu0
  %v3947 = vadd.f32 %v3880, %v3946
  %v3948 = vpop.f32.mrf.mxu0
  %v3949 = vpop.f32.mrf.mxu0
  %v3950 = vpop.f32.mrf.mxu0
  %3951 = vdwg.mxu0
  %v3952 = vpack.c.bf16 %v3792, %v3792
  %s3953 = scalar_lea.vmem %s5, 64
  %v3954 = vld [vmem:[%s3953] sm:$0xf]
  %v3955 = vld [vmem:[%s3953 + $0x4] sm:$0xf]
  %v3956 = vld [vmem:[%s3953 + $0x8] sm:$0xf]
  %v3957 = vld [vmem:[%s3953 + $0xc] sm:$0xf]
  %v3958 = vld [vmem:[%s3953 + $0x10] sm:$0xf]
  %v3959 = vld [vmem:[%s3953 + $0x14] sm:$0xf]
  %v3960 = vld [vmem:[%s3953 + $0x18] sm:$0xf]
  %v3961 = vld [vmem:[%s3953 + $0x1c] sm:$0xf]
  %v3970 = vunpack.c.l.b16 %v3954
  %v3971 = vunpack.c.l.b16 %v3955
  %v3972 = vunpack.c.l.b16 %v3956
  %v3973 = vunpack.c.l.b16 %v3957
  %v3974 = vunpack.c.l.b16 %v3958
  %v3975 = vunpack.c.l.b16 %v3959
  %v3976 = vunpack.c.l.b16 %v3960
  %v3977 = vunpack.c.l.b16 %v3961
  %v3978 = vpack.c.b16 %v3971, %v3970
  %v3979 = vpack.c.b16 %v3973, %v3972
  %v3980 = vpack.c.b16 %v3975, %v3974
  %v3981 = vpack.c.b16 %v3977, %v3976
  %v3987 = vsel %vm934, %v3952, 0
  %3989 = vmatprep.subr.bf16.mxu0 0
  %3990 = vmatpush1.bf16.msra.mxu0 0
  %3991 = vmatprep.subr.bf16.mxu0 0
  %3992 = vmatpush1.bf16.msra.mxu0 0
  %3993 = vmatprep.subr.bf16.mxu0 0
  %3994 = vmatpush1.bf16.msra.mxu0 0
  %3995 = vmatprep.subr.bf16.mxu0 0
  %3996 = vmatpush1.bf16.msra.mxu0 0
  %3997 = vmatprep.subr.bf16.mxu0 0
  %3998 = vmatpush1.bf16.msra.mxu0 %v3981
  %3999 = vmatprep.subr.bf16.mxu0 0
  %4000 = vmatpush1.bf16.msra.mxu0 %v3980
  %4001 = vmatprep.subr.bf16.mxu0 0
  %4002 = vmatpush1.bf16.msra.mxu0 %v3979
  %4003 = vmatprep.subr.bf16.mxu0 0
  %4004 = vmatpush1.bf16.msra.mxu0 %v3978
  %4005 = vmatprep.subr.bf16.mxu0 0
  %4006 = vmatpush2.bf16.msra.mxu0 0
  %4007 = vmatprep.subr.bf16.mxu0 0
  %4008 = vmatpush2.bf16.msra.mxu0 0
  %4009 = vmatprep.subr.bf16.mxu0 0
  %4010 = vmatpush2.bf16.msra.mxu0 0
  %4011 = vmatprep.subr.bf16.mxu0 0
  %4012 = vmatpush2.bf16.msra.mxu0 0
  %4013 = vmatprep.subr.bf16.mxu0 0
  %4014 = vmatpush2.bf16.msra.mxu0 0
  %4015 = vmatprep.subr.bf16.mxu0 0
  %4016 = vmatpush2.bf16.msra.mxu0 0
  %4017 = vmatprep.subr.bf16.mxu0 0
  %4018 = vmatpush2.bf16.msra.mxu0 0
  %4019 = vmatprep.subr.bf16.mxu0 0
  %4020 = vmatpush2.bf16.msra.mxu0 0
  %4021 = vmatprep.mubr.bf16.mxu0 0
  %4022 = vmatmul.mubr.bf16.gmra.mxu0 %v3987
  %v4023 = vpop.f32.mrf.mxu0
  %v4024 = vadd.f32 0.0, %v4023
  %v4025 = vpop.f32.mrf.mxu0
  %v4026 = vpop.f32.mrf.mxu0
  %v4027 = vpop.f32.mrf.mxu0
  %4028 = vdwg.mxu0
  %v4029 = vadd.f32 %v3947, %v4024
  %v4030 = vpack.c.bf16 %v3793, %v3793
  %s4031 = scalar_lea.vmem %s5, 96
  %v4032 = vld [vmem:[%s4031] sm:$0xf]
  %v4033 = vld [vmem:[%s4031 + $0x4] sm:$0xf]
  %v4034 = vld [vmem:[%s4031 + $0x8] sm:$0xf]
  %v4035 = vld [vmem:[%s4031 + $0xc] sm:$0xf]
  %v4036 = vld [vmem:[%s4031 + $0x10] sm:$0xf]
  %v4037 = vld [vmem:[%s4031 + $0x14] sm:$0xf]
  %v4038 = vld [vmem:[%s4031 + $0x18] sm:$0xf]
  %v4039 = vld [vmem:[%s4031 + $0x1c] sm:$0xf]
  %v4048 = vunpack.c.l.b16 %v4032
  %v4049 = vunpack.c.l.b16 %v4033
  %v4050 = vunpack.c.l.b16 %v4034
  %v4051 = vunpack.c.l.b16 %v4035
  %v4052 = vunpack.c.l.b16 %v4036
  %v4053 = vunpack.c.l.b16 %v4037
  %v4054 = vunpack.c.l.b16 %v4038
  %v4055 = vunpack.c.l.b16 %v4039
  %v4056 = vpack.c.b16 %v4049, %v4048
  %v4057 = vpack.c.b16 %v4051, %v4050
  %v4058 = vpack.c.b16 %v4053, %v4052
  %v4059 = vpack.c.b16 %v4055, %v4054
  %v4065 = vsel %vm934, %v4030, 0
  %4067 = vmatprep.subr.bf16.mxu0 0
  %4068 = vmatpush1.bf16.msra.mxu0 0
  %4069 = vmatprep.subr.bf16.mxu0 0
  %4070 = vmatpush1.bf16.msra.mxu0 0
  %4071 = vmatprep.subr.bf16.mxu0 0
  %4072 = vmatpush1.bf16.msra.mxu0 0
  %4073 = vmatprep.subr.bf16.mxu0 0
  %4074 = vmatpush1.bf16.msra.mxu0 0
  %4075 = vmatprep.subr.bf16.mxu0 0
  %4076 = vmatpush1.bf16.msra.mxu0 %v4059
  %4077 = vmatprep.subr.bf16.mxu0 0
  %4078 = vmatpush1.bf16.msra.mxu0 %v4058
  %4079 = vmatprep.subr.bf16.mxu0 0
  %4080 = vmatpush1.bf16.msra.mxu0 %v4057
  %4081 = vmatprep.subr.bf16.mxu0 0
  %4082 = vmatpush1.bf16.msra.mxu0 %v4056
  %4083 = vmatprep.subr.bf16.mxu0 0
  %4084 = vmatpush2.bf16.msra.mxu0 0
  %4085 = vmatprep.subr.bf16.mxu0 0
  %4086 = vmatpush2.bf16.msra.mxu0 0
  %4087 = vmatprep.subr.bf16.mxu0 0
  %4088 = vmatpush2.bf16.msra.mxu0 0
  %4089 = vmatprep.subr.bf16.mxu0 0
  %4090 = vmatpush2.bf16.msra.mxu0 0
  %4091 = vmatprep.subr.bf16.mxu0 0
  %4092 = vmatpush2.bf16.msra.mxu0 0
  %4093 = vmatprep.subr.bf16.mxu0 0
  %4094 = vmatpush2.bf16.msra.mxu0 0
  %4095 = vmatprep.subr.bf16.mxu0 0
  %4096 = vmatpush2.bf16.msra.mxu0 0
  %4097 = vmatprep.subr.bf16.mxu0 0
  %4098 = vmatpush2.bf16.msra.mxu0 0
  %4099 = vmatprep.mubr.bf16.mxu0 0
  %4100 = vmatmul.mubr.bf16.gmra.mxu0 %v4065
  %v4101 = vpop.f32.mrf.mxu0
  %v4102 = vadd.f32 0.0, %v4101
  %v4103 = vpop.f32.mrf.mxu0
  %v4104 = vpop.f32.mrf.mxu0
  %v4105 = vpop.f32.mrf.mxu0
  %4106 = vdwg.mxu0
  %v4107 = vadd.f32 %v4029, %v4102
  %v4108 = vpack.c.bf16 %v3794, %v3794
  %s4109 = scalar_lea.vmem %s5, 128
  %v4110 = vld [vmem:[%s4109] sm:$0xf]
  %v4111 = vld [vmem:[%s4109 + $0x4] sm:$0xf]
  %v4112 = vld [vmem:[%s4109 + $0x8] sm:$0xf]
  %v4113 = vld [vmem:[%s4109 + $0xc] sm:$0xf]
  %v4114 = vld [vmem:[%s4109 + $0x10] sm:$0xf]
  %v4115 = vld [vmem:[%s4109 + $0x14] sm:$0xf]
  %v4116 = vld [vmem:[%s4109 + $0x18] sm:$0xf]
  %v4117 = vld [vmem:[%s4109 + $0x1c] sm:$0xf]
  %v4126 = vunpack.c.l.b16 %v4110
  %v4127 = vunpack.c.l.b16 %v4111
  %v4128 = vunpack.c.l.b16 %v4112
  %v4129 = vunpack.c.l.b16 %v4113
  %v4130 = vunpack.c.l.b16 %v4114
  %v4131 = vunpack.c.l.b16 %v4115
  %v4132 = vunpack.c.l.b16 %v4116
  %v4133 = vunpack.c.l.b16 %v4117
  %v4134 = vpack.c.b16 %v4127, %v4126
  %v4135 = vpack.c.b16 %v4129, %v4128
  %v4136 = vpack.c.b16 %v4131, %v4130
  %v4137 = vpack.c.b16 %v4133, %v4132
  %v4143 = vsel %vm934, %v4108, 0
  %4145 = vmatprep.subr.bf16.mxu0 0
  %4146 = vmatpush1.bf16.msra.mxu0 0
  %4147 = vmatprep.subr.bf16.mxu0 0
  %4148 = vmatpush1.bf16.msra.mxu0 0
  %4149 = vmatprep.subr.bf16.mxu0 0
  %4150 = vmatpush1.bf16.msra.mxu0 0
  %4151 = vmatprep.subr.bf16.mxu0 0
  %4152 = vmatpush1.bf16.msra.mxu0 0
  %4153 = vmatprep.subr.bf16.mxu0 0
  %4154 = vmatpush1.bf16.msra.mxu0 %v4137
  %4155 = vmatprep.subr.bf16.mxu0 0
  %4156 = vmatpush1.bf16.msra.mxu0 %v4136
  %4157 = vmatprep.subr.bf16.mxu0 0
  %4158 = vmatpush1.bf16.msra.mxu0 %v4135
  %4159 = vmatprep.subr.bf16.mxu0 0
  %4160 = vmatpush1.bf16.msra.mxu0 %v4134
  %4161 = vmatprep.subr.bf16.mxu0 0
  %4162 = vmatpush2.bf16.msra.mxu0 0
  %4163 = vmatprep.subr.bf16.mxu0 0
  %4164 = vmatpush2.bf16.msra.mxu0 0
  %4165 = vmatprep.subr.bf16.mxu0 0
  %4166 = vmatpush2.bf16.msra.mxu0 0
  %4167 = vmatprep.subr.bf16.mxu0 0
  %4168 = vmatpush2.bf16.msra.mxu0 0
  %4169 = vmatprep.subr.bf16.mxu0 0
  %4170 = vmatpush2.bf16.msra.mxu0 0
  %4171 = vmatprep.subr.bf16.mxu0 0
  %4172 = vmatpush2.bf16.msra.mxu0 0
  %4173 = vmatprep.subr.bf16.mxu0 0
  %4174 = vmatpush2.bf16.msra.mxu0 0
  %4175 = vmatprep.subr.bf16.mxu0 0
  %4176 = vmatpush2.bf16.msra.mxu0 0
  %4177 = vmatprep.mubr.bf16.mxu0 0
  %4178 = vmatmul.mubr.bf16.gmra.mxu0 %v4143
  %v4179 = vpop.f32.mrf.mxu0
  %v4180 = vadd.f32 0.0, %v4179
  %v4181 = vpop.f32.mrf.mxu0
  %v4182 = vpop.f32.mrf.mxu0
  %v4183 = vpop.f32.mrf.mxu0
  %4184 = vdwg.mxu0
  %v4185 = vadd.f32 %v4107, %v4180
  %v4186 = vpack.c.bf16 %v3795, %v3795
  %s4187 = scalar_lea.vmem %s5, 160
  %v4188 = vld [vmem:[%s4187] sm:$0xf]
  %v4189 = vld [vmem:[%s4187 + $0x4] sm:$0xf]
  %v4190 = vld [vmem:[%s4187 + $0x8] sm:$0xf]
  %v4191 = vld [vmem:[%s4187 + $0xc] sm:$0xf]
  %v4192 = vld [vmem:[%s4187 + $0x10] sm:$0xf]
  %v4193 = vld [vmem:[%s4187 + $0x14] sm:$0xf]
  %v4194 = vld [vmem:[%s4187 + $0x18] sm:$0xf]
  %v4195 = vld [vmem:[%s4187 + $0x1c] sm:$0xf]
  %v4204 = vunpack.c.l.b16 %v4188
  %v4205 = vunpack.c.l.b16 %v4189
  %v4206 = vunpack.c.l.b16 %v4190
  %v4207 = vunpack.c.l.b16 %v4191
  %v4208 = vunpack.c.l.b16 %v4192
  %v4209 = vunpack.c.l.b16 %v4193
  %v4210 = vunpack.c.l.b16 %v4194
  %v4211 = vunpack.c.l.b16 %v4195
  %v4212 = vpack.c.b16 %v4205, %v4204
  %v4213 = vpack.c.b16 %v4207, %v4206
  %v4214 = vpack.c.b16 %v4209, %v4208
  %v4215 = vpack.c.b16 %v4211, %v4210
  %v4221 = vsel %vm934, %v4186, 0
  %4223 = vmatprep.subr.bf16.mxu0 0
  %4224 = vmatpush1.bf16.msra.mxu0 0
  %4225 = vmatprep.subr.bf16.mxu0 0
  %4226 = vmatpush1.bf16.msra.mxu0 0
  %4227 = vmatprep.subr.bf16.mxu0 0
  %4228 = vmatpush1.bf16.msra.mxu0 0
  %4229 = vmatprep.subr.bf16.mxu0 0
  %4230 = vmatpush1.bf16.msra.mxu0 0
  %4231 = vmatprep.subr.bf16.mxu0 0
  %4232 = vmatpush1.bf16.msra.mxu0 %v4215
  %4233 = vmatprep.subr.bf16.mxu0 0
  %4234 = vmatpush1.bf16.msra.mxu0 %v4214
  %4235 = vmatprep.subr.bf16.mxu0 0
  %4236 = vmatpush1.bf16.msra.mxu0 %v4213
  %4237 = vmatprep.subr.bf16.mxu0 0
  %4238 = vmatpush1.bf16.msra.mxu0 %v4212
  %4239 = vmatprep.subr.bf16.mxu0 0
  %4240 = vmatpush2.bf16.msra.mxu0 0
  %4241 = vmatprep.subr.bf16.mxu0 0
  %4242 = vmatpush2.bf16.msra.mxu0 0
  %4243 = vmatprep.subr.bf16.mxu0 0
  %4244 = vmatpush2.bf16.msra.mxu0 0
  %4245 = vmatprep.subr.bf16.mxu0 0
  %4246 = vmatpush2.bf16.msra.mxu0 0
  %4247 = vmatprep.subr.bf16.mxu0 0
  %4248 = vmatpush2.bf16.msra.mxu0 0
  %4249 = vmatprep.subr.bf16.mxu0 0
  %4250 = vmatpush2.bf16.msra.mxu0 0
  %4251 = vmatprep.subr.bf16.mxu0 0
  %4252 = vmatpush2.bf16.msra.mxu0 0
  %4253 = vmatprep.subr.bf16.mxu0 0
  %4254 = vmatpush2.bf16.msra.mxu0 0
  %4255 = vmatprep.mubr.bf16.mxu0 0
  %4256 = vmatmul.mubr.bf16.gmra.mxu0 %v4221
  %v4257 = vpop.f32.mrf.mxu0
  %v4258 = vadd.f32 0.0, %v4257
  %v4259 = vpop.f32.mrf.mxu0
  %v4260 = vpop.f32.mrf.mxu0
  %v4261 = vpop.f32.mrf.mxu0
  %4262 = vdwg.mxu0
  %v4263 = vadd.f32 %v4185, %v4258
  %v4264 = vpack.c.bf16 %v3796, %v3796
  %s4265 = scalar_lea.vmem %s5, 192
  %v4266 = vld [vmem:[%s4265] sm:$0xf]
  %v4267 = vld [vmem:[%s4265 + $0x4] sm:$0xf]
  %v4268 = vld [vmem:[%s4265 + $0x8] sm:$0xf]
  %v4269 = vld [vmem:[%s4265 + $0xc] sm:$0xf]
  %v4270 = vld [vmem:[%s4265 + $0x10] sm:$0xf]
  %v4271 = vld [vmem:[%s4265 + $0x14] sm:$0xf]
  %v4272 = vld [vmem:[%s4265 + $0x18] sm:$0xf]
  %v4273 = vld [vmem:[%s4265 + $0x1c] sm:$0xf]
  %v4282 = vunpack.c.l.b16 %v4266
  %v4283 = vunpack.c.l.b16 %v4267
  %v4284 = vunpack.c.l.b16 %v4268
  %v4285 = vunpack.c.l.b16 %v4269
  %v4286 = vunpack.c.l.b16 %v4270
  %v4287 = vunpack.c.l.b16 %v4271
  %v4288 = vunpack.c.l.b16 %v4272
  %v4289 = vunpack.c.l.b16 %v4273
  %v4290 = vpack.c.b16 %v4283, %v4282
  %v4291 = vpack.c.b16 %v4285, %v4284
  %v4292 = vpack.c.b16 %v4287, %v4286
  %v4293 = vpack.c.b16 %v4289, %v4288
  %v4299 = vsel %vm934, %v4264, 0
  %4301 = vmatprep.subr.bf16.mxu0 0
  %4302 = vmatpush1.bf16.msra.mxu0 0
  %4303 = vmatprep.subr.bf16.mxu0 0
  %4304 = vmatpush1.bf16.msra.mxu0 0
  %4305 = vmatprep.subr.bf16.mxu0 0
  %4306 = vmatpush1.bf16.msra.mxu0 0
  %4307 = vmatprep.subr.bf16.mxu0 0
  %4308 = vmatpush1.bf16.msra.mxu0 0
  %4309 = vmatprep.subr.bf16.mxu0 0
  %4310 = vmatpush1.bf16.msra.mxu0 %v4293
  %4311 = vmatprep.subr.bf16.mxu0 0
  %4312 = vmatpush1.bf16.msra.mxu0 %v4292
  %4313 = vmatprep.subr.bf16.mxu0 0
  %4314 = vmatpush1.bf16.msra.mxu0 %v4291
  %4315 = vmatprep.subr.bf16.mxu0 0
  %4316 = vmatpush1.bf16.msra.mxu0 %v4290
  %4317 = vmatprep.subr.bf16.mxu0 0
  %4318 = vmatpush2.bf16.msra.mxu0 0
  %4319 = vmatprep.subr.bf16.mxu0 0
  %4320 = vmatpush2.bf16.msra.mxu0 0
  %4321 = vmatprep.subr.bf16.mxu0 0
  %4322 = vmatpush2.bf16.msra.mxu0 0
  %4323 = vmatprep.subr.bf16.mxu0 0
  %4324 = vmatpush2.bf16.msra.mxu0 0
  %4325 = vmatprep.subr.bf16.mxu0 0
  %4326 = vmatpush2.bf16.msra.mxu0 0
  %4327 = vmatprep.subr.bf16.mxu0 0
  %4328 = vmatpush2.bf16.msra.mxu0 0
  %4329 = vmatprep.subr.bf16.mxu0 0
  %4330 = vmatpush2.bf16.msra.mxu0 0
  %4331 = vmatprep.subr.bf16.mxu0 0
  %4332 = vmatpush2.bf16.msra.mxu0 0
  %4333 = vmatprep.mubr.bf16.mxu0 0
  %4334 = vmatmul.mubr.bf16.gmra.mxu0 %v4299
  %v4335 = vpop.f32.mrf.mxu0
  %v4336 = vadd.f32 0.0, %v4335
  %v4337 = vpop.f32.mrf.mxu0
  %v4338 = vpop.f32.mrf.mxu0
  %v4339 = vpop.f32.mrf.mxu0
  %4340 = vdwg.mxu0
  %v4341 = vadd.f32 %v4263, %v4336
  %v4342 = vpack.c.bf16 %v3797, %v3797
  %s4343 = scalar_lea.vmem %s5, 224
  %v4344 = vld [vmem:[%s4343] sm:$0xf]
  %v4345 = vld [vmem:[%s4343 + $0x4] sm:$0xf]
  %v4346 = vld [vmem:[%s4343 + $0x8] sm:$0xf]
  %v4347 = vld [vmem:[%s4343 + $0xc] sm:$0xf]
  %v4348 = vld [vmem:[%s4343 + $0x10] sm:$0xf]
  %v4349 = vld [vmem:[%s4343 + $0x14] sm:$0xf]
  %v4350 = vld [vmem:[%s4343 + $0x18] sm:$0xf]
  %v4351 = vld [vmem:[%s4343 + $0x1c] sm:$0xf]
  %v4360 = vunpack.c.l.b16 %v4344
  %v4361 = vunpack.c.l.b16 %v4345
  %v4362 = vunpack.c.l.b16 %v4346
  %v4363 = vunpack.c.l.b16 %v4347
  %v4364 = vunpack.c.l.b16 %v4348
  %v4365 = vunpack.c.l.b16 %v4349
  %v4366 = vunpack.c.l.b16 %v4350
  %v4367 = vunpack.c.l.b16 %v4351
  %v4368 = vpack.c.b16 %v4361, %v4360
  %v4369 = vpack.c.b16 %v4363, %v4362
  %v4370 = vpack.c.b16 %v4365, %v4364
  %v4371 = vpack.c.b16 %v4367, %v4366
  %v4377 = vsel %vm934, %v4342, 0
  %4379 = vmatprep.subr.bf16.mxu0 0
  %4380 = vmatpush1.bf16.msra.mxu0 0
  %4381 = vmatprep.subr.bf16.mxu0 0
  %4382 = vmatpush1.bf16.msra.mxu0 0
  %4383 = vmatprep.subr.bf16.mxu0 0
  %4384 = vmatpush1.bf16.msra.mxu0 0
  %4385 = vmatprep.subr.bf16.mxu0 0
  %4386 = vmatpush1.bf16.msra.mxu0 0
  %4387 = vmatprep.subr.bf16.mxu0 0
  %4388 = vmatpush1.bf16.msra.mxu0 %v4371
  %4389 = vmatprep.subr.bf16.mxu0 0
  %4390 = vmatpush1.bf16.msra.mxu0 %v4370
  %4391 = vmatprep.subr.bf16.mxu0 0
  %4392 = vmatpush1.bf16.msra.mxu0 %v4369
  %4393 = vmatprep.subr.bf16.mxu0 0
  %4394 = vmatpush1.bf16.msra.mxu0 %v4368
  %4395 = vmatprep.subr.bf16.mxu0 0
  %4396 = vmatpush2.bf16.msra.mxu0 0
  %4397 = vmatprep.subr.bf16.mxu0 0
  %4398 = vmatpush2.bf16.msra.mxu0 0
  %4399 = vmatprep.subr.bf16.mxu0 0
  %4400 = vmatpush2.bf16.msra.mxu0 0
  %4401 = vmatprep.subr.bf16.mxu0 0
  %4402 = vmatpush2.bf16.msra.mxu0 0
  %4403 = vmatprep.subr.bf16.mxu0 0
  %4404 = vmatpush2.bf16.msra.mxu0 0
  %4405 = vmatprep.subr.bf16.mxu0 0
  %4406 = vmatpush2.bf16.msra.mxu0 0
  %4407 = vmatprep.subr.bf16.mxu0 0
  %4408 = vmatpush2.bf16.msra.mxu0 0
  %4409 = vmatprep.subr.bf16.mxu0 0
  %4410 = vmatpush2.bf16.msra.mxu0 0
  %4411 = vmatprep.mubr.bf16.mxu0 0
  %4412 = vmatmul.mubr.bf16.gmra.mxu0 %v4377
  %v4413 = vpop.f32.mrf.mxu0
  %v4414 = vadd.f32 0.0, %v4413
  %v4415 = vpop.f32.mrf.mxu0
  %v4416 = vpop.f32.mrf.mxu0
  %v4417 = vpop.f32.mrf.mxu0
  %4418 = vdwg.mxu0
  %v4419 = vadd.f32 %v4341, %v4414
  %v4420 = vpack.c.bf16 %v3798, %v3798
  %s4421 = scalar_lea.vmem %s5, 256
  %v4422 = vld [vmem:[%s4421] sm:$0xf]
  %v4423 = vld [vmem:[%s4421 + $0x4] sm:$0xf]
  %v4424 = vld [vmem:[%s4421 + $0x8] sm:$0xf]
  %v4425 = vld [vmem:[%s4421 + $0xc] sm:$0xf]
  %v4426 = vld [vmem:[%s4421 + $0x10] sm:$0xf]
  %v4427 = vld [vmem:[%s4421 + $0x14] sm:$0xf]
  %v4428 = vld [vmem:[%s4421 + $0x18] sm:$0xf]
  %v4429 = vld [vmem:[%s4421 + $0x1c] sm:$0xf]
  %v4438 = vunpack.c.l.b16 %v4422
  %v4439 = vunpack.c.l.b16 %v4423
  %v4440 = vunpack.c.l.b16 %v4424
  %v4441 = vunpack.c.l.b16 %v4425
  %v4442 = vunpack.c.l.b16 %v4426
  %v4443 = vunpack.c.l.b16 %v4427
  %v4444 = vunpack.c.l.b16 %v4428
  %v4445 = vunpack.c.l.b16 %v4429
  %v4446 = vpack.c.b16 %v4439, %v4438
  %v4447 = vpack.c.b16 %v4441, %v4440
  %v4448 = vpack.c.b16 %v4443, %v4442
  %v4449 = vpack.c.b16 %v4445, %v4444
  %v4455 = vsel %vm934, %v4420, 0
  %4457 = vmatprep.subr.bf16.mxu0 0
  %4458 = vmatpush1.bf16.msra.mxu0 0
  %4459 = vmatprep.subr.bf16.mxu0 0
  %4460 = vmatpush1.bf16.msra.mxu0 0
  %4461 = vmatprep.subr.bf16.mxu0 0
  %4462 = vmatpush1.bf16.msra.mxu0 0
  %4463 = vmatprep.subr.bf16.mxu0 0
  %4464 = vmatpush1.bf16.msra.mxu0 0
  %4465 = vmatprep.subr.bf16.mxu0 0
  %4466 = vmatpush1.bf16.msra.mxu0 %v4449
  %4467 = vmatprep.subr.bf16.mxu0 0
  %4468 = vmatpush1.bf16.msra.mxu0 %v4448
  %4469 = vmatprep.subr.bf16.mxu0 0
  %4470 = vmatpush1.bf16.msra.mxu0 %v4447
  %4471 = vmatprep.subr.bf16.mxu0 0
  %4472 = vmatpush1.bf16.msra.mxu0 %v4446
  %4473 = vmatprep.subr.bf16.mxu0 0
  %4474 = vmatpush2.bf16.msra.mxu0 0
  %4475 = vmatprep.subr.bf16.mxu0 0
  %4476 = vmatpush2.bf16.msra.mxu0 0
  %4477 = vmatprep.subr.bf16.mxu0 0
  %4478 = vmatpush2.bf16.msra.mxu0 0
  %4479 = vmatprep.subr.bf16.mxu0 0
  %4480 = vmatpush2.bf16.msra.mxu0 0
  %4481 = vmatprep.subr.bf16.mxu0 0
  %4482 = vmatpush2.bf16.msra.mxu0 0
  %4483 = vmatprep.subr.bf16.mxu0 0
  %4484 = vmatpush2.bf16.msra.mxu0 0
  %4485 = vmatprep.subr.bf16.mxu0 0
  %4486 = vmatpush2.bf16.msra.mxu0 0
  %4487 = vmatprep.subr.bf16.mxu0 0
  %4488 = vmatpush2.bf16.msra.mxu0 0
  %4489 = vmatprep.mubr.bf16.mxu0 0
  %4490 = vmatmul.mubr.bf16.gmra.mxu0 %v4455
  %v4491 = vpop.f32.mrf.mxu0
  %v4492 = vadd.f32 0.0, %v4491
  %v4493 = vpop.f32.mrf.mxu0
  %v4494 = vpop.f32.mrf.mxu0
  %v4495 = vpop.f32.mrf.mxu0
  %4496 = vdwg.mxu0
  %v4497 = vadd.f32 %v4419, %v4492
  %v4498 = vld [vmem:[%s6] sm:$0x1]
  %v4500 = vlaneseq
  %v4501 = vshrl.u32 %v4500, 7
  %v4502 = vsub.s32 0, %v4501
  %v4503 = vrot.slane %v4498, %v4502
  %v4505 = vadd.f32 %v4497, %v4503
  %v4506 = vmax.f32 %v4505, 0.0
  %v4507 = vpack.c.bf16 %v4506, %v4506
  %v4508 = vld [vmem:[%s7] sm:$0xff]
  %v4509 = vld [vmem:[%s7 + $0x8] sm:$0xff]
  %v4510 = vld [vmem:[%s7 + $0x10] sm:$0xff]
  %v4511 = vld [vmem:[%s7 + $0x18] sm:$0xff]
  %v4512 = vld [vmem:[%s7 + $0x20] sm:$0xff]
  %v4513 = vld [vmem:[%s7 + $0x28] sm:$0xff]
  %v4514 = vld [vmem:[%s7 + $0x30] sm:$0xff]
  %v4515 = vld [vmem:[%s7 + $0x38] sm:$0xff]
  %v4516 = vld [vmem:[%s7 + $0x40] sm:$0xff]
  %v4517 = vld [vmem:[%s7 + $0x48] sm:$0xff]
  %v4518 = vld [vmem:[%s7 + $0x50] sm:$0xff]
  %v4519 = vld [vmem:[%s7 + $0x58] sm:$0xff]
  %v4520 = vld [vmem:[%s7 + $0x60] sm:$0xff]
  %v4521 = vld [vmem:[%s7 + $0x68] sm:$0xff]
  %v4522 = vld [vmem:[%s7 + $0x70] sm:$0xff]
  %v4523 = vld [vmem:[%s7 + $0x78] sm:$0xff]
  %v4524 = vld [vmem:[%s8] sm:$0xf]
  %v4526 = vlaneseq
  %v4527 = vshrl.u32 %v4526, 7
  %v4528 = vsub.s32 0, %v4527
  %v4529 = vrot.slane %v4524, %v4528
  %v4530 = vlaneseq
  %v4531 = vshrl.u32 %v4530, 7
  %v4532 = vsub.s32 1, %v4531
  %v4533 = vrot.slane %v4524, %v4532
  %v4534 = vlaneseq
  %v4535 = vshrl.u32 %v4534, 7
  %v4536 = vsub.s32 2, %v4535
  %v4537 = vrot.slane %v4524, %v4536
  %v4538 = vlaneseq
  %v4539 = vshrl.u32 %v4538, 7
  %v4540 = vsub.s32 3, %v4539
  %v4541 = vrot.slane %v4524, %v4540
  %v4562 = vunpack.c.l.b16 %v4508
  %v4563 = vunpack.c.h.b16 %v4508
  %v4564 = vunpack.c.l.b16 %v4509
  %v4565 = vunpack.c.h.b16 %v4509
  %v4566 = vunpack.c.l.b16 %v4510
  %v4567 = vunpack.c.h.b16 %v4510
  %v4568 = vunpack.c.l.b16 %v4511
  %v4569 = vunpack.c.h.b16 %v4511
  %v4570 = vunpack.c.l.b16 %v4512
  %v4571 = vunpack.c.h.b16 %v4512
  %v4572 = vunpack.c.l.b16 %v4513
  %v4573 = vunpack.c.h.b16 %v4513
  %v4574 = vunpack.c.l.b16 %v4514
  %v4575 = vunpack.c.h.b16 %v4514
  %v4576 = vunpack.c.l.b16 %v4515
  %v4577 = vunpack.c.h.b16 %v4515
  %v4578 = vunpack.c.l.b16 %v4516
  %v4579 = vunpack.c.h.b16 %v4516
  %v4580 = vunpack.c.l.b16 %v4517
  %v4581 = vunpack.c.h.b16 %v4517
  %v4582 = vunpack.c.l.b16 %v4518
  %v4583 = vunpack.c.h.b16 %v4518
  %v4584 = vunpack.c.l.b16 %v4519
  %v4585 = vunpack.c.h.b16 %v4519
  %v4586 = vunpack.c.l.b16 %v4520
  %v4587 = vunpack.c.h.b16 %v4520
  %v4588 = vunpack.c.l.b16 %v4521
  %v4589 = vunpack.c.h.b16 %v4521
  %v4590 = vunpack.c.l.b16 %v4522
  %v4591 = vunpack.c.h.b16 %v4522
  %v4592 = vunpack.c.l.b16 %v4523
  %v4593 = vunpack.c.h.b16 %v4523
  %v4594 = vpack.c.b16 %v4566, %v4562
  %v4595 = vpack.c.b16 %v4567, %v4563
  %v4596 = vpack.c.b16 %v4568, %v4564
  %v4597 = vpack.c.b16 %v4569, %v4565
  %v4598 = vpack.c.b16 %v4574, %v4570
  %v4599 = vpack.c.b16 %v4575, %v4571
  %v4600 = vpack.c.b16 %v4576, %v4572
  %v4601 = vpack.c.b16 %v4577, %v4573
  %v4602 = vpack.c.b16 %v4582, %v4578
  %v4603 = vpack.c.b16 %v4583, %v4579
  %v4604 = vpack.c.b16 %v4584, %v4580
  %v4605 = vpack.c.b16 %v4585, %v4581
  %v4606 = vpack.c.b16 %v4590, %v4586
  %v4607 = vpack.c.b16 %v4591, %v4587
  %v4608 = vpack.c.b16 %v4592, %v4588
  %v4609 = vpack.c.b16 %v4593, %v4589
  %v4627 = vsel %vm934, %v4507, 0
  %4629 = vmatprep.subr.bf16.mxu0 0
  %4630 = vmatpush1.bf16.msra.mxu0 0
  %4631 = vmatprep.subr.bf16.mxu0 0
  %4632 = vmatpush1.bf16.msra.mxu0 0
  %4633 = vmatprep.subr.bf16.mxu0 0
  %4634 = vmatpush1.bf16.msra.mxu0 0
  %4635 = vmatprep.subr.bf16.mxu0 0
  %4636 = vmatpush1.bf16.msra.mxu0 0
  %4637 = vmatprep.subr.bf16.mxu0 %v4607
  %4638 = vmatpush1.bf16.msra.mxu0 %v4606
  %4639 = vmatprep.subr.bf16.mxu0 %v4603
  %4640 = vmatpush1.bf16.msra.mxu0 %v4602
  %4641 = vmatprep.subr.bf16.mxu0 %v4599
  %4642 = vmatpush1.bf16.msra.mxu0 %v4598
  %4643 = vmatprep.subr.bf16.mxu0 %v4595
  %4644 = vmatpush1.bf16.msra.mxu0 %v4594
  %4645 = vmatprep.subr.bf16.mxu0 0
  %4646 = vmatpush2.bf16.msra.mxu0 0
  %4647 = vmatprep.subr.bf16.mxu0 0
  %4648 = vmatpush2.bf16.msra.mxu0 0
  %4649 = vmatprep.subr.bf16.mxu0 0
  %4650 = vmatpush2.bf16.msra.mxu0 0
  %4651 = vmatprep.subr.bf16.mxu0 0
  %4652 = vmatpush2.bf16.msra.mxu0 0
  %4653 = vmatprep.subr.bf16.mxu0 0
  %4654 = vmatpush2.bf16.msra.mxu0 0
  %4655 = vmatprep.subr.bf16.mxu0 0
  %4656 = vmatpush2.bf16.msra.mxu0 0
  %4657 = vmatprep.subr.bf16.mxu0 0
  %4658 = vmatpush2.bf16.msra.mxu0 0
  %4659 = vmatprep.subr.bf16.mxu0 0
  %4660 = vmatpush2.bf16.msra.mxu0 0
  %4661 = vmatprep.mubr.bf16.mxu0 0
  %4662 = vmatmul.mubr.bf16.gmra.mxu0 %v4627
  %v4663 = vpop.f32.mrf.mxu0
  %v4664 = vadd.f32 %v4529, %v4663
  %v4665 = vpop.f32.mrf.mxu0
  %v4666 = vadd.f32 %v4533, %v4665
  %v4667 = vpop.f32.mrf.mxu0
  %v4668 = vpop.f32.mrf.mxu0
  %4669 = vdwg.mxu0
  %4670 = vmatprep.subr.bf16.mxu0 0
  %4671 = vmatpush1.bf16.msra.mxu0 0
  %4672 = vmatprep.subr.bf16.mxu0 0
  %4673 = vmatpush1.bf16.msra.mxu0 0
  %4674 = vmatprep.subr.bf16.mxu0 0
  %4675 = vmatpush1.bf16.msra.mxu0 0
  %4676 = vmatprep.subr.bf16.mxu0 0
  %4677 = vmatpush1.bf16.msra.mxu0 0
  %4678 = vmatprep.subr.bf16.mxu0 %v4609
  %4679 = vmatpush1.bf16.msra.mxu0 %v4608
  %4680 = vmatprep.subr.bf16.mxu0 %v4605
  %4681 = vmatpush1.bf16.msra.mxu0 %v4604
  %4682 = vmatprep.subr.bf16.mxu0 %v4601
  %4683 = vmatpush1.bf16.msra.mxu0 %v4600
  %4684 = vmatprep.subr.bf16.mxu0 %v4597
  %4685 = vmatpush1.bf16.msra.mxu0 %v4596
  %4686 = vmatprep.subr.bf16.mxu0 0
  %4687 = vmatpush2.bf16.msra.mxu0 0
  %4688 = vmatprep.subr.bf16.mxu0 0
  %4689 = vmatpush2.bf16.msra.mxu0 0
  %4690 = vmatprep.subr.bf16.mxu0 0
  %4691 = vmatpush2.bf16.msra.mxu0 0
  %4692 = vmatprep.subr.bf16.mxu0 0
  %4693 = vmatpush2.bf16.msra.mxu0 0
  %4694 = vmatprep.subr.bf16.mxu0 0
  %4695 = vmatpush2.bf16.msra.mxu0 0
  %4696 = vmatprep.subr.bf16.mxu0 0
  %4697 = vmatpush2.bf16.msra.mxu0 0
  %4698 = vmatprep.subr.bf16.mxu0 0
  %4699 = vmatpush2.bf16.msra.mxu0 0
  %4700 = vmatprep.subr.bf16.mxu0 0
  %4701 = vmatpush2.bf16.msra.mxu0 0
  %4702 = vmatprep.mubr.bf16.mxu0 0
  %4703 = vmatmul.mubr.bf16.gmra.mxu0 %v4627
  %v4704 = vpop.f32.mrf.mxu0
  %v4705 = vadd.f32 %v4537, %v4704
  %v4706 = vpop.f32.mrf.mxu0
  %v4707 = vadd.f32 %v4541, %v4706
  %v4708 = vpop.f32.mrf.mxu0
  %v4709 = vpop.f32.mrf.mxu0
  %4710 = vdwg.mxu0
  %v4711 = vmax.f32 %v4664, 0.0
  %v4712 = vmax.f32 %v4666, 0.0
  %v4713 = vmax.f32 %v4705, 0.0
  %v4714 = vmax.f32 %v4707, 0.0
  %v4715 = vpack.c.bf16 %v4711, %v4711
  %v4716 = vpack.c.bf16 %v4712, %v4712
  %v4717 = vpack.c.bf16 %v4713, %v4713
  %v4718 = vpack.c.bf16 %v4714, %v4714
  %v4719 = vld [vmem:[%s9] sm:$0xff]
  %v4720 = vld [vmem:[%s9 + $0x8] sm:$0xff]
  %v4721 = vld [vmem:[%s9 + $0x10] sm:$0xff]
  %v4722 = vld [vmem:[%s9 + $0x18] sm:$0xff]
  %v4723 = vld [vmem:[%s9 + $0x20] sm:$0xff]
  %v4724 = vld [vmem:[%s9 + $0x28] sm:$0xff]
  %v4725 = vld [vmem:[%s9 + $0x30] sm:$0xff]
  %v4726 = vld [vmem:[%s9 + $0x38] sm:$0xff]
  %v4727 = vld [vmem:[%s9 + $0x40] sm:$0xff]
  %v4728 = vld [vmem:[%s9 + $0x48] sm:$0xff]
  %v4729 = vld [vmem:[%s9 + $0x50] sm:$0xff]
  %v4730 = vld [vmem:[%s9 + $0x58] sm:$0xff]
  %v4731 = vld [vmem:[%s9 + $0x60] sm:$0xff]
  %v4732 = vld [vmem:[%s9 + $0x68] sm:$0xff]
  %v4733 = vld [vmem:[%s9 + $0x70] sm:$0xff]
  %v4734 = vld [vmem:[%s9 + $0x78] sm:$0xff]
  %v4735 = vld [vmem:[%s9 + $0x80] sm:$0xff]
  %v4736 = vld [vmem:[%s9 + $0x88] sm:$0xff]
  %v4737 = vld [vmem:[%s9 + $0x90] sm:$0xff]
  %v4738 = vld [vmem:[%s9 + $0x98] sm:$0xff]
  %v4739 = vld [vmem:[%s9 + $0xa0] sm:$0xff]
  %v4740 = vld [vmem:[%s9 + $0xa8] sm:$0xff]
  %v4741 = vld [vmem:[%s9 + $0xb0] sm:$0xff]
  %v4742 = vld [vmem:[%s9 + $0xb8] sm:$0xff]
  %v4743 = vld [vmem:[%s9 + $0xc0] sm:$0xff]
  %v4744 = vld [vmem:[%s9 + $0xc8] sm:$0xff]
  %v4745 = vld [vmem:[%s9 + $0xd0] sm:$0xff]
  %v4746 = vld [vmem:[%s9 + $0xd8] sm:$0xff]
  %v4747 = vld [vmem:[%s9 + $0xe0] sm:$0xff]
  %v4748 = vld [vmem:[%s9 + $0xe8] sm:$0xff]
  %v4749 = vld [vmem:[%s9 + $0xf0] sm:$0xff]
  %v4750 = vld [vmem:[%s9 + $0xf8] sm:$0xff]
  %v4751 = vld [vmem:[%s9 + $0x100] sm:$0xff]
  %v4752 = vld [vmem:[%s9 + $0x108] sm:$0xff]
  %v4753 = vld [vmem:[%s9 + $0x110] sm:$0xff]
  %v4754 = vld [vmem:[%s9 + $0x118] sm:$0xff]
  %v4755 = vld [vmem:[%s9 + $0x120] sm:$0xff]
  %v4756 = vld [vmem:[%s9 + $0x128] sm:$0xff]
  %v4757 = vld [vmem:[%s9 + $0x130] sm:$0xff]
  %v4758 = vld [vmem:[%s9 + $0x138] sm:$0xff]
  %v4759 = vld [vmem:[%s9 + $0x140] sm:$0xff]
  %v4760 = vld [vmem:[%s9 + $0x148] sm:$0xff]
  %v4761 = vld [vmem:[%s9 + $0x150] sm:$0xff]
  %v4762 = vld [vmem:[%s9 + $0x158] sm:$0xff]
  %v4763 = vld [vmem:[%s9 + $0x160] sm:$0xff]
  %v4764 = vld [vmem:[%s9 + $0x168] sm:$0xff]
  %v4765 = vld [vmem:[%s9 + $0x170] sm:$0xff]
  %v4766 = vld [vmem:[%s9 + $0x178] sm:$0xff]
  %v4767 = vld [vmem:[%s9 + $0x180] sm:$0xff]
  %v4768 = vld [vmem:[%s9 + $0x188] sm:$0xff]
  %v4769 = vld [vmem:[%s9 + $0x190] sm:$0xff]
  %v4770 = vld [vmem:[%s9 + $0x198] sm:$0xff]
  %v4771 = vld [vmem:[%s9 + $0x1a0] sm:$0xff]
  %v4772 = vld [vmem:[%s9 + $0x1a8] sm:$0xff]
  %v4773 = vld [vmem:[%s9 + $0x1b0] sm:$0xff]
  %v4774 = vld [vmem:[%s9 + $0x1b8] sm:$0xff]
  %v4775 = vld [vmem:[%s9 + $0x1c0] sm:$0xff]
  %v4776 = vld [vmem:[%s9 + $0x1c8] sm:$0xff]
  %v4777 = vld [vmem:[%s9 + $0x1d0] sm:$0xff]
  %v4778 = vld [vmem:[%s9 + $0x1d8] sm:$0xff]
  %v4779 = vld [vmem:[%s9 + $0x1e0] sm:$0xff]
  %v4780 = vld [vmem:[%s9 + $0x1e8] sm:$0xff]
  %v4781 = vld [vmem:[%s9 + $0x1f0] sm:$0xff]
  %v4782 = vld [vmem:[%s9 + $0x1f8] sm:$0xff]
  %v4783 = vld [vmem:[%s9 + $0x200] sm:$0xff]
  %v4784 = vld [vmem:[%s9 + $0x208] sm:$0xff]
  %v4785 = vld [vmem:[%s9 + $0x210] sm:$0xff]
  %v4786 = vld [vmem:[%s9 + $0x218] sm:$0xff]
  %v4787 = vld [vmem:[%s9 + $0x220] sm:$0xff]
  %v4788 = vld [vmem:[%s9 + $0x228] sm:$0xff]
  %v4789 = vld [vmem:[%s9 + $0x230] sm:$0xff]
  %v4790 = vld [vmem:[%s9 + $0x238] sm:$0xff]
  %v4791 = vld [vmem:[%s9 + $0x240] sm:$0xff]
  %v4792 = vld [vmem:[%s9 + $0x248] sm:$0xff]
  %v4793 = vld [vmem:[%s9 + $0x250] sm:$0xff]
  %v4794 = vld [vmem:[%s9 + $0x258] sm:$0xff]
  %v4795 = vld [vmem:[%s9 + $0x260] sm:$0xff]
  %v4796 = vld [vmem:[%s9 + $0x268] sm:$0xff]
  %v4797 = vld [vmem:[%s9 + $0x270] sm:$0xff]
  %v4798 = vld [vmem:[%s9 + $0x278] sm:$0xff]
  %v4799 = vld [vmem:[%s9 + $0x280] sm:$0xff]
  %v4800 = vld [vmem:[%s9 + $0x288] sm:$0xff]
  %v4801 = vld [vmem:[%s9 + $0x290] sm:$0xff]
  %v4802 = vld [vmem:[%s9 + $0x298] sm:$0xff]
  %v4803 = vld [vmem:[%s9 + $0x2a0] sm:$0xff]
  %v4804 = vld [vmem:[%s9 + $0x2a8] sm:$0xff]
  %v4805 = vld [vmem:[%s9 + $0x2b0] sm:$0xff]
  %v4806 = vld [vmem:[%s9 + $0x2b8] sm:$0xff]
  %v4807 = vld [vmem:[%s9 + $0x2c0] sm:$0xff]
  %v4808 = vld [vmem:[%s9 + $0x2c8] sm:$0xff]
  %v4809 = vld [vmem:[%s9 + $0x2d0] sm:$0xff]
  %v4810 = vld [vmem:[%s9 + $0x2d8] sm:$0xff]
  %v4811 = vld [vmem:[%s9 + $0x2e0] sm:$0xff]
  %v4812 = vld [vmem:[%s9 + $0x2e8] sm:$0xff]
  %v4813 = vld [vmem:[%s9 + $0x2f0] sm:$0xff]
  %v4814 = vld [vmem:[%s9 + $0x2f8] sm:$0xff]
  %v4815 = vld [vmem:[%s9 + $0x300] sm:$0xff]
  %v4816 = vld [vmem:[%s9 + $0x308] sm:$0xff]
  %v4817 = vld [vmem:[%s9 + $0x310] sm:$0xff]
  %v4818 = vld [vmem:[%s9 + $0x318] sm:$0xff]
  %v4819 = vld [vmem:[%s9 + $0x320] sm:$0xff]
  %v4820 = vld [vmem:[%s9 + $0x328] sm:$0xff]
  %v4821 = vld [vmem:[%s9 + $0x330] sm:$0xff]
  %v4822 = vld [vmem:[%s9 + $0x338] sm:$0xff]
  %v4823 = vld [vmem:[%s9 + $0x340] sm:$0xff]
  %v4824 = vld [vmem:[%s9 + $0x348] sm:$0xff]
  %v4825 = vld [vmem:[%s9 + $0x350] sm:$0xff]
  %v4826 = vld [vmem:[%s9 + $0x358] sm:$0xff]
  %v4827 = vld [vmem:[%s9 + $0x360] sm:$0xff]
  %v4828 = vld [vmem:[%s9 + $0x368] sm:$0xff]
  %v4829 = vld [vmem:[%s9 + $0x370] sm:$0xff]
  %v4830 = vld [vmem:[%s9 + $0x378] sm:$0xff]
  %v4831 = vld [vmem:[%s9 + $0x380] sm:$0xff]
  %v4832 = vld [vmem:[%s9 + $0x388] sm:$0xff]
  %v4833 = vld [vmem:[%s9 + $0x390] sm:$0xff]
  %v4834 = vld [vmem:[%s9 + $0x398] sm:$0xff]
  %v4835 = vld [vmem:[%s9 + $0x3a0] sm:$0xff]
  %v4836 = vld [vmem:[%s9 + $0x3a8] sm:$0xff]
  %v4837 = vld [vmem:[%s9 + $0x3b0] sm:$0xff]
  %v4838 = vld [vmem:[%s9 + $0x3b8] sm:$0xff]
  %v4839 = vld [vmem:[%s9 + $0x3c0] sm:$0xff]
  %v4840 = vld [vmem:[%s9 + $0x3c8] sm:$0xff]
  %v4841 = vld [vmem:[%s9 + $0x3d0] sm:$0xff]
  %v4842 = vld [vmem:[%s9 + $0x3d8] sm:$0xff]
  %v4843 = vld [vmem:[%s9 + $0x3e0] sm:$0xff]
  %v4844 = vld [vmem:[%s9 + $0x3e8] sm:$0xff]
  %v4845 = vld [vmem:[%s9 + $0x3f0] sm:$0xff]
  %v4846 = vld [vmem:[%s9 + $0x3f8] sm:$0xff]
  %v4847 = vld [vmem:[%s10] sm:$0xf]
  %v4849 = vlaneseq
  %v4850 = vshrl.u32 %v4849, 7
  %v4851 = vsub.s32 0, %v4850
  %v4852 = vrot.slane %v4847, %v4851
  %v4853 = vlaneseq
  %v4854 = vshrl.u32 %v4853, 7
  %v4855 = vsub.s32 1, %v4854
  %v4856 = vrot.slane %v4847, %v4855
  %v4857 = vlaneseq
  %v4858 = vshrl.u32 %v4857, 7
  %v4859 = vsub.s32 2, %v4858
  %v4860 = vrot.slane %v4847, %v4859
  %v4861 = vlaneseq
  %v4862 = vshrl.u32 %v4861, 7
  %v4863 = vsub.s32 3, %v4862
  %v4864 = vrot.slane %v4847, %v4863
  %v4997 = vunpack.c.l.b16 %v4719
  %v4998 = vunpack.c.h.b16 %v4719
  %v4999 = vunpack.c.l.b16 %v4720
  %v5000 = vunpack.c.h.b16 %v4720
  %v5001 = vunpack.c.l.b16 %v4721
  %v5002 = vunpack.c.h.b16 %v4721
  %v5003 = vunpack.c.l.b16 %v4722
  %v5004 = vunpack.c.h.b16 %v4722
  %v5005 = vunpack.c.l.b16 %v4723
  %v5006 = vunpack.c.h.b16 %v4723
  %v5007 = vunpack.c.l.b16 %v4724
  %v5008 = vunpack.c.h.b16 %v4724
  %v5009 = vunpack.c.l.b16 %v4725
  %v5010 = vunpack.c.h.b16 %v4725
  %v5011 = vunpack.c.l.b16 %v4726
  %v5012 = vunpack.c.h.b16 %v4726
  %v5013 = vunpack.c.l.b16 %v4727
  %v5014 = vunpack.c.h.b16 %v4727
  %v5015 = vunpack.c.l.b16 %v4728
  %v5016 = vunpack.c.h.b16 %v4728
  %v5017 = vunpack.c.l.b16 %v4729
  %v5018 = vunpack.c.h.b16 %v4729
  %v5019 = vunpack.c.l.b16 %v4730
  %v5020 = vunpack.c.h.b16 %v4730
  %v5021 = vunpack.c.l.b16 %v4731
  %v5022 = vunpack.c.h.b16 %v4731
  %v5023 = vunpack.c.l.b16 %v4732
  %v5024 = vunpack.c.h.b16 %v4732
  %v5025 = vunpack.c.l.b16 %v4733
  %v5026 = vunpack.c.h.b16 %v4733
  %v5027 = vunpack.c.l.b16 %v4734
  %v5028 = vunpack.c.h.b16 %v4734
  %v5029 = vunpack.c.l.b16 %v4735
  %v5030 = vunpack.c.h.b16 %v4735
  %v5031 = vunpack.c.l.b16 %v4736
  %v5032 = vunpack.c.h.b16 %v4736
  %v5033 = vunpack.c.l.b16 %v4737
  %v5034 = vunpack.c.h.b16 %v4737
  %v5035 = vunpack.c.l.b16 %v4738
  %v5036 = vunpack.c.h.b16 %v4738
  %v5037 = vunpack.c.l.b16 %v4739
  %v5038 = vunpack.c.h.b16 %v4739
  %v5039 = vunpack.c.l.b16 %v4740
  %v5040 = vunpack.c.h.b16 %v4740
  %v5041 = vunpack.c.l.b16 %v4741
  %v5042 = vunpack.c.h.b16 %v4741
  %v5043 = vunpack.c.l.b16 %v4742
  %v5044 = vunpack.c.h.b16 %v4742
  %v5045 = vunpack.c.l.b16 %v4743
  %v5046 = vunpack.c.h.b16 %v4743
  %v5047 = vunpack.c.l.b16 %v4744
  %v5048 = vunpack.c.h.b16 %v4744
  %v5049 = vunpack.c.l.b16 %v4745
  %v5050 = vunpack.c.h.b16 %v4745
  %v5051 = vunpack.c.l.b16 %v4746
  %v5052 = vunpack.c.h.b16 %v4746
  %v5053 = vunpack.c.l.b16 %v4747
  %v5054 = vunpack.c.h.b16 %v4747
  %v5055 = vunpack.c.l.b16 %v4748
  %v5056 = vunpack.c.h.b16 %v4748
  %v5057 = vunpack.c.l.b16 %v4749
  %v5058 = vunpack.c.h.b16 %v4749
  %v5059 = vunpack.c.l.b16 %v4750
  %v5060 = vunpack.c.h.b16 %v4750
  %v5061 = vunpack.c.l.b16 %v4751
  %v5062 = vunpack.c.h.b16 %v4751
  %v5063 = vunpack.c.l.b16 %v4752
  %v5064 = vunpack.c.h.b16 %v4752
  %v5065 = vunpack.c.l.b16 %v4753
  %v5066 = vunpack.c.h.b16 %v4753
  %v5067 = vunpack.c.l.b16 %v4754
  %v5068 = vunpack.c.h.b16 %v4754
  %v5069 = vunpack.c.l.b16 %v4755
  %v5070 = vunpack.c.h.b16 %v4755
  %v5071 = vunpack.c.l.b16 %v4756
  %v5072 = vunpack.c.h.b16 %v4756
  %v5073 = vunpack.c.l.b16 %v4757
  %v5074 = vunpack.c.h.b16 %v4757
  %v5075 = vunpack.c.l.b16 %v4758
  %v5076 = vunpack.c.h.b16 %v4758
  %v5077 = vunpack.c.l.b16 %v4759
  %v5078 = vunpack.c.h.b16 %v4759
  %v5079 = vunpack.c.l.b16 %v4760
  %v5080 = vunpack.c.h.b16 %v4760
  %v5081 = vunpack.c.l.b16 %v4761
  %v5082 = vunpack.c.h.b16 %v4761
  %v5083 = vunpack.c.l.b16 %v4762
  %v5084 = vunpack.c.h.b16 %v4762
  %v5085 = vunpack.c.l.b16 %v4763
  %v5086 = vunpack.c.h.b16 %v4763
  %v5087 = vunpack.c.l.b16 %v4764
  %v5088 = vunpack.c.h.b16 %v4764
  %v5089 = vunpack.c.l.b16 %v4765
  %v5090 = vunpack.c.h.b16 %v4765
  %v5091 = vunpack.c.l.b16 %v4766
  %v5092 = vunpack.c.h.b16 %v4766
  %v5093 = vunpack.c.l.b16 %v4767
  %v5094 = vunpack.c.h.b16 %v4767
  %v5095 = vunpack.c.l.b16 %v4768
  %v5096 = vunpack.c.h.b16 %v4768
  %v5097 = vunpack.c.l.b16 %v4769
  %v5098 = vunpack.c.h.b16 %v4769
  %v5099 = vunpack.c.l.b16 %v4770
  %v5100 = vunpack.c.h.b16 %v4770
  %v5101 = vunpack.c.l.b16 %v4771
  %v5102 = vunpack.c.h.b16 %v4771
  %v5103 = vunpack.c.l.b16 %v4772
  %v5104 = vunpack.c.h.b16 %v4772
  %v5105 = vunpack.c.l.b16 %v4773
  %v5106 = vunpack.c.h.b16 %v4773
  %v5107 = vunpack.c.l.b16 %v4774
  %v5108 = vunpack.c.h.b16 %v4774
  %v5109 = vunpack.c.l.b16 %v4775
  %v5110 = vunpack.c.h.b16 %v4775
  %v5111 = vunpack.c.l.b16 %v4776
  %v5112 = vunpack.c.h.b16 %v4776
  %v5113 = vunpack.c.l.b16 %v4777
  %v5114 = vunpack.c.h.b16 %v4777
  %v5115 = vunpack.c.l.b16 %v4778
  %v5116 = vunpack.c.h.b16 %v4778
  %v5117 = vunpack.c.l.b16 %v4779
  %v5118 = vunpack.c.h.b16 %v4779
  %v5119 = vunpack.c.l.b16 %v4780
  %v5120 = vunpack.c.h.b16 %v4780
  %v5121 = vunpack.c.l.b16 %v4781
  %v5122 = vunpack.c.h.b16 %v4781
  %v5123 = vunpack.c.l.b16 %v4782
  %v5124 = vunpack.c.h.b16 %v4782
  %v5125 = vunpack.c.l.b16 %v4783
  %v5126 = vunpack.c.h.b16 %v4783
  %v5127 = vunpack.c.l.b16 %v4784
  %v5128 = vunpack.c.h.b16 %v4784
  %v5129 = vunpack.c.l.b16 %v4785
  %v5130 = vunpack.c.h.b16 %v4785
  %v5131 = vunpack.c.l.b16 %v4786
  %v5132 = vunpack.c.h.b16 %v4786
  %v5133 = vunpack.c.l.b16 %v4787
  %v5134 = vunpack.c.h.b16 %v4787
  %v5135 = vunpack.c.l.b16 %v4788
  %v5136 = vunpack.c.h.b16 %v4788
  %v5137 = vunpack.c.l.b16 %v4789
  %v5138 = vunpack.c.h.b16 %v4789
  %v5139 = vunpack.c.l.b16 %v4790
  %v5140 = vunpack.c.h.b16 %v4790
  %v5141 = vunpack.c.l.b16 %v4791
  %v5142 = vunpack.c.h.b16 %v4791
  %v5143 = vunpack.c.l.b16 %v4792
  %v5144 = vunpack.c.h.b16 %v4792
  %v5145 = vunpack.c.l.b16 %v4793
  %v5146 = vunpack.c.h.b16 %v4793
  %v5147 = vunpack.c.l.b16 %v4794
  %v5148 = vunpack.c.h.b16 %v4794
  %v5149 = vunpack.c.l.b16 %v4795
  %v5150 = vunpack.c.h.b16 %v4795
  %v5151 = vunpack.c.l.b16 %v4796
  %v5152 = vunpack.c.h.b16 %v4796
  %v5153 = vunpack.c.l.b16 %v4797
  %v5154 = vunpack.c.h.b16 %v4797
  %v5155 = vunpack.c.l.b16 %v4798
  %v5156 = vunpack.c.h.b16 %v4798
  %v5157 = vunpack.c.l.b16 %v4799
  %v5158 = vunpack.c.h.b16 %v4799
  %v5159 = vunpack.c.l.b16 %v4800
  %v5160 = vunpack.c.h.b16 %v4800
  %v5161 = vunpack.c.l.b16 %v4801
  %v5162 = vunpack.c.h.b16 %v4801
  %v5163 = vunpack.c.l.b16 %v4802
  %v5164 = vunpack.c.h.b16 %v4802
  %v5165 = vunpack.c.l.b16 %v4803
  %v5166 = vunpack.c.h.b16 %v4803
  %v5167 = vunpack.c.l.b16 %v4804
  %v5168 = vunpack.c.h.b16 %v4804
  %v5169 = vunpack.c.l.b16 %v4805
  %v5170 = vunpack.c.h.b16 %v4805
  %v5171 = vunpack.c.l.b16 %v4806
  %v5172 = vunpack.c.h.b16 %v4806
  %v5173 = vunpack.c.l.b16 %v4807
  %v5174 = vunpack.c.h.b16 %v4807
  %v5175 = vunpack.c.l.b16 %v4808
  %v5176 = vunpack.c.h.b16 %v4808
  %v5177 = vunpack.c.l.b16 %v4809
  %v5178 = vunpack.c.h.b16 %v4809
  %v5179 = vunpack.c.l.b16 %v4810
  %v5180 = vunpack.c.h.b16 %v4810
  %v5181 = vunpack.c.l.b16 %v4811
  %v5182 = vunpack.c.h.b16 %v4811
  %v5183 = vunpack.c.l.b16 %v4812
  %v5184 = vunpack.c.h.b16 %v4812
  %v5185 = vunpack.c.l.b16 %v4813
  %v5186 = vunpack.c.h.b16 %v4813
  %v5187 = vunpack.c.l.b16 %v4814
  %v5188 = vunpack.c.h.b16 %v4814
  %v5189 = vunpack.c.l.b16 %v4815
  %v5190 = vunpack.c.h.b16 %v4815
  %v5191 = vunpack.c.l.b16 %v4816
  %v5192 = vunpack.c.h.b16 %v4816
  %v5193 = vunpack.c.l.b16 %v4817
  %v5194 = vunpack.c.h.b16 %v4817
  %v5195 = vunpack.c.l.b16 %v4818
  %v5196 = vunpack.c.h.b16 %v4818
  %v5197 = vunpack.c.l.b16 %v4819
  %v5198 = vunpack.c.h.b16 %v4819
  %v5199 = vunpack.c.l.b16 %v4820
  %v5200 = vunpack.c.h.b16 %v4820
  %v5201 = vunpack.c.l.b16 %v4821
  %v5202 = vunpack.c.h.b16 %v4821
  %v5203 = vunpack.c.l.b16 %v4822
  %v5204 = vunpack.c.h.b16 %v4822
  %v5205 = vunpack.c.l.b16 %v4823
  %v5206 = vunpack.c.h.b16 %v4823
  %v5207 = vunpack.c.l.b16 %v4824
  %v5208 = vunpack.c.h.b16 %v4824
  %v5209 = vunpack.c.l.b16 %v4825
  %v5210 = vunpack.c.h.b16 %v4825
  %v5211 = vunpack.c.l.b16 %v4826
  %v5212 = vunpack.c.h.b16 %v4826
  %v5213 = vunpack.c.l.b16 %v4827
  %v5214 = vunpack.c.h.b16 %v4827
  %v5215 = vunpack.c.l.b16 %v4828
  %v5216 = vunpack.c.h.b16 %v4828
  %v5217 = vunpack.c.l.b16 %v4829
  %v5218 = vunpack.c.h.b16 %v4829
  %v5219 = vunpack.c.l.b16 %v4830
  %v5220 = vunpack.c.h.b16 %v4830
  %v5221 = vunpack.c.l.b16 %v4831
  %v5222 = vunpack.c.h.b16 %v4831
  %v5223 = vunpack.c.l.b16 %v4832
  %v5224 = vunpack.c.h.b16 %v4832
  %v5225 = vunpack.c.l.b16 %v4833
  %v5226 = vunpack.c.h.b16 %v4833
  %v5227 = vunpack.c.l.b16 %v4834
  %v5228 = vunpack.c.h.b16 %v4834
  %v5229 = vunpack.c.l.b16 %v4835
  %v5230 = vunpack.c.h.b16 %v4835
  %v5231 = vunpack.c.l.b16 %v4836
  %v5232 = vunpack.c.h.b16 %v4836
  %v5233 = vunpack.c.l.b16 %v4837
  %v5234 = vunpack.c.h.b16 %v4837
  %v5235 = vunpack.c.l.b16 %v4838
  %v5236 = vunpack.c.h.b16 %v4838
  %v5237 = vunpack.c.l.b16 %v4839
  %v5238 = vunpack.c.h.b16 %v4839
  %v5239 = vunpack.c.l.b16 %v4840
  %v5240 = vunpack.c.h.b16 %v4840
  %v5241 = vunpack.c.l.b16 %v4841
  %v5242 = vunpack.c.h.b16 %v4841
  %v5243 = vunpack.c.l.b16 %v4842
  %v5244 = vunpack.c.h.b16 %v4842
  %v5245 = vunpack.c.l.b16 %v4843
  %v5246 = vunpack.c.h.b16 %v4843
  %v5247 = vunpack.c.l.b16 %v4844
  %v5248 = vunpack.c.h.b16 %v4844
  %v5249 = vunpack.c.l.b16 %v4845
  %v5250 = vunpack.c.h.b16 %v4845
  %v5251 = vunpack.c.l.b16 %v4846
  %v5252 = vunpack.c.h.b16 %v4846
  %v5253 = vpack.c.b16 %v5001, %v4997
  %v5254 = vpack.c.b16 %v5002, %v4998
  %v5255 = vpack.c.b16 %v5003, %v4999
  %v5256 = vpack.c.b16 %v5004, %v5000
  %v5257 = vpack.c.b16 %v5009, %v5005
  %v5258 = vpack.c.b16 %v5010, %v5006
  %v5259 = vpack.c.b16 %v5011, %v5007
  %v5260 = vpack.c.b16 %v5012, %v5008
  %v5261 = vpack.c.b16 %v5017, %v5013
  %v5262 = vpack.c.b16 %v5018, %v5014
  %v5263 = vpack.c.b16 %v5019, %v5015
  %v5264 = vpack.c.b16 %v5020, %v5016
  %v5265 = vpack.c.b16 %v5025, %v5021
  %v5266 = vpack.c.b16 %v5026, %v5022
  %v5267 = vpack.c.b16 %v5027, %v5023
  %v5268 = vpack.c.b16 %v5028, %v5024
  %v5269 = vpack.c.b16 %v5033, %v5029
  %v5270 = vpack.c.b16 %v5034, %v5030
  %v5271 = vpack.c.b16 %v5035, %v5031
  %v5272 = vpack.c.b16 %v5036, %v5032
  %v5273 = vpack.c.b16 %v5041, %v5037
  %v5274 = vpack.c.b16 %v5042, %v5038
  %v5275 = vpack.c.b16 %v5043, %v5039
  %v5276 = vpack.c.b16 %v5044, %v5040
  %v5277 = vpack.c.b16 %v5049, %v5045
  %v5278 = vpack.c.b16 %v5050, %v5046
  %v5279 = vpack.c.b16 %v5051, %v5047
  %v5280 = vpack.c.b16 %v5052, %v5048
  %v5281 = vpack.c.b16 %v5057, %v5053
  %v5282 = vpack.c.b16 %v5058, %v5054
  %v5283 = vpack.c.b16 %v5059, %v5055
  %v5284 = vpack.c.b16 %v5060, %v5056
  %v5285 = vpack.c.b16 %v5065, %v5061
  %v5286 = vpack.c.b16 %v5066, %v5062
  %v5287 = vpack.c.b16 %v5067, %v5063
  %v5288 = vpack.c.b16 %v5068, %v5064
  %v5289 = vpack.c.b16 %v5073, %v5069
  %v5290 = vpack.c.b16 %v5074, %v5070
  %v5291 = vpack.c.b16 %v5075, %v5071
  %v5292 = vpack.c.b16 %v5076, %v5072
  %v5293 = vpack.c.b16 %v5081, %v5077
  %v5294 = vpack.c.b16 %v5082, %v5078
  %v5295 = vpack.c.b16 %v5083, %v5079
  %v5296 = vpack.c.b16 %v5084, %v5080
  %v5297 = vpack.c.b16 %v5089, %v5085
  %v5298 = vpack.c.b16 %v5090, %v5086
  %v5299 = vpack.c.b16 %v5091, %v5087
  %v5300 = vpack.c.b16 %v5092, %v5088
  %v5301 = vpack.c.b16 %v5097, %v5093
  %v5302 = vpack.c.b16 %v5098, %v5094
  %v5303 = vpack.c.b16 %v5099, %v5095
  %v5304 = vpack.c.b16 %v5100, %v5096
  %v5305 = vpack.c.b16 %v5105, %v5101
  %v5306 = vpack.c.b16 %v5106, %v5102
  %v5307 = vpack.c.b16 %v5107, %v5103
  %v5308 = vpack.c.b16 %v5108, %v5104
  %v5309 = vpack.c.b16 %v5113, %v5109
  %v5310 = vpack.c.b16 %v5114, %v5110
  %v5311 = vpack.c.b16 %v5115, %v5111
  %v5312 = vpack.c.b16 %v5116, %v5112
  %v5313 = vpack.c.b16 %v5121, %v5117
  %v5314 = vpack.c.b16 %v5122, %v5118
  %v5315 = vpack.c.b16 %v5123, %v5119
  %v5316 = vpack.c.b16 %v5124, %v5120
  %v5317 = vpack.c.b16 %v5129, %v5125
  %v5318 = vpack.c.b16 %v5130, %v5126
  %v5319 = vpack.c.b16 %v5131, %v5127
  %v5320 = vpack.c.b16 %v5132, %v5128
  %v5321 = vpack.c.b16 %v5137, %v5133
  %v5322 = vpack.c.b16 %v5138, %v5134
  %v5323 = vpack.c.b16 %v5139, %v5135
  %v5324 = vpack.c.b16 %v5140, %v5136
  %v5325 = vpack.c.b16 %v5145, %v5141
  %v5326 = vpack.c.b16 %v5146, %v5142
  %v5327 = vpack.c.b16 %v5147, %v5143
  %v5328 = vpack.c.b16 %v5148, %v5144
  %v5329 = vpack.c.b16 %v5153, %v5149
  %v5330 = vpack.c.b16 %v5154, %v5150
  %v5331 = vpack.c.b16 %v5155, %v5151
  %v5332 = vpack.c.b16 %v5156, %v5152
  %v5333 = vpack.c.b16 %v5161, %v5157
  %v5334 = vpack.c.b16 %v5162, %v5158
  %v5335 = vpack.c.b16 %v5163, %v5159
  %v5336 = vpack.c.b16 %v5164, %v5160
  %v5337 = vpack.c.b16 %v5169, %v5165
  %v5338 = vpack.c.b16 %v5170, %v5166
  %v5339 = vpack.c.b16 %v5171, %v5167
  %v5340 = vpack.c.b16 %v5172, %v5168
  %v5341 = vpack.c.b16 %v5177, %v5173
  %v5342 = vpack.c.b16 %v5178, %v5174
  %v5343 = vpack.c.b16 %v5179, %v5175
  %v5344 = vpack.c.b16 %v5180, %v5176
  %v5345 = vpack.c.b16 %v5185, %v5181
  %v5346 = vpack.c.b16 %v5186, %v5182
  %v5347 = vpack.c.b16 %v5187, %v5183
  %v5348 = vpack.c.b16 %v5188, %v5184
  %v5349 = vpack.c.b16 %v5193, %v5189
  %v5350 = vpack.c.b16 %v5194, %v5190
  %v5351 = vpack.c.b16 %v5195, %v5191
  %v5352 = vpack.c.b16 %v5196, %v5192
  %v5353 = vpack.c.b16 %v5201, %v5197
  %v5354 = vpack.c.b16 %v5202, %v5198
  %v5355 = vpack.c.b16 %v5203, %v5199
  %v5356 = vpack.c.b16 %v5204, %v5200
  %v5357 = vpack.c.b16 %v5209, %v5205
  %v5358 = vpack.c.b16 %v5210, %v5206
  %v5359 = vpack.c.b16 %v5211, %v5207
  %v5360 = vpack.c.b16 %v5212, %v5208
  %v5361 = vpack.c.b16 %v5217, %v5213
  %v5362 = vpack.c.b16 %v5218, %v5214
  %v5363 = vpack.c.b16 %v5219, %v5215
  %v5364 = vpack.c.b16 %v5220, %v5216
  %v5365 = vpack.c.b16 %v5225, %v5221
  %v5366 = vpack.c.b16 %v5226, %v5222
  %v5367 = vpack.c.b16 %v5227, %v5223
  %v5368 = vpack.c.b16 %v5228, %v5224
  %v5369 = vpack.c.b16 %v5233, %v5229
  %v5370 = vpack.c.b16 %v5234, %v5230
  %v5371 = vpack.c.b16 %v5235, %v5231
  %v5372 = vpack.c.b16 %v5236, %v5232
  %v5373 = vpack.c.b16 %v5241, %v5237
  %v5374 = vpack.c.b16 %v5242, %v5238
  %v5375 = vpack.c.b16 %v5243, %v5239
  %v5376 = vpack.c.b16 %v5244, %v5240
  %v5377 = vpack.c.b16 %v5249, %v5245
  %v5378 = vpack.c.b16 %v5250, %v5246
  %v5379 = vpack.c.b16 %v5251, %v5247
  %v5380 = vpack.c.b16 %v5252, %v5248
  %5509 = vmatprep.subr.bf16.mxu0 %v5282
  %5510 = vmatpush1.bf16.msra.mxu0 %v5281
  %5511 = vmatprep.subr.bf16.mxu0 %v5278
  %5512 = vmatpush1.bf16.msra.mxu0 %v5277
  %5513 = vmatprep.subr.bf16.mxu0 %v5274
  %5514 = vmatpush1.bf16.msra.mxu0 %v5273
  %5515 = vmatprep.subr.bf16.mxu0 %v5270
  %5516 = vmatpush1.bf16.msra.mxu0 %v5269
  %5517 = vmatprep.subr.bf16.mxu0 %v5266
  %5518 = vmatpush1.bf16.msra.mxu0 %v5265
  %5519 = vmatprep.subr.bf16.mxu0 %v5262
  %5520 = vmatpush1.bf16.msra.mxu0 %v5261
  %5521 = vmatprep.subr.bf16.mxu0 %v5258
  %5522 = vmatpush1.bf16.msra.mxu0 %v5257
  %5523 = vmatprep.subr.bf16.mxu0 %v5254
  %5524 = vmatpush1.bf16.msra.mxu0 %v5253
  %5525 = vmatprep.subr.bf16.mxu0 %v5314
  %5526 = vmatpush2.bf16.msra.mxu0 %v5313
  %5527 = vmatprep.subr.bf16.mxu0 %v5310
  %5528 = vmatpush2.bf16.msra.mxu0 %v5309
  %5529 = vmatprep.subr.bf16.mxu0 %v5306
  %5530 = vmatpush2.bf16.msra.mxu0 %v5305
  %5531 = vmatprep.subr.bf16.mxu0 %v5302
  %5532 = vmatpush2.bf16.msra.mxu0 %v5301
  %5533 = vmatprep.subr.bf16.mxu0 %v5298
  %5534 = vmatpush2.bf16.msra.mxu0 %v5297
  %5535 = vmatprep.subr.bf16.mxu0 %v5294
  %5536 = vmatpush2.bf16.msra.mxu0 %v5293
  %5537 = vmatprep.subr.bf16.mxu0 %v5290
  %5538 = vmatpush2.bf16.msra.mxu0 %v5289
  %5539 = vmatprep.subr.bf16.mxu0 %v5286
  %5540 = vmatpush2.bf16.msra.mxu0 %v5285
  %5541 = vmatprep.mubr.bf16.mxu0 %v4716
  %5542 = vmatmul.mubr.bf16.gmra.mxu0 %v4715
  %v5543 = vpop.f32.mrf.mxu0
  %v5544 = vadd.f32 %v4852, %v5543
  %v5545 = vpop.f32.mrf.mxu0
  %v5546 = vadd.f32 %v4856, %v5545
  %v5547 = vpop.f32.mrf.mxu0
  %v5548 = vpop.f32.mrf.mxu0
  %5549 = vdwg.mxu0
  %5550 = vmatprep.subr.bf16.mxu0 %v5346
  %5551 = vmatpush1.bf16.msra.mxu0 %v5345
  %5552 = vmatprep.subr.bf16.mxu0 %v5342
  %5553 = vmatpush1.bf16.msra.mxu0 %v5341
  %5554 = vmatprep.subr.bf16.mxu0 %v5338
  %5555 = vmatpush1.bf16.msra.mxu0 %v5337
  %5556 = vmatprep.subr.bf16.mxu0 %v5334
  %5557 = vmatpush1.bf16.msra.mxu0 %v5333
  %5558 = vmatprep.subr.bf16.mxu0 %v5330
  %5559 = vmatpush1.bf16.msra.mxu0 %v5329
  %5560 = vmatprep.subr.bf16.mxu0 %v5326
  %5561 = vmatpush1.bf16.msra.mxu0 %v5325
  %5562 = vmatprep.subr.bf16.mxu0 %v5322
  %5563 = vmatpush1.bf16.msra.mxu0 %v5321
  %5564 = vmatprep.subr.bf16.mxu0 %v5318
  %5565 = vmatpush1.bf16.msra.mxu0 %v5317
  %5566 = vmatprep.subr.bf16.mxu0 %v5378
  %5567 = vmatpush2.bf16.msra.mxu0 %v5377
  %5568 = vmatprep.subr.bf16.mxu0 %v5374
  %5569 = vmatpush2.bf16.msra.mxu0 %v5373
  %5570 = vmatprep.subr.bf16.mxu0 %v5370
  %5571 = vmatpush2.bf16.msra.mxu0 %v5369
  %5572 = vmatprep.subr.bf16.mxu0 %v5366
  %5573 = vmatpush2.bf16.msra.mxu0 %v5365
  %5574 = vmatprep.subr.bf16.mxu0 %v5362
  %5575 = vmatpush2.bf16.msra.mxu0 %v5361
  %5576 = vmatprep.subr.bf16.mxu0 %v5358
  %5577 = vmatpush2.bf16.msra.mxu0 %v5357
  %5578 = vmatprep.subr.bf16.mxu0 %v5354
  %5579 = vmatpush2.bf16.msra.mxu0 %v5353
  %5580 = vmatprep.subr.bf16.mxu0 %v5350
  %5581 = vmatpush2.bf16.msra.mxu0 %v5349
  %5582 = vmatprep.mubr.bf16.mxu0 %v4718
  %5583 = vmatmul.mubr.bf16.gmra.mxu0 %v4717
  %v5584 = vpop.f32.mrf.mxu0
  %v5585 = vadd.f32 %v5544, %v5584
  %v5586 = vpop.f32.mrf.mxu0
  %v5587 = vadd.f32 %v5546, %v5586
  %v5588 = vpop.f32.mrf.mxu0
  %v5589 = vpop.f32.mrf.mxu0
  %5590 = vdwg.mxu0
  %5591 = vmatprep.subr.bf16.mxu0 %v5284
  %5592 = vmatpush1.bf16.msra.mxu0 %v5283
  %5593 = vmatprep.subr.bf16.mxu0 %v5280
  %5594 = vmatpush1.bf16.msra.mxu0 %v5279
  %5595 = vmatprep.subr.bf16.mxu0 %v5276
  %5596 = vmatpush1.bf16.msra.mxu0 %v5275
  %5597 = vmatprep.subr.bf16.mxu0 %v5272
  %5598 = vmatpush1.bf16.msra.mxu0 %v5271
  %5599 = vmatprep.subr.bf16.mxu0 %v5268
  %5600 = vmatpush1.bf16.msra.mxu0 %v5267
  %5601 = vmatprep.subr.bf16.mxu0 %v5264
  %5602 = vmatpush1.bf16.msra.mxu0 %v5263
  %5603 = vmatprep.subr.bf16.mxu0 %v5260
  %5604 = vmatpush1.bf16.msra.mxu0 %v5259
  %5605 = vmatprep.subr.bf16.mxu0 %v5256
  %5606 = vmatpush1.bf16.msra.mxu0 %v5255
  %5607 = vmatprep.subr.bf16.mxu0 %v5316
  %5608 = vmatpush2.bf16.msra.mxu0 %v5315
  %5609 = vmatprep.subr.bf16.mxu0 %v5312
  %5610 = vmatpush2.bf16.msra.mxu0 %v5311
  %5611 = vmatprep.subr.bf16.mxu0 %v5308
  %5612 = vmatpush2.bf16.msra.mxu0 %v5307
  %5613 = vmatprep.subr.bf16.mxu0 %v5304
  %5614 = vmatpush2.bf16.msra.mxu0 %v5303
  %5615 = vmatprep.subr.bf16.mxu0 %v5300
  %5616 = vmatpush2.bf16.msra.mxu0 %v5299
  %5617 = vmatprep.subr.bf16.mxu0 %v5296
  %5618 = vmatpush2.bf16.msra.mxu0 %v5295
  %5619 = vmatprep.subr.bf16.mxu0 %v5292
  %5620 = vmatpush2.bf16.msra.mxu0 %v5291
  %5621 = vmatprep.subr.bf16.mxu0 %v5288
  %5622 = vmatpush2.bf16.msra.mxu0 %v5287
  %5623 = vmatprep.mubr.bf16.mxu0 %v4716
  %5624 = vmatmul.mubr.bf16.gmra.mxu0 %v4715
  %v5625 = vpop.f32.mrf.mxu0
  %v5626 = vadd.f32 %v4860, %v5625
  %v5627 = vpop.f32.mrf.mxu0
  %v5628 = vadd.f32 %v4864, %v5627
  %v5629 = vpop.f32.mrf.mxu0
  %v5630 = vpop.f32.mrf.mxu0
  %5631 = vdwg.mxu0
  %5632 = vmatprep.subr.bf16.mxu0 %v5348
  %5633 = vmatpush1.bf16.msra.mxu0 %v5347
  %5634 = vmatprep.subr.bf16.mxu0 %v5344
  %5635 = vmatpush1.bf16.msra.mxu0 %v5343
  %5636 = vmatprep.subr.bf16.mxu0 %v5340
  %5637 = vmatpush1.bf16.msra.mxu0 %v5339
  %5638 = vmatprep.subr.bf16.mxu0 %v5336
  %5639 = vmatpush1.bf16.msra.mxu0 %v5335
  %5640 = vmatprep.subr.bf16.mxu0 %v5332
  %5641 = vmatpush1.bf16.msra.mxu0 %v5331
  %5642 = vmatprep.subr.bf16.mxu0 %v5328
  %5643 = vmatpush1.bf16.msra.mxu0 %v5327
  %5644 = vmatprep.subr.bf16.mxu0 %v5324
  %5645 = vmatpush1.bf16.msra.mxu0 %v5323
  %5646 = vmatprep.subr.bf16.mxu0 %v5320
  %5647 = vmatpush1.bf16.msra.mxu0 %v5319
  %5648 = vmatprep.subr.bf16.mxu0 %v5380
  %5649 = vmatpush2.bf16.msra.mxu0 %v5379
  %5650 = vmatprep.subr.bf16.mxu0 %v5376
  %5651 = vmatpush2.bf16.msra.mxu0 %v5375
  %5652 = vmatprep.subr.bf16.mxu0 %v5372
  %5653 = vmatpush2.bf16.msra.mxu0 %v5371
  %5654 = vmatprep.subr.bf16.mxu0 %v5368
  %5655 = vmatpush2.bf16.msra.mxu0 %v5367
  %5656 = vmatprep.subr.bf16.mxu0 %v5364
  %5657 = vmatpush2.bf16.msra.mxu0 %v5363
  %5658 = vmatprep.subr.bf16.mxu0 %v5360
  %5659 = vmatpush2.bf16.msra.mxu0 %v5359
  %5660 = vmatprep.subr.bf16.mxu0 %v5356
  %5661 = vmatpush2.bf16.msra.mxu0 %v5355
  %5662 = vmatprep.subr.bf16.mxu0 %v5352
  %5663 = vmatpush2.bf16.msra.mxu0 %v5351
  %5664 = vmatprep.mubr.bf16.mxu0 %v4718
  %5665 = vmatmul.mubr.bf16.gmra.mxu0 %v4717
  %v5666 = vpop.f32.mrf.mxu0
  %v5667 = vadd.f32 %v5626, %v5666
  %v5668 = vpop.f32.mrf.mxu0
  %v5669 = vadd.f32 %v5628, %v5668
  %v5670 = vpop.f32.mrf.mxu0
  %v5671 = vpop.f32.mrf.mxu0
  %5672 = vdwg.mxu0
  %5673 = vst [vmem:[%s11] sm:$0xff] %v5585
  %5674 = vst [vmem:[%s11 + $0x8] sm:$0xff] %v5587
  %5675 = vst [vmem:[%s11 + $0x10] sm:$0xff] %v5667
  %5676 = vst [vmem:[%s11 + $0x18] sm:$0xff] %v5669
  %s5677 = scalar_lea.vmem %s1, 96
  %v5678 = vld [vmem:[%s5677] sm:$0xf]
  %v5679 = vld [vmem:[%s5677 + $0x4] sm:$0xf]
  %v5680 = vld [vmem:[%s5677 + $0x8] sm:$0xf]
  %v5681 = vld [vmem:[%s5677 + $0xc] sm:$0xf]
  %v5682 = vld [vmem:[%s5677 + $0x10] sm:$0xf]
  %v5683 = vld [vmem:[%s5677 + $0x14] sm:$0xf]
  %v5684 = vld [vmem:[%s5677 + $0x18] sm:$0xf]
  %v5685 = vld [vmem:[%s5677 + $0x1c] sm:$0xf]
  %v5686 = vld [vmem:[%s5677 + $0x20] sm:$0xf]
  %v5687 = vld [vmem:[%s5677 + $0x24] sm:$0xf]
  %v5688 = vld [vmem:[%s5677 + $0x28] sm:$0xf]
  %v5689 = vld [vmem:[%s5677 + $0x2c] sm:$0xf]
  %v5690 = vld [vmem:[%s5677 + $0x30] sm:$0xf]
  %v5691 = vld [vmem:[%s5677 + $0x34] sm:$0xf]
  %v5692 = vld [vmem:[%s5677 + $0x38] sm:$0xf]
  %v5693 = vld [vmem:[%s5677 + $0x3c] sm:$0xf]
  %v5694 = vld [vmem:[%s5677 + $0x40] sm:$0xf]
  %v5695 = vld [vmem:[%s5677 + $0x44] sm:$0xf]
  %v5696 = vld [vmem:[%s5677 + $0x48] sm:$0xf]
  %v5697 = vld [vmem:[%s5677 + $0x4c] sm:$0xf]
  %v5698 = vld [vmem:[%s5677 + $0x50] sm:$0xf]
  %v5699 = vld [vmem:[%s5677 + $0x54] sm:$0xf]
  %v5700 = vld [vmem:[%s5677 + $0x58] sm:$0xf]
  %v5701 = vld [vmem:[%s5677 + $0x5c] sm:$0xf]
  %s5702 = scalar_lea.vmem %s2, 1
  %v5703 = vld [vmem:[%s5702] sm:$0x1]
  %v5705 = vlaneseq
  %v5706 = vshrl.u32 %v5705, 7
  %v5707 = vsub.s32 0, %v5706
  %v5708 = vrot.slane %v5703, %v5707
  %v5734 = vunpack.c.l.b16 %v5678
  %v5735 = vunpack.c.l.b16 %v5679
  %v5736 = vunpack.c.l.b16 %v5680
  %v5737 = vunpack.c.l.b16 %v5681
  %v5738 = vunpack.c.l.b16 %v5682
  %v5739 = vunpack.c.l.b16 %v5683
  %v5740 = vunpack.c.l.b16 %v5684
  %v5741 = vunpack.c.l.b16 %v5685
  %v5742 = vunpack.c.l.b16 %v5686
  %v5743 = vunpack.c.l.b16 %v5687
  %v5744 = vunpack.c.l.b16 %v5688
  %v5745 = vunpack.c.l.b16 %v5689
  %v5746 = vunpack.c.l.b16 %v5690
  %v5747 = vunpack.c.l.b16 %v5691
  %v5748 = vunpack.c.l.b16 %v5692
  %v5749 = vunpack.c.l.b16 %v5693
  %v5750 = vunpack.c.l.b16 %v5694
  %v5751 = vunpack.c.l.b16 %v5695
  %v5752 = vunpack.c.l.b16 %v5696
  %v5753 = vunpack.c.l.b16 %v5697
  %v5754 = vunpack.c.l.b16 %v5698
  %v5755 = vunpack.c.l.b16 %v5699
  %v5756 = vunpack.c.l.b16 %v5700
  %v5757 = vunpack.c.l.b16 %v5701
  %v5758 = vpack.c.b16 %v5735, %v5734
  %v5759 = vpack.c.b16 %v5737, %v5736
  %v5760 = vpack.c.b16 %v5739, %v5738
  %v5761 = vpack.c.b16 %v5741, %v5740
  %v5762 = vpack.c.b16 %v5743, %v5742
  %v5763 = vpack.c.b16 %v5745, %v5744
  %v5764 = vpack.c.b16 %v5747, %v5746
  %v5765 = vpack.c.b16 %v5749, %v5748
  %v5766 = vpack.c.b16 %v5751, %v5750
  %v5767 = vpack.c.b16 %v5753, %v5752
  %v5768 = vpack.c.b16 %v5755, %v5754
  %v5769 = vpack.c.b16 %v5757, %v5756
  %5782 = vmatprep.subr.bf16.mxu0 0
  %5783 = vmatpush1.bf16.msra.mxu0 %v5765
  %5784 = vmatprep.subr.bf16.mxu0 0
  %5785 = vmatpush1.bf16.msra.mxu0 %v5764
  %5786 = vmatprep.subr.bf16.mxu0 0
  %5787 = vmatpush1.bf16.msra.mxu0 %v5763
  %5788 = vmatprep.subr.bf16.mxu0 0
  %5789 = vmatpush1.bf16.msra.mxu0 %v5762
  %5790 = vmatprep.subr.bf16.mxu0 0
  %5791 = vmatpush1.bf16.msra.mxu0 %v5761
  %5792 = vmatprep.subr.bf16.mxu0 0
  %5793 = vmatpush1.bf16.msra.mxu0 %v5760
  %5794 = vmatprep.subr.bf16.mxu0 0
  %5795 = vmatpush1.bf16.msra.mxu0 %v5759
  %5796 = vmatprep.subr.bf16.mxu0 0
  %5797 = vmatpush1.bf16.msra.mxu0 %v5758
  %5798 = vmatprep.subr.bf16.mxu0 0
  %5799 = vmatpush2.bf16.msra.mxu0 0
  %5800 = vmatprep.subr.bf16.mxu0 0
  %5801 = vmatpush2.bf16.msra.mxu0 0
  %5802 = vmatprep.subr.bf16.mxu0 0
  %5803 = vmatpush2.bf16.msra.mxu0 0
  %5804 = vmatprep.subr.bf16.mxu0 0
  %5805 = vmatpush2.bf16.msra.mxu0 0
  %5806 = vmatprep.subr.bf16.mxu0 0
  %5807 = vmatpush2.bf16.msra.mxu0 %v5769
  %5808 = vmatprep.subr.bf16.mxu0 0
  %5809 = vmatpush2.bf16.msra.mxu0 %v5768
  %5810 = vmatprep.subr.bf16.mxu0 0
  %5811 = vmatpush2.bf16.msra.mxu0 %v5767
  %5812 = vmatprep.subr.bf16.mxu0 0
  %5813 = vmatpush2.bf16.msra.mxu0 %v5766
  %5814 = vmatprep.mubr.bf16.mxu0 %v936
  %5815 = vmatmul.mubr.bf16.gmra.mxu0 %v646
  %v5816 = vpop.f32.mrf.mxu0
  %v5817 = vadd.f32 %v5708, %v5816
  %v5818 = vpop.f32.mrf.mxu0
  %v5819 = vpop.f32.mrf.mxu0
  %v5820 = vadd.f32 %v5708, %v5819
  %v5821 = vpop.f32.mrf.mxu0
  %5822 = vmatprep.mubr.bf16.mxu0 %v939
  %5823 = vmatmul.mubr.bf16.gmra.mxu0 %v648
  %v5824 = vpop.f32.mrf.mxu0
  %v5825 = vadd.f32 %v5708, %v5824
  %v5826 = vpop.f32.mrf.mxu0
  %v5827 = vpop.f32.mrf.mxu0
  %v5828 = vadd.f32 %v5708, %v5827
  %v5829 = vpop.f32.mrf.mxu0
  %5830 = vmatprep.mubr.bf16.mxu0 %v942
  %5831 = vmatmul.mubr.bf16.gmra.mxu0 %v650
  %v5832 = vpop.f32.mrf.mxu0
  %v5833 = vadd.f32 %v5708, %v5832
  %v5834 = vpop.f32.mrf.mxu0
  %v5835 = vpop.f32.mrf.mxu0
  %v5836 = vadd.f32 %v5708, %v5835
  %v5837 = vpop.f32.mrf.mxu0
  %5838 = vmatprep.mubr.bf16.mxu0 %v945
  %5839 = vmatmul.mubr.bf16.gmra.mxu0 %v652
  %v5840 = vpop.f32.mrf.mxu0
  %v5841 = vadd.f32 %v5708, %v5840
  %v5842 = vpop.f32.mrf.mxu0
  %v5843 = vpop.f32.mrf.mxu0
  %v5844 = vadd.f32 %v5708, %v5843
  %v5845 = vpop.f32.mrf.mxu0
  %5846 = vmatprep.mubr.bf16.mxu0 %v948
  %5847 = vmatmul.mubr.bf16.gmra.mxu0 %v654
  %v5848 = vpop.f32.mrf.mxu0
  %v5849 = vadd.f32 %v5708, %v5848
  %v5850 = vpop.f32.mrf.mxu0
  %v5851 = vpop.f32.mrf.mxu0
  %v5852 = vadd.f32 %v5708, %v5851
  %v5853 = vpop.f32.mrf.mxu0
  %5854 = vmatprep.mubr.bf16.mxu0 %v951
  %5855 = vmatmul.mubr.bf16.gmra.mxu0 %v656
  %v5856 = vpop.f32.mrf.mxu0
  %v5857 = vadd.f32 %v5708, %v5856
  %v5858 = vpop.f32.mrf.mxu0
  %v5859 = vpop.f32.mrf.mxu0
  %v5860 = vadd.f32 %v5708, %v5859
  %v5861 = vpop.f32.mrf.mxu0
  %5862 = vmatprep.mubr.bf16.mxu0 %v954
  %5863 = vmatmul.mubr.bf16.gmra.mxu0 %v658
  %v5864 = vpop.f32.mrf.mxu0
  %v5865 = vadd.f32 %v5708, %v5864
  %v5866 = vpop.f32.mrf.mxu0
  %v5867 = vpop.f32.mrf.mxu0
  %v5868 = vadd.f32 %v5708, %v5867
  %v5869 = vpop.f32.mrf.mxu0
  %5870 = vmatprep.mubr.bf16.mxu0 %v957
  %5871 = vmatmul.mubr.bf16.gmra.mxu0 %v660
  %v5872 = vpop.f32.mrf.mxu0
  %v5873 = vadd.f32 %v5708, %v5872
  %v5874 = vpop.f32.mrf.mxu0
  %v5875 = vpop.f32.mrf.mxu0
  %v5876 = vadd.f32 %v5708, %v5875
  %v5877 = vpop.f32.mrf.mxu0
  %5878 = vmatprep.mubr.bf16.mxu0 %v960
  %5879 = vmatmul.mubr.bf16.gmra.mxu0 %v662
  %v5880 = vpop.f32.mrf.mxu0
  %v5881 = vadd.f32 %v5708, %v5880
  %v5882 = vpop.f32.mrf.mxu0
  %v5883 = vpop.f32.mrf.mxu0
  %v5884 = vadd.f32 %v5708, %v5883
  %v5885 = vpop.f32.mrf.mxu0
  %5886 = vmatprep.mubr.bf16.mxu0 %v963
  %5887 = vmatmul.mubr.bf16.gmra.mxu0 %v664
  %v5888 = vpop.f32.mrf.mxu0
  %v5889 = vadd.f32 %v5708, %v5888
  %v5890 = vpop.f32.mrf.mxu0
  %v5891 = vpop.f32.mrf.mxu0
  %v5892 = vadd.f32 %v5708, %v5891
  %v5893 = vpop.f32.mrf.mxu0
  %5894 = vmatprep.mubr.bf16.mxu0 %v966
  %5895 = vmatmul.mubr.bf16.gmra.mxu0 %v666
  %v5896 = vpop.f32.mrf.mxu0
  %v5897 = vadd.f32 %v5708, %v5896
  %v5898 = vpop.f32.mrf.mxu0
  %v5899 = vpop.f32.mrf.mxu0
  %v5900 = vadd.f32 %v5708, %v5899
  %v5901 = vpop.f32.mrf.mxu0
  %5902 = vmatprep.mubr.bf16.mxu0 %v969
  %5903 = vmatmul.mubr.bf16.gmra.mxu0 %v668
  %v5904 = vpop.f32.mrf.mxu0
  %v5905 = vadd.f32 %v5708, %v5904
  %v5906 = vpop.f32.mrf.mxu0
  %v5907 = vpop.f32.mrf.mxu0
  %v5908 = vadd.f32 %v5708, %v5907
  %v5909 = vpop.f32.mrf.mxu0
  %5910 = vmatprep.mubr.bf16.mxu0 %v972
  %5911 = vmatmul.mubr.bf16.gmra.mxu0 %v670
  %v5912 = vpop.f32.mrf.mxu0
  %v5913 = vadd.f32 %v5708, %v5912
  %v5914 = vpop.f32.mrf.mxu0
  %v5915 = vpop.f32.mrf.mxu0
  %v5916 = vadd.f32 %v5708, %v5915
  %v5917 = vpop.f32.mrf.mxu0
  %5918 = vmatprep.mubr.bf16.mxu0 %v975
  %5919 = vmatmul.mubr.bf16.gmra.mxu0 %v672
  %v5920 = vpop.f32.mrf.mxu0
  %v5921 = vadd.f32 %v5708, %v5920
  %v5922 = vpop.f32.mrf.mxu0
  %v5923 = vpop.f32.mrf.mxu0
  %v5924 = vadd.f32 %v5708, %v5923
  %v5925 = vpop.f32.mrf.mxu0
  %5926 = vmatprep.mubr.bf16.mxu0 %v978
  %5927 = vmatmul.mubr.bf16.gmra.mxu0 %v674
  %v5928 = vpop.f32.mrf.mxu0
  %v5929 = vadd.f32 %v5708, %v5928
  %v5930 = vpop.f32.mrf.mxu0
  %v5931 = vpop.f32.mrf.mxu0
  %v5932 = vadd.f32 %v5708, %v5931
  %v5933 = vpop.f32.mrf.mxu0
  %5934 = vmatprep.mubr.bf16.mxu0 %v981
  %5935 = vmatmul.mubr.bf16.gmra.mxu0 %v676
  %v5936 = vpop.f32.mrf.mxu0
  %v5937 = vadd.f32 %v5708, %v5936
  %v5938 = vpop.f32.mrf.mxu0
  %v5939 = vpop.f32.mrf.mxu0
  %v5940 = vadd.f32 %v5708, %v5939
  %v5941 = vpop.f32.mrf.mxu0
  %5942 = vmatprep.mubr.bf16.mxu0 %v984
  %5943 = vmatmul.mubr.bf16.gmra.mxu0 %v678
  %v5944 = vpop.f32.mrf.mxu0
  %v5945 = vadd.f32 %v5708, %v5944
  %v5946 = vpop.f32.mrf.mxu0
  %v5947 = vpop.f32.mrf.mxu0
  %v5948 = vadd.f32 %v5708, %v5947
  %v5949 = vpop.f32.mrf.mxu0
  %5950 = vmatprep.mubr.bf16.mxu0 %v987
  %5951 = vmatmul.mubr.bf16.gmra.mxu0 %v680
  %v5952 = vpop.f32.mrf.mxu0
  %v5953 = vadd.f32 %v5708, %v5952
  %v5954 = vpop.f32.mrf.mxu0
  %v5955 = vpop.f32.mrf.mxu0
  %v5956 = vadd.f32 %v5708, %v5955
  %v5957 = vpop.f32.mrf.mxu0
  %5958 = vmatprep.mubr.bf16.mxu0 %v990
  %5959 = vmatmul.mubr.bf16.gmra.mxu0 %v682
  %v5960 = vpop.f32.mrf.mxu0
  %v5961 = vadd.f32 %v5708, %v5960
  %v5962 = vpop.f32.mrf.mxu0
  %v5963 = vpop.f32.mrf.mxu0
  %v5964 = vadd.f32 %v5708, %v5963
  %v5965 = vpop.f32.mrf.mxu0
  %5966 = vmatprep.mubr.bf16.mxu0 %v993
  %5967 = vmatmul.mubr.bf16.gmra.mxu0 %v684
  %v5968 = vpop.f32.mrf.mxu0
  %v5969 = vadd.f32 %v5708, %v5968
  %v5970 = vpop.f32.mrf.mxu0
  %v5971 = vpop.f32.mrf.mxu0
  %v5972 = vadd.f32 %v5708, %v5971
  %v5973 = vpop.f32.mrf.mxu0
  %5974 = vmatprep.mubr.bf16.mxu0 %v996
  %5975 = vmatmul.mubr.bf16.gmra.mxu0 %v686
  %v5976 = vpop.f32.mrf.mxu0
  %v5977 = vadd.f32 %v5708, %v5976
  %v5978 = vpop.f32.mrf.mxu0
  %v5979 = vpop.f32.mrf.mxu0
  %v5980 = vadd.f32 %v5708, %v5979
  %v5981 = vpop.f32.mrf.mxu0
  %5982 = vmatprep.mubr.bf16.mxu0 %v999
  %5983 = vmatmul.mubr.bf16.gmra.mxu0 %v688
  %v5984 = vpop.f32.mrf.mxu0
  %v5985 = vadd.f32 %v5708, %v5984
  %v5986 = vpop.f32.mrf.mxu0
  %v5987 = vpop.f32.mrf.mxu0
  %v5988 = vadd.f32 %v5708, %v5987
  %v5989 = vpop.f32.mrf.mxu0
  %5990 = vmatprep.mubr.bf16.mxu0 %v1002
  %5991 = vmatmul.mubr.bf16.gmra.mxu0 %v690
  %v5992 = vpop.f32.mrf.mxu0
  %v5993 = vadd.f32 %v5708, %v5992
  %v5994 = vpop.f32.mrf.mxu0
  %v5995 = vpop.f32.mrf.mxu0
  %v5996 = vadd.f32 %v5708, %v5995
  %v5997 = vpop.f32.mrf.mxu0
  %5998 = vmatprep.mubr.bf16.mxu0 %v1005
  %5999 = vmatmul.mubr.bf16.gmra.mxu0 %v692
  %v6000 = vpop.f32.mrf.mxu0
  %v6001 = vadd.f32 %v5708, %v6000
  %v6002 = vpop.f32.mrf.mxu0
  %v6003 = vpop.f32.mrf.mxu0
  %v6004 = vadd.f32 %v5708, %v6003
  %v6005 = vpop.f32.mrf.mxu0
  %6006 = vmatprep.mubr.bf16.mxu0 %v1008
  %6007 = vmatmul.mubr.bf16.gmra.mxu0 %v694
  %v6008 = vpop.f32.mrf.mxu0
  %v6009 = vadd.f32 %v5708, %v6008
  %v6010 = vpop.f32.mrf.mxu0
  %v6011 = vpop.f32.mrf.mxu0
  %v6012 = vadd.f32 %v5708, %v6011
  %v6013 = vpop.f32.mrf.mxu0
  %6014 = vmatprep.mubr.bf16.mxu0 %v1011
  %6015 = vmatmul.mubr.bf16.gmra.mxu0 %v696
  %v6016 = vpop.f32.mrf.mxu0
  %v6017 = vadd.f32 %v5708, %v6016
  %v6018 = vpop.f32.mrf.mxu0
  %v6019 = vpop.f32.mrf.mxu0
  %v6020 = vadd.f32 %v5708, %v6019
  %v6021 = vpop.f32.mrf.mxu0
  %6022 = vmatprep.mubr.bf16.mxu0 %v1014
  %6023 = vmatmul.mubr.bf16.gmra.mxu0 %v698
  %v6024 = vpop.f32.mrf.mxu0
  %v6025 = vadd.f32 %v5708, %v6024
  %v6026 = vpop.f32.mrf.mxu0
  %v6027 = vpop.f32.mrf.mxu0
  %v6028 = vadd.f32 %v5708, %v6027
  %v6029 = vpop.f32.mrf.mxu0
  %6030 = vmatprep.mubr.bf16.mxu0 %v1017
  %6031 = vmatmul.mubr.bf16.gmra.mxu0 %v700
  %v6032 = vpop.f32.mrf.mxu0
  %v6033 = vadd.f32 %v5708, %v6032
  %v6034 = vpop.f32.mrf.mxu0
  %v6035 = vpop.f32.mrf.mxu0
  %v6036 = vadd.f32 %v5708, %v6035
  %v6037 = vpop.f32.mrf.mxu0
  %6038 = vmatprep.mubr.bf16.mxu0 %v1020
  %6039 = vmatmul.mubr.bf16.gmra.mxu0 %v702
  %v6040 = vpop.f32.mrf.mxu0
  %v6041 = vadd.f32 %v5708, %v6040
  %v6042 = vpop.f32.mrf.mxu0
  %v6043 = vpop.f32.mrf.mxu0
  %v6044 = vadd.f32 %v5708, %v6043
  %v6045 = vpop.f32.mrf.mxu0
  %6046 = vmatprep.mubr.bf16.mxu0 %v1023
  %6047 = vmatmul.mubr.bf16.gmra.mxu0 %v704
  %v6048 = vpop.f32.mrf.mxu0
  %v6049 = vadd.f32 %v5708, %v6048
  %v6050 = vpop.f32.mrf.mxu0
  %v6051 = vpop.f32.mrf.mxu0
  %v6052 = vadd.f32 %v5708, %v6051
  %v6053 = vpop.f32.mrf.mxu0
  %6054 = vmatprep.mubr.bf16.mxu0 %v1026
  %6055 = vmatmul.mubr.bf16.gmra.mxu0 %v706
  %v6056 = vpop.f32.mrf.mxu0
  %v6057 = vadd.f32 %v5708, %v6056
  %v6058 = vpop.f32.mrf.mxu0
  %v6059 = vpop.f32.mrf.mxu0
  %v6060 = vadd.f32 %v5708, %v6059
  %v6061 = vpop.f32.mrf.mxu0
  %6062 = vmatprep.mubr.bf16.mxu0 %v1029
  %6063 = vmatmul.mubr.bf16.gmra.mxu0 %v708
  %v6064 = vpop.f32.mrf.mxu0
  %v6065 = vadd.f32 %v5708, %v6064
  %v6066 = vpop.f32.mrf.mxu0
  %v6067 = vpop.f32.mrf.mxu0
  %v6068 = vadd.f32 %v5708, %v6067
  %v6069 = vpop.f32.mrf.mxu0
  %6070 = vmatprep.mubr.bf16.mxu0 %v1032
  %6071 = vmatmul.mubr.bf16.gmra.mxu0 %v710
  %v6072 = vpop.f32.mrf.mxu0
  %v6073 = vadd.f32 %v5708, %v6072
  %v6074 = vpop.f32.mrf.mxu0
  %v6075 = vpop.f32.mrf.mxu0
  %v6076 = vadd.f32 %v5708, %v6075
  %v6077 = vpop.f32.mrf.mxu0
  %6078 = vmatprep.mubr.bf16.mxu0 %v1035
  %6079 = vmatmul.mubr.bf16.gmra.mxu0 %v712
  %v6080 = vpop.f32.mrf.mxu0
  %v6081 = vadd.f32 %v5708, %v6080
  %v6082 = vpop.f32.mrf.mxu0
  %v6083 = vpop.f32.mrf.mxu0
  %v6084 = vadd.f32 %v5708, %v6083
  %v6085 = vpop.f32.mrf.mxu0
  %6086 = vmatprep.mubr.bf16.mxu0 %v1038
  %6087 = vmatmul.mubr.bf16.gmra.mxu0 %v714
  %v6088 = vpop.f32.mrf.mxu0
  %v6089 = vadd.f32 %v5708, %v6088
  %v6090 = vpop.f32.mrf.mxu0
  %v6091 = vpop.f32.mrf.mxu0
  %v6092 = vadd.f32 %v5708, %v6091
  %v6093 = vpop.f32.mrf.mxu0
  %6094 = vmatprep.mubr.bf16.mxu0 %v1041
  %6095 = vmatmul.mubr.bf16.gmra.mxu0 %v716
  %v6096 = vpop.f32.mrf.mxu0
  %v6097 = vadd.f32 %v5708, %v6096
  %v6098 = vpop.f32.mrf.mxu0
  %v6099 = vpop.f32.mrf.mxu0
  %v6100 = vadd.f32 %v5708, %v6099
  %v6101 = vpop.f32.mrf.mxu0
  %6102 = vmatprep.mubr.bf16.mxu0 %v1044
  %6103 = vmatmul.mubr.bf16.gmra.mxu0 %v718
  %v6104 = vpop.f32.mrf.mxu0
  %v6105 = vadd.f32 %v5708, %v6104
  %v6106 = vpop.f32.mrf.mxu0
  %v6107 = vpop.f32.mrf.mxu0
  %v6108 = vadd.f32 %v5708, %v6107
  %v6109 = vpop.f32.mrf.mxu0
  %6110 = vmatprep.mubr.bf16.mxu0 %v1047
  %6111 = vmatmul.mubr.bf16.gmra.mxu0 %v720
  %v6112 = vpop.f32.mrf.mxu0
  %v6113 = vadd.f32 %v5708, %v6112
  %v6114 = vpop.f32.mrf.mxu0
  %v6115 = vpop.f32.mrf.mxu0
  %v6116 = vadd.f32 %v5708, %v6115
  %v6117 = vpop.f32.mrf.mxu0
  %6118 = vmatprep.mubr.bf16.mxu0 %v1050
  %6119 = vmatmul.mubr.bf16.gmra.mxu0 %v722
  %v6120 = vpop.f32.mrf.mxu0
  %v6121 = vadd.f32 %v5708, %v6120
  %v6122 = vpop.f32.mrf.mxu0
  %v6123 = vpop.f32.mrf.mxu0
  %v6124 = vadd.f32 %v5708, %v6123
  %v6125 = vpop.f32.mrf.mxu0
  %6126 = vmatprep.mubr.bf16.mxu0 %v1053
  %6127 = vmatmul.mubr.bf16.gmra.mxu0 %v724
  %v6128 = vpop.f32.mrf.mxu0
  %v6129 = vadd.f32 %v5708, %v6128
  %v6130 = vpop.f32.mrf.mxu0
  %v6131 = vpop.f32.mrf.mxu0
  %v6132 = vadd.f32 %v5708, %v6131
  %v6133 = vpop.f32.mrf.mxu0
  %6134 = vmatprep.mubr.bf16.mxu0 %v1056
  %6135 = vmatmul.mubr.bf16.gmra.mxu0 %v726
  %v6136 = vpop.f32.mrf.mxu0
  %v6137 = vadd.f32 %v5708, %v6136
  %v6138 = vpop.f32.mrf.mxu0
  %v6139 = vpop.f32.mrf.mxu0
  %v6140 = vadd.f32 %v5708, %v6139
  %v6141 = vpop.f32.mrf.mxu0
  %6142 = vmatprep.mubr.bf16.mxu0 %v1059
  %6143 = vmatmul.mubr.bf16.gmra.mxu0 %v728
  %v6144 = vpop.f32.mrf.mxu0
  %v6145 = vadd.f32 %v5708, %v6144
  %v6146 = vpop.f32.mrf.mxu0
  %v6147 = vpop.f32.mrf.mxu0
  %v6148 = vadd.f32 %v5708, %v6147
  %v6149 = vpop.f32.mrf.mxu0
  %6150 = vmatprep.mubr.bf16.mxu0 %v1062
  %6151 = vmatmul.mubr.bf16.gmra.mxu0 %v730
  %v6152 = vpop.f32.mrf.mxu0
  %v6153 = vadd.f32 %v5708, %v6152
  %v6154 = vpop.f32.mrf.mxu0
  %v6155 = vpop.f32.mrf.mxu0
  %v6156 = vadd.f32 %v5708, %v6155
  %v6157 = vpop.f32.mrf.mxu0
  %6158 = vmatprep.mubr.bf16.mxu0 %v1065
  %6159 = vmatmul.mubr.bf16.gmra.mxu0 %v732
  %v6160 = vpop.f32.mrf.mxu0
  %v6161 = vadd.f32 %v5708, %v6160
  %v6162 = vpop.f32.mrf.mxu0
  %v6163 = vpop.f32.mrf.mxu0
  %v6164 = vadd.f32 %v5708, %v6163
  %v6165 = vpop.f32.mrf.mxu0
  %6166 = vmatprep.mubr.bf16.mxu0 %v1068
  %6167 = vmatmul.mubr.bf16.gmra.mxu0 %v734
  %v6168 = vpop.f32.mrf.mxu0
  %v6169 = vadd.f32 %v5708, %v6168
  %v6170 = vpop.f32.mrf.mxu0
  %v6171 = vpop.f32.mrf.mxu0
  %v6172 = vadd.f32 %v5708, %v6171
  %v6173 = vpop.f32.mrf.mxu0
  %6174 = vmatprep.mubr.bf16.mxu0 %v1071
  %6175 = vmatmul.mubr.bf16.gmra.mxu0 %v736
  %v6176 = vpop.f32.mrf.mxu0
  %v6177 = vadd.f32 %v5708, %v6176
  %v6178 = vpop.f32.mrf.mxu0
  %v6179 = vpop.f32.mrf.mxu0
  %v6180 = vadd.f32 %v5708, %v6179
  %v6181 = vpop.f32.mrf.mxu0
  %6182 = vmatprep.mubr.bf16.mxu0 %v1074
  %6183 = vmatmul.mubr.bf16.gmra.mxu0 %v738
  %v6184 = vpop.f32.mrf.mxu0
  %v6185 = vadd.f32 %v5708, %v6184
  %v6186 = vpop.f32.mrf.mxu0
  %v6187 = vpop.f32.mrf.mxu0
  %v6188 = vadd.f32 %v5708, %v6187
  %v6189 = vpop.f32.mrf.mxu0
  %6190 = vmatprep.mubr.bf16.mxu0 %v1077
  %6191 = vmatmul.mubr.bf16.gmra.mxu0 %v740
  %v6192 = vpop.f32.mrf.mxu0
  %v6193 = vadd.f32 %v5708, %v6192
  %v6194 = vpop.f32.mrf.mxu0
  %v6195 = vpop.f32.mrf.mxu0
  %v6196 = vadd.f32 %v5708, %v6195
  %v6197 = vpop.f32.mrf.mxu0
  %6198 = vmatprep.mubr.bf16.mxu0 %v1080
  %6199 = vmatmul.mubr.bf16.gmra.mxu0 %v742
  %v6200 = vpop.f32.mrf.mxu0
  %v6201 = vadd.f32 %v5708, %v6200
  %v6202 = vpop.f32.mrf.mxu0
  %v6203 = vpop.f32.mrf.mxu0
  %v6204 = vadd.f32 %v5708, %v6203
  %v6205 = vpop.f32.mrf.mxu0
  %6206 = vmatprep.mubr.bf16.mxu0 %v1083
  %6207 = vmatmul.mubr.bf16.gmra.mxu0 %v744
  %v6208 = vpop.f32.mrf.mxu0
  %v6209 = vadd.f32 %v5708, %v6208
  %v6210 = vpop.f32.mrf.mxu0
  %v6211 = vpop.f32.mrf.mxu0
  %v6212 = vadd.f32 %v5708, %v6211
  %v6213 = vpop.f32.mrf.mxu0
  %6214 = vmatprep.mubr.bf16.mxu0 %v1086
  %6215 = vmatmul.mubr.bf16.gmra.mxu0 %v746
  %v6216 = vpop.f32.mrf.mxu0
  %v6217 = vadd.f32 %v5708, %v6216
  %v6218 = vpop.f32.mrf.mxu0
  %v6219 = vpop.f32.mrf.mxu0
  %v6220 = vadd.f32 %v5708, %v6219
  %v6221 = vpop.f32.mrf.mxu0
  %6222 = vmatprep.mubr.bf16.mxu0 %v1089
  %6223 = vmatmul.mubr.bf16.gmra.mxu0 %v748
  %v6224 = vpop.f32.mrf.mxu0
  %v6225 = vadd.f32 %v5708, %v6224
  %v6226 = vpop.f32.mrf.mxu0
  %v6227 = vpop.f32.mrf.mxu0
  %v6228 = vadd.f32 %v5708, %v6227
  %v6229 = vpop.f32.mrf.mxu0
  %6230 = vmatprep.mubr.bf16.mxu0 %v1092
  %6231 = vmatmul.mubr.bf16.gmra.mxu0 %v750
  %v6232 = vpop.f32.mrf.mxu0
  %v6233 = vadd.f32 %v5708, %v6232
  %v6234 = vpop.f32.mrf.mxu0
  %v6235 = vpop.f32.mrf.mxu0
  %v6236 = vadd.f32 %v5708, %v6235
  %v6237 = vpop.f32.mrf.mxu0
  %6238 = vmatprep.mubr.bf16.mxu0 %v1095
  %6239 = vmatmul.mubr.bf16.gmra.mxu0 %v752
  %v6240 = vpop.f32.mrf.mxu0
  %v6241 = vadd.f32 %v5708, %v6240
  %v6242 = vpop.f32.mrf.mxu0
  %v6243 = vpop.f32.mrf.mxu0
  %v6244 = vadd.f32 %v5708, %v6243
  %v6245 = vpop.f32.mrf.mxu0
  %6246 = vmatprep.mubr.bf16.mxu0 %v1098
  %6247 = vmatmul.mubr.bf16.gmra.mxu0 %v754
  %v6248 = vpop.f32.mrf.mxu0
  %v6249 = vadd.f32 %v5708, %v6248
  %v6250 = vpop.f32.mrf.mxu0
  %v6251 = vpop.f32.mrf.mxu0
  %v6252 = vadd.f32 %v5708, %v6251
  %v6253 = vpop.f32.mrf.mxu0
  %6254 = vmatprep.mubr.bf16.mxu0 %v1101
  %6255 = vmatmul.mubr.bf16.gmra.mxu0 %v756
  %v6256 = vpop.f32.mrf.mxu0
  %v6257 = vadd.f32 %v5708, %v6256
  %v6258 = vpop.f32.mrf.mxu0
  %v6259 = vpop.f32.mrf.mxu0
  %v6260 = vadd.f32 %v5708, %v6259
  %v6261 = vpop.f32.mrf.mxu0
  %6262 = vmatprep.mubr.bf16.mxu0 %v1104
  %6263 = vmatmul.mubr.bf16.gmra.mxu0 %v758
  %v6264 = vpop.f32.mrf.mxu0
  %v6265 = vadd.f32 %v5708, %v6264
  %v6266 = vpop.f32.mrf.mxu0
  %v6267 = vpop.f32.mrf.mxu0
  %v6268 = vadd.f32 %v5708, %v6267
  %v6269 = vpop.f32.mrf.mxu0
  %6270 = vmatprep.mubr.bf16.mxu0 %v1107
  %6271 = vmatmul.mubr.bf16.gmra.mxu0 %v760
  %v6272 = vpop.f32.mrf.mxu0
  %v6273 = vadd.f32 %v5708, %v6272
  %v6274 = vpop.f32.mrf.mxu0
  %v6275 = vpop.f32.mrf.mxu0
  %v6276 = vadd.f32 %v5708, %v6275
  %v6277 = vpop.f32.mrf.mxu0
  %6278 = vmatprep.mubr.bf16.mxu0 %v1110
  %6279 = vmatmul.mubr.bf16.gmra.mxu0 %v762
  %v6280 = vpop.f32.mrf.mxu0
  %v6281 = vadd.f32 %v5708, %v6280
  %v6282 = vpop.f32.mrf.mxu0
  %v6283 = vpop.f32.mrf.mxu0
  %v6284 = vadd.f32 %v5708, %v6283
  %v6285 = vpop.f32.mrf.mxu0
  %6286 = vmatprep.mubr.bf16.mxu0 %v1113
  %6287 = vmatmul.mubr.bf16.gmra.mxu0 %v764
  %v6288 = vpop.f32.mrf.mxu0
  %v6289 = vadd.f32 %v5708, %v6288
  %v6290 = vpop.f32.mrf.mxu0
  %v6291 = vpop.f32.mrf.mxu0
  %v6292 = vadd.f32 %v5708, %v6291
  %v6293 = vpop.f32.mrf.mxu0
  %6294 = vmatprep.mubr.bf16.mxu0 %v1116
  %6295 = vmatmul.mubr.bf16.gmra.mxu0 %v766
  %v6296 = vpop.f32.mrf.mxu0
  %v6297 = vadd.f32 %v5708, %v6296
  %v6298 = vpop.f32.mrf.mxu0
  %v6299 = vpop.f32.mrf.mxu0
  %v6300 = vadd.f32 %v5708, %v6299
  %v6301 = vpop.f32.mrf.mxu0
  %6302 = vmatprep.mubr.bf16.mxu0 %v1119
  %6303 = vmatmul.mubr.bf16.gmra.mxu0 %v768
  %v6304 = vpop.f32.mrf.mxu0
  %v6305 = vadd.f32 %v5708, %v6304
  %v6306 = vpop.f32.mrf.mxu0
  %v6307 = vpop.f32.mrf.mxu0
  %v6308 = vadd.f32 %v5708, %v6307
  %v6309 = vpop.f32.mrf.mxu0
  %6310 = vmatprep.mubr.bf16.mxu0 %v1122
  %6311 = vmatmul.mubr.bf16.gmra.mxu0 %v770
  %v6312 = vpop.f32.mrf.mxu0
  %v6313 = vadd.f32 %v5708, %v6312
  %v6314 = vpop.f32.mrf.mxu0
  %v6315 = vpop.f32.mrf.mxu0
  %v6316 = vadd.f32 %v5708, %v6315
  %v6317 = vpop.f32.mrf.mxu0
  %6318 = vmatprep.mubr.bf16.mxu0 %v1125
  %6319 = vmatmul.mubr.bf16.gmra.mxu0 %v772
  %v6320 = vpop.f32.mrf.mxu0
  %v6321 = vadd.f32 %v5708, %v6320
  %v6322 = vpop.f32.mrf.mxu0
  %v6323 = vpop.f32.mrf.mxu0
  %v6324 = vadd.f32 %v5708, %v6323
  %v6325 = vpop.f32.mrf.mxu0
  %6326 = vmatprep.mubr.bf16.mxu0 %v1128
  %6327 = vmatmul.mubr.bf16.gmra.mxu0 %v774
  %v6328 = vpop.f32.mrf.mxu0
  %v6329 = vadd.f32 %v5708, %v6328
  %v6330 = vpop.f32.mrf.mxu0
  %v6331 = vpop.f32.mrf.mxu0
  %v6332 = vadd.f32 %v5708, %v6331
  %v6333 = vpop.f32.mrf.mxu0
  %6334 = vmatprep.mubr.bf16.mxu0 %v1131
  %6335 = vmatmul.mubr.bf16.gmra.mxu0 %v776
  %v6336 = vpop.f32.mrf.mxu0
  %v6337 = vadd.f32 %v5708, %v6336
  %v6338 = vpop.f32.mrf.mxu0
  %v6339 = vpop.f32.mrf.mxu0
  %v6340 = vadd.f32 %v5708, %v6339
  %v6341 = vpop.f32.mrf.mxu0
  %6342 = vmatprep.mubr.bf16.mxu0 %v1134
  %6343 = vmatmul.mubr.bf16.gmra.mxu0 %v778
  %v6344 = vpop.f32.mrf.mxu0
  %v6345 = vadd.f32 %v5708, %v6344
  %v6346 = vpop.f32.mrf.mxu0
  %v6347 = vpop.f32.mrf.mxu0
  %v6348 = vadd.f32 %v5708, %v6347
  %v6349 = vpop.f32.mrf.mxu0
  %6350 = vmatprep.mubr.bf16.mxu0 %v1137
  %6351 = vmatmul.mubr.bf16.gmra.mxu0 %v780
  %v6352 = vpop.f32.mrf.mxu0
  %v6353 = vadd.f32 %v5708, %v6352
  %v6354 = vpop.f32.mrf.mxu0
  %v6355 = vpop.f32.mrf.mxu0
  %v6356 = vadd.f32 %v5708, %v6355
  %v6357 = vpop.f32.mrf.mxu0
  %6358 = vmatprep.mubr.bf16.mxu0 %v1140
  %6359 = vmatmul.mubr.bf16.gmra.mxu0 %v782
  %v6360 = vpop.f32.mrf.mxu0
  %v6361 = vadd.f32 %v5708, %v6360
  %v6362 = vpop.f32.mrf.mxu0
  %v6363 = vpop.f32.mrf.mxu0
  %v6364 = vadd.f32 %v5708, %v6363
  %v6365 = vpop.f32.mrf.mxu0
  %6366 = vmatprep.mubr.bf16.mxu0 %v1143
  %6367 = vmatmul.mubr.bf16.gmra.mxu0 %v784
  %v6368 = vpop.f32.mrf.mxu0
  %v6369 = vadd.f32 %v5708, %v6368
  %v6370 = vpop.f32.mrf.mxu0
  %v6371 = vpop.f32.mrf.mxu0
  %v6372 = vadd.f32 %v5708, %v6371
  %v6373 = vpop.f32.mrf.mxu0
  %6374 = vmatprep.mubr.bf16.mxu0 %v1146
  %6375 = vmatmul.mubr.bf16.gmra.mxu0 %v786
  %v6376 = vpop.f32.mrf.mxu0
  %v6377 = vadd.f32 %v5708, %v6376
  %v6378 = vpop.f32.mrf.mxu0
  %v6379 = vpop.f32.mrf.mxu0
  %v6380 = vadd.f32 %v5708, %v6379
  %v6381 = vpop.f32.mrf.mxu0
  %6382 = vmatprep.mubr.bf16.mxu0 %v1149
  %6383 = vmatmul.mubr.bf16.gmra.mxu0 %v788
  %v6384 = vpop.f32.mrf.mxu0
  %v6385 = vadd.f32 %v5708, %v6384
  %v6386 = vpop.f32.mrf.mxu0
  %v6387 = vpop.f32.mrf.mxu0
  %v6388 = vadd.f32 %v5708, %v6387
  %v6389 = vpop.f32.mrf.mxu0
  %6390 = vdwg.mxu0
  %v6391 = vmax.f32 %v5817, 0.0
  %v6392 = vmax.f32 %v5820, 0.0
  %v6393 = vmax.f32 %v5825, 0.0
  %v6394 = vmax.f32 %v5828, 0.0
  %v6395 = vmax.f32 %v5833, 0.0
  %v6396 = vmax.f32 %v5836, 0.0
  %v6397 = vmax.f32 %v5841, 0.0
  %v6398 = vmax.f32 %v5844, 0.0
  %v6399 = vmax.f32 %v5849, 0.0
  %v6400 = vmax.f32 %v5852, 0.0
  %v6401 = vmax.f32 %v5857, 0.0
  %v6402 = vmax.f32 %v5860, 0.0
  %v6403 = vmax.f32 %v5865, 0.0
  %v6404 = vmax.f32 %v5868, 0.0
  %v6405 = vmax.f32 %v5873, 0.0
  %v6406 = vmax.f32 %v5876, 0.0
  %v6407 = vmax.f32 %v5881, 0.0
  %v6408 = vmax.f32 %v5884, 0.0
  %v6409 = vmax.f32 %v5889, 0.0
  %v6410 = vmax.f32 %v5892, 0.0
  %v6411 = vmax.f32 %v5897, 0.0
  %v6412 = vmax.f32 %v5900, 0.0
  %v6413 = vmax.f32 %v5905, 0.0
  %v6414 = vmax.f32 %v5908, 0.0
  %v6415 = vmax.f32 %v5913, 0.0
  %v6416 = vmax.f32 %v5916, 0.0
  %v6417 = vmax.f32 %v5921, 0.0
  %v6418 = vmax.f32 %v5924, 0.0
  %v6419 = vmax.f32 %v5929, 0.0
  %v6420 = vmax.f32 %v5932, 0.0
  %v6421 = vmax.f32 %v5937, 0.0
  %v6422 = vmax.f32 %v5940, 0.0
  %v6423 = vmax.f32 %v5945, 0.0
  %v6424 = vmax.f32 %v5948, 0.0
  %v6425 = vmax.f32 %v5953, 0.0
  %v6426 = vmax.f32 %v5956, 0.0
  %v6427 = vmax.f32 %v5961, 0.0
  %v6428 = vmax.f32 %v5964, 0.0
  %v6429 = vmax.f32 %v5969, 0.0
  %v6430 = vmax.f32 %v5972, 0.0
  %v6431 = vmax.f32 %v5977, 0.0
  %v6432 = vmax.f32 %v5980, 0.0
  %v6433 = vmax.f32 %v5985, 0.0
  %v6434 = vmax.f32 %v5988, 0.0
  %v6435 = vmax.f32 %v5993, 0.0
  %v6436 = vmax.f32 %v5996, 0.0
  %v6437 = vmax.f32 %v6001, 0.0
  %v6438 = vmax.f32 %v6004, 0.0
  %v6439 = vmax.f32 %v6009, 0.0
  %v6440 = vmax.f32 %v6012, 0.0
  %v6441 = vmax.f32 %v6017, 0.0
  %v6442 = vmax.f32 %v6020, 0.0
  %v6443 = vmax.f32 %v6025, 0.0
  %v6444 = vmax.f32 %v6028, 0.0
  %v6445 = vmax.f32 %v6033, 0.0
  %v6446 = vmax.f32 %v6036, 0.0
  %v6447 = vmax.f32 %v6041, 0.0
  %v6448 = vmax.f32 %v6044, 0.0
  %v6449 = vmax.f32 %v6049, 0.0
  %v6450 = vmax.f32 %v6052, 0.0
  %v6451 = vmax.f32 %v6057, 0.0
  %v6452 = vmax.f32 %v6060, 0.0
  %v6453 = vmax.f32 %v6065, 0.0
  %v6454 = vmax.f32 %v6068, 0.0
  %v6455 = vmax.f32 %v6073, 0.0
  %v6456 = vmax.f32 %v6076, 0.0
  %v6457 = vmax.f32 %v6081, 0.0
  %v6458 = vmax.f32 %v6084, 0.0
  %v6459 = vmax.f32 %v6089, 0.0
  %v6460 = vmax.f32 %v6092, 0.0
  %v6461 = vmax.f32 %v6097, 0.0
  %v6462 = vmax.f32 %v6100, 0.0
  %v6463 = vmax.f32 %v6105, 0.0
  %v6464 = vmax.f32 %v6108, 0.0
  %v6465 = vmax.f32 %v6113, 0.0
  %v6466 = vmax.f32 %v6116, 0.0
  %v6467 = vmax.f32 %v6121, 0.0
  %v6468 = vmax.f32 %v6124, 0.0
  %v6469 = vmax.f32 %v6129, 0.0
  %v6470 = vmax.f32 %v6132, 0.0
  %v6471 = vmax.f32 %v6137, 0.0
  %v6472 = vmax.f32 %v6140, 0.0
  %v6473 = vmax.f32 %v6145, 0.0
  %v6474 = vmax.f32 %v6148, 0.0
  %v6475 = vmax.f32 %v6153, 0.0
  %v6476 = vmax.f32 %v6156, 0.0
  %v6477 = vmax.f32 %v6161, 0.0
  %v6478 = vmax.f32 %v6164, 0.0
  %v6479 = vmax.f32 %v6169, 0.0
  %v6480 = vmax.f32 %v6172, 0.0
  %v6481 = vmax.f32 %v6177, 0.0
  %v6482 = vmax.f32 %v6180, 0.0
  %v6483 = vmax.f32 %v6185, 0.0
  %v6484 = vmax.f32 %v6188, 0.0
  %v6485 = vmax.f32 %v6193, 0.0
  %v6486 = vmax.f32 %v6196, 0.0
  %v6487 = vmax.f32 %v6201, 0.0
  %v6488 = vmax.f32 %v6204, 0.0
  %v6489 = vmax.f32 %v6209, 0.0
  %v6490 = vmax.f32 %v6212, 0.0
  %v6491 = vmax.f32 %v6217, 0.0
  %v6492 = vmax.f32 %v6220, 0.0
  %v6493 = vmax.f32 %v6225, 0.0
  %v6494 = vmax.f32 %v6228, 0.0
  %v6495 = vmax.f32 %v6233, 0.0
  %v6496 = vmax.f32 %v6236, 0.0
  %v6497 = vmax.f32 %v6241, 0.0
  %v6498 = vmax.f32 %v6244, 0.0
  %v6499 = vmax.f32 %v6249, 0.0
  %v6500 = vmax.f32 %v6252, 0.0
  %v6501 = vmax.f32 %v6257, 0.0
  %v6502 = vmax.f32 %v6260, 0.0
  %v6503 = vmax.f32 %v6265, 0.0
  %v6504 = vmax.f32 %v6268, 0.0
  %v6505 = vmax.f32 %v6273, 0.0
  %v6506 = vmax.f32 %v6276, 0.0
  %v6507 = vmax.f32 %v6281, 0.0
  %v6508 = vmax.f32 %v6284, 0.0
  %v6509 = vmax.f32 %v6289, 0.0
  %v6510 = vmax.f32 %v6292, 0.0
  %v6511 = vmax.f32 %v6297, 0.0
  %v6512 = vmax.f32 %v6300, 0.0
  %v6513 = vmax.f32 %v6305, 0.0
  %v6514 = vmax.f32 %v6308, 0.0
  %v6515 = vmax.f32 %v6313, 0.0
  %v6516 = vmax.f32 %v6316, 0.0
  %v6517 = vmax.f32 %v6321, 0.0
  %v6518 = vmax.f32 %v6324, 0.0
  %v6519 = vmax.f32 %v6329, 0.0
  %v6520 = vmax.f32 %v6332, 0.0
  %v6521 = vmax.f32 %v6337, 0.0
  %v6522 = vmax.f32 %v6340, 0.0
  %v6523 = vmax.f32 %v6345, 0.0
  %v6524 = vmax.f32 %v6348, 0.0
  %v6525 = vmax.f32 %v6353, 0.0
  %v6526 = vmax.f32 %v6356, 0.0
  %v6527 = vmax.f32 %v6361, 0.0
  %v6528 = vmax.f32 %v6364, 0.0
  %v6529 = vmax.f32 %v6369, 0.0
  %v6530 = vmax.f32 %v6372, 0.0
  %v6531 = vmax.f32 %v6377, 0.0
  %v6532 = vmax.f32 %v6380, 0.0
  %v6533 = vmax.f32 %v6385, 0.0
  %v6534 = vmax.f32 %v6388, 0.0
  %v6535 = vpack.c.bf16 %v6392, %v6391
  %v6536 = vpack.c.bf16 %v6394, %v6393
  %v6537 = vpack.c.bf16 %v6396, %v6395
  %v6538 = vpack.c.bf16 %v6398, %v6397
  %v6539 = vpack.c.bf16 %v6399, %v6399
  %s6540 = scalar_lea.vmem %s3, 256
  %v6541 = vld [vmem:[%s6540] sm:$0xf]
  %v6542 = vld [vmem:[%s6540 + $0x4] sm:$0xf]
  %v6543 = vld [vmem:[%s6540 + $0x8] sm:$0xf]
  %v6544 = vld [vmem:[%s6540 + $0xc] sm:$0xf]
  %v6545 = vpack.c.bf16 %v6401, %v6400
  %v6546 = vpack.c.bf16 %v6403, %v6402
  %v6547 = vpack.c.bf16 %v6405, %v6404
  %v6548 = vpack.c.bf16 %v6407, %v6406
  %v6549 = vpack.c.bf16 %v6408, %v6408
  %s6550 = scalar_lea.vmem %s3, 272
  %v6551 = vld [vmem:[%s6550] sm:$0xf]
  %v6552 = vld [vmem:[%s6550 + $0x4] sm:$0xf]
  %v6553 = vld [vmem:[%s6550 + $0x8] sm:$0xf]
  %v6554 = vld [vmem:[%s6550 + $0xc] sm:$0xf]
  %v6559 = vunpack.c.l.b16 %v6551
  %v6560 = vunpack.c.l.b16 %v6552
  %v6561 = vunpack.c.l.b16 %v6553
  %v6562 = vunpack.c.l.b16 %v6554
  %v6563 = vpack.c.b16 %v6560, %v6559
  %v6564 = vpack.c.b16 %v6562, %v6561
  %v6568 = vsel %vm1935, %v6545, 0
  %v6571 = vsel %vm1935, %v6546, 0
  %v6574 = vsel %vm1935, %v6547, 0
  %v6577 = vsel %vm1935, %v6548, 0
  %v6580 = vsel %vm1935, %v6549, 0
  %6582 = vmatprep.subr.bf16.mxu0 0
  %6583 = vmatpush1.bf16.msra.mxu0 0
  %6584 = vmatprep.subr.bf16.mxu0 0
  %6585 = vmatpush1.bf16.msra.mxu0 0
  %6586 = vmatprep.subr.bf16.mxu0 0
  %6587 = vmatpush1.bf16.msra.mxu0 0
  %6588 = vmatprep.subr.bf16.mxu0 0
  %6589 = vmatpush1.bf16.msra.mxu0 0
  %6590 = vmatprep.subr.bf16.mxu0 0
  %6591 = vmatpush1.bf16.msra.mxu0 0
  %6592 = vmatprep.subr.bf16.mxu0 0
  %6593 = vmatpush1.bf16.msra.mxu0 0
  %6594 = vmatprep.subr.bf16.mxu0 0
  %6595 = vmatpush1.bf16.msra.mxu0 %v6564
  %6596 = vmatprep.subr.bf16.mxu0 0
  %6597 = vmatpush1.bf16.msra.mxu0 %v6563
  %6598 = vmatprep.subr.bf16.mxu0 0
  %6599 = vmatpush2.bf16.msra.mxu0 0
  %6600 = vmatprep.subr.bf16.mxu0 0
  %6601 = vmatpush2.bf16.msra.mxu0 0
  %6602 = vmatprep.subr.bf16.mxu0 0
  %6603 = vmatpush2.bf16.msra.mxu0 0
  %6604 = vmatprep.subr.bf16.mxu0 0
  %6605 = vmatpush2.bf16.msra.mxu0 0
  %6606 = vmatprep.subr.bf16.mxu0 0
  %6607 = vmatpush2.bf16.msra.mxu0 0
  %6608 = vmatprep.subr.bf16.mxu0 0
  %6609 = vmatpush2.bf16.msra.mxu0 0
  %6610 = vmatprep.subr.bf16.mxu0 0
  %6611 = vmatpush2.bf16.msra.mxu0 0
  %6612 = vmatprep.subr.bf16.mxu0 0
  %6613 = vmatpush2.bf16.msra.mxu0 0
  %6614 = vmatprep.mubr.bf16.mxu0 0
  %6615 = vmatmul.mubr.bf16.gmra.mxu0 %v6568
  %v6616 = vpop.f32.mrf.mxu0
  %v6617 = vadd.f32 0.0, %v6616
  %v6618 = vpop.f32.mrf.mxu0
  %v6619 = vpop.f32.mrf.mxu0
  %v6620 = vadd.f32 0.0, %v6619
  %v6621 = vpop.f32.mrf.mxu0
  %6622 = vmatprep.mubr.bf16.mxu0 0
  %6623 = vmatmul.mubr.bf16.gmra.mxu0 %v6571
  %v6624 = vpop.f32.mrf.mxu0
  %v6625 = vadd.f32 0.0, %v6624
  %v6626 = vpop.f32.mrf.mxu0
  %v6627 = vpop.f32.mrf.mxu0
  %v6628 = vadd.f32 0.0, %v6627
  %v6629 = vpop.f32.mrf.mxu0
  %6630 = vmatprep.mubr.bf16.mxu0 0
  %6631 = vmatmul.mubr.bf16.gmra.mxu0 %v6574
  %v6632 = vpop.f32.mrf.mxu0
  %v6633 = vadd.f32 0.0, %v6632
  %v6634 = vpop.f32.mrf.mxu0
  %v6635 = vpop.f32.mrf.mxu0
  %v6636 = vadd.f32 0.0, %v6635
  %v6637 = vpop.f32.mrf.mxu0
  %6638 = vmatprep.mubr.bf16.mxu0 0
  %6639 = vmatmul.mubr.bf16.gmra.mxu0 %v6577
  %v6640 = vpop.f32.mrf.mxu0
  %v6641 = vadd.f32 0.0, %v6640
  %v6642 = vpop.f32.mrf.mxu0
  %v6643 = vpop.f32.mrf.mxu0
  %v6644 = vadd.f32 0.0, %v6643
  %v6645 = vpop.f32.mrf.mxu0
  %6646 = vmatprep.mubr.bf16.mxu0 0
  %6647 = vmatmul.mubr.bf16.gmra.mxu0 %v6580
  %v6648 = vpop.f32.mrf.mxu0
  %v6649 = vadd.f32 0.0, %v6648
  %v6650 = vpop.f32.mrf.mxu0
  %v6651 = vpop.f32.mrf.mxu0
  %v6652 = vpop.f32.mrf.mxu0
  %6653 = vdwg.mxu0
  %v6658 = vunpack.c.l.b16 %v6541
  %v6659 = vunpack.c.l.b16 %v6542
  %v6660 = vunpack.c.l.b16 %v6543
  %v6661 = vunpack.c.l.b16 %v6544
  %v6662 = vpack.c.b16 %v6659, %v6658
  %v6663 = vpack.c.b16 %v6661, %v6660
  %v6667 = vsel %vm1935, %v6535, 0
  %v6670 = vsel %vm1935, %v6536, 0
  %v6673 = vsel %vm1935, %v6537, 0
  %v6676 = vsel %vm1935, %v6538, 0
  %v6679 = vsel %vm1935, %v6539, 0
  %6681 = vmatprep.subr.bf16.mxu0 0
  %6682 = vmatpush1.bf16.msra.mxu0 0
  %6683 = vmatprep.subr.bf16.mxu0 0
  %6684 = vmatpush1.bf16.msra.mxu0 0
  %6685 = vmatprep.subr.bf16.mxu0 0
  %6686 = vmatpush1.bf16.msra.mxu0 0
  %6687 = vmatprep.subr.bf16.mxu0 0
  %6688 = vmatpush1.bf16.msra.mxu0 0
  %6689 = vmatprep.subr.bf16.mxu0 0
  %6690 = vmatpush1.bf16.msra.mxu0 0
  %6691 = vmatprep.subr.bf16.mxu0 0
  %6692 = vmatpush1.bf16.msra.mxu0 0
  %6693 = vmatprep.subr.bf16.mxu0 0
  %6694 = vmatpush1.bf16.msra.mxu0 %v6663
  %6695 = vmatprep.subr.bf16.mxu0 0
  %6696 = vmatpush1.bf16.msra.mxu0 %v6662
  %6697 = vmatprep.subr.bf16.mxu0 0
  %6698 = vmatpush2.bf16.msra.mxu0 0
  %6699 = vmatprep.subr.bf16.mxu0 0
  %6700 = vmatpush2.bf16.msra.mxu0 0
  %6701 = vmatprep.subr.bf16.mxu0 0
  %6702 = vmatpush2.bf16.msra.mxu0 0
  %6703 = vmatprep.subr.bf16.mxu0 0
  %6704 = vmatpush2.bf16.msra.mxu0 0
  %6705 = vmatprep.subr.bf16.mxu0 0
  %6706 = vmatpush2.bf16.msra.mxu0 0
  %6707 = vmatprep.subr.bf16.mxu0 0
  %6708 = vmatpush2.bf16.msra.mxu0 0
  %6709 = vmatprep.subr.bf16.mxu0 0
  %6710 = vmatpush2.bf16.msra.mxu0 0
  %6711 = vmatprep.subr.bf16.mxu0 0
  %6712 = vmatpush2.bf16.msra.mxu0 0
  %6713 = vmatprep.mubr.bf16.mxu0 0
  %6714 = vmatmul.mubr.bf16.gmra.mxu0 %v6667
  %v6715 = vpop.f32.mrf.mxu0
  %v6716 = vadd.f32 %v6617, %v6715
  %v6717 = vpop.f32.mrf.mxu0
  %v6718 = vpop.f32.mrf.mxu0
  %v6719 = vadd.f32 %v6620, %v6718
  %v6720 = vpop.f32.mrf.mxu0
  %6721 = vmatprep.mubr.bf16.mxu0 0
  %6722 = vmatmul.mubr.bf16.gmra.mxu0 %v6670
  %v6723 = vpop.f32.mrf.mxu0
  %v6724 = vadd.f32 %v6625, %v6723
  %v6725 = vpop.f32.mrf.mxu0
  %v6726 = vpop.f32.mrf.mxu0
  %v6727 = vadd.f32 %v6628, %v6726
  %v6728 = vpop.f32.mrf.mxu0
  %6729 = vmatprep.mubr.bf16.mxu0 0
  %6730 = vmatmul.mubr.bf16.gmra.mxu0 %v6673
  %v6731 = vpop.f32.mrf.mxu0
  %v6732 = vadd.f32 %v6633, %v6731
  %v6733 = vpop.f32.mrf.mxu0
  %v6734 = vpop.f32.mrf.mxu0
  %v6735 = vadd.f32 %v6636, %v6734
  %v6736 = vpop.f32.mrf.mxu0
  %6737 = vmatprep.mubr.bf16.mxu0 0
  %6738 = vmatmul.mubr.bf16.gmra.mxu0 %v6676
  %v6739 = vpop.f32.mrf.mxu0
  %v6740 = vadd.f32 %v6641, %v6739
  %v6741 = vpop.f32.mrf.mxu0
  %v6742 = vpop.f32.mrf.mxu0
  %v6743 = vadd.f32 %v6644, %v6742
  %v6744 = vpop.f32.mrf.mxu0
  %6745 = vmatprep.mubr.bf16.mxu0 0
  %6746 = vmatmul.mubr.bf16.gmra.mxu0 %v6679
  %v6747 = vpop.f32.mrf.mxu0
  %v6748 = vadd.f32 %v6649, %v6747
  %v6749 = vpop.f32.mrf.mxu0
  %v6750 = vpop.f32.mrf.mxu0
  %v6751 = vpop.f32.mrf.mxu0
  %6752 = vdwg.mxu0
  %v6753 = vpack.c.bf16 %v6410, %v6409
  %v6754 = vpack.c.bf16 %v6412, %v6411
  %v6755 = vpack.c.bf16 %v6414, %v6413
  %v6756 = vpack.c.bf16 %v6416, %v6415
  %v6757 = vpack.c.bf16 %v6417, %v6417
  %s6758 = scalar_lea.vmem %s3, 288
  %v6759 = vld [vmem:[%s6758] sm:$0xf]
  %v6760 = vld [vmem:[%s6758 + $0x4] sm:$0xf]
  %v6761 = vld [vmem:[%s6758 + $0x8] sm:$0xf]
  %v6762 = vld [vmem:[%s6758 + $0xc] sm:$0xf]
  %v6767 = vunpack.c.l.b16 %v6759
  %v6768 = vunpack.c.l.b16 %v6760
  %v6769 = vunpack.c.l.b16 %v6761
  %v6770 = vunpack.c.l.b16 %v6762
  %v6771 = vpack.c.b16 %v6768, %v6767
  %v6772 = vpack.c.b16 %v6770, %v6769
  %v6776 = vsel %vm1935, %v6753, 0
  %v6779 = vsel %vm1935, %v6754, 0
  %v6782 = vsel %vm1935, %v6755, 0
  %v6785 = vsel %vm1935, %v6756, 0
  %v6788 = vsel %vm1935, %v6757, 0
  %6790 = vmatprep.subr.bf16.mxu0 0
  %6791 = vmatpush1.bf16.msra.mxu0 0
  %6792 = vmatprep.subr.bf16.mxu0 0
  %6793 = vmatpush1.bf16.msra.mxu0 0
  %6794 = vmatprep.subr.bf16.mxu0 0
  %6795 = vmatpush1.bf16.msra.mxu0 0
  %6796 = vmatprep.subr.bf16.mxu0 0
  %6797 = vmatpush1.bf16.msra.mxu0 0
  %6798 = vmatprep.subr.bf16.mxu0 0
  %6799 = vmatpush1.bf16.msra.mxu0 0
  %6800 = vmatprep.subr.bf16.mxu0 0
  %6801 = vmatpush1.bf16.msra.mxu0 0
  %6802 = vmatprep.subr.bf16.mxu0 0
  %6803 = vmatpush1.bf16.msra.mxu0 %v6772
  %6804 = vmatprep.subr.bf16.mxu0 0
  %6805 = vmatpush1.bf16.msra.mxu0 %v6771
  %6806 = vmatprep.subr.bf16.mxu0 0
  %6807 = vmatpush2.bf16.msra.mxu0 0
  %6808 = vmatprep.subr.bf16.mxu0 0
  %6809 = vmatpush2.bf16.msra.mxu0 0
  %6810 = vmatprep.subr.bf16.mxu0 0
  %6811 = vmatpush2.bf16.msra.mxu0 0
  %6812 = vmatprep.subr.bf16.mxu0 0
  %6813 = vmatpush2.bf16.msra.mxu0 0
  %6814 = vmatprep.subr.bf16.mxu0 0
  %6815 = vmatpush2.bf16.msra.mxu0 0
  %6816 = vmatprep.subr.bf16.mxu0 0
  %6817 = vmatpush2.bf16.msra.mxu0 0
  %6818 = vmatprep.subr.bf16.mxu0 0
  %6819 = vmatpush2.bf16.msra.mxu0 0
  %6820 = vmatprep.subr.bf16.mxu0 0
  %6821 = vmatpush2.bf16.msra.mxu0 0
  %6822 = vmatprep.mubr.bf16.mxu0 0
  %6823 = vmatmul.mubr.bf16.gmra.mxu0 %v6776
  %v6824 = vpop.f32.mrf.mxu0
  %v6825 = vadd.f32 0.0, %v6824
  %v6826 = vpop.f32.mrf.mxu0
  %v6827 = vpop.f32.mrf.mxu0
  %v6828 = vadd.f32 0.0, %v6827
  %v6829 = vpop.f32.mrf.mxu0
  %6830 = vmatprep.mubr.bf16.mxu0 0
  %6831 = vmatmul.mubr.bf16.gmra.mxu0 %v6779
  %v6832 = vpop.f32.mrf.mxu0
  %v6833 = vadd.f32 0.0, %v6832
  %v6834 = vpop.f32.mrf.mxu0
  %v6835 = vpop.f32.mrf.mxu0
  %v6836 = vadd.f32 0.0, %v6835
  %v6837 = vpop.f32.mrf.mxu0
  %6838 = vmatprep.mubr.bf16.mxu0 0
  %6839 = vmatmul.mubr.bf16.gmra.mxu0 %v6782
  %v6840 = vpop.f32.mrf.mxu0
  %v6841 = vadd.f32 0.0, %v6840
  %v6842 = vpop.f32.mrf.mxu0
  %v6843 = vpop.f32.mrf.mxu0
  %v6844 = vadd.f32 0.0, %v6843
  %v6845 = vpop.f32.mrf.mxu0
  %6846 = vmatprep.mubr.bf16.mxu0 0
  %6847 = vmatmul.mubr.bf16.gmra.mxu0 %v6785
  %v6848 = vpop.f32.mrf.mxu0
  %v6849 = vadd.f32 0.0, %v6848
  %v6850 = vpop.f32.mrf.mxu0
  %v6851 = vpop.f32.mrf.mxu0
  %v6852 = vadd.f32 0.0, %v6851
  %v6853 = vpop.f32.mrf.mxu0
  %6854 = vmatprep.mubr.bf16.mxu0 0
  %6855 = vmatmul.mubr.bf16.gmra.mxu0 %v6788
  %v6856 = vpop.f32.mrf.mxu0
  %v6857 = vadd.f32 0.0, %v6856
  %v6858 = vpop.f32.mrf.mxu0
  %v6859 = vpop.f32.mrf.mxu0
  %v6860 = vpop.f32.mrf.mxu0
  %6861 = vdwg.mxu0
  %v6862 = vadd.f32 %v6716, %v6825
  %v6863 = vadd.f32 %v6719, %v6828
  %v6864 = vadd.f32 %v6724, %v6833
  %v6865 = vadd.f32 %v6727, %v6836
  %v6866 = vadd.f32 %v6732, %v6841
  %v6867 = vadd.f32 %v6735, %v6844
  %v6868 = vadd.f32 %v6740, %v6849
  %v6869 = vadd.f32 %v6743, %v6852
  %v6870 = vadd.f32 %v6748, %v6857
  %v6871 = vpack.c.bf16 %v6419, %v6418
  %v6872 = vpack.c.bf16 %v6421, %v6420
  %v6873 = vpack.c.bf16 %v6423, %v6422
  %v6874 = vpack.c.bf16 %v6425, %v6424
  %v6875 = vpack.c.bf16 %v6426, %v6426
  %s6876 = scalar_lea.vmem %s3, 304
  %v6877 = vld [vmem:[%s6876] sm:$0xf]
  %v6878 = vld [vmem:[%s6876 + $0x4] sm:$0xf]
  %v6879 = vld [vmem:[%s6876 + $0x8] sm:$0xf]
  %v6880 = vld [vmem:[%s6876 + $0xc] sm:$0xf]
  %v6885 = vunpack.c.l.b16 %v6877
  %v6886 = vunpack.c.l.b16 %v6878
  %v6887 = vunpack.c.l.b16 %v6879
  %v6888 = vunpack.c.l.b16 %v6880
  %v6889 = vpack.c.b16 %v6886, %v6885
  %v6890 = vpack.c.b16 %v6888, %v6887
  %v6894 = vsel %vm1935, %v6871, 0
  %v6897 = vsel %vm1935, %v6872, 0
  %v6900 = vsel %vm1935, %v6873, 0
  %v6903 = vsel %vm1935, %v6874, 0
  %v6906 = vsel %vm1935, %v6875, 0
  %6908 = vmatprep.subr.bf16.mxu0 0
  %6909 = vmatpush1.bf16.msra.mxu0 0
  %6910 = vmatprep.subr.bf16.mxu0 0
  %6911 = vmatpush1.bf16.msra.mxu0 0
  %6912 = vmatprep.subr.bf16.mxu0 0
  %6913 = vmatpush1.bf16.msra.mxu0 0
  %6914 = vmatprep.subr.bf16.mxu0 0
  %6915 = vmatpush1.bf16.msra.mxu0 0
  %6916 = vmatprep.subr.bf16.mxu0 0
  %6917 = vmatpush1.bf16.msra.mxu0 0
  %6918 = vmatprep.subr.bf16.mxu0 0
  %6919 = vmatpush1.bf16.msra.mxu0 0
  %6920 = vmatprep.subr.bf16.mxu0 0
  %6921 = vmatpush1.bf16.msra.mxu0 %v6890
  %6922 = vmatprep.subr.bf16.mxu0 0
  %6923 = vmatpush1.bf16.msra.mxu0 %v6889
  %6924 = vmatprep.subr.bf16.mxu0 0
  %6925 = vmatpush2.bf16.msra.mxu0 0
  %6926 = vmatprep.subr.bf16.mxu0 0
  %6927 = vmatpush2.bf16.msra.mxu0 0
  %6928 = vmatprep.subr.bf16.mxu0 0
  %6929 = vmatpush2.bf16.msra.mxu0 0
  %6930 = vmatprep.subr.bf16.mxu0 0
  %6931 = vmatpush2.bf16.msra.mxu0 0
  %6932 = vmatprep.subr.bf16.mxu0 0
  %6933 = vmatpush2.bf16.msra.mxu0 0
  %6934 = vmatprep.subr.bf16.mxu0 0
  %6935 = vmatpush2.bf16.msra.mxu0 0
  %6936 = vmatprep.subr.bf16.mxu0 0
  %6937 = vmatpush2.bf16.msra.mxu0 0
  %6938 = vmatprep.subr.bf16.mxu0 0
  %6939 = vmatpush2.bf16.msra.mxu0 0
  %6940 = vmatprep.mubr.bf16.mxu0 0
  %6941 = vmatmul.mubr.bf16.gmra.mxu0 %v6894
  %v6942 = vpop.f32.mrf.mxu0
  %v6943 = vadd.f32 0.0, %v6942
  %v6944 = vpop.f32.mrf.mxu0
  %v6945 = vpop.f32.mrf.mxu0
  %v6946 = vadd.f32 0.0, %v6945
  %v6947 = vpop.f32.mrf.mxu0
  %6948 = vmatprep.mubr.bf16.mxu0 0
  %6949 = vmatmul.mubr.bf16.gmra.mxu0 %v6897
  %v6950 = vpop.f32.mrf.mxu0
  %v6951 = vadd.f32 0.0, %v6950
  %v6952 = vpop.f32.mrf.mxu0
  %v6953 = vpop.f32.mrf.mxu0
  %v6954 = vadd.f32 0.0, %v6953
  %v6955 = vpop.f32.mrf.mxu0
  %6956 = vmatprep.mubr.bf16.mxu0 0
  %6957 = vmatmul.mubr.bf16.gmra.mxu0 %v6900
  %v6958 = vpop.f32.mrf.mxu0
  %v6959 = vadd.f32 0.0, %v6958
  %v6960 = vpop.f32.mrf.mxu0
  %v6961 = vpop.f32.mrf.mxu0
  %v6962 = vadd.f32 0.0, %v6961
  %v6963 = vpop.f32.mrf.mxu0
  %6964 = vmatprep.mubr.bf16.mxu0 0
  %6965 = vmatmul.mubr.bf16.gmra.mxu0 %v6903
  %v6966 = vpop.f32.mrf.mxu0
  %v6967 = vadd.f32 0.0, %v6966
  %v6968 = vpop.f32.mrf.mxu0
  %v6969 = vpop.f32.mrf.mxu0
  %v6970 = vadd.f32 0.0, %v6969
  %v6971 = vpop.f32.mrf.mxu0
  %6972 = vmatprep.mubr.bf16.mxu0 0
  %6973 = vmatmul.mubr.bf16.gmra.mxu0 %v6906
  %v6974 = vpop.f32.mrf.mxu0
  %v6975 = vadd.f32 0.0, %v6974
  %v6976 = vpop.f32.mrf.mxu0
  %v6977 = vpop.f32.mrf.mxu0
  %v6978 = vpop.f32.mrf.mxu0
  %6979 = vdwg.mxu0
  %v6980 = vadd.f32 %v6862, %v6943
  %v6981 = vadd.f32 %v6863, %v6946
  %v6982 = vadd.f32 %v6864, %v6951
  %v6983 = vadd.f32 %v6865, %v6954
  %v6984 = vadd.f32 %v6866, %v6959
  %v6985 = vadd.f32 %v6867, %v6962
  %v6986 = vadd.f32 %v6868, %v6967
  %v6987 = vadd.f32 %v6869, %v6970
  %v6988 = vadd.f32 %v6870, %v6975
  %v6989 = vpack.c.bf16 %v6428, %v6427
  %v6990 = vpack.c.bf16 %v6430, %v6429
  %v6991 = vpack.c.bf16 %v6432, %v6431
  %v6992 = vpack.c.bf16 %v6434, %v6433
  %v6993 = vpack.c.bf16 %v6435, %v6435
  %s6994 = scalar_lea.vmem %s3, 320
  %v6995 = vld [vmem:[%s6994] sm:$0xf]
  %v6996 = vld [vmem:[%s6994 + $0x4] sm:$0xf]
  %v6997 = vld [vmem:[%s6994 + $0x8] sm:$0xf]
  %v6998 = vld [vmem:[%s6994 + $0xc] sm:$0xf]
  %v7003 = vunpack.c.l.b16 %v6995
  %v7004 = vunpack.c.l.b16 %v6996
  %v7005 = vunpack.c.l.b16 %v6997
  %v7006 = vunpack.c.l.b16 %v6998
  %v7007 = vpack.c.b16 %v7004, %v7003
  %v7008 = vpack.c.b16 %v7006, %v7005
  %v7012 = vsel %vm1935, %v6989, 0
  %v7015 = vsel %vm1935, %v6990, 0
  %v7018 = vsel %vm1935, %v6991, 0
  %v7021 = vsel %vm1935, %v6992, 0
  %v7024 = vsel %vm1935, %v6993, 0
  %7026 = vmatprep.subr.bf16.mxu0 0
  %7027 = vmatpush1.bf16.msra.mxu0 0
  %7028 = vmatprep.subr.bf16.mxu0 0
  %7029 = vmatpush1.bf16.msra.mxu0 0
  %7030 = vmatprep.subr.bf16.mxu0 0
  %7031 = vmatpush1.bf16.msra.mxu0 0
  %7032 = vmatprep.subr.bf16.mxu0 0
  %7033 = vmatpush1.bf16.msra.mxu0 0
  %7034 = vmatprep.subr.bf16.mxu0 0
  %7035 = vmatpush1.bf16.msra.mxu0 0
  %7036 = vmatprep.subr.bf16.mxu0 0
  %7037 = vmatpush1.bf16.msra.mxu0 0
  %7038 = vmatprep.subr.bf16.mxu0 0
  %7039 = vmatpush1.bf16.msra.mxu0 %v7008
  %7040 = vmatprep.subr.bf16.mxu0 0
  %7041 = vmatpush1.bf16.msra.mxu0 %v7007
  %7042 = vmatprep.subr.bf16.mxu0 0
  %7043 = vmatpush2.bf16.msra.mxu0 0
  %7044 = vmatprep.subr.bf16.mxu0 0
  %7045 = vmatpush2.bf16.msra.mxu0 0
  %7046 = vmatprep.subr.bf16.mxu0 0
  %7047 = vmatpush2.bf16.msra.mxu0 0
  %7048 = vmatprep.subr.bf16.mxu0 0
  %7049 = vmatpush2.bf16.msra.mxu0 0
  %7050 = vmatprep.subr.bf16.mxu0 0
  %7051 = vmatpush2.bf16.msra.mxu0 0
  %7052 = vmatprep.subr.bf16.mxu0 0
  %7053 = vmatpush2.bf16.msra.mxu0 0
  %7054 = vmatprep.subr.bf16.mxu0 0
  %7055 = vmatpush2.bf16.msra.mxu0 0
  %7056 = vmatprep.subr.bf16.mxu0 0
  %7057 = vmatpush2.bf16.msra.mxu0 0
  %7058 = vmatprep.mubr.bf16.mxu0 0
  %7059 = vmatmul.mubr.bf16.gmra.mxu0 %v7012
  %v7060 = vpop.f32.mrf.mxu0
  %v7061 = vadd.f32 0.0, %v7060
  %v7062 = vpop.f32.mrf.mxu0
  %v7063 = vpop.f32.mrf.mxu0
  %v7064 = vadd.f32 0.0, %v7063
  %v7065 = vpop.f32.mrf.mxu0
  %7066 = vmatprep.mubr.bf16.mxu0 0
  %7067 = vmatmul.mubr.bf16.gmra.mxu0 %v7015
  %v7068 = vpop.f32.mrf.mxu0
  %v7069 = vadd.f32 0.0, %v7068
  %v7070 = vpop.f32.mrf.mxu0
  %v7071 = vpop.f32.mrf.mxu0
  %v7072 = vadd.f32 0.0, %v7071
  %v7073 = vpop.f32.mrf.mxu0
  %7074 = vmatprep.mubr.bf16.mxu0 0
  %7075 = vmatmul.mubr.bf16.gmra.mxu0 %v7018
  %v7076 = vpop.f32.mrf.mxu0
  %v7077 = vadd.f32 0.0, %v7076
  %v7078 = vpop.f32.mrf.mxu0
  %v7079 = vpop.f32.mrf.mxu0
  %v7080 = vadd.f32 0.0, %v7079
  %v7081 = vpop.f32.mrf.mxu0
  %7082 = vmatprep.mubr.bf16.mxu0 0
  %7083 = vmatmul.mubr.bf16.gmra.mxu0 %v7021
  %v7084 = vpop.f32.mrf.mxu0
  %v7085 = vadd.f32 0.0, %v7084
  %v7086 = vpop.f32.mrf.mxu0
  %v7087 = vpop.f32.mrf.mxu0
  %v7088 = vadd.f32 0.0, %v7087
  %v7089 = vpop.f32.mrf.mxu0
  %7090 = vmatprep.mubr.bf16.mxu0 0
  %7091 = vmatmul.mubr.bf16.gmra.mxu0 %v7024
  %v7092 = vpop.f32.mrf.mxu0
  %v7093 = vadd.f32 0.0, %v7092
  %v7094 = vpop.f32.mrf.mxu0
  %v7095 = vpop.f32.mrf.mxu0
  %v7096 = vpop.f32.mrf.mxu0
  %7097 = vdwg.mxu0
  %v7098 = vadd.f32 %v6980, %v7061
  %v7099 = vadd.f32 %v6981, %v7064
  %v7100 = vadd.f32 %v6982, %v7069
  %v7101 = vadd.f32 %v6983, %v7072
  %v7102 = vadd.f32 %v6984, %v7077
  %v7103 = vadd.f32 %v6985, %v7080
  %v7104 = vadd.f32 %v6986, %v7085
  %v7105 = vadd.f32 %v6987, %v7088
  %v7106 = vadd.f32 %v6988, %v7093
  %v7107 = vpack.c.bf16 %v6437, %v6436
  %v7108 = vpack.c.bf16 %v6439, %v6438
  %v7109 = vpack.c.bf16 %v6441, %v6440
  %v7110 = vpack.c.bf16 %v6443, %v6442
  %v7111 = vpack.c.bf16 %v6444, %v6444
  %s7112 = scalar_lea.vmem %s3, 336
  %v7113 = vld [vmem:[%s7112] sm:$0xf]
  %v7114 = vld [vmem:[%s7112 + $0x4] sm:$0xf]
  %v7115 = vld [vmem:[%s7112 + $0x8] sm:$0xf]
  %v7116 = vld [vmem:[%s7112 + $0xc] sm:$0xf]
  %v7121 = vunpack.c.l.b16 %v7113
  %v7122 = vunpack.c.l.b16 %v7114
  %v7123 = vunpack.c.l.b16 %v7115
  %v7124 = vunpack.c.l.b16 %v7116
  %v7125 = vpack.c.b16 %v7122, %v7121
  %v7126 = vpack.c.b16 %v7124, %v7123
  %v7130 = vsel %vm1935, %v7107, 0
  %v7133 = vsel %vm1935, %v7108, 0
  %v7136 = vsel %vm1935, %v7109, 0
  %v7139 = vsel %vm1935, %v7110, 0
  %v7142 = vsel %vm1935, %v7111, 0
  %7144 = vmatprep.subr.bf16.mxu0 0
  %7145 = vmatpush1.bf16.msra.mxu0 0
  %7146 = vmatprep.subr.bf16.mxu0 0
  %7147 = vmatpush1.bf16.msra.mxu0 0
  %7148 = vmatprep.subr.bf16.mxu0 0
  %7149 = vmatpush1.bf16.msra.mxu0 0
  %7150 = vmatprep.subr.bf16.mxu0 0
  %7151 = vmatpush1.bf16.msra.mxu0 0
  %7152 = vmatprep.subr.bf16.mxu0 0
  %7153 = vmatpush1.bf16.msra.mxu0 0
  %7154 = vmatprep.subr.bf16.mxu0 0
  %7155 = vmatpush1.bf16.msra.mxu0 0
  %7156 = vmatprep.subr.bf16.mxu0 0
  %7157 = vmatpush1.bf16.msra.mxu0 %v7126
  %7158 = vmatprep.subr.bf16.mxu0 0
  %7159 = vmatpush1.bf16.msra.mxu0 %v7125
  %7160 = vmatprep.subr.bf16.mxu0 0
  %7161 = vmatpush2.bf16.msra.mxu0 0
  %7162 = vmatprep.subr.bf16.mxu0 0
  %7163 = vmatpush2.bf16.msra.mxu0 0
  %7164 = vmatprep.subr.bf16.mxu0 0
  %7165 = vmatpush2.bf16.msra.mxu0 0
  %7166 = vmatprep.subr.bf16.mxu0 0
  %7167 = vmatpush2.bf16.msra.mxu0 0
  %7168 = vmatprep.subr.bf16.mxu0 0
  %7169 = vmatpush2.bf16.msra.mxu0 0
  %7170 = vmatprep.subr.bf16.mxu0 0
  %7171 = vmatpush2.bf16.msra.mxu0 0
  %7172 = vmatprep.subr.bf16.mxu0 0
  %7173 = vmatpush2.bf16.msra.mxu0 0
  %7174 = vmatprep.subr.bf16.mxu0 0
  %7175 = vmatpush2.bf16.msra.mxu0 0
  %7176 = vmatprep.mubr.bf16.mxu0 0
  %7177 = vmatmul.mubr.bf16.gmra.mxu0 %v7130
  %v7178 = vpop.f32.mrf.mxu0
  %v7179 = vadd.f32 0.0, %v7178
  %v7180 = vpop.f32.mrf.mxu0
  %v7181 = vpop.f32.mrf.mxu0
  %v7182 = vadd.f32 0.0, %v7181
  %v7183 = vpop.f32.mrf.mxu0
  %7184 = vmatprep.mubr.bf16.mxu0 0
  %7185 = vmatmul.mubr.bf16.gmra.mxu0 %v7133
  %v7186 = vpop.f32.mrf.mxu0
  %v7187 = vadd.f32 0.0, %v7186
  %v7188 = vpop.f32.mrf.mxu0
  %v7189 = vpop.f32.mrf.mxu0
  %v7190 = vadd.f32 0.0, %v7189
  %v7191 = vpop.f32.mrf.mxu0
  %7192 = vmatprep.mubr.bf16.mxu0 0
  %7193 = vmatmul.mubr.bf16.gmra.mxu0 %v7136
  %v7194 = vpop.f32.mrf.mxu0
  %v7195 = vadd.f32 0.0, %v7194
  %v7196 = vpop.f32.mrf.mxu0
  %v7197 = vpop.f32.mrf.mxu0
  %v7198 = vadd.f32 0.0, %v7197
  %v7199 = vpop.f32.mrf.mxu0
  %7200 = vmatprep.mubr.bf16.mxu0 0
  %7201 = vmatmul.mubr.bf16.gmra.mxu0 %v7139
  %v7202 = vpop.f32.mrf.mxu0
  %v7203 = vadd.f32 0.0, %v7202
  %v7204 = vpop.f32.mrf.mxu0
  %v7205 = vpop.f32.mrf.mxu0
  %v7206 = vadd.f32 0.0, %v7205
  %v7207 = vpop.f32.mrf.mxu0
  %7208 = vmatprep.mubr.bf16.mxu0 0
  %7209 = vmatmul.mubr.bf16.gmra.mxu0 %v7142
  %v7210 = vpop.f32.mrf.mxu0
  %v7211 = vadd.f32 0.0, %v7210
  %v7212 = vpop.f32.mrf.mxu0
  %v7213 = vpop.f32.mrf.mxu0
  %v7214 = vpop.f32.mrf.mxu0
  %7215 = vdwg.mxu0
  %v7216 = vadd.f32 %v7098, %v7179
  %v7217 = vadd.f32 %v7099, %v7182
  %v7218 = vadd.f32 %v7100, %v7187
  %v7219 = vadd.f32 %v7101, %v7190
  %v7220 = vadd.f32 %v7102, %v7195
  %v7221 = vadd.f32 %v7103, %v7198
  %v7222 = vadd.f32 %v7104, %v7203
  %v7223 = vadd.f32 %v7105, %v7206
  %v7224 = vadd.f32 %v7106, %v7211
  %v7225 = vpack.c.bf16 %v6446, %v6445
  %v7226 = vpack.c.bf16 %v6448, %v6447
  %v7227 = vpack.c.bf16 %v6450, %v6449
  %v7228 = vpack.c.bf16 %v6452, %v6451
  %v7229 = vpack.c.bf16 %v6453, %v6453
  %s7230 = scalar_lea.vmem %s3, 352
  %v7231 = vld [vmem:[%s7230] sm:$0xf]
  %v7232 = vld [vmem:[%s7230 + $0x4] sm:$0xf]
  %v7233 = vld [vmem:[%s7230 + $0x8] sm:$0xf]
  %v7234 = vld [vmem:[%s7230 + $0xc] sm:$0xf]
  %v7239 = vunpack.c.l.b16 %v7231
  %v7240 = vunpack.c.l.b16 %v7232
  %v7241 = vunpack.c.l.b16 %v7233
  %v7242 = vunpack.c.l.b16 %v7234
  %v7243 = vpack.c.b16 %v7240, %v7239
  %v7244 = vpack.c.b16 %v7242, %v7241
  %v7248 = vsel %vm1935, %v7225, 0
  %v7251 = vsel %vm1935, %v7226, 0
  %v7254 = vsel %vm1935, %v7227, 0
  %v7257 = vsel %vm1935, %v7228, 0
  %v7260 = vsel %vm1935, %v7229, 0
  %7262 = vmatprep.subr.bf16.mxu0 0
  %7263 = vmatpush1.bf16.msra.mxu0 0
  %7264 = vmatprep.subr.bf16.mxu0 0
  %7265 = vmatpush1.bf16.msra.mxu0 0
  %7266 = vmatprep.subr.bf16.mxu0 0
  %7267 = vmatpush1.bf16.msra.mxu0 0
  %7268 = vmatprep.subr.bf16.mxu0 0
  %7269 = vmatpush1.bf16.msra.mxu0 0
  %7270 = vmatprep.subr.bf16.mxu0 0
  %7271 = vmatpush1.bf16.msra.mxu0 0
  %7272 = vmatprep.subr.bf16.mxu0 0
  %7273 = vmatpush1.bf16.msra.mxu0 0
  %7274 = vmatprep.subr.bf16.mxu0 0
  %7275 = vmatpush1.bf16.msra.mxu0 %v7244
  %7276 = vmatprep.subr.bf16.mxu0 0
  %7277 = vmatpush1.bf16.msra.mxu0 %v7243
  %7278 = vmatprep.subr.bf16.mxu0 0
  %7279 = vmatpush2.bf16.msra.mxu0 0
  %7280 = vmatprep.subr.bf16.mxu0 0
  %7281 = vmatpush2.bf16.msra.mxu0 0
  %7282 = vmatprep.subr.bf16.mxu0 0
  %7283 = vmatpush2.bf16.msra.mxu0 0
  %7284 = vmatprep.subr.bf16.mxu0 0
  %7285 = vmatpush2.bf16.msra.mxu0 0
  %7286 = vmatprep.subr.bf16.mxu0 0
  %7287 = vmatpush2.bf16.msra.mxu0 0
  %7288 = vmatprep.subr.bf16.mxu0 0
  %7289 = vmatpush2.bf16.msra.mxu0 0
  %7290 = vmatprep.subr.bf16.mxu0 0
  %7291 = vmatpush2.bf16.msra.mxu0 0
  %7292 = vmatprep.subr.bf16.mxu0 0
  %7293 = vmatpush2.bf16.msra.mxu0 0
  %7294 = vmatprep.mubr.bf16.mxu0 0
  %7295 = vmatmul.mubr.bf16.gmra.mxu0 %v7248
  %v7296 = vpop.f32.mrf.mxu0
  %v7297 = vadd.f32 0.0, %v7296
  %v7298 = vpop.f32.mrf.mxu0
  %v7299 = vpop.f32.mrf.mxu0
  %v7300 = vadd.f32 0.0, %v7299
  %v7301 = vpop.f32.mrf.mxu0
  %7302 = vmatprep.mubr.bf16.mxu0 0
  %7303 = vmatmul.mubr.bf16.gmra.mxu0 %v7251
  %v7304 = vpop.f32.mrf.mxu0
  %v7305 = vadd.f32 0.0, %v7304
  %v7306 = vpop.f32.mrf.mxu0
  %v7307 = vpop.f32.mrf.mxu0
  %v7308 = vadd.f32 0.0, %v7307
  %v7309 = vpop.f32.mrf.mxu0
  %7310 = vmatprep.mubr.bf16.mxu0 0
  %7311 = vmatmul.mubr.bf16.gmra.mxu0 %v7254
  %v7312 = vpop.f32.mrf.mxu0
  %v7313 = vadd.f32 0.0, %v7312
  %v7314 = vpop.f32.mrf.mxu0
  %v7315 = vpop.f32.mrf.mxu0
  %v7316 = vadd.f32 0.0, %v7315
  %v7317 = vpop.f32.mrf.mxu0
  %7318 = vmatprep.mubr.bf16.mxu0 0
  %7319 = vmatmul.mubr.bf16.gmra.mxu0 %v7257
  %v7320 = vpop.f32.mrf.mxu0
  %v7321 = vadd.f32 0.0, %v7320
  %v7322 = vpop.f32.mrf.mxu0
  %v7323 = vpop.f32.mrf.mxu0
  %v7324 = vadd.f32 0.0, %v7323
  %v7325 = vpop.f32.mrf.mxu0
  %7326 = vmatprep.mubr.bf16.mxu0 0
  %7327 = vmatmul.mubr.bf16.gmra.mxu0 %v7260
  %v7328 = vpop.f32.mrf.mxu0
  %v7329 = vadd.f32 0.0, %v7328
  %v7330 = vpop.f32.mrf.mxu0
  %v7331 = vpop.f32.mrf.mxu0
  %v7332 = vpop.f32.mrf.mxu0
  %7333 = vdwg.mxu0
  %v7334 = vadd.f32 %v7216, %v7297
  %v7335 = vadd.f32 %v7217, %v7300
  %v7336 = vadd.f32 %v7218, %v7305
  %v7337 = vadd.f32 %v7219, %v7308
  %v7338 = vadd.f32 %v7220, %v7313
  %v7339 = vadd.f32 %v7221, %v7316
  %v7340 = vadd.f32 %v7222, %v7321
  %v7341 = vadd.f32 %v7223, %v7324
  %v7342 = vadd.f32 %v7224, %v7329
  %v7343 = vpack.c.bf16 %v6455, %v6454
  %v7344 = vpack.c.bf16 %v6457, %v6456
  %v7345 = vpack.c.bf16 %v6459, %v6458
  %v7346 = vpack.c.bf16 %v6461, %v6460
  %v7347 = vpack.c.bf16 %v6462, %v6462
  %s7348 = scalar_lea.vmem %s3, 368
  %v7349 = vld [vmem:[%s7348] sm:$0xf]
  %v7350 = vld [vmem:[%s7348 + $0x4] sm:$0xf]
  %v7351 = vld [vmem:[%s7348 + $0x8] sm:$0xf]
  %v7352 = vld [vmem:[%s7348 + $0xc] sm:$0xf]
  %v7357 = vunpack.c.l.b16 %v7349
  %v7358 = vunpack.c.l.b16 %v7350
  %v7359 = vunpack.c.l.b16 %v7351
  %v7360 = vunpack.c.l.b16 %v7352
  %v7361 = vpack.c.b16 %v7358, %v7357
  %v7362 = vpack.c.b16 %v7360, %v7359
  %v7366 = vsel %vm1935, %v7343, 0
  %v7369 = vsel %vm1935, %v7344, 0
  %v7372 = vsel %vm1935, %v7345, 0
  %v7375 = vsel %vm1935, %v7346, 0
  %v7378 = vsel %vm1935, %v7347, 0
  %7380 = vmatprep.subr.bf16.mxu0 0
  %7381 = vmatpush1.bf16.msra.mxu0 0
  %7382 = vmatprep.subr.bf16.mxu0 0
  %7383 = vmatpush1.bf16.msra.mxu0 0
  %7384 = vmatprep.subr.bf16.mxu0 0
  %7385 = vmatpush1.bf16.msra.mxu0 0
  %7386 = vmatprep.subr.bf16.mxu0 0
  %7387 = vmatpush1.bf16.msra.mxu0 0
  %7388 = vmatprep.subr.bf16.mxu0 0
  %7389 = vmatpush1.bf16.msra.mxu0 0
  %7390 = vmatprep.subr.bf16.mxu0 0
  %7391 = vmatpush1.bf16.msra.mxu0 0
  %7392 = vmatprep.subr.bf16.mxu0 0
  %7393 = vmatpush1.bf16.msra.mxu0 %v7362
  %7394 = vmatprep.subr.bf16.mxu0 0
  %7395 = vmatpush1.bf16.msra.mxu0 %v7361
  %7396 = vmatprep.subr.bf16.mxu0 0
  %7397 = vmatpush2.bf16.msra.mxu0 0
  %7398 = vmatprep.subr.bf16.mxu0 0
  %7399 = vmatpush2.bf16.msra.mxu0 0
  %7400 = vmatprep.subr.bf16.mxu0 0
  %7401 = vmatpush2.bf16.msra.mxu0 0
  %7402 = vmatprep.subr.bf16.mxu0 0
  %7403 = vmatpush2.bf16.msra.mxu0 0
  %7404 = vmatprep.subr.bf16.mxu0 0
  %7405 = vmatpush2.bf16.msra.mxu0 0
  %7406 = vmatprep.subr.bf16.mxu0 0
  %7407 = vmatpush2.bf16.msra.mxu0 0
  %7408 = vmatprep.subr.bf16.mxu0 0
  %7409 = vmatpush2.bf16.msra.mxu0 0
  %7410 = vmatprep.subr.bf16.mxu0 0
  %7411 = vmatpush2.bf16.msra.mxu0 0
  %7412 = vmatprep.mubr.bf16.mxu0 0
  %7413 = vmatmul.mubr.bf16.gmra.mxu0 %v7366
  %v7414 = vpop.f32.mrf.mxu0
  %v7415 = vadd.f32 0.0, %v7414
  %v7416 = vpop.f32.mrf.mxu0
  %v7417 = vpop.f32.mrf.mxu0
  %v7418 = vadd.f32 0.0, %v7417
  %v7419 = vpop.f32.mrf.mxu0
  %7420 = vmatprep.mubr.bf16.mxu0 0
  %7421 = vmatmul.mubr.bf16.gmra.mxu0 %v7369
  %v7422 = vpop.f32.mrf.mxu0
  %v7423 = vadd.f32 0.0, %v7422
  %v7424 = vpop.f32.mrf.mxu0
  %v7425 = vpop.f32.mrf.mxu0
  %v7426 = vadd.f32 0.0, %v7425
  %v7427 = vpop.f32.mrf.mxu0
  %7428 = vmatprep.mubr.bf16.mxu0 0
  %7429 = vmatmul.mubr.bf16.gmra.mxu0 %v7372
  %v7430 = vpop.f32.mrf.mxu0
  %v7431 = vadd.f32 0.0, %v7430
  %v7432 = vpop.f32.mrf.mxu0
  %v7433 = vpop.f32.mrf.mxu0
  %v7434 = vadd.f32 0.0, %v7433
  %v7435 = vpop.f32.mrf.mxu0
  %7436 = vmatprep.mubr.bf16.mxu0 0
  %7437 = vmatmul.mubr.bf16.gmra.mxu0 %v7375
  %v7438 = vpop.f32.mrf.mxu0
  %v7439 = vadd.f32 0.0, %v7438
  %v7440 = vpop.f32.mrf.mxu0
  %v7441 = vpop.f32.mrf.mxu0
  %v7442 = vadd.f32 0.0, %v7441
  %v7443 = vpop.f32.mrf.mxu0
  %7444 = vmatprep.mubr.bf16.mxu0 0
  %7445 = vmatmul.mubr.bf16.gmra.mxu0 %v7378
  %v7446 = vpop.f32.mrf.mxu0
  %v7447 = vadd.f32 0.0, %v7446
  %v7448 = vpop.f32.mrf.mxu0
  %v7449 = vpop.f32.mrf.mxu0
  %v7450 = vpop.f32.mrf.mxu0
  %7451 = vdwg.mxu0
  %v7452 = vadd.f32 %v7334, %v7415
  %v7453 = vadd.f32 %v7335, %v7418
  %v7454 = vadd.f32 %v7336, %v7423
  %v7455 = vadd.f32 %v7337, %v7426
  %v7456 = vadd.f32 %v7338, %v7431
  %v7457 = vadd.f32 %v7339, %v7434
  %v7458 = vadd.f32 %v7340, %v7439
  %v7459 = vadd.f32 %v7341, %v7442
  %v7460 = vadd.f32 %v7342, %v7447
  %v7461 = vpack.c.bf16 %v6464, %v6463
  %v7462 = vpack.c.bf16 %v6466, %v6465
  %v7463 = vpack.c.bf16 %v6468, %v6467
  %v7464 = vpack.c.bf16 %v6470, %v6469
  %v7465 = vpack.c.bf16 %v6471, %v6471
  %s7466 = scalar_lea.vmem %s3, 384
  %v7467 = vld [vmem:[%s7466] sm:$0xf]
  %v7468 = vld [vmem:[%s7466 + $0x4] sm:$0xf]
  %v7469 = vld [vmem:[%s7466 + $0x8] sm:$0xf]
  %v7470 = vld [vmem:[%s7466 + $0xc] sm:$0xf]
  %v7475 = vunpack.c.l.b16 %v7467
  %v7476 = vunpack.c.l.b16 %v7468
  %v7477 = vunpack.c.l.b16 %v7469
  %v7478 = vunpack.c.l.b16 %v7470
  %v7479 = vpack.c.b16 %v7476, %v7475
  %v7480 = vpack.c.b16 %v7478, %v7477
  %v7484 = vsel %vm1935, %v7461, 0
  %v7487 = vsel %vm1935, %v7462, 0
  %v7490 = vsel %vm1935, %v7463, 0
  %v7493 = vsel %vm1935, %v7464, 0
  %v7496 = vsel %vm1935, %v7465, 0
  %7498 = vmatprep.subr.bf16.mxu0 0
  %7499 = vmatpush1.bf16.msra.mxu0 0
  %7500 = vmatprep.subr.bf16.mxu0 0
  %7501 = vmatpush1.bf16.msra.mxu0 0
  %7502 = vmatprep.subr.bf16.mxu0 0
  %7503 = vmatpush1.bf16.msra.mxu0 0
  %7504 = vmatprep.subr.bf16.mxu0 0
  %7505 = vmatpush1.bf16.msra.mxu0 0
  %7506 = vmatprep.subr.bf16.mxu0 0
  %7507 = vmatpush1.bf16.msra.mxu0 0
  %7508 = vmatprep.subr.bf16.mxu0 0
  %7509 = vmatpush1.bf16.msra.mxu0 0
  %7510 = vmatprep.subr.bf16.mxu0 0
  %7511 = vmatpush1.bf16.msra.mxu0 %v7480
  %7512 = vmatprep.subr.bf16.mxu0 0
  %7513 = vmatpush1.bf16.msra.mxu0 %v7479
  %7514 = vmatprep.subr.bf16.mxu0 0
  %7515 = vmatpush2.bf16.msra.mxu0 0
  %7516 = vmatprep.subr.bf16.mxu0 0
  %7517 = vmatpush2.bf16.msra.mxu0 0
  %7518 = vmatprep.subr.bf16.mxu0 0
  %7519 = vmatpush2.bf16.msra.mxu0 0
  %7520 = vmatprep.subr.bf16.mxu0 0
  %7521 = vmatpush2.bf16.msra.mxu0 0
  %7522 = vmatprep.subr.bf16.mxu0 0
  %7523 = vmatpush2.bf16.msra.mxu0 0
  %7524 = vmatprep.subr.bf16.mxu0 0
  %7525 = vmatpush2.bf16.msra.mxu0 0
  %7526 = vmatprep.subr.bf16.mxu0 0
  %7527 = vmatpush2.bf16.msra.mxu0 0
  %7528 = vmatprep.subr.bf16.mxu0 0
  %7529 = vmatpush2.bf16.msra.mxu0 0
  %7530 = vmatprep.mubr.bf16.mxu0 0
  %7531 = vmatmul.mubr.bf16.gmra.mxu0 %v7484
  %v7532 = vpop.f32.mrf.mxu0
  %v7533 = vadd.f32 0.0, %v7532
  %v7534 = vpop.f32.mrf.mxu0
  %v7535 = vpop.f32.mrf.mxu0
  %v7536 = vadd.f32 0.0, %v7535
  %v7537 = vpop.f32.mrf.mxu0
  %7538 = vmatprep.mubr.bf16.mxu0 0
  %7539 = vmatmul.mubr.bf16.gmra.mxu0 %v7487
  %v7540 = vpop.f32.mrf.mxu0
  %v7541 = vadd.f32 0.0, %v7540
  %v7542 = vpop.f32.mrf.mxu0
  %v7543 = vpop.f32.mrf.mxu0
  %v7544 = vadd.f32 0.0, %v7543
  %v7545 = vpop.f32.mrf.mxu0
  %7546 = vmatprep.mubr.bf16.mxu0 0
  %7547 = vmatmul.mubr.bf16.gmra.mxu0 %v7490
  %v7548 = vpop.f32.mrf.mxu0
  %v7549 = vadd.f32 0.0, %v7548
  %v7550 = vpop.f32.mrf.mxu0
  %v7551 = vpop.f32.mrf.mxu0
  %v7552 = vadd.f32 0.0, %v7551
  %v7553 = vpop.f32.mrf.mxu0
  %7554 = vmatprep.mubr.bf16.mxu0 0
  %7555 = vmatmul.mubr.bf16.gmra.mxu0 %v7493
  %v7556 = vpop.f32.mrf.mxu0
  %v7557 = vadd.f32 0.0, %v7556
  %v7558 = vpop.f32.mrf.mxu0
  %v7559 = vpop.f32.mrf.mxu0
  %v7560 = vadd.f32 0.0, %v7559
  %v7561 = vpop.f32.mrf.mxu0
  %7562 = vmatprep.mubr.bf16.mxu0 0
  %7563 = vmatmul.mubr.bf16.gmra.mxu0 %v7496
  %v7564 = vpop.f32.mrf.mxu0
  %v7565 = vadd.f32 0.0, %v7564
  %v7566 = vpop.f32.mrf.mxu0
  %v7567 = vpop.f32.mrf.mxu0
  %v7568 = vpop.f32.mrf.mxu0
  %7569 = vdwg.mxu0
  %v7570 = vadd.f32 %v7452, %v7533
  %v7571 = vadd.f32 %v7453, %v7536
  %v7572 = vadd.f32 %v7454, %v7541
  %v7573 = vadd.f32 %v7455, %v7544
  %v7574 = vadd.f32 %v7456, %v7549
  %v7575 = vadd.f32 %v7457, %v7552
  %v7576 = vadd.f32 %v7458, %v7557
  %v7577 = vadd.f32 %v7459, %v7560
  %v7578 = vadd.f32 %v7460, %v7565
  %v7579 = vpack.c.bf16 %v6473, %v6472
  %v7580 = vpack.c.bf16 %v6475, %v6474
  %v7581 = vpack.c.bf16 %v6477, %v6476
  %v7582 = vpack.c.bf16 %v6479, %v6478
  %v7583 = vpack.c.bf16 %v6480, %v6480
  %s7584 = scalar_lea.vmem %s3, 400
  %v7585 = vld [vmem:[%s7584] sm:$0xf]
  %v7586 = vld [vmem:[%s7584 + $0x4] sm:$0xf]
  %v7587 = vld [vmem:[%s7584 + $0x8] sm:$0xf]
  %v7588 = vld [vmem:[%s7584 + $0xc] sm:$0xf]
  %v7593 = vunpack.c.l.b16 %v7585
  %v7594 = vunpack.c.l.b16 %v7586
  %v7595 = vunpack.c.l.b16 %v7587
  %v7596 = vunpack.c.l.b16 %v7588
  %v7597 = vpack.c.b16 %v7594, %v7593
  %v7598 = vpack.c.b16 %v7596, %v7595
  %v7602 = vsel %vm1935, %v7579, 0
  %v7605 = vsel %vm1935, %v7580, 0
  %v7608 = vsel %vm1935, %v7581, 0
  %v7611 = vsel %vm1935, %v7582, 0
  %v7614 = vsel %vm1935, %v7583, 0
  %7616 = vmatprep.subr.bf16.mxu0 0
  %7617 = vmatpush1.bf16.msra.mxu0 0
  %7618 = vmatprep.subr.bf16.mxu0 0
  %7619 = vmatpush1.bf16.msra.mxu0 0
  %7620 = vmatprep.subr.bf16.mxu0 0
  %7621 = vmatpush1.bf16.msra.mxu0 0
  %7622 = vmatprep.subr.bf16.mxu0 0
  %7623 = vmatpush1.bf16.msra.mxu0 0
  %7624 = vmatprep.subr.bf16.mxu0 0
  %7625 = vmatpush1.bf16.msra.mxu0 0
  %7626 = vmatprep.subr.bf16.mxu0 0
  %7627 = vmatpush1.bf16.msra.mxu0 0
  %7628 = vmatprep.subr.bf16.mxu0 0
  %7629 = vmatpush1.bf16.msra.mxu0 %v7598
  %7630 = vmatprep.subr.bf16.mxu0 0
  %7631 = vmatpush1.bf16.msra.mxu0 %v7597
  %7632 = vmatprep.subr.bf16.mxu0 0
  %7633 = vmatpush2.bf16.msra.mxu0 0
  %7634 = vmatprep.subr.bf16.mxu0 0
  %7635 = vmatpush2.bf16.msra.mxu0 0
  %7636 = vmatprep.subr.bf16.mxu0 0
  %7637 = vmatpush2.bf16.msra.mxu0 0
  %7638 = vmatprep.subr.bf16.mxu0 0
  %7639 = vmatpush2.bf16.msra.mxu0 0
  %7640 = vmatprep.subr.bf16.mxu0 0
  %7641 = vmatpush2.bf16.msra.mxu0 0
  %7642 = vmatprep.subr.bf16.mxu0 0
  %7643 = vmatpush2.bf16.msra.mxu0 0
  %7644 = vmatprep.subr.bf16.mxu0 0
  %7645 = vmatpush2.bf16.msra.mxu0 0
  %7646 = vmatprep.subr.bf16.mxu0 0
  %7647 = vmatpush2.bf16.msra.mxu0 0
  %7648 = vmatprep.mubr.bf16.mxu0 0
  %7649 = vmatmul.mubr.bf16.gmra.mxu0 %v7602
  %v7650 = vpop.f32.mrf.mxu0
  %v7651 = vadd.f32 0.0, %v7650
  %v7652 = vpop.f32.mrf.mxu0
  %v7653 = vpop.f32.mrf.mxu0
  %v7654 = vadd.f32 0.0, %v7653
  %v7655 = vpop.f32.mrf.mxu0
  %7656 = vmatprep.mubr.bf16.mxu0 0
  %7657 = vmatmul.mubr.bf16.gmra.mxu0 %v7605
  %v7658 = vpop.f32.mrf.mxu0
  %v7659 = vadd.f32 0.0, %v7658
  %v7660 = vpop.f32.mrf.mxu0
  %v7661 = vpop.f32.mrf.mxu0
  %v7662 = vadd.f32 0.0, %v7661
  %v7663 = vpop.f32.mrf.mxu0
  %7664 = vmatprep.mubr.bf16.mxu0 0
  %7665 = vmatmul.mubr.bf16.gmra.mxu0 %v7608
  %v7666 = vpop.f32.mrf.mxu0
  %v7667 = vadd.f32 0.0, %v7666
  %v7668 = vpop.f32.mrf.mxu0
  %v7669 = vpop.f32.mrf.mxu0
  %v7670 = vadd.f32 0.0, %v7669
  %v7671 = vpop.f32.mrf.mxu0
  %7672 = vmatprep.mubr.bf16.mxu0 0
  %7673 = vmatmul.mubr.bf16.gmra.mxu0 %v7611
  %v7674 = vpop.f32.mrf.mxu0
  %v7675 = vadd.f32 0.0, %v7674
  %v7676 = vpop.f32.mrf.mxu0
  %v7677 = vpop.f32.mrf.mxu0
  %v7678 = vadd.f32 0.0, %v7677
  %v7679 = vpop.f32.mrf.mxu0
  %7680 = vmatprep.mubr.bf16.mxu0 0
  %7681 = vmatmul.mubr.bf16.gmra.mxu0 %v7614
  %v7682 = vpop.f32.mrf.mxu0
  %v7683 = vadd.f32 0.0, %v7682
  %v7684 = vpop.f32.mrf.mxu0
  %v7685 = vpop.f32.mrf.mxu0
  %v7686 = vpop.f32.mrf.mxu0
  %7687 = vdwg.mxu0
  %v7688 = vadd.f32 %v7570, %v7651
  %v7689 = vadd.f32 %v7571, %v7654
  %v7690 = vadd.f32 %v7572, %v7659
  %v7691 = vadd.f32 %v7573, %v7662
  %v7692 = vadd.f32 %v7574, %v7667
  %v7693 = vadd.f32 %v7575, %v7670
  %v7694 = vadd.f32 %v7576, %v7675
  %v7695 = vadd.f32 %v7577, %v7678
  %v7696 = vadd.f32 %v7578, %v7683
  %v7697 = vpack.c.bf16 %v6482, %v6481
  %v7698 = vpack.c.bf16 %v6484, %v6483
  %v7699 = vpack.c.bf16 %v6486, %v6485
  %v7700 = vpack.c.bf16 %v6488, %v6487
  %v7701 = vpack.c.bf16 %v6489, %v6489
  %s7702 = scalar_lea.vmem %s3, 416
  %v7703 = vld [vmem:[%s7702] sm:$0xf]
  %v7704 = vld [vmem:[%s7702 + $0x4] sm:$0xf]
  %v7705 = vld [vmem:[%s7702 + $0x8] sm:$0xf]
  %v7706 = vld [vmem:[%s7702 + $0xc] sm:$0xf]
  %v7711 = vunpack.c.l.b16 %v7703
  %v7712 = vunpack.c.l.b16 %v7704
  %v7713 = vunpack.c.l.b16 %v7705
  %v7714 = vunpack.c.l.b16 %v7706
  %v7715 = vpack.c.b16 %v7712, %v7711
  %v7716 = vpack.c.b16 %v7714, %v7713
  %v7720 = vsel %vm1935, %v7697, 0
  %v7723 = vsel %vm1935, %v7698, 0
  %v7726 = vsel %vm1935, %v7699, 0
  %v7729 = vsel %vm1935, %v7700, 0
  %v7732 = vsel %vm1935, %v7701, 0
  %7734 = vmatprep.subr.bf16.mxu0 0
  %7735 = vmatpush1.bf16.msra.mxu0 0
  %7736 = vmatprep.subr.bf16.mxu0 0
  %7737 = vmatpush1.bf16.msra.mxu0 0
  %7738 = vmatprep.subr.bf16.mxu0 0
  %7739 = vmatpush1.bf16.msra.mxu0 0
  %7740 = vmatprep.subr.bf16.mxu0 0
  %7741 = vmatpush1.bf16.msra.mxu0 0
  %7742 = vmatprep.subr.bf16.mxu0 0
  %7743 = vmatpush1.bf16.msra.mxu0 0
  %7744 = vmatprep.subr.bf16.mxu0 0
  %7745 = vmatpush1.bf16.msra.mxu0 0
  %7746 = vmatprep.subr.bf16.mxu0 0
  %7747 = vmatpush1.bf16.msra.mxu0 %v7716
  %7748 = vmatprep.subr.bf16.mxu0 0
  %7749 = vmatpush1.bf16.msra.mxu0 %v7715
  %7750 = vmatprep.subr.bf16.mxu0 0
  %7751 = vmatpush2.bf16.msra.mxu0 0
  %7752 = vmatprep.subr.bf16.mxu0 0
  %7753 = vmatpush2.bf16.msra.mxu0 0
  %7754 = vmatprep.subr.bf16.mxu0 0
  %7755 = vmatpush2.bf16.msra.mxu0 0
  %7756 = vmatprep.subr.bf16.mxu0 0
  %7757 = vmatpush2.bf16.msra.mxu0 0
  %7758 = vmatprep.subr.bf16.mxu0 0
  %7759 = vmatpush2.bf16.msra.mxu0 0
  %7760 = vmatprep.subr.bf16.mxu0 0
  %7761 = vmatpush2.bf16.msra.mxu0 0
  %7762 = vmatprep.subr.bf16.mxu0 0
  %7763 = vmatpush2.bf16.msra.mxu0 0
  %7764 = vmatprep.subr.bf16.mxu0 0
  %7765 = vmatpush2.bf16.msra.mxu0 0
  %7766 = vmatprep.mubr.bf16.mxu0 0
  %7767 = vmatmul.mubr.bf16.gmra.mxu0 %v7720
  %v7768 = vpop.f32.mrf.mxu0
  %v7769 = vadd.f32 0.0, %v7768
  %v7770 = vpop.f32.mrf.mxu0
  %v7771 = vpop.f32.mrf.mxu0
  %v7772 = vadd.f32 0.0, %v7771
  %v7773 = vpop.f32.mrf.mxu0
  %7774 = vmatprep.mubr.bf16.mxu0 0
  %7775 = vmatmul.mubr.bf16.gmra.mxu0 %v7723
  %v7776 = vpop.f32.mrf.mxu0
  %v7777 = vadd.f32 0.0, %v7776
  %v7778 = vpop.f32.mrf.mxu0
  %v7779 = vpop.f32.mrf.mxu0
  %v7780 = vadd.f32 0.0, %v7779
  %v7781 = vpop.f32.mrf.mxu0
  %7782 = vmatprep.mubr.bf16.mxu0 0
  %7783 = vmatmul.mubr.bf16.gmra.mxu0 %v7726
  %v7784 = vpop.f32.mrf.mxu0
  %v7785 = vadd.f32 0.0, %v7784
  %v7786 = vpop.f32.mrf.mxu0
  %v7787 = vpop.f32.mrf.mxu0
  %v7788 = vadd.f32 0.0, %v7787
  %v7789 = vpop.f32.mrf.mxu0
  %7790 = vmatprep.mubr.bf16.mxu0 0
  %7791 = vmatmul.mubr.bf16.gmra.mxu0 %v7729
  %v7792 = vpop.f32.mrf.mxu0
  %v7793 = vadd.f32 0.0, %v7792
  %v7794 = vpop.f32.mrf.mxu0
  %v7795 = vpop.f32.mrf.mxu0
  %v7796 = vadd.f32 0.0, %v7795
  %v7797 = vpop.f32.mrf.mxu0
  %7798 = vmatprep.mubr.bf16.mxu0 0
  %7799 = vmatmul.mubr.bf16.gmra.mxu0 %v7732
  %v7800 = vpop.f32.mrf.mxu0
  %v7801 = vadd.f32 0.0, %v7800
  %v7802 = vpop.f32.mrf.mxu0
  %v7803 = vpop.f32.mrf.mxu0
  %v7804 = vpop.f32.mrf.mxu0
  %7805 = vdwg.mxu0
  %v7806 = vadd.f32 %v7688, %v7769
  %v7807 = vadd.f32 %v7689, %v7772
  %v7808 = vadd.f32 %v7690, %v7777
  %v7809 = vadd.f32 %v7691, %v7780
  %v7810 = vadd.f32 %v7692, %v7785
  %v7811 = vadd.f32 %v7693, %v7788
  %v7812 = vadd.f32 %v7694, %v7793
  %v7813 = vadd.f32 %v7695, %v7796
  %v7814 = vadd.f32 %v7696, %v7801
  %v7815 = vpack.c.bf16 %v6491, %v6490
  %v7816 = vpack.c.bf16 %v6493, %v6492
  %v7817 = vpack.c.bf16 %v6495, %v6494
  %v7818 = vpack.c.bf16 %v6497, %v6496
  %v7819 = vpack.c.bf16 %v6498, %v6498
  %s7820 = scalar_lea.vmem %s3, 432
  %v7821 = vld [vmem:[%s7820] sm:$0xf]
  %v7822 = vld [vmem:[%s7820 + $0x4] sm:$0xf]
  %v7823 = vld [vmem:[%s7820 + $0x8] sm:$0xf]
  %v7824 = vld [vmem:[%s7820 + $0xc] sm:$0xf]
  %v7829 = vunpack.c.l.b16 %v7821
  %v7830 = vunpack.c.l.b16 %v7822
  %v7831 = vunpack.c.l.b16 %v7823
  %v7832 = vunpack.c.l.b16 %v7824
  %v7833 = vpack.c.b16 %v7830, %v7829
  %v7834 = vpack.c.b16 %v7832, %v7831
  %v7838 = vsel %vm1935, %v7815, 0
  %v7841 = vsel %vm1935, %v7816, 0
  %v7844 = vsel %vm1935, %v7817, 0
  %v7847 = vsel %vm1935, %v7818, 0
  %v7850 = vsel %vm1935, %v7819, 0
  %7852 = vmatprep.subr.bf16.mxu0 0
  %7853 = vmatpush1.bf16.msra.mxu0 0
  %7854 = vmatprep.subr.bf16.mxu0 0
  %7855 = vmatpush1.bf16.msra.mxu0 0
  %7856 = vmatprep.subr.bf16.mxu0 0
  %7857 = vmatpush1.bf16.msra.mxu0 0
  %7858 = vmatprep.subr.bf16.mxu0 0
  %7859 = vmatpush1.bf16.msra.mxu0 0
  %7860 = vmatprep.subr.bf16.mxu0 0
  %7861 = vmatpush1.bf16.msra.mxu0 0
  %7862 = vmatprep.subr.bf16.mxu0 0
  %7863 = vmatpush1.bf16.msra.mxu0 0
  %7864 = vmatprep.subr.bf16.mxu0 0
  %7865 = vmatpush1.bf16.msra.mxu0 %v7834
  %7866 = vmatprep.subr.bf16.mxu0 0
  %7867 = vmatpush1.bf16.msra.mxu0 %v7833
  %7868 = vmatprep.subr.bf16.mxu0 0
  %7869 = vmatpush2.bf16.msra.mxu0 0
  %7870 = vmatprep.subr.bf16.mxu0 0
  %7871 = vmatpush2.bf16.msra.mxu0 0
  %7872 = vmatprep.subr.bf16.mxu0 0
  %7873 = vmatpush2.bf16.msra.mxu0 0
  %7874 = vmatprep.subr.bf16.mxu0 0
  %7875 = vmatpush2.bf16.msra.mxu0 0
  %7876 = vmatprep.subr.bf16.mxu0 0
  %7877 = vmatpush2.bf16.msra.mxu0 0
  %7878 = vmatprep.subr.bf16.mxu0 0
  %7879 = vmatpush2.bf16.msra.mxu0 0
  %7880 = vmatprep.subr.bf16.mxu0 0
  %7881 = vmatpush2.bf16.msra.mxu0 0
  %7882 = vmatprep.subr.bf16.mxu0 0
  %7883 = vmatpush2.bf16.msra.mxu0 0
  %7884 = vmatprep.mubr.bf16.mxu0 0
  %7885 = vmatmul.mubr.bf16.gmra.mxu0 %v7838
  %v7886 = vpop.f32.mrf.mxu0
  %v7887 = vadd.f32 0.0, %v7886
  %v7888 = vpop.f32.mrf.mxu0
  %v7889 = vpop.f32.mrf.mxu0
  %v7890 = vadd.f32 0.0, %v7889
  %v7891 = vpop.f32.mrf.mxu0
  %7892 = vmatprep.mubr.bf16.mxu0 0
  %7893 = vmatmul.mubr.bf16.gmra.mxu0 %v7841
  %v7894 = vpop.f32.mrf.mxu0
  %v7895 = vadd.f32 0.0, %v7894
  %v7896 = vpop.f32.mrf.mxu0
  %v7897 = vpop.f32.mrf.mxu0
  %v7898 = vadd.f32 0.0, %v7897
  %v7899 = vpop.f32.mrf.mxu0
  %7900 = vmatprep.mubr.bf16.mxu0 0
  %7901 = vmatmul.mubr.bf16.gmra.mxu0 %v7844
  %v7902 = vpop.f32.mrf.mxu0
  %v7903 = vadd.f32 0.0, %v7902
  %v7904 = vpop.f32.mrf.mxu0
  %v7905 = vpop.f32.mrf.mxu0
  %v7906 = vadd.f32 0.0, %v7905
  %v7907 = vpop.f32.mrf.mxu0
  %7908 = vmatprep.mubr.bf16.mxu0 0
  %7909 = vmatmul.mubr.bf16.gmra.mxu0 %v7847
  %v7910 = vpop.f32.mrf.mxu0
  %v7911 = vadd.f32 0.0, %v7910
  %v7912 = vpop.f32.mrf.mxu0
  %v7913 = vpop.f32.mrf.mxu0
  %v7914 = vadd.f32 0.0, %v7913
  %v7915 = vpop.f32.mrf.mxu0
  %7916 = vmatprep.mubr.bf16.mxu0 0
  %7917 = vmatmul.mubr.bf16.gmra.mxu0 %v7850
  %v7918 = vpop.f32.mrf.mxu0
  %v7919 = vadd.f32 0.0, %v7918
  %v7920 = vpop.f32.mrf.mxu0
  %v7921 = vpop.f32.mrf.mxu0
  %v7922 = vpop.f32.mrf.mxu0
  %7923 = vdwg.mxu0
  %v7924 = vadd.f32 %v7806, %v7887
  %v7925 = vadd.f32 %v7807, %v7890
  %v7926 = vadd.f32 %v7808, %v7895
  %v7927 = vadd.f32 %v7809, %v7898
  %v7928 = vadd.f32 %v7810, %v7903
  %v7929 = vadd.f32 %v7811, %v7906
  %v7930 = vadd.f32 %v7812, %v7911
  %v7931 = vadd.f32 %v7813, %v7914
  %v7932 = vadd.f32 %v7814, %v7919
  %v7933 = vpack.c.bf16 %v6500, %v6499
  %v7934 = vpack.c.bf16 %v6502, %v6501
  %v7935 = vpack.c.bf16 %v6504, %v6503
  %v7936 = vpack.c.bf16 %v6506, %v6505
  %v7937 = vpack.c.bf16 %v6507, %v6507
  %s7938 = scalar_lea.vmem %s3, 448
  %v7939 = vld [vmem:[%s7938] sm:$0xf]
  %v7940 = vld [vmem:[%s7938 + $0x4] sm:$0xf]
  %v7941 = vld [vmem:[%s7938 + $0x8] sm:$0xf]
  %v7942 = vld [vmem:[%s7938 + $0xc] sm:$0xf]
  %v7947 = vunpack.c.l.b16 %v7939
  %v7948 = vunpack.c.l.b16 %v7940
  %v7949 = vunpack.c.l.b16 %v7941
  %v7950 = vunpack.c.l.b16 %v7942
  %v7951 = vpack.c.b16 %v7948, %v7947
  %v7952 = vpack.c.b16 %v7950, %v7949
  %v7956 = vsel %vm1935, %v7933, 0
  %v7959 = vsel %vm1935, %v7934, 0
  %v7962 = vsel %vm1935, %v7935, 0
  %v7965 = vsel %vm1935, %v7936, 0
  %v7968 = vsel %vm1935, %v7937, 0
  %7970 = vmatprep.subr.bf16.mxu0 0
  %7971 = vmatpush1.bf16.msra.mxu0 0
  %7972 = vmatprep.subr.bf16.mxu0 0
  %7973 = vmatpush1.bf16.msra.mxu0 0
  %7974 = vmatprep.subr.bf16.mxu0 0
  %7975 = vmatpush1.bf16.msra.mxu0 0
  %7976 = vmatprep.subr.bf16.mxu0 0
  %7977 = vmatpush1.bf16.msra.mxu0 0
  %7978 = vmatprep.subr.bf16.mxu0 0
  %7979 = vmatpush1.bf16.msra.mxu0 0
  %7980 = vmatprep.subr.bf16.mxu0 0
  %7981 = vmatpush1.bf16.msra.mxu0 0
  %7982 = vmatprep.subr.bf16.mxu0 0
  %7983 = vmatpush1.bf16.msra.mxu0 %v7952
  %7984 = vmatprep.subr.bf16.mxu0 0
  %7985 = vmatpush1.bf16.msra.mxu0 %v7951
  %7986 = vmatprep.subr.bf16.mxu0 0
  %7987 = vmatpush2.bf16.msra.mxu0 0
  %7988 = vmatprep.subr.bf16.mxu0 0
  %7989 = vmatpush2.bf16.msra.mxu0 0
  %7990 = vmatprep.subr.bf16.mxu0 0
  %7991 = vmatpush2.bf16.msra.mxu0 0
  %7992 = vmatprep.subr.bf16.mxu0 0
  %7993 = vmatpush2.bf16.msra.mxu0 0
  %7994 = vmatprep.subr.bf16.mxu0 0
  %7995 = vmatpush2.bf16.msra.mxu0 0
  %7996 = vmatprep.subr.bf16.mxu0 0
  %7997 = vmatpush2.bf16.msra.mxu0 0
  %7998 = vmatprep.subr.bf16.mxu0 0
  %7999 = vmatpush2.bf16.msra.mxu0 0
  %8000 = vmatprep.subr.bf16.mxu0 0
  %8001 = vmatpush2.bf16.msra.mxu0 0
  %8002 = vmatprep.mubr.bf16.mxu0 0
  %8003 = vmatmul.mubr.bf16.gmra.mxu0 %v7956
  %v8004 = vpop.f32.mrf.mxu0
  %v8005 = vadd.f32 0.0, %v8004
  %v8006 = vpop.f32.mrf.mxu0
  %v8007 = vpop.f32.mrf.mxu0
  %v8008 = vadd.f32 0.0, %v8007
  %v8009 = vpop.f32.mrf.mxu0
  %8010 = vmatprep.mubr.bf16.mxu0 0
  %8011 = vmatmul.mubr.bf16.gmra.mxu0 %v7959
  %v8012 = vpop.f32.mrf.mxu0
  %v8013 = vadd.f32 0.0, %v8012
  %v8014 = vpop.f32.mrf.mxu0
  %v8015 = vpop.f32.mrf.mxu0
  %v8016 = vadd.f32 0.0, %v8015
  %v8017 = vpop.f32.mrf.mxu0
  %8018 = vmatprep.mubr.bf16.mxu0 0
  %8019 = vmatmul.mubr.bf16.gmra.mxu0 %v7962
  %v8020 = vpop.f32.mrf.mxu0
  %v8021 = vadd.f32 0.0, %v8020
  %v8022 = vpop.f32.mrf.mxu0
  %v8023 = vpop.f32.mrf.mxu0
  %v8024 = vadd.f32 0.0, %v8023
  %v8025 = vpop.f32.mrf.mxu0
  %8026 = vmatprep.mubr.bf16.mxu0 0
  %8027 = vmatmul.mubr.bf16.gmra.mxu0 %v7965
  %v8028 = vpop.f32.mrf.mxu0
  %v8029 = vadd.f32 0.0, %v8028
  %v8030 = vpop.f32.mrf.mxu0
  %v8031 = vpop.f32.mrf.mxu0
  %v8032 = vadd.f32 0.0, %v8031
  %v8033 = vpop.f32.mrf.mxu0
  %8034 = vmatprep.mubr.bf16.mxu0 0
  %8035 = vmatmul.mubr.bf16.gmra.mxu0 %v7968
  %v8036 = vpop.f32.mrf.mxu0
  %v8037 = vadd.f32 0.0, %v8036
  %v8038 = vpop.f32.mrf.mxu0
  %v8039 = vpop.f32.mrf.mxu0
  %v8040 = vpop.f32.mrf.mxu0
  %8041 = vdwg.mxu0
  %v8042 = vadd.f32 %v7924, %v8005
  %v8043 = vadd.f32 %v7925, %v8008
  %v8044 = vadd.f32 %v7926, %v8013
  %v8045 = vadd.f32 %v7927, %v8016
  %v8046 = vadd.f32 %v7928, %v8021
  %v8047 = vadd.f32 %v7929, %v8024
  %v8048 = vadd.f32 %v7930, %v8029
  %v8049 = vadd.f32 %v7931, %v8032
  %v8050 = vadd.f32 %v7932, %v8037
  %v8051 = vpack.c.bf16 %v6509, %v6508
  %v8052 = vpack.c.bf16 %v6511, %v6510
  %v8053 = vpack.c.bf16 %v6513, %v6512
  %v8054 = vpack.c.bf16 %v6515, %v6514
  %v8055 = vpack.c.bf16 %v6516, %v6516
  %s8056 = scalar_lea.vmem %s3, 464
  %v8057 = vld [vmem:[%s8056] sm:$0xf]
  %v8058 = vld [vmem:[%s8056 + $0x4] sm:$0xf]
  %v8059 = vld [vmem:[%s8056 + $0x8] sm:$0xf]
  %v8060 = vld [vmem:[%s8056 + $0xc] sm:$0xf]
  %v8065 = vunpack.c.l.b16 %v8057
  %v8066 = vunpack.c.l.b16 %v8058
  %v8067 = vunpack.c.l.b16 %v8059
  %v8068 = vunpack.c.l.b16 %v8060
  %v8069 = vpack.c.b16 %v8066, %v8065
  %v8070 = vpack.c.b16 %v8068, %v8067
  %v8074 = vsel %vm1935, %v8051, 0
  %v8077 = vsel %vm1935, %v8052, 0
  %v8080 = vsel %vm1935, %v8053, 0
  %v8083 = vsel %vm1935, %v8054, 0
  %v8086 = vsel %vm1935, %v8055, 0
  %8088 = vmatprep.subr.bf16.mxu0 0
  %8089 = vmatpush1.bf16.msra.mxu0 0
  %8090 = vmatprep.subr.bf16.mxu0 0
  %8091 = vmatpush1.bf16.msra.mxu0 0
  %8092 = vmatprep.subr.bf16.mxu0 0
  %8093 = vmatpush1.bf16.msra.mxu0 0
  %8094 = vmatprep.subr.bf16.mxu0 0
  %8095 = vmatpush1.bf16.msra.mxu0 0
  %8096 = vmatprep.subr.bf16.mxu0 0
  %8097 = vmatpush1.bf16.msra.mxu0 0
  %8098 = vmatprep.subr.bf16.mxu0 0
  %8099 = vmatpush1.bf16.msra.mxu0 0
  %8100 = vmatprep.subr.bf16.mxu0 0
  %8101 = vmatpush1.bf16.msra.mxu0 %v8070
  %8102 = vmatprep.subr.bf16.mxu0 0
  %8103 = vmatpush1.bf16.msra.mxu0 %v8069
  %8104 = vmatprep.subr.bf16.mxu0 0
  %8105 = vmatpush2.bf16.msra.mxu0 0
  %8106 = vmatprep.subr.bf16.mxu0 0
  %8107 = vmatpush2.bf16.msra.mxu0 0
  %8108 = vmatprep.subr.bf16.mxu0 0
  %8109 = vmatpush2.bf16.msra.mxu0 0
  %8110 = vmatprep.subr.bf16.mxu0 0
  %8111 = vmatpush2.bf16.msra.mxu0 0
  %8112 = vmatprep.subr.bf16.mxu0 0
  %8113 = vmatpush2.bf16.msra.mxu0 0
  %8114 = vmatprep.subr.bf16.mxu0 0
  %8115 = vmatpush2.bf16.msra.mxu0 0
  %8116 = vmatprep.subr.bf16.mxu0 0
  %8117 = vmatpush2.bf16.msra.mxu0 0
  %8118 = vmatprep.subr.bf16.mxu0 0
  %8119 = vmatpush2.bf16.msra.mxu0 0
  %8120 = vmatprep.mubr.bf16.mxu0 0
  %8121 = vmatmul.mubr.bf16.gmra.mxu0 %v8074
  %v8122 = vpop.f32.mrf.mxu0
  %v8123 = vadd.f32 0.0, %v8122
  %v8124 = vpop.f32.mrf.mxu0
  %v8125 = vpop.f32.mrf.mxu0
  %v8126 = vadd.f32 0.0, %v8125
  %v8127 = vpop.f32.mrf.mxu0
  %8128 = vmatprep.mubr.bf16.mxu0 0
  %8129 = vmatmul.mubr.bf16.gmra.mxu0 %v8077
  %v8130 = vpop.f32.mrf.mxu0
  %v8131 = vadd.f32 0.0, %v8130
  %v8132 = vpop.f32.mrf.mxu0
  %v8133 = vpop.f32.mrf.mxu0
  %v8134 = vadd.f32 0.0, %v8133
  %v8135 = vpop.f32.mrf.mxu0
  %8136 = vmatprep.mubr.bf16.mxu0 0
  %8137 = vmatmul.mubr.bf16.gmra.mxu0 %v8080
  %v8138 = vpop.f32.mrf.mxu0
  %v8139 = vadd.f32 0.0, %v8138
  %v8140 = vpop.f32.mrf.mxu0
  %v8141 = vpop.f32.mrf.mxu0
  %v8142 = vadd.f32 0.0, %v8141
  %v8143 = vpop.f32.mrf.mxu0
  %8144 = vmatprep.mubr.bf16.mxu0 0
  %8145 = vmatmul.mubr.bf16.gmra.mxu0 %v8083
  %v8146 = vpop.f32.mrf.mxu0
  %v8147 = vadd.f32 0.0, %v8146
  %v8148 = vpop.f32.mrf.mxu0
  %v8149 = vpop.f32.mrf.mxu0
  %v8150 = vadd.f32 0.0, %v8149
  %v8151 = vpop.f32.mrf.mxu0
  %8152 = vmatprep.mubr.bf16.mxu0 0
  %8153 = vmatmul.mubr.bf16.gmra.mxu0 %v8086
  %v8154 = vpop.f32.mrf.mxu0
  %v8155 = vadd.f32 0.0, %v8154
  %v8156 = vpop.f32.mrf.mxu0
  %v8157 = vpop.f32.mrf.mxu0
  %v8158 = vpop.f32.mrf.mxu0
  %8159 = vdwg.mxu0
  %v8160 = vadd.f32 %v8042, %v8123
  %v8161 = vadd.f32 %v8043, %v8126
  %v8162 = vadd.f32 %v8044, %v8131
  %v8163 = vadd.f32 %v8045, %v8134
  %v8164 = vadd.f32 %v8046, %v8139
  %v8165 = vadd.f32 %v8047, %v8142
  %v8166 = vadd.f32 %v8048, %v8147
  %v8167 = vadd.f32 %v8049, %v8150
  %v8168 = vadd.f32 %v8050, %v8155
  %v8169 = vpack.c.bf16 %v6518, %v6517
  %v8170 = vpack.c.bf16 %v6520, %v6519
  %v8171 = vpack.c.bf16 %v6522, %v6521
  %v8172 = vpack.c.bf16 %v6524, %v6523
  %v8173 = vpack.c.bf16 %v6525, %v6525
  %s8174 = scalar_lea.vmem %s3, 480
  %v8175 = vld [vmem:[%s8174] sm:$0xf]
  %v8176 = vld [vmem:[%s8174 + $0x4] sm:$0xf]
  %v8177 = vld [vmem:[%s8174 + $0x8] sm:$0xf]
  %v8178 = vld [vmem:[%s8174 + $0xc] sm:$0xf]
  %v8183 = vunpack.c.l.b16 %v8175
  %v8184 = vunpack.c.l.b16 %v8176
  %v8185 = vunpack.c.l.b16 %v8177
  %v8186 = vunpack.c.l.b16 %v8178
  %v8187 = vpack.c.b16 %v8184, %v8183
  %v8188 = vpack.c.b16 %v8186, %v8185
  %v8192 = vsel %vm1935, %v8169, 0
  %v8195 = vsel %vm1935, %v8170, 0
  %v8198 = vsel %vm1935, %v8171, 0
  %v8201 = vsel %vm1935, %v8172, 0
  %v8204 = vsel %vm1935, %v8173, 0
  %8206 = vmatprep.subr.bf16.mxu0 0
  %8207 = vmatpush1.bf16.msra.mxu0 0
  %8208 = vmatprep.subr.bf16.mxu0 0
  %8209 = vmatpush1.bf16.msra.mxu0 0
  %8210 = vmatprep.subr.bf16.mxu0 0
  %8211 = vmatpush1.bf16.msra.mxu0 0
  %8212 = vmatprep.subr.bf16.mxu0 0
  %8213 = vmatpush1.bf16.msra.mxu0 0
  %8214 = vmatprep.subr.bf16.mxu0 0
  %8215 = vmatpush1.bf16.msra.mxu0 0
  %8216 = vmatprep.subr.bf16.mxu0 0
  %8217 = vmatpush1.bf16.msra.mxu0 0
  %8218 = vmatprep.subr.bf16.mxu0 0
  %8219 = vmatpush1.bf16.msra.mxu0 %v8188
  %8220 = vmatprep.subr.bf16.mxu0 0
  %8221 = vmatpush1.bf16.msra.mxu0 %v8187
  %8222 = vmatprep.subr.bf16.mxu0 0
  %8223 = vmatpush2.bf16.msra.mxu0 0
  %8224 = vmatprep.subr.bf16.mxu0 0
  %8225 = vmatpush2.bf16.msra.mxu0 0
  %8226 = vmatprep.subr.bf16.mxu0 0
  %8227 = vmatpush2.bf16.msra.mxu0 0
  %8228 = vmatprep.subr.bf16.mxu0 0
  %8229 = vmatpush2.bf16.msra.mxu0 0
  %8230 = vmatprep.subr.bf16.mxu0 0
  %8231 = vmatpush2.bf16.msra.mxu0 0
  %8232 = vmatprep.subr.bf16.mxu0 0
  %8233 = vmatpush2.bf16.msra.mxu0 0
  %8234 = vmatprep.subr.bf16.mxu0 0
  %8235 = vmatpush2.bf16.msra.mxu0 0
  %8236 = vmatprep.subr.bf16.mxu0 0
  %8237 = vmatpush2.bf16.msra.mxu0 0
  %8238 = vmatprep.mubr.bf16.mxu0 0
  %8239 = vmatmul.mubr.bf16.gmra.mxu0 %v8192
  %v8240 = vpop.f32.mrf.mxu0
  %v8241 = vadd.f32 0.0, %v8240
  %v8242 = vpop.f32.mrf.mxu0
  %v8243 = vpop.f32.mrf.mxu0
  %v8244 = vadd.f32 0.0, %v8243
  %v8245 = vpop.f32.mrf.mxu0
  %8246 = vmatprep.mubr.bf16.mxu0 0
  %8247 = vmatmul.mubr.bf16.gmra.mxu0 %v8195
  %v8248 = vpop.f32.mrf.mxu0
  %v8249 = vadd.f32 0.0, %v8248
  %v8250 = vpop.f32.mrf.mxu0
  %v8251 = vpop.f32.mrf.mxu0
  %v8252 = vadd.f32 0.0, %v8251
  %v8253 = vpop.f32.mrf.mxu0
  %8254 = vmatprep.mubr.bf16.mxu0 0
  %8255 = vmatmul.mubr.bf16.gmra.mxu0 %v8198
  %v8256 = vpop.f32.mrf.mxu0
  %v8257 = vadd.f32 0.0, %v8256
  %v8258 = vpop.f32.mrf.mxu0
  %v8259 = vpop.f32.mrf.mxu0
  %v8260 = vadd.f32 0.0, %v8259
  %v8261 = vpop.f32.mrf.mxu0
  %8262 = vmatprep.mubr.bf16.mxu0 0
  %8263 = vmatmul.mubr.bf16.gmra.mxu0 %v8201
  %v8264 = vpop.f32.mrf.mxu0
  %v8265 = vadd.f32 0.0, %v8264
  %v8266 = vpop.f32.mrf.mxu0
  %v8267 = vpop.f32.mrf.mxu0
  %v8268 = vadd.f32 0.0, %v8267
  %v8269 = vpop.f32.mrf.mxu0
  %8270 = vmatprep.mubr.bf16.mxu0 0
  %8271 = vmatmul.mubr.bf16.gmra.mxu0 %v8204
  %v8272 = vpop.f32.mrf.mxu0
  %v8273 = vadd.f32 0.0, %v8272
  %v8274 = vpop.f32.mrf.mxu0
  %v8275 = vpop.f32.mrf.mxu0
  %v8276 = vpop.f32.mrf.mxu0
  %8277 = vdwg.mxu0
  %v8278 = vadd.f32 %v8160, %v8241
  %v8279 = vadd.f32 %v8161, %v8244
  %v8280 = vadd.f32 %v8162, %v8249
  %v8281 = vadd.f32 %v8163, %v8252
  %v8282 = vadd.f32 %v8164, %v8257
  %v8283 = vadd.f32 %v8165, %v8260
  %v8284 = vadd.f32 %v8166, %v8265
  %v8285 = vadd.f32 %v8167, %v8268
  %v8286 = vadd.f32 %v8168, %v8273
  %v8287 = vpack.c.bf16 %v6527, %v6526
  %v8288 = vpack.c.bf16 %v6529, %v6528
  %v8289 = vpack.c.bf16 %v6531, %v6530
  %v8290 = vpack.c.bf16 %v6533, %v6532
  %v8291 = vpack.c.bf16 %v6534, %v6534
  %s8292 = scalar_lea.vmem %s3, 496
  %v8293 = vld [vmem:[%s8292] sm:$0xf]
  %v8294 = vld [vmem:[%s8292 + $0x4] sm:$0xf]
  %v8295 = vld [vmem:[%s8292 + $0x8] sm:$0xf]
  %v8296 = vld [vmem:[%s8292 + $0xc] sm:$0xf]
  %v8301 = vunpack.c.l.b16 %v8293
  %v8302 = vunpack.c.l.b16 %v8294
  %v8303 = vunpack.c.l.b16 %v8295
  %v8304 = vunpack.c.l.b16 %v8296
  %v8305 = vpack.c.b16 %v8302, %v8301
  %v8306 = vpack.c.b16 %v8304, %v8303
  %v8310 = vsel %vm1935, %v8287, 0
  %v8313 = vsel %vm1935, %v8288, 0
  %v8316 = vsel %vm1935, %v8289, 0
  %v8319 = vsel %vm1935, %v8290, 0
  %v8322 = vsel %vm1935, %v8291, 0
  %8324 = vmatprep.subr.bf16.mxu0 0
  %8325 = vmatpush1.bf16.msra.mxu0 0
  %8326 = vmatprep.subr.bf16.mxu0 0
  %8327 = vmatpush1.bf16.msra.mxu0 0
  %8328 = vmatprep.subr.bf16.mxu0 0
  %8329 = vmatpush1.bf16.msra.mxu0 0
  %8330 = vmatprep.subr.bf16.mxu0 0
  %8331 = vmatpush1.bf16.msra.mxu0 0
  %8332 = vmatprep.subr.bf16.mxu0 0
  %8333 = vmatpush1.bf16.msra.mxu0 0
  %8334 = vmatprep.subr.bf16.mxu0 0
  %8335 = vmatpush1.bf16.msra.mxu0 0
  %8336 = vmatprep.subr.bf16.mxu0 0
  %8337 = vmatpush1.bf16.msra.mxu0 %v8306
  %8338 = vmatprep.subr.bf16.mxu0 0
  %8339 = vmatpush1.bf16.msra.mxu0 %v8305
  %8340 = vmatprep.subr.bf16.mxu0 0
  %8341 = vmatpush2.bf16.msra.mxu0 0
  %8342 = vmatprep.subr.bf16.mxu0 0
  %8343 = vmatpush2.bf16.msra.mxu0 0
  %8344 = vmatprep.subr.bf16.mxu0 0
  %8345 = vmatpush2.bf16.msra.mxu0 0
  %8346 = vmatprep.subr.bf16.mxu0 0
  %8347 = vmatpush2.bf16.msra.mxu0 0
  %8348 = vmatprep.subr.bf16.mxu0 0
  %8349 = vmatpush2.bf16.msra.mxu0 0
  %8350 = vmatprep.subr.bf16.mxu0 0
  %8351 = vmatpush2.bf16.msra.mxu0 0
  %8352 = vmatprep.subr.bf16.mxu0 0
  %8353 = vmatpush2.bf16.msra.mxu0 0
  %8354 = vmatprep.subr.bf16.mxu0 0
  %8355 = vmatpush2.bf16.msra.mxu0 0
  %8356 = vmatprep.mubr.bf16.mxu0 0
  %8357 = vmatmul.mubr.bf16.gmra.mxu0 %v8310
  %v8358 = vpop.f32.mrf.mxu0
  %v8359 = vadd.f32 0.0, %v8358
  %v8360 = vpop.f32.mrf.mxu0
  %v8361 = vpop.f32.mrf.mxu0
  %v8362 = vadd.f32 0.0, %v8361
  %v8363 = vpop.f32.mrf.mxu0
  %8364 = vmatprep.mubr.bf16.mxu0 0
  %8365 = vmatmul.mubr.bf16.gmra.mxu0 %v8313
  %v8366 = vpop.f32.mrf.mxu0
  %v8367 = vadd.f32 0.0, %v8366
  %v8368 = vpop.f32.mrf.mxu0
  %v8369 = vpop.f32.mrf.mxu0
  %v8370 = vadd.f32 0.0, %v8369
  %v8371 = vpop.f32.mrf.mxu0
  %8372 = vmatprep.mubr.bf16.mxu0 0
  %8373 = vmatmul.mubr.bf16.gmra.mxu0 %v8316
  %v8374 = vpop.f32.mrf.mxu0
  %v8375 = vadd.f32 0.0, %v8374
  %v8376 = vpop.f32.mrf.mxu0
  %v8377 = vpop.f32.mrf.mxu0
  %v8378 = vadd.f32 0.0, %v8377
  %v8379 = vpop.f32.mrf.mxu0
  %8380 = vmatprep.mubr.bf16.mxu0 0
  %8381 = vmatmul.mubr.bf16.gmra.mxu0 %v8319
  %v8382 = vpop.f32.mrf.mxu0
  %v8383 = vadd.f32 0.0, %v8382
  %v8384 = vpop.f32.mrf.mxu0
  %v8385 = vpop.f32.mrf.mxu0
  %v8386 = vadd.f32 0.0, %v8385
  %v8387 = vpop.f32.mrf.mxu0
  %8388 = vmatprep.mubr.bf16.mxu0 0
  %8389 = vmatmul.mubr.bf16.gmra.mxu0 %v8322
  %v8390 = vpop.f32.mrf.mxu0
  %v8391 = vadd.f32 0.0, %v8390
  %v8392 = vpop.f32.mrf.mxu0
  %v8393 = vpop.f32.mrf.mxu0
  %v8394 = vpop.f32.mrf.mxu0
  %8395 = vdwg.mxu0
  %v8396 = vadd.f32 %v8278, %v8359
  %v8397 = vadd.f32 %v8279, %v8362
  %v8398 = vadd.f32 %v8280, %v8367
  %v8399 = vadd.f32 %v8281, %v8370
  %v8400 = vadd.f32 %v8282, %v8375
  %v8401 = vadd.f32 %v8283, %v8378
  %v8402 = vadd.f32 %v8284, %v8383
  %v8403 = vadd.f32 %v8285, %v8386
  %v8404 = vadd.f32 %v8286, %v8391
  %s8405 = scalar_lea.vmem %s4, 1
  %v8406 = vld [vmem:[%s8405] sm:$0x1]
  %v8408 = vlaneseq
  %v8409 = vshrl.u32 %v8408, 7
  %v8410 = vsub.s32 0, %v8409
  %v8411 = vrot.slane %v8406, %v8410
  %v8413 = vadd.f32 %v8396, %v8411
  %v8414 = vadd.f32 %v8397, %v8411
  %v8415 = vadd.f32 %v8398, %v8411
  %v8416 = vadd.f32 %v8399, %v8411
  %v8417 = vadd.f32 %v8400, %v8411
  %v8418 = vadd.f32 %v8401, %v8411
  %v8419 = vadd.f32 %v8402, %v8411
  %v8420 = vadd.f32 %v8403, %v8411
  %v8421 = vadd.f32 %v8404, %v8411
  %v8422 = vmax.f32 %v8413, 0.0
  %v8423 = vmax.f32 %v8414, 0.0
  %v8424 = vmax.f32 %v8415, 0.0
  %v8425 = vmax.f32 %v8416, 0.0
  %v8426 = vmax.f32 %v8417, 0.0
  %v8427 = vmax.f32 %v8418, 0.0
  %v8428 = vmax.f32 %v8419, 0.0
  %v8429 = vmax.f32 %v8420, 0.0
  %v8430 = vmax.f32 %v8421, 0.0
  %v8431 = vpack.c.bf16 %v8422, %v8422
  %s8432 = scalar_lea.vmem %s5, 288
  %v8433 = vld [vmem:[%s8432] sm:$0xf]
  %v8434 = vld [vmem:[%s8432 + $0x4] sm:$0xf]
  %v8435 = vld [vmem:[%s8432 + $0x8] sm:$0xf]
  %v8436 = vld [vmem:[%s8432 + $0xc] sm:$0xf]
  %v8437 = vld [vmem:[%s8432 + $0x10] sm:$0xf]
  %v8438 = vld [vmem:[%s8432 + $0x14] sm:$0xf]
  %v8439 = vld [vmem:[%s8432 + $0x18] sm:$0xf]
  %v8440 = vld [vmem:[%s8432 + $0x1c] sm:$0xf]
  %v8441 = vpack.c.bf16 %v8423, %v8423
  %s8442 = scalar_lea.vmem %s5, 320
  %v8443 = vld [vmem:[%s8442] sm:$0xf]
  %v8444 = vld [vmem:[%s8442 + $0x4] sm:$0xf]
  %v8445 = vld [vmem:[%s8442 + $0x8] sm:$0xf]
  %v8446 = vld [vmem:[%s8442 + $0xc] sm:$0xf]
  %v8447 = vld [vmem:[%s8442 + $0x10] sm:$0xf]
  %v8448 = vld [vmem:[%s8442 + $0x14] sm:$0xf]
  %v8449 = vld [vmem:[%s8442 + $0x18] sm:$0xf]
  %v8450 = vld [vmem:[%s8442 + $0x1c] sm:$0xf]
  %v8459 = vunpack.c.l.b16 %v8443
  %v8460 = vunpack.c.l.b16 %v8444
  %v8461 = vunpack.c.l.b16 %v8445
  %v8462 = vunpack.c.l.b16 %v8446
  %v8463 = vunpack.c.l.b16 %v8447
  %v8464 = vunpack.c.l.b16 %v8448
  %v8465 = vunpack.c.l.b16 %v8449
  %v8466 = vunpack.c.l.b16 %v8450
  %v8467 = vpack.c.b16 %v8460, %v8459
  %v8468 = vpack.c.b16 %v8462, %v8461
  %v8469 = vpack.c.b16 %v8464, %v8463
  %v8470 = vpack.c.b16 %v8466, %v8465
  %v8476 = vsel %vm934, %v8441, 0
  %8478 = vmatprep.subr.bf16.mxu0 0
  %8479 = vmatpush1.bf16.msra.mxu0 0
  %8480 = vmatprep.subr.bf16.mxu0 0
  %8481 = vmatpush1.bf16.msra.mxu0 0
  %8482 = vmatprep.subr.bf16.mxu0 0
  %8483 = vmatpush1.bf16.msra.mxu0 0
  %8484 = vmatprep.subr.bf16.mxu0 0
  %8485 = vmatpush1.bf16.msra.mxu0 0
  %8486 = vmatprep.subr.bf16.mxu0 0
  %8487 = vmatpush1.bf16.msra.mxu0 %v8470
  %8488 = vmatprep.subr.bf16.mxu0 0
  %8489 = vmatpush1.bf16.msra.mxu0 %v8469
  %8490 = vmatprep.subr.bf16.mxu0 0
  %8491 = vmatpush1.bf16.msra.mxu0 %v8468
  %8492 = vmatprep.subr.bf16.mxu0 0
  %8493 = vmatpush1.bf16.msra.mxu0 %v8467
  %8494 = vmatprep.subr.bf16.mxu0 0
  %8495 = vmatpush2.bf16.msra.mxu0 0
  %8496 = vmatprep.subr.bf16.mxu0 0
  %8497 = vmatpush2.bf16.msra.mxu0 0
  %8498 = vmatprep.subr.bf16.mxu0 0
  %8499 = vmatpush2.bf16.msra.mxu0 0
  %8500 = vmatprep.subr.bf16.mxu0 0
  %8501 = vmatpush2.bf16.msra.mxu0 0
  %8502 = vmatprep.subr.bf16.mxu0 0
  %8503 = vmatpush2.bf16.msra.mxu0 0
  %8504 = vmatprep.subr.bf16.mxu0 0
  %8505 = vmatpush2.bf16.msra.mxu0 0
  %8506 = vmatprep.subr.bf16.mxu0 0
  %8507 = vmatpush2.bf16.msra.mxu0 0
  %8508 = vmatprep.subr.bf16.mxu0 0
  %8509 = vmatpush2.bf16.msra.mxu0 0
  %8510 = vmatprep.mubr.bf16.mxu0 0
  %8511 = vmatmul.mubr.bf16.gmra.mxu0 %v8476
  %v8512 = vpop.f32.mrf.mxu0
  %v8513 = vadd.f32 0.0, %v8512
  %v8514 = vpop.f32.mrf.mxu0
  %v8515 = vpop.f32.mrf.mxu0
  %v8516 = vpop.f32.mrf.mxu0
  %8517 = vdwg.mxu0
  %v8526 = vunpack.c.l.b16 %v8433
  %v8527 = vunpack.c.l.b16 %v8434
  %v8528 = vunpack.c.l.b16 %v8435
  %v8529 = vunpack.c.l.b16 %v8436
  %v8530 = vunpack.c.l.b16 %v8437
  %v8531 = vunpack.c.l.b16 %v8438
  %v8532 = vunpack.c.l.b16 %v8439
  %v8533 = vunpack.c.l.b16 %v8440
  %v8534 = vpack.c.b16 %v8527, %v8526
  %v8535 = vpack.c.b16 %v8529, %v8528
  %v8536 = vpack.c.b16 %v8531, %v8530
  %v8537 = vpack.c.b16 %v8533, %v8532
  %v8543 = vsel %vm934, %v8431, 0
  %8545 = vmatprep.subr.bf16.mxu0 0
  %8546 = vmatpush1.bf16.msra.mxu0 0
  %8547 = vmatprep.subr.bf16.mxu0 0
  %8548 = vmatpush1.bf16.msra.mxu0 0
  %8549 = vmatprep.subr.bf16.mxu0 0
  %8550 = vmatpush1.bf16.msra.mxu0 0
  %8551 = vmatprep.subr.bf16.mxu0 0
  %8552 = vmatpush1.bf16.msra.mxu0 0
  %8553 = vmatprep.subr.bf16.mxu0 0
  %8554 = vmatpush1.bf16.msra.mxu0 %v8537
  %8555 = vmatprep.subr.bf16.mxu0 0
  %8556 = vmatpush1.bf16.msra.mxu0 %v8536
  %8557 = vmatprep.subr.bf16.mxu0 0
  %8558 = vmatpush1.bf16.msra.mxu0 %v8535
  %8559 = vmatprep.subr.bf16.mxu0 0
  %8560 = vmatpush1.bf16.msra.mxu0 %v8534
  %8561 = vmatprep.subr.bf16.mxu0 0
  %8562 = vmatpush2.bf16.msra.mxu0 0
  %8563 = vmatprep.subr.bf16.mxu0 0
  %8564 = vmatpush2.bf16.msra.mxu0 0
  %8565 = vmatprep.subr.bf16.mxu0 0
  %8566 = vmatpush2.bf16.msra.mxu0 0
  %8567 = vmatprep.subr.bf16.mxu0 0
  %8568 = vmatpush2.bf16.msra.mxu0 0
  %8569 = vmatprep.subr.bf16.mxu0 0
  %8570 = vmatpush2.bf16.msra.mxu0 0
  %8571 = vmatprep.subr.bf16.mxu0 0
  %8572 = vmatpush2.bf16.msra.mxu0 0
  %8573 = vmatprep.subr.bf16.mxu0 0
  %8574 = vmatpush2.bf16.msra.mxu0 0
  %8575 = vmatprep.subr.bf16.mxu0 0
  %8576 = vmatpush2.bf16.msra.mxu0 0
  %8577 = vmatprep.mubr.bf16.mxu0 0
  %8578 = vmatmul.mubr.bf16.gmra.mxu0 %v8543
  %v8579 = vpop.f32.mrf.mxu0
  %v8580 = vadd.f32 %v8513, %v8579
  %v8581 = vpop.f32.mrf.mxu0
  %v8582 = vpop.f32.mrf.mxu0
  %v8583 = vpop.f32.mrf.mxu0
  %8584 = vdwg.mxu0
  %v8585 = vpack.c.bf16 %v8424, %v8424
  %s8586 = scalar_lea.vmem %s5, 352
  %v8587 = vld [vmem:[%s8586] sm:$0xf]
  %v8588 = vld [vmem:[%s8586 + $0x4] sm:$0xf]
  %v8589 = vld [vmem:[%s8586 + $0x8] sm:$0xf]
  %v8590 = vld [vmem:[%s8586 + $0xc] sm:$0xf]
  %v8591 = vld [vmem:[%s8586 + $0x10] sm:$0xf]
  %v8592 = vld [vmem:[%s8586 + $0x14] sm:$0xf]
  %v8593 = vld [vmem:[%s8586 + $0x18] sm:$0xf]
  %v8594 = vld [vmem:[%s8586 + $0x1c] sm:$0xf]
  %v8603 = vunpack.c.l.b16 %v8587
  %v8604 = vunpack.c.l.b16 %v8588
  %v8605 = vunpack.c.l.b16 %v8589
  %v8606 = vunpack.c.l.b16 %v8590
  %v8607 = vunpack.c.l.b16 %v8591
  %v8608 = vunpack.c.l.b16 %v8592
  %v8609 = vunpack.c.l.b16 %v8593
  %v8610 = vunpack.c.l.b16 %v8594
  %v8611 = vpack.c.b16 %v8604, %v8603
  %v8612 = vpack.c.b16 %v8606, %v8605
  %v8613 = vpack.c.b16 %v8608, %v8607
  %v8614 = vpack.c.b16 %v8610, %v8609
  %v8620 = vsel %vm934, %v8585, 0
  %8622 = vmatprep.subr.bf16.mxu0 0
  %8623 = vmatpush1.bf16.msra.mxu0 0
  %8624 = vmatprep.subr.bf16.mxu0 0
  %8625 = vmatpush1.bf16.msra.mxu0 0
  %8626 = vmatprep.subr.bf16.mxu0 0
  %8627 = vmatpush1.bf16.msra.mxu0 0
  %8628 = vmatprep.subr.bf16.mxu0 0
  %8629 = vmatpush1.bf16.msra.mxu0 0
  %8630 = vmatprep.subr.bf16.mxu0 0
  %8631 = vmatpush1.bf16.msra.mxu0 %v8614
  %8632 = vmatprep.subr.bf16.mxu0 0
  %8633 = vmatpush1.bf16.msra.mxu0 %v8613
  %8634 = vmatprep.subr.bf16.mxu0 0
  %8635 = vmatpush1.bf16.msra.mxu0 %v8612
  %8636 = vmatprep.subr.bf16.mxu0 0
  %8637 = vmatpush1.bf16.msra.mxu0 %v8611
  %8638 = vmatprep.subr.bf16.mxu0 0
  %8639 = vmatpush2.bf16.msra.mxu0 0
  %8640 = vmatprep.subr.bf16.mxu0 0
  %8641 = vmatpush2.bf16.msra.mxu0 0
  %8642 = vmatprep.subr.bf16.mxu0 0
  %8643 = vmatpush2.bf16.msra.mxu0 0
  %8644 = vmatprep.subr.bf16.mxu0 0
  %8645 = vmatpush2.bf16.msra.mxu0 0
  %8646 = vmatprep.subr.bf16.mxu0 0
  %8647 = vmatpush2.bf16.msra.mxu0 0
  %8648 = vmatprep.subr.bf16.mxu0 0
  %8649 = vmatpush2.bf16.msra.mxu0 0
  %8650 = vmatprep.subr.bf16.mxu0 0
  %8651 = vmatpush2.bf16.msra.mxu0 0
  %8652 = vmatprep.subr.bf16.mxu0 0
  %8653 = vmatpush2.bf16.msra.mxu0 0
  %8654 = vmatprep.mubr.bf16.mxu0 0
  %8655 = vmatmul.mubr.bf16.gmra.mxu0 %v8620
  %v8656 = vpop.f32.mrf.mxu0
  %v8657 = vadd.f32 0.0, %v8656
  %v8658 = vpop.f32.mrf.mxu0
  %v8659 = vpop.f32.mrf.mxu0
  %v8660 = vpop.f32.mrf.mxu0
  %8661 = vdwg.mxu0
  %v8662 = vadd.f32 %v8580, %v8657
  %v8663 = vpack.c.bf16 %v8425, %v8425
  %s8664 = scalar_lea.vmem %s5, 384
  %v8665 = vld [vmem:[%s8664] sm:$0xf]
  %v8666 = vld [vmem:[%s8664 + $0x4] sm:$0xf]
  %v8667 = vld [vmem:[%s8664 + $0x8] sm:$0xf]
  %v8668 = vld [vmem:[%s8664 + $0xc] sm:$0xf]
  %v8669 = vld [vmem:[%s8664 + $0x10] sm:$0xf]
  %v8670 = vld [vmem:[%s8664 + $0x14] sm:$0xf]
  %v8671 = vld [vmem:[%s8664 + $0x18] sm:$0xf]
  %v8672 = vld [vmem:[%s8664 + $0x1c] sm:$0xf]
  %v8681 = vunpack.c.l.b16 %v8665
  %v8682 = vunpack.c.l.b16 %v8666
  %v8683 = vunpack.c.l.b16 %v8667
  %v8684 = vunpack.c.l.b16 %v8668
  %v8685 = vunpack.c.l.b16 %v8669
  %v8686 = vunpack.c.l.b16 %v8670
  %v8687 = vunpack.c.l.b16 %v8671
  %v8688 = vunpack.c.l.b16 %v8672
  %v8689 = vpack.c.b16 %v8682, %v8681
  %v8690 = vpack.c.b16 %v8684, %v8683
  %v8691 = vpack.c.b16 %v8686, %v8685
  %v8692 = vpack.c.b16 %v8688, %v8687
  %v8698 = vsel %vm934, %v8663, 0
  %8700 = vmatprep.subr.bf16.mxu0 0
  %8701 = vmatpush1.bf16.msra.mxu0 0
  %8702 = vmatprep.subr.bf16.mxu0 0
  %8703 = vmatpush1.bf16.msra.mxu0 0
  %8704 = vmatprep.subr.bf16.mxu0 0
  %8705 = vmatpush1.bf16.msra.mxu0 0
  %8706 = vmatprep.subr.bf16.mxu0 0
  %8707 = vmatpush1.bf16.msra.mxu0 0
  %8708 = vmatprep.subr.bf16.mxu0 0
  %8709 = vmatpush1.bf16.msra.mxu0 %v8692
  %8710 = vmatprep.subr.bf16.mxu0 0
  %8711 = vmatpush1.bf16.msra.mxu0 %v8691
  %8712 = vmatprep.subr.bf16.mxu0 0
  %8713 = vmatpush1.bf16.msra.mxu0 %v8690
  %8714 = vmatprep.subr.bf16.mxu0 0
  %8715 = vmatpush1.bf16.msra.mxu0 %v8689
  %8716 = vmatprep.subr.bf16.mxu0 0
  %8717 = vmatpush2.bf16.msra.mxu0 0
  %8718 = vmatprep.subr.bf16.mxu0 0
  %8719 = vmatpush2.bf16.msra.mxu0 0
  %8720 = vmatprep.subr.bf16.mxu0 0
  %8721 = vmatpush2.bf16.msra.mxu0 0
  %8722 = vmatprep.subr.bf16.mxu0 0
  %8723 = vmatpush2.bf16.msra.mxu0 0
  %8724 = vmatprep.subr.bf16.mxu0 0
  %8725 = vmatpush2.bf16.msra.mxu0 0
  %8726 = vmatprep.subr.bf16.mxu0 0
  %8727 = vmatpush2.bf16.msra.mxu0 0
  %8728 = vmatprep.subr.bf16.mxu0 0
  %8729 = vmatpush2.bf16.msra.mxu0 0
  %8730 = vmatprep.subr.bf16.mxu0 0
  %8731 = vmatpush2.bf16.msra.mxu0 0
  %8732 = vmatprep.mubr.bf16.mxu0 0
  %8733 = vmatmul.mubr.bf16.gmra.mxu0 %v8698
  %v8734 = vpop.f32.mrf.mxu0
  %v8735 = vadd.f32 0.0, %v8734
  %v8736 = vpop.f32.mrf.mxu0
  %v8737 = vpop.f32.mrf.mxu0
  %v8738 = vpop.f32.mrf.mxu0
  %8739 = vdwg.mxu0
  %v8740 = vadd.f32 %v8662, %v8735
  %v8741 = vpack.c.bf16 %v8426, %v8426
  %s8742 = scalar_lea.vmem %s5, 416
  %v8743 = vld [vmem:[%s8742] sm:$0xf]
  %v8744 = vld [vmem:[%s8742 + $0x4] sm:$0xf]
  %v8745 = vld [vmem:[%s8742 + $0x8] sm:$0xf]
  %v8746 = vld [vmem:[%s8742 + $0xc] sm:$0xf]
  %v8747 = vld [vmem:[%s8742 + $0x10] sm:$0xf]
  %v8748 = vld [vmem:[%s8742 + $0x14] sm:$0xf]
  %v8749 = vld [vmem:[%s8742 + $0x18] sm:$0xf]
  %v8750 = vld [vmem:[%s8742 + $0x1c] sm:$0xf]
  %v8759 = vunpack.c.l.b16 %v8743
  %v8760 = vunpack.c.l.b16 %v8744
  %v8761 = vunpack.c.l.b16 %v8745
  %v8762 = vunpack.c.l.b16 %v8746
  %v8763 = vunpack.c.l.b16 %v8747
  %v8764 = vunpack.c.l.b16 %v8748
  %v8765 = vunpack.c.l.b16 %v8749
  %v8766 = vunpack.c.l.b16 %v8750
  %v8767 = vpack.c.b16 %v8760, %v8759
  %v8768 = vpack.c.b16 %v8762, %v8761
  %v8769 = vpack.c.b16 %v8764, %v8763
  %v8770 = vpack.c.b16 %v8766, %v8765
  %v8776 = vsel %vm934, %v8741, 0
  %8778 = vmatprep.subr.bf16.mxu0 0
  %8779 = vmatpush1.bf16.msra.mxu0 0
  %8780 = vmatprep.subr.bf16.mxu0 0
  %8781 = vmatpush1.bf16.msra.mxu0 0
  %8782 = vmatprep.subr.bf16.mxu0 0
  %8783 = vmatpush1.bf16.msra.mxu0 0
  %8784 = vmatprep.subr.bf16.mxu0 0
  %8785 = vmatpush1.bf16.msra.mxu0 0
  %8786 = vmatprep.subr.bf16.mxu0 0
  %8787 = vmatpush1.bf16.msra.mxu0 %v8770
  %8788 = vmatprep.subr.bf16.mxu0 0
  %8789 = vmatpush1.bf16.msra.mxu0 %v8769
  %8790 = vmatprep.subr.bf16.mxu0 0
  %8791 = vmatpush1.bf16.msra.mxu0 %v8768
  %8792 = vmatprep.subr.bf16.mxu0 0
  %8793 = vmatpush1.bf16.msra.mxu0 %v8767
  %8794 = vmatprep.subr.bf16.mxu0 0
  %8795 = vmatpush2.bf16.msra.mxu0 0
  %8796 = vmatprep.subr.bf16.mxu0 0
  %8797 = vmatpush2.bf16.msra.mxu0 0
  %8798 = vmatprep.subr.bf16.mxu0 0
  %8799 = vmatpush2.bf16.msra.mxu0 0
  %8800 = vmatprep.subr.bf16.mxu0 0
  %8801 = vmatpush2.bf16.msra.mxu0 0
  %8802 = vmatprep.subr.bf16.mxu0 0
  %8803 = vmatpush2.bf16.msra.mxu0 0
  %8804 = vmatprep.subr.bf16.mxu0 0
  %8805 = vmatpush2.bf16.msra.mxu0 0
  %8806 = vmatprep.subr.bf16.mxu0 0
  %8807 = vmatpush2.bf16.msra.mxu0 0
  %8808 = vmatprep.subr.bf16.mxu0 0
  %8809 = vmatpush2.bf16.msra.mxu0 0
  %8810 = vmatprep.mubr.bf16.mxu0 0
  %8811 = vmatmul.mubr.bf16.gmra.mxu0 %v8776
  %v8812 = vpop.f32.mrf.mxu0
  %v8813 = vadd.f32 0.0, %v8812
  %v8814 = vpop.f32.mrf.mxu0
  %v8815 = vpop.f32.mrf.mxu0
  %v8816 = vpop.f32.mrf.mxu0
  %8817 = vdwg.mxu0
  %v8818 = vadd.f32 %v8740, %v8813
  %v8819 = vpack.c.bf16 %v8427, %v8427
  %s8820 = scalar_lea.vmem %s5, 448
  %v8821 = vld [vmem:[%s8820] sm:$0xf]
  %v8822 = vld [vmem:[%s8820 + $0x4] sm:$0xf]
  %v8823 = vld [vmem:[%s8820 + $0x8] sm:$0xf]
  %v8824 = vld [vmem:[%s8820 + $0xc] sm:$0xf]
  %v8825 = vld [vmem:[%s8820 + $0x10] sm:$0xf]
  %v8826 = vld [vmem:[%s8820 + $0x14] sm:$0xf]
  %v8827 = vld [vmem:[%s8820 + $0x18] sm:$0xf]
  %v8828 = vld [vmem:[%s8820 + $0x1c] sm:$0xf]
  %v8837 = vunpack.c.l.b16 %v8821
  %v8838 = vunpack.c.l.b16 %v8822
  %v8839 = vunpack.c.l.b16 %v8823
  %v8840 = vunpack.c.l.b16 %v8824
  %v8841 = vunpack.c.l.b16 %v8825
  %v8842 = vunpack.c.l.b16 %v8826
  %v8843 = vunpack.c.l.b16 %v8827
  %v8844 = vunpack.c.l.b16 %v8828
  %v8845 = vpack.c.b16 %v8838, %v8837
  %v8846 = vpack.c.b16 %v8840, %v8839
  %v8847 = vpack.c.b16 %v8842, %v8841
  %v8848 = vpack.c.b16 %v8844, %v8843
  %v8854 = vsel %vm934, %v8819, 0
  %8856 = vmatprep.subr.bf16.mxu0 0
  %8857 = vmatpush1.bf16.msra.mxu0 0
  %8858 = vmatprep.subr.bf16.mxu0 0
  %8859 = vmatpush1.bf16.msra.mxu0 0
  %8860 = vmatprep.subr.bf16.mxu0 0
  %8861 = vmatpush1.bf16.msra.mxu0 0
  %8862 = vmatprep.subr.bf16.mxu0 0
  %8863 = vmatpush1.bf16.msra.mxu0 0
  %8864 = vmatprep.subr.bf16.mxu0 0
  %8865 = vmatpush1.bf16.msra.mxu0 %v8848
  %8866 = vmatprep.subr.bf16.mxu0 0
  %8867 = vmatpush1.bf16.msra.mxu0 %v8847
  %8868 = vmatprep.subr.bf16.mxu0 0
  %8869 = vmatpush1.bf16.msra.mxu0 %v8846
  %8870 = vmatprep.subr.bf16.mxu0 0
  %8871 = vmatpush1.bf16.msra.mxu0 %v8845
  %8872 = vmatprep.subr.bf16.mxu0 0
  %8873 = vmatpush2.bf16.msra.mxu0 0
  %8874 = vmatprep.subr.bf16.mxu0 0
  %8875 = vmatpush2.bf16.msra.mxu0 0
  %8876 = vmatprep.subr.bf16.mxu0 0
  %8877 = vmatpush2.bf16.msra.mxu0 0
  %8878 = vmatprep.subr.bf16.mxu0 0
  %8879 = vmatpush2.bf16.msra.mxu0 0
  %8880 = vmatprep.subr.bf16.mxu0 0
  %8881 = vmatpush2.bf16.msra.mxu0 0
  %8882 = vmatprep.subr.bf16.mxu0 0
  %8883 = vmatpush2.bf16.msra.mxu0 0
  %8884 = vmatprep.subr.bf16.mxu0 0
  %8885 = vmatpush2.bf16.msra.mxu0 0
  %8886 = vmatprep.subr.bf16.mxu0 0
  %8887 = vmatpush2.bf16.msra.mxu0 0
  %8888 = vmatprep.mubr.bf16.mxu0 0
  %8889 = vmatmul.mubr.bf16.gmra.mxu0 %v8854
  %v8890 = vpop.f32.mrf.mxu0
  %v8891 = vadd.f32 0.0, %v8890
  %v8892 = vpop.f32.mrf.mxu0
  %v8893 = vpop.f32.mrf.mxu0
  %v8894 = vpop.f32.mrf.mxu0
  %8895 = vdwg.mxu0
  %v8896 = vadd.f32 %v8818, %v8891
  %v8897 = vpack.c.bf16 %v8428, %v8428
  %s8898 = scalar_lea.vmem %s5, 480
  %v8899 = vld [vmem:[%s8898] sm:$0xf]
  %v8900 = vld [vmem:[%s8898 + $0x4] sm:$0xf]
  %v8901 = vld [vmem:[%s8898 + $0x8] sm:$0xf]
  %v8902 = vld [vmem:[%s8898 + $0xc] sm:$0xf]
  %v8903 = vld [vmem:[%s8898 + $0x10] sm:$0xf]
  %v8904 = vld [vmem:[%s8898 + $0x14] sm:$0xf]
  %v8905 = vld [vmem:[%s8898 + $0x18] sm:$0xf]
  %v8906 = vld [vmem:[%s8898 + $0x1c] sm:$0xf]
  %v8915 = vunpack.c.l.b16 %v8899
  %v8916 = vunpack.c.l.b16 %v8900
  %v8917 = vunpack.c.l.b16 %v8901
  %v8918 = vunpack.c.l.b16 %v8902
  %v8919 = vunpack.c.l.b16 %v8903
  %v8920 = vunpack.c.l.b16 %v8904
  %v8921 = vunpack.c.l.b16 %v8905
  %v8922 = vunpack.c.l.b16 %v8906
  %v8923 = vpack.c.b16 %v8916, %v8915
  %v8924 = vpack.c.b16 %v8918, %v8917
  %v8925 = vpack.c.b16 %v8920, %v8919
  %v8926 = vpack.c.b16 %v8922, %v8921
  %v8932 = vsel %vm934, %v8897, 0
  %8934 = vmatprep.subr.bf16.mxu0 0
  %8935 = vmatpush1.bf16.msra.mxu0 0
  %8936 = vmatprep.subr.bf16.mxu0 0
  %8937 = vmatpush1.bf16.msra.mxu0 0
  %8938 = vmatprep.subr.bf16.mxu0 0
  %8939 = vmatpush1.bf16.msra.mxu0 0
  %8940 = vmatprep.subr.bf16.mxu0 0
  %8941 = vmatpush1.bf16.msra.mxu0 0
  %8942 = vmatprep.subr.bf16.mxu0 0
  %8943 = vmatpush1.bf16.msra.mxu0 %v8926
  %8944 = vmatprep.subr.bf16.mxu0 0
  %8945 = vmatpush1.bf16.msra.mxu0 %v8925
  %8946 = vmatprep.subr.bf16.mxu0 0
  %8947 = vmatpush1.bf16.msra.mxu0 %v8924
  %8948 = vmatprep.subr.bf16.mxu0 0
  %8949 = vmatpush1.bf16.msra.mxu0 %v8923
  %8950 = vmatprep.subr.bf16.mxu0 0
  %8951 = vmatpush2.bf16.msra.mxu0 0
  %8952 = vmatprep.subr.bf16.mxu0 0
  %8953 = vmatpush2.bf16.msra.mxu0 0
  %8954 = vmatprep.subr.bf16.mxu0 0
  %8955 = vmatpush2.bf16.msra.mxu0 0
  %8956 = vmatprep.subr.bf16.mxu0 0
  %8957 = vmatpush2.bf16.msra.mxu0 0
  %8958 = vmatprep.subr.bf16.mxu0 0
  %8959 = vmatpush2.bf16.msra.mxu0 0
  %8960 = vmatprep.subr.bf16.mxu0 0
  %8961 = vmatpush2.bf16.msra.mxu0 0
  %8962 = vmatprep.subr.bf16.mxu0 0
  %8963 = vmatpush2.bf16.msra.mxu0 0
  %8964 = vmatprep.subr.bf16.mxu0 0
  %8965 = vmatpush2.bf16.msra.mxu0 0
  %8966 = vmatprep.mubr.bf16.mxu0 0
  %8967 = vmatmul.mubr.bf16.gmra.mxu0 %v8932
  %v8968 = vpop.f32.mrf.mxu0
  %v8969 = vadd.f32 0.0, %v8968
  %v8970 = vpop.f32.mrf.mxu0
  %v8971 = vpop.f32.mrf.mxu0
  %v8972 = vpop.f32.mrf.mxu0
  %8973 = vdwg.mxu0
  %v8974 = vadd.f32 %v8896, %v8969
  %v8975 = vpack.c.bf16 %v8429, %v8429
  %s8976 = scalar_lea.vmem %s5, 512
  %v8977 = vld [vmem:[%s8976] sm:$0xf]
  %v8978 = vld [vmem:[%s8976 + $0x4] sm:$0xf]
  %v8979 = vld [vmem:[%s8976 + $0x8] sm:$0xf]
  %v8980 = vld [vmem:[%s8976 + $0xc] sm:$0xf]
  %v8981 = vld [vmem:[%s8976 + $0x10] sm:$0xf]
  %v8982 = vld [vmem:[%s8976 + $0x14] sm:$0xf]
  %v8983 = vld [vmem:[%s8976 + $0x18] sm:$0xf]
  %v8984 = vld [vmem:[%s8976 + $0x1c] sm:$0xf]
  %v8993 = vunpack.c.l.b16 %v8977
  %v8994 = vunpack.c.l.b16 %v8978
  %v8995 = vunpack.c.l.b16 %v8979
  %v8996 = vunpack.c.l.b16 %v8980
  %v8997 = vunpack.c.l.b16 %v8981
  %v8998 = vunpack.c.l.b16 %v8982
  %v8999 = vunpack.c.l.b16 %v8983
  %v9000 = vunpack.c.l.b16 %v8984
  %v9001 = vpack.c.b16 %v8994, %v8993
  %v9002 = vpack.c.b16 %v8996, %v8995
  %v9003 = vpack.c.b16 %v8998, %v8997
  %v9004 = vpack.c.b16 %v9000, %v8999
  %v9010 = vsel %vm934, %v8975, 0
  %9012 = vmatprep.subr.bf16.mxu0 0
  %9013 = vmatpush1.bf16.msra.mxu0 0
  %9014 = vmatprep.subr.bf16.mxu0 0
  %9015 = vmatpush1.bf16.msra.mxu0 0
  %9016 = vmatprep.subr.bf16.mxu0 0
  %9017 = vmatpush1.bf16.msra.mxu0 0
  %9018 = vmatprep.subr.bf16.mxu0 0
  %9019 = vmatpush1.bf16.msra.mxu0 0
  %9020 = vmatprep.subr.bf16.mxu0 0
  %9021 = vmatpush1.bf16.msra.mxu0 %v9004
  %9022 = vmatprep.subr.bf16.mxu0 0
  %9023 = vmatpush1.bf16.msra.mxu0 %v9003
  %9024 = vmatprep.subr.bf16.mxu0 0
  %9025 = vmatpush1.bf16.msra.mxu0 %v9002
  %9026 = vmatprep.subr.bf16.mxu0 0
  %9027 = vmatpush1.bf16.msra.mxu0 %v9001
  %9028 = vmatprep.subr.bf16.mxu0 0
  %9029 = vmatpush2.bf16.msra.mxu0 0
  %9030 = vmatprep.subr.bf16.mxu0 0
  %9031 = vmatpush2.bf16.msra.mxu0 0
  %9032 = vmatprep.subr.bf16.mxu0 0
  %9033 = vmatpush2.bf16.msra.mxu0 0
  %9034 = vmatprep.subr.bf16.mxu0 0
  %9035 = vmatpush2.bf16.msra.mxu0 0
  %9036 = vmatprep.subr.bf16.mxu0 0
  %9037 = vmatpush2.bf16.msra.mxu0 0
  %9038 = vmatprep.subr.bf16.mxu0 0
  %9039 = vmatpush2.bf16.msra.mxu0 0
  %9040 = vmatprep.subr.bf16.mxu0 0
  %9041 = vmatpush2.bf16.msra.mxu0 0
  %9042 = vmatprep.subr.bf16.mxu0 0
  %9043 = vmatpush2.bf16.msra.mxu0 0
  %9044 = vmatprep.mubr.bf16.mxu0 0
  %9045 = vmatmul.mubr.bf16.gmra.mxu0 %v9010
  %v9046 = vpop.f32.mrf.mxu0
  %v9047 = vadd.f32 0.0, %v9046
  %v9048 = vpop.f32.mrf.mxu0
  %v9049 = vpop.f32.mrf.mxu0
  %v9050 = vpop.f32.mrf.mxu0
  %9051 = vdwg.mxu0
  %v9052 = vadd.f32 %v8974, %v9047
  %v9053 = vpack.c.bf16 %v8430, %v8430
  %s9054 = scalar_lea.vmem %s5, 544
  %v9055 = vld [vmem:[%s9054] sm:$0xf]
  %v9056 = vld [vmem:[%s9054 + $0x4] sm:$0xf]
  %v9057 = vld [vmem:[%s9054 + $0x8] sm:$0xf]
  %v9058 = vld [vmem:[%s9054 + $0xc] sm:$0xf]
  %v9059 = vld [vmem:[%s9054 + $0x10] sm:$0xf]
  %v9060 = vld [vmem:[%s9054 + $0x14] sm:$0xf]
  %v9061 = vld [vmem:[%s9054 + $0x18] sm:$0xf]
  %v9062 = vld [vmem:[%s9054 + $0x1c] sm:$0xf]
  %v9071 = vunpack.c.l.b16 %v9055
  %v9072 = vunpack.c.l.b16 %v9056
  %v9073 = vunpack.c.l.b16 %v9057
  %v9074 = vunpack.c.l.b16 %v9058
  %v9075 = vunpack.c.l.b16 %v9059
  %v9076 = vunpack.c.l.b16 %v9060
  %v9077 = vunpack.c.l.b16 %v9061
  %v9078 = vunpack.c.l.b16 %v9062
  %v9079 = vpack.c.b16 %v9072, %v9071
  %v9080 = vpack.c.b16 %v9074, %v9073
  %v9081 = vpack.c.b16 %v9076, %v9075
  %v9082 = vpack.c.b16 %v9078, %v9077
  %v9088 = vsel %vm934, %v9053, 0
  %9090 = vmatprep.subr.bf16.mxu0 0
  %9091 = vmatpush1.bf16.msra.mxu0 0
  %9092 = vmatprep.subr.bf16.mxu0 0
  %9093 = vmatpush1.bf16.msra.mxu0 0
  %9094 = vmatprep.subr.bf16.mxu0 0
  %9095 = vmatpush1.bf16.msra.mxu0 0
  %9096 = vmatprep.subr.bf16.mxu0 0
  %9097 = vmatpush1.bf16.msra.mxu0 0
  %9098 = vmatprep.subr.bf16.mxu0 0
  %9099 = vmatpush1.bf16.msra.mxu0 %v9082
  %9100 = vmatprep.subr.bf16.mxu0 0
  %9101 = vmatpush1.bf16.msra.mxu0 %v9081
  %9102 = vmatprep.subr.bf16.mxu0 0
  %9103 = vmatpush1.bf16.msra.mxu0 %v9080
  %9104 = vmatprep.subr.bf16.mxu0 0
  %9105 = vmatpush1.bf16.msra.mxu0 %v9079
  %9106 = vmatprep.subr.bf16.mxu0 0
  %9107 = vmatpush2.bf16.msra.mxu0 0
  %9108 = vmatprep.subr.bf16.mxu0 0
  %9109 = vmatpush2.bf16.msra.mxu0 0
  %9110 = vmatprep.subr.bf16.mxu0 0
  %9111 = vmatpush2.bf16.msra.mxu0 0
  %9112 = vmatprep.subr.bf16.mxu0 0
  %9113 = vmatpush2.bf16.msra.mxu0 0
  %9114 = vmatprep.subr.bf16.mxu0 0
  %9115 = vmatpush2.bf16.msra.mxu0 0
  %9116 = vmatprep.subr.bf16.mxu0 0
  %9117 = vmatpush2.bf16.msra.mxu0 0
  %9118 = vmatprep.subr.bf16.mxu0 0
  %9119 = vmatpush2.bf16.msra.mxu0 0
  %9120 = vmatprep.subr.bf16.mxu0 0
  %9121 = vmatpush2.bf16.msra.mxu0 0
  %9122 = vmatprep.mubr.bf16.mxu0 0
  %9123 = vmatmul.mubr.bf16.gmra.mxu0 %v9088
  %v9124 = vpop.f32.mrf.mxu0
  %v9125 = vadd.f32 0.0, %v9124
  %v9126 = vpop.f32.mrf.mxu0
  %v9127 = vpop.f32.mrf.mxu0
  %v9128 = vpop.f32.mrf.mxu0
  %9129 = vdwg.mxu0
  %v9130 = vadd.f32 %v9052, %v9125
  %s9131 = scalar_lea.vmem %s6, 1
  %v9132 = vld [vmem:[%s9131] sm:$0x1]
  %v9134 = vlaneseq
  %v9135 = vshrl.u32 %v9134, 7
  %v9136 = vsub.s32 0, %v9135
  %v9137 = vrot.slane %v9132, %v9136
  %v9139 = vadd.f32 %v9130, %v9137
  %v9140 = vmax.f32 %v9139, 0.0
  %v9141 = vpack.c.bf16 %v9140, %v9140
  %s9142 = scalar_lea.vmem %s7, 128
  %v9143 = vld [vmem:[%s9142] sm:$0xff]
  %v9144 = vld [vmem:[%s9142 + $0x8] sm:$0xff]
  %v9145 = vld [vmem:[%s9142 + $0x10] sm:$0xff]
  %v9146 = vld [vmem:[%s9142 + $0x18] sm:$0xff]
  %v9147 = vld [vmem:[%s9142 + $0x20] sm:$0xff]
  %v9148 = vld [vmem:[%s9142 + $0x28] sm:$0xff]
  %v9149 = vld [vmem:[%s9142 + $0x30] sm:$0xff]
  %v9150 = vld [vmem:[%s9142 + $0x38] sm:$0xff]
  %v9151 = vld [vmem:[%s9142 + $0x40] sm:$0xff]
  %v9152 = vld [vmem:[%s9142 + $0x48] sm:$0xff]
  %v9153 = vld [vmem:[%s9142 + $0x50] sm:$0xff]
  %v9154 = vld [vmem:[%s9142 + $0x58] sm:$0xff]
  %v9155 = vld [vmem:[%s9142 + $0x60] sm:$0xff]
  %v9156 = vld [vmem:[%s9142 + $0x68] sm:$0xff]
  %v9157 = vld [vmem:[%s9142 + $0x70] sm:$0xff]
  %v9158 = vld [vmem:[%s9142 + $0x78] sm:$0xff]
  %s9159 = scalar_lea.vmem %s8, 4
  %v9160 = vld [vmem:[%s9159] sm:$0xf]
  %v9162 = vlaneseq
  %v9163 = vshrl.u32 %v9162, 7
  %v9164 = vsub.s32 0, %v9163
  %v9165 = vrot.slane %v9160, %v9164
  %v9166 = vlaneseq
  %v9167 = vshrl.u32 %v9166, 7
  %v9168 = vsub.s32 1, %v9167
  %v9169 = vrot.slane %v9160, %v9168
  %v9170 = vlaneseq
  %v9171 = vshrl.u32 %v9170, 7
  %v9172 = vsub.s32 2, %v9171
  %v9173 = vrot.slane %v9160, %v9172
  %v9174 = vlaneseq
  %v9175 = vshrl.u32 %v9174, 7
  %v9176 = vsub.s32 3, %v9175
  %v9177 = vrot.slane %v9160, %v9176
  %v9198 = vunpack.c.l.b16 %v9143
  %v9199 = vunpack.c.h.b16 %v9143
  %v9200 = vunpack.c.l.b16 %v9144
  %v9201 = vunpack.c.h.b16 %v9144
  %v9202 = vunpack.c.l.b16 %v9145
  %v9203 = vunpack.c.h.b16 %v9145
  %v9204 = vunpack.c.l.b16 %v9146
  %v9205 = vunpack.c.h.b16 %v9146
  %v9206 = vunpack.c.l.b16 %v9147
  %v9207 = vunpack.c.h.b16 %v9147
  %v9208 = vunpack.c.l.b16 %v9148
  %v9209 = vunpack.c.h.b16 %v9148
  %v9210 = vunpack.c.l.b16 %v9149
  %v9211 = vunpack.c.h.b16 %v9149
  %v9212 = vunpack.c.l.b16 %v9150
  %v9213 = vunpack.c.h.b16 %v9150
  %v9214 = vunpack.c.l.b16 %v9151
  %v9215 = vunpack.c.h.b16 %v9151
  %v9216 = vunpack.c.l.b16 %v9152
  %v9217 = vunpack.c.h.b16 %v9152
  %v9218 = vunpack.c.l.b16 %v9153
  %v9219 = vunpack.c.h.b16 %v9153
  %v9220 = vunpack.c.l.b16 %v9154
  %v9221 = vunpack.c.h.b16 %v9154
  %v9222 = vunpack.c.l.b16 %v9155
  %v9223 = vunpack.c.h.b16 %v9155
  %v9224 = vunpack.c.l.b16 %v9156
  %v9225 = vunpack.c.h.b16 %v9156
  %v9226 = vunpack.c.l.b16 %v9157
  %v9227 = vunpack.c.h.b16 %v9157
  %v9228 = vunpack.c.l.b16 %v9158
  %v9229 = vunpack.c.h.b16 %v9158
  %v9230 = vpack.c.b16 %v9202, %v9198
  %v9231 = vpack.c.b16 %v9203, %v9199
  %v9232 = vpack.c.b16 %v9204, %v9200
  %v9233 = vpack.c.b16 %v9205, %v9201
  %v9234 = vpack.c.b16 %v9210, %v9206
  %v9235 = vpack.c.b16 %v9211, %v9207
  %v9236 = vpack.c.b16 %v9212, %v9208
  %v9237 = vpack.c.b16 %v9213, %v9209
  %v9238 = vpack.c.b16 %v9218, %v9214
  %v9239 = vpack.c.b16 %v9219, %v9215
  %v9240 = vpack.c.b16 %v9220, %v9216
  %v9241 = vpack.c.b16 %v9221, %v9217
  %v9242 = vpack.c.b16 %v9226, %v9222
  %v9243 = vpack.c.b16 %v9227, %v9223
  %v9244 = vpack.c.b16 %v9228, %v9224
  %v9245 = vpack.c.b16 %v9229, %v9225
  %v9263 = vsel %vm934, %v9141, 0
  %9265 = vmatprep.subr.bf16.mxu0 0
  %9266 = vmatpush1.bf16.msra.mxu0 0
  %9267 = vmatprep.subr.bf16.mxu0 0
  %9268 = vmatpush1.bf16.msra.mxu0 0
  %9269 = vmatprep.subr.bf16.mxu0 0
  %9270 = vmatpush1.bf16.msra.mxu0 0
  %9271 = vmatprep.subr.bf16.mxu0 0
  %9272 = vmatpush1.bf16.msra.mxu0 0
  %9273 = vmatprep.subr.bf16.mxu0 %v9243
  %9274 = vmatpush1.bf16.msra.mxu0 %v9242
  %9275 = vmatprep.subr.bf16.mxu0 %v9239
  %9276 = vmatpush1.bf16.msra.mxu0 %v9238
  %9277 = vmatprep.subr.bf16.mxu0 %v9235
  %9278 = vmatpush1.bf16.msra.mxu0 %v9234
  %9279 = vmatprep.subr.bf16.mxu0 %v9231
  %9280 = vmatpush1.bf16.msra.mxu0 %v9230
  %9281 = vmatprep.subr.bf16.mxu0 0
  %9282 = vmatpush2.bf16.msra.mxu0 0
  %9283 = vmatprep.subr.bf16.mxu0 0
  %9284 = vmatpush2.bf16.msra.mxu0 0
  %9285 = vmatprep.subr.bf16.mxu0 0
  %9286 = vmatpush2.bf16.msra.mxu0 0
  %9287 = vmatprep.subr.bf16.mxu0 0
  %9288 = vmatpush2.bf16.msra.mxu0 0
  %9289 = vmatprep.subr.bf16.mxu0 0
  %9290 = vmatpush2.bf16.msra.mxu0 0
  %9291 = vmatprep.subr.bf16.mxu0 0
  %9292 = vmatpush2.bf16.msra.mxu0 0
  %9293 = vmatprep.subr.bf16.mxu0 0
  %9294 = vmatpush2.bf16.msra.mxu0 0
  %9295 = vmatprep.subr.bf16.mxu0 0
  %9296 = vmatpush2.bf16.msra.mxu0 0
  %9297 = vmatprep.mubr.bf16.mxu0 0
  %9298 = vmatmul.mubr.bf16.gmra.mxu0 %v9263
  %v9299 = vpop.f32.mrf.mxu0
  %v9300 = vadd.f32 %v9165, %v9299
  %v9301 = vpop.f32.mrf.mxu0
  %v9302 = vadd.f32 %v9169, %v9301
  %v9303 = vpop.f32.mrf.mxu0
  %v9304 = vpop.f32.mrf.mxu0
  %9305 = vdwg.mxu0
  %9306 = vmatprep.subr.bf16.mxu0 0
  %9307 = vmatpush1.bf16.msra.mxu0 0
  %9308 = vmatprep.subr.bf16.mxu0 0
  %9309 = vmatpush1.bf16.msra.mxu0 0
  %9310 = vmatprep.subr.bf16.mxu0 0
  %9311 = vmatpush1.bf16.msra.mxu0 0
  %9312 = vmatprep.subr.bf16.mxu0 0
  %9313 = vmatpush1.bf16.msra.mxu0 0
  %9314 = vmatprep.subr.bf16.mxu0 %v9245
  %9315 = vmatpush1.bf16.msra.mxu0 %v9244
  %9316 = vmatprep.subr.bf16.mxu0 %v9241
  %9317 = vmatpush1.bf16.msra.mxu0 %v9240
  %9318 = vmatprep.subr.bf16.mxu0 %v9237
  %9319 = vmatpush1.bf16.msra.mxu0 %v9236
  %9320 = vmatprep.subr.bf16.mxu0 %v9233
  %9321 = vmatpush1.bf16.msra.mxu0 %v9232
  %9322 = vmatprep.subr.bf16.mxu0 0
  %9323 = vmatpush2.bf16.msra.mxu0 0
  %9324 = vmatprep.subr.bf16.mxu0 0
  %9325 = vmatpush2.bf16.msra.mxu0 0
  %9326 = vmatprep.subr.bf16.mxu0 0
  %9327 = vmatpush2.bf16.msra.mxu0 0
  %9328 = vmatprep.subr.bf16.mxu0 0
  %9329 = vmatpush2.bf16.msra.mxu0 0
  %9330 = vmatprep.subr.bf16.mxu0 0
  %9331 = vmatpush2.bf16.msra.mxu0 0
  %9332 = vmatprep.subr.bf16.mxu0 0
  %9333 = vmatpush2.bf16.msra.mxu0 0
  %9334 = vmatprep.subr.bf16.mxu0 0
  %9335 = vmatpush2.bf16.msra.mxu0 0
  %9336 = vmatprep.subr.bf16.mxu0 0
  %9337 = vmatpush2.bf16.msra.mxu0 0
  %9338 = vmatprep.mubr.bf16.mxu0 0
  %9339 = vmatmul.mubr.bf16.gmra.mxu0 %v9263
  %v9340 = vpop.f32.mrf.mxu0
  %v9341 = vadd.f32 %v9173, %v9340
  %v9342 = vpop.f32.mrf.mxu0
  %v9343 = vadd.f32 %v9177, %v9342
  %v9344 = vpop.f32.mrf.mxu0
  %v9345 = vpop.f32.mrf.mxu0
  %9346 = vdwg.mxu0
  %v9347 = vmax.f32 %v9300, 0.0
  %v9348 = vmax.f32 %v9302, 0.0
  %v9349 = vmax.f32 %v9341, 0.0
  %v9350 = vmax.f32 %v9343, 0.0
  %v9351 = vpack.c.bf16 %v9347, %v9347
  %v9352 = vpack.c.bf16 %v9348, %v9348
  %v9353 = vpack.c.bf16 %v9349, %v9349
  %v9354 = vpack.c.bf16 %v9350, %v9350
  %s9355 = scalar_lea.vmem %s9, 1024
  %v9356 = vld [vmem:[%s9355] sm:$0xff]
  %v9357 = vld [vmem:[%s9355 + $0x8] sm:$0xff]
  %v9358 = vld [vmem:[%s9355 + $0x10] sm:$0xff]
  %v9359 = vld [vmem:[%s9355 + $0x18] sm:$0xff]
  %v9360 = vld [vmem:[%s9355 + $0x20] sm:$0xff]
  %v9361 = vld [vmem:[%s9355 + $0x28] sm:$0xff]
  %v9362 = vld [vmem:[%s9355 + $0x30] sm:$0xff]
  %v9363 = vld [vmem:[%s9355 + $0x38] sm:$0xff]
  %v9364 = vld [vmem:[%s9355 + $0x40] sm:$0xff]
  %v9365 = vld [vmem:[%s9355 + $0x48] sm:$0xff]
  %v9366 = vld [vmem:[%s9355 + $0x50] sm:$0xff]
  %v9367 = vld [vmem:[%s9355 + $0x58] sm:$0xff]
  %v9368 = vld [vmem:[%s9355 + $0x60] sm:$0xff]
  %v9369 = vld [vmem:[%s9355 + $0x68] sm:$0xff]
  %v9370 = vld [vmem:[%s9355 + $0x70] sm:$0xff]
  %v9371 = vld [vmem:[%s9355 + $0x78] sm:$0xff]
  %v9372 = vld [vmem:[%s9355 + $0x80] sm:$0xff]
  %v9373 = vld [vmem:[%s9355 + $0x88] sm:$0xff]
  %v9374 = vld [vmem:[%s9355 + $0x90] sm:$0xff]
  %v9375 = vld [vmem:[%s9355 + $0x98] sm:$0xff]
  %v9376 = vld [vmem:[%s9355 + $0xa0] sm:$0xff]
  %v9377 = vld [vmem:[%s9355 + $0xa8] sm:$0xff]
  %v9378 = vld [vmem:[%s9355 + $0xb0] sm:$0xff]
  %v9379 = vld [vmem:[%s9355 + $0xb8] sm:$0xff]
  %v9380 = vld [vmem:[%s9355 + $0xc0] sm:$0xff]
  %v9381 = vld [vmem:[%s9355 + $0xc8] sm:$0xff]
  %v9382 = vld [vmem:[%s9355 + $0xd0] sm:$0xff]
  %v9383 = vld [vmem:[%s9355 + $0xd8] sm:$0xff]
  %v9384 = vld [vmem:[%s9355 + $0xe0] sm:$0xff]
  %v9385 = vld [vmem:[%s9355 + $0xe8] sm:$0xff]
  %v9386 = vld [vmem:[%s9355 + $0xf0] sm:$0xff]
  %v9387 = vld [vmem:[%s9355 + $0xf8] sm:$0xff]
  %v9388 = vld [vmem:[%s9355 + $0x100] sm:$0xff]
  %v9389 = vld [vmem:[%s9355 + $0x108] sm:$0xff]
  %v9390 = vld [vmem:[%s9355 + $0x110] sm:$0xff]
  %v9391 = vld [vmem:[%s9355 + $0x118] sm:$0xff]
  %v9392 = vld [vmem:[%s9355 + $0x120] sm:$0xff]
  %v9393 = vld [vmem:[%s9355 + $0x128] sm:$0xff]
  %v9394 = vld [vmem:[%s9355 + $0x130] sm:$0xff]
  %v9395 = vld [vmem:[%s9355 + $0x138] sm:$0xff]
  %v9396 = vld [vmem:[%s9355 + $0x140] sm:$0xff]
  %v9397 = vld [vmem:[%s9355 + $0x148] sm:$0xff]
  %v9398 = vld [vmem:[%s9355 + $0x150] sm:$0xff]
  %v9399 = vld [vmem:[%s9355 + $0x158] sm:$0xff]
  %v9400 = vld [vmem:[%s9355 + $0x160] sm:$0xff]
  %v9401 = vld [vmem:[%s9355 + $0x168] sm:$0xff]
  %v9402 = vld [vmem:[%s9355 + $0x170] sm:$0xff]
  %v9403 = vld [vmem:[%s9355 + $0x178] sm:$0xff]
  %v9404 = vld [vmem:[%s9355 + $0x180] sm:$0xff]
  %v9405 = vld [vmem:[%s9355 + $0x188] sm:$0xff]
  %v9406 = vld [vmem:[%s9355 + $0x190] sm:$0xff]
  %v9407 = vld [vmem:[%s9355 + $0x198] sm:$0xff]
  %v9408 = vld [vmem:[%s9355 + $0x1a0] sm:$0xff]
  %v9409 = vld [vmem:[%s9355 + $0x1a8] sm:$0xff]
  %v9410 = vld [vmem:[%s9355 + $0x1b0] sm:$0xff]
  %v9411 = vld [vmem:[%s9355 + $0x1b8] sm:$0xff]
  %v9412 = vld [vmem:[%s9355 + $0x1c0] sm:$0xff]
  %v9413 = vld [vmem:[%s9355 + $0x1c8] sm:$0xff]
  %v9414 = vld [vmem:[%s9355 + $0x1d0] sm:$0xff]
  %v9415 = vld [vmem:[%s9355 + $0x1d8] sm:$0xff]
  %v9416 = vld [vmem:[%s9355 + $0x1e0] sm:$0xff]
  %v9417 = vld [vmem:[%s9355 + $0x1e8] sm:$0xff]
  %v9418 = vld [vmem:[%s9355 + $0x1f0] sm:$0xff]
  %v9419 = vld [vmem:[%s9355 + $0x1f8] sm:$0xff]
  %v9420 = vld [vmem:[%s9355 + $0x200] sm:$0xff]
  %v9421 = vld [vmem:[%s9355 + $0x208] sm:$0xff]
  %v9422 = vld [vmem:[%s9355 + $0x210] sm:$0xff]
  %v9423 = vld [vmem:[%s9355 + $0x218] sm:$0xff]
  %v9424 = vld [vmem:[%s9355 + $0x220] sm:$0xff]
  %v9425 = vld [vmem:[%s9355 + $0x228] sm:$0xff]
  %v9426 = vld [vmem:[%s9355 + $0x230] sm:$0xff]
  %v9427 = vld [vmem:[%s9355 + $0x238] sm:$0xff]
  %v9428 = vld [vmem:[%s9355 + $0x240] sm:$0xff]
  %v9429 = vld [vmem:[%s9355 + $0x248] sm:$0xff]
  %v9430 = vld [vmem:[%s9355 + $0x250] sm:$0xff]
  %v9431 = vld [vmem:[%s9355 + $0x258] sm:$0xff]
  %v9432 = vld [vmem:[%s9355 + $0x260] sm:$0xff]
  %v9433 = vld [vmem:[%s9355 + $0x268] sm:$0xff]
  %v9434 = vld [vmem:[%s9355 + $0x270] sm:$0xff]
  %v9435 = vld [vmem:[%s9355 + $0x278] sm:$0xff]
  %v9436 = vld [vmem:[%s9355 + $0x280] sm:$0xff]
  %v9437 = vld [vmem:[%s9355 + $0x288] sm:$0xff]
  %v9438 = vld [vmem:[%s9355 + $0x290] sm:$0xff]
  %v9439 = vld [vmem:[%s9355 + $0x298] sm:$0xff]
  %v9440 = vld [vmem:[%s9355 + $0x2a0] sm:$0xff]
  %v9441 = vld [vmem:[%s9355 + $0x2a8] sm:$0xff]
  %v9442 = vld [vmem:[%s9355 + $0x2b0] sm:$0xff]
  %v9443 = vld [vmem:[%s9355 + $0x2b8] sm:$0xff]
  %v9444 = vld [vmem:[%s9355 + $0x2c0] sm:$0xff]
  %v9445 = vld [vmem:[%s9355 + $0x2c8] sm:$0xff]
  %v9446 = vld [vmem:[%s9355 + $0x2d0] sm:$0xff]
  %v9447 = vld [vmem:[%s9355 + $0x2d8] sm:$0xff]
  %v9448 = vld [vmem:[%s9355 + $0x2e0] sm:$0xff]
  %v9449 = vld [vmem:[%s9355 + $0x2e8] sm:$0xff]
  %v9450 = vld [vmem:[%s9355 + $0x2f0] sm:$0xff]
  %v9451 = vld [vmem:[%s9355 + $0x2f8] sm:$0xff]
  %v9452 = vld [vmem:[%s9355 + $0x300] sm:$0xff]
  %v9453 = vld [vmem:[%s9355 + $0x308] sm:$0xff]
  %v9454 = vld [vmem:[%s9355 + $0x310] sm:$0xff]
  %v9455 = vld [vmem:[%s9355 + $0x318] sm:$0xff]
  %v9456 = vld [vmem:[%s9355 + $0x320] sm:$0xff]
  %v9457 = vld [vmem:[%s9355 + $0x328] sm:$0xff]
  %v9458 = vld [vmem:[%s9355 + $0x330] sm:$0xff]
  %v9459 = vld [vmem:[%s9355 + $0x338] sm:$0xff]
  %v9460 = vld [vmem:[%s9355 + $0x340] sm:$0xff]
  %v9461 = vld [vmem:[%s9355 + $0x348] sm:$0xff]
  %v9462 = vld [vmem:[%s9355 + $0x350] sm:$0xff]
  %v9463 = vld [vmem:[%s9355 + $0x358] sm:$0xff]
  %v9464 = vld [vmem:[%s9355 + $0x360] sm:$0xff]
  %v9465 = vld [vmem:[%s9355 + $0x368] sm:$0xff]
  %v9466 = vld [vmem:[%s9355 + $0x370] sm:$0xff]
  %v9467 = vld [vmem:[%s9355 + $0x378] sm:$0xff]
  %v9468 = vld [vmem:[%s9355 + $0x380] sm:$0xff]
  %v9469 = vld [vmem:[%s9355 + $0x388] sm:$0xff]
  %v9470 = vld [vmem:[%s9355 + $0x390] sm:$0xff]
  %v9471 = vld [vmem:[%s9355 + $0x398] sm:$0xff]
  %v9472 = vld [vmem:[%s9355 + $0x3a0] sm:$0xff]
  %v9473 = vld [vmem:[%s9355 + $0x3a8] sm:$0xff]
  %v9474 = vld [vmem:[%s9355 + $0x3b0] sm:$0xff]
  %v9475 = vld [vmem:[%s9355 + $0x3b8] sm:$0xff]
  %v9476 = vld [vmem:[%s9355 + $0x3c0] sm:$0xff]
  %v9477 = vld [vmem:[%s9355 + $0x3c8] sm:$0xff]
  %v9478 = vld [vmem:[%s9355 + $0x3d0] sm:$0xff]
  %v9479 = vld [vmem:[%s9355 + $0x3d8] sm:$0xff]
  %v9480 = vld [vmem:[%s9355 + $0x3e0] sm:$0xff]
  %v9481 = vld [vmem:[%s9355 + $0x3e8] sm:$0xff]
  %v9482 = vld [vmem:[%s9355 + $0x3f0] sm:$0xff]
  %v9483 = vld [vmem:[%s9355 + $0x3f8] sm:$0xff]
  %s9484 = scalar_lea.vmem %s10, 4
  %v9485 = vld [vmem:[%s9484] sm:$0xf]
  %v9487 = vlaneseq
  %v9488 = vshrl.u32 %v9487, 7
  %v9489 = vsub.s32 0, %v9488
  %v9490 = vrot.slane %v9485, %v9489
  %v9491 = vlaneseq
  %v9492 = vshrl.u32 %v9491, 7
  %v9493 = vsub.s32 1, %v9492
  %v9494 = vrot.slane %v9485, %v9493
  %v9495 = vlaneseq
  %v9496 = vshrl.u32 %v9495, 7
  %v9497 = vsub.s32 2, %v9496
  %v9498 = vrot.slane %v9485, %v9497
  %v9499 = vlaneseq
  %v9500 = vshrl.u32 %v9499, 7
  %v9501 = vsub.s32 3, %v9500
  %v9502 = vrot.slane %v9485, %v9501
  %v9635 = vunpack.c.l.b16 %v9356
  %v9636 = vunpack.c.h.b16 %v9356
  %v9637 = vunpack.c.l.b16 %v9357
  %v9638 = vunpack.c.h.b16 %v9357
  %v9639 = vunpack.c.l.b16 %v9358
  %v9640 = vunpack.c.h.b16 %v9358
  %v9641 = vunpack.c.l.b16 %v9359
  %v9642 = vunpack.c.h.b16 %v9359
  %v9643 = vunpack.c.l.b16 %v9360
  %v9644 = vunpack.c.h.b16 %v9360
  %v9645 = vunpack.c.l.b16 %v9361
  %v9646 = vunpack.c.h.b16 %v9361
  %v9647 = vunpack.c.l.b16 %v9362
  %v9648 = vunpack.c.h.b16 %v9362
  %v9649 = vunpack.c.l.b16 %v9363
  %v9650 = vunpack.c.h.b16 %v9363
  %v9651 = vunpack.c.l.b16 %v9364
  %v9652 = vunpack.c.h.b16 %v9364
  %v9653 = vunpack.c.l.b16 %v9365
  %v9654 = vunpack.c.h.b16 %v9365
  %v9655 = vunpack.c.l.b16 %v9366
  %v9656 = vunpack.c.h.b16 %v9366
  %v9657 = vunpack.c.l.b16 %v9367
  %v9658 = vunpack.c.h.b16 %v9367
  %v9659 = vunpack.c.l.b16 %v9368
  %v9660 = vunpack.c.h.b16 %v9368
  %v9661 = vunpack.c.l.b16 %v9369
  %v9662 = vunpack.c.h.b16 %v9369
  %v9663 = vunpack.c.l.b16 %v9370
  %v9664 = vunpack.c.h.b16 %v9370
  %v9665 = vunpack.c.l.b16 %v9371
  %v9666 = vunpack.c.h.b16 %v9371
  %v9667 = vunpack.c.l.b16 %v9372
  %v9668 = vunpack.c.h.b16 %v9372
  %v9669 = vunpack.c.l.b16 %v9373
  %v9670 = vunpack.c.h.b16 %v9373
  %v9671 = vunpack.c.l.b16 %v9374
  %v9672 = vunpack.c.h.b16 %v9374
  %v9673 = vunpack.c.l.b16 %v9375
  %v9674 = vunpack.c.h.b16 %v9375
  %v9675 = vunpack.c.l.b16 %v9376
  %v9676 = vunpack.c.h.b16 %v9376
  %v9677 = vunpack.c.l.b16 %v9377
  %v9678 = vunpack.c.h.b16 %v9377
  %v9679 = vunpack.c.l.b16 %v9378
  %v9680 = vunpack.c.h.b16 %v9378
  %v9681 = vunpack.c.l.b16 %v9379
  %v9682 = vunpack.c.h.b16 %v9379
  %v9683 = vunpack.c.l.b16 %v9380
  %v9684 = vunpack.c.h.b16 %v9380
  %v9685 = vunpack.c.l.b16 %v9381
  %v9686 = vunpack.c.h.b16 %v9381
  %v9687 = vunpack.c.l.b16 %v9382
  %v9688 = vunpack.c.h.b16 %v9382
  %v9689 = vunpack.c.l.b16 %v9383
  %v9690 = vunpack.c.h.b16 %v9383
  %v9691 = vunpack.c.l.b16 %v9384
  %v9692 = vunpack.c.h.b16 %v9384
  %v9693 = vunpack.c.l.b16 %v9385
  %v9694 = vunpack.c.h.b16 %v9385
  %v9695 = vunpack.c.l.b16 %v9386
  %v9696 = vunpack.c.h.b16 %v9386
  %v9697 = vunpack.c.l.b16 %v9387
  %v9698 = vunpack.c.h.b16 %v9387
  %v9699 = vunpack.c.l.b16 %v9388
  %v9700 = vunpack.c.h.b16 %v9388
  %v9701 = vunpack.c.l.b16 %v9389
  %v9702 = vunpack.c.h.b16 %v9389
  %v9703 = vunpack.c.l.b16 %v9390
  %v9704 = vunpack.c.h.b16 %v9390
  %v9705 = vunpack.c.l.b16 %v9391
  %v9706 = vunpack.c.h.b16 %v9391
  %v9707 = vunpack.c.l.b16 %v9392
  %v9708 = vunpack.c.h.b16 %v9392
  %v9709 = vunpack.c.l.b16 %v9393
  %v9710 = vunpack.c.h.b16 %v9393
  %v9711 = vunpack.c.l.b16 %v9394
  %v9712 = vunpack.c.h.b16 %v9394
  %v9713 = vunpack.c.l.b16 %v9395
  %v9714 = vunpack.c.h.b16 %v9395
  %v9715 = vunpack.c.l.b16 %v9396
  %v9716 = vunpack.c.h.b16 %v9396
  %v9717 = vunpack.c.l.b16 %v9397
  %v9718 = vunpack.c.h.b16 %v9397
  %v9719 = vunpack.c.l.b16 %v9398
  %v9720 = vunpack.c.h.b16 %v9398
  %v9721 = vunpack.c.l.b16 %v9399
  %v9722 = vunpack.c.h.b16 %v9399
  %v9723 = vunpack.c.l.b16 %v9400
  %v9724 = vunpack.c.h.b16 %v9400
  %v9725 = vunpack.c.l.b16 %v9401
  %v9726 = vunpack.c.h.b16 %v9401
  %v9727 = vunpack.c.l.b16 %v9402
  %v9728 = vunpack.c.h.b16 %v9402
  %v9729 = vunpack.c.l.b16 %v9403
  %v9730 = vunpack.c.h.b16 %v9403
  %v9731 = vunpack.c.l.b16 %v9404
  %v9732 = vunpack.c.h.b16 %v9404
  %v9733 = vunpack.c.l.b16 %v9405
  %v9734 = vunpack.c.h.b16 %v9405
  %v9735 = vunpack.c.l.b16 %v9406
  %v9736 = vunpack.c.h.b16 %v9406
  %v9737 = vunpack.c.l.b16 %v9407
  %v9738 = vunpack.c.h.b16 %v9407
  %v9739 = vunpack.c.l.b16 %v9408
  %v9740 = vunpack.c.h.b16 %v9408
  %v9741 = vunpack.c.l.b16 %v9409
  %v9742 = vunpack.c.h.b16 %v9409
  %v9743 = vunpack.c.l.b16 %v9410
  %v9744 = vunpack.c.h.b16 %v9410
  %v9745 = vunpack.c.l.b16 %v9411
  %v9746 = vunpack.c.h.b16 %v9411
  %v9747 = vunpack.c.l.b16 %v9412
  %v9748 = vunpack.c.h.b16 %v9412
  %v9749 = vunpack.c.l.b16 %v9413
  %v9750 = vunpack.c.h.b16 %v9413
  %v9751 = vunpack.c.l.b16 %v9414
  %v9752 = vunpack.c.h.b16 %v9414
  %v9753 = vunpack.c.l.b16 %v9415
  %v9754 = vunpack.c.h.b16 %v9415
  %v9755 = vunpack.c.l.b16 %v9416
  %v9756 = vunpack.c.h.b16 %v9416
  %v9757 = vunpack.c.l.b16 %v9417
  %v9758 = vunpack.c.h.b16 %v9417
  %v9759 = vunpack.c.l.b16 %v9418
  %v9760 = vunpack.c.h.b16 %v9418
  %v9761 = vunpack.c.l.b16 %v9419
  %v9762 = vunpack.c.h.b16 %v9419
  %v9763 = vunpack.c.l.b16 %v9420
  %v9764 = vunpack.c.h.b16 %v9420
  %v9765 = vunpack.c.l.b16 %v9421
  %v9766 = vunpack.c.h.b16 %v9421
  %v9767 = vunpack.c.l.b16 %v9422
  %v9768 = vunpack.c.h.b16 %v9422
  %v9769 = vunpack.c.l.b16 %v9423
  %v9770 = vunpack.c.h.b16 %v9423
  %v9771 = vunpack.c.l.b16 %v9424
  %v9772 = vunpack.c.h.b16 %v9424
  %v9773 = vunpack.c.l.b16 %v9425
  %v9774 = vunpack.c.h.b16 %v9425
  %v9775 = vunpack.c.l.b16 %v9426
  %v9776 = vunpack.c.h.b16 %v9426
  %v9777 = vunpack.c.l.b16 %v9427
  %v9778 = vunpack.c.h.b16 %v9427
  %v9779 = vunpack.c.l.b16 %v9428
  %v9780 = vunpack.c.h.b16 %v9428
  %v9781 = vunpack.c.l.b16 %v9429
  %v9782 = vunpack.c.h.b16 %v9429
  %v9783 = vunpack.c.l.b16 %v9430
  %v9784 = vunpack.c.h.b16 %v9430
  %v9785 = vunpack.c.l.b16 %v9431
  %v9786 = vunpack.c.h.b16 %v9431
  %v9787 = vunpack.c.l.b16 %v9432
  %v9788 = vunpack.c.h.b16 %v9432
  %v9789 = vunpack.c.l.b16 %v9433
  %v9790 = vunpack.c.h.b16 %v9433
  %v9791 = vunpack.c.l.b16 %v9434
  %v9792 = vunpack.c.h.b16 %v9434
  %v9793 = vunpack.c.l.b16 %v9435
  %v9794 = vunpack.c.h.b16 %v9435
  %v9795 = vunpack.c.l.b16 %v9436
  %v9796 = vunpack.c.h.b16 %v9436
  %v9797 = vunpack.c.l.b16 %v9437
  %v9798 = vunpack.c.h.b16 %v9437
  %v9799 = vunpack.c.l.b16 %v9438
  %v9800 = vunpack.c.h.b16 %v9438
  %v9801 = vunpack.c.l.b16 %v9439
  %v9802 = vunpack.c.h.b16 %v9439
  %v9803 = vunpack.c.l.b16 %v9440
  %v9804 = vunpack.c.h.b16 %v9440
  %v9805 = vunpack.c.l.b16 %v9441
  %v9806 = vunpack.c.h.b16 %v9441
  %v9807 = vunpack.c.l.b16 %v9442
  %v9808 = vunpack.c.h.b16 %v9442
  %v9809 = vunpack.c.l.b16 %v9443
  %v9810 = vunpack.c.h.b16 %v9443
  %v9811 = vunpack.c.l.b16 %v9444
  %v9812 = vunpack.c.h.b16 %v9444
  %v9813 = vunpack.c.l.b16 %v9445
  %v9814 = vunpack.c.h.b16 %v9445
  %v9815 = vunpack.c.l.b16 %v9446
  %v9816 = vunpack.c.h.b16 %v9446
  %v9817 = vunpack.c.l.b16 %v9447
  %v9818 = vunpack.c.h.b16 %v9447
  %v9819 = vunpack.c.l.b16 %v9448
  %v9820 = vunpack.c.h.b16 %v9448
  %v9821 = vunpack.c.l.b16 %v9449
  %v9822 = vunpack.c.h.b16 %v9449
  %v9823 = vunpack.c.l.b16 %v9450
  %v9824 = vunpack.c.h.b16 %v9450
  %v9825 = vunpack.c.l.b16 %v9451
  %v9826 = vunpack.c.h.b16 %v9451
  %v9827 = vunpack.c.l.b16 %v9452
  %v9828 = vunpack.c.h.b16 %v9452
  %v9829 = vunpack.c.l.b16 %v9453
  %v9830 = vunpack.c.h.b16 %v9453
  %v9831 = vunpack.c.l.b16 %v9454
  %v9832 = vunpack.c.h.b16 %v9454
  %v9833 = vunpack.c.l.b16 %v9455
  %v9834 = vunpack.c.h.b16 %v9455
  %v9835 = vunpack.c.l.b16 %v9456
  %v9836 = vunpack.c.h.b16 %v9456
  %v9837 = vunpack.c.l.b16 %v9457
  %v9838 = vunpack.c.h.b16 %v9457
  %v9839 = vunpack.c.l.b16 %v9458
  %v9840 = vunpack.c.h.b16 %v9458
  %v9841 = vunpack.c.l.b16 %v9459
  %v9842 = vunpack.c.h.b16 %v9459
  %v9843 = vunpack.c.l.b16 %v9460
  %v9844 = vunpack.c.h.b16 %v9460
  %v9845 = vunpack.c.l.b16 %v9461
  %v9846 = vunpack.c.h.b16 %v9461
  %v9847 = vunpack.c.l.b16 %v9462
  %v9848 = vunpack.c.h.b16 %v9462
  %v9849 = vunpack.c.l.b16 %v9463
  %v9850 = vunpack.c.h.b16 %v9463
  %v9851 = vunpack.c.l.b16 %v9464
  %v9852 = vunpack.c.h.b16 %v9464
  %v9853 = vunpack.c.l.b16 %v9465
  %v9854 = vunpack.c.h.b16 %v9465
  %v9855 = vunpack.c.l.b16 %v9466
  %v9856 = vunpack.c.h.b16 %v9466
  %v9857 = vunpack.c.l.b16 %v9467
  %v9858 = vunpack.c.h.b16 %v9467
  %v9859 = vunpack.c.l.b16 %v9468
  %v9860 = vunpack.c.h.b16 %v9468
  %v9861 = vunpack.c.l.b16 %v9469
  %v9862 = vunpack.c.h.b16 %v9469
  %v9863 = vunpack.c.l.b16 %v9470
  %v9864 = vunpack.c.h.b16 %v9470
  %v9865 = vunpack.c.l.b16 %v9471
  %v9866 = vunpack.c.h.b16 %v9471
  %v9867 = vunpack.c.l.b16 %v9472
  %v9868 = vunpack.c.h.b16 %v9472
  %v9869 = vunpack.c.l.b16 %v9473
  %v9870 = vunpack.c.h.b16 %v9473
  %v9871 = vunpack.c.l.b16 %v9474
  %v9872 = vunpack.c.h.b16 %v9474
  %v9873 = vunpack.c.l.b16 %v9475
  %v9874 = vunpack.c.h.b16 %v9475
  %v9875 = vunpack.c.l.b16 %v9476
  %v9876 = vunpack.c.h.b16 %v9476
  %v9877 = vunpack.c.l.b16 %v9477
  %v9878 = vunpack.c.h.b16 %v9477
  %v9879 = vunpack.c.l.b16 %v9478
  %v9880 = vunpack.c.h.b16 %v9478
  %v9881 = vunpack.c.l.b16 %v9479
  %v9882 = vunpack.c.h.b16 %v9479
  %v9883 = vunpack.c.l.b16 %v9480
  %v9884 = vunpack.c.h.b16 %v9480
  %v9885 = vunpack.c.l.b16 %v9481
  %v9886 = vunpack.c.h.b16 %v9481
  %v9887 = vunpack.c.l.b16 %v9482
  %v9888 = vunpack.c.h.b16 %v9482
  %v9889 = vunpack.c.l.b16 %v9483
  %v9890 = vunpack.c.h.b16 %v9483
  %v9891 = vpack.c.b16 %v9639, %v9635
  %v9892 = vpack.c.b16 %v9640, %v9636
  %v9893 = vpack.c.b16 %v9641, %v9637
  %v9894 = vpack.c.b16 %v9642, %v9638
  %v9895 = vpack.c.b16 %v9647, %v9643
  %v9896 = vpack.c.b16 %v9648, %v9644
  %v9897 = vpack.c.b16 %v9649, %v9645
  %v9898 = vpack.c.b16 %v9650, %v9646
  %v9899 = vpack.c.b16 %v9655, %v9651
  %v9900 = vpack.c.b16 %v9656, %v9652
  %v9901 = vpack.c.b16 %v9657, %v9653
  %v9902 = vpack.c.b16 %v9658, %v9654
  %v9903 = vpack.c.b16 %v9663, %v9659
  %v9904 = vpack.c.b16 %v9664, %v9660
  %v9905 = vpack.c.b16 %v9665, %v9661
  %v9906 = vpack.c.b16 %v9666, %v9662
  %v9907 = vpack.c.b16 %v9671, %v9667
  %v9908 = vpack.c.b16 %v9672, %v9668
  %v9909 = vpack.c.b16 %v9673, %v9669
  %v9910 = vpack.c.b16 %v9674, %v9670
  %v9911 = vpack.c.b16 %v9679, %v9675
  %v9912 = vpack.c.b16 %v9680, %v9676
  %v9913 = vpack.c.b16 %v9681, %v9677
  %v9914 = vpack.c.b16 %v9682, %v9678
  %v9915 = vpack.c.b16 %v9687, %v9683
  %v9916 = vpack.c.b16 %v9688, %v9684
  %v9917 = vpack.c.b16 %v9689, %v9685
  %v9918 = vpack.c.b16 %v9690, %v9686
  %v9919 = vpack.c.b16 %v9695, %v9691
  %v9920 = vpack.c.b16 %v9696, %v9692
  %v9921 = vpack.c.b16 %v9697, %v9693
  %v9922 = vpack.c.b16 %v9698, %v9694
  %v9923 = vpack.c.b16 %v9703, %v9699
  %v9924 = vpack.c.b16 %v9704, %v9700
  %v9925 = vpack.c.b16 %v9705, %v9701
  %v9926 = vpack.c.b16 %v9706, %v9702
  %v9927 = vpack.c.b16 %v9711, %v9707
  %v9928 = vpack.c.b16 %v9712, %v9708
  %v9929 = vpack.c.b16 %v9713, %v9709
  %v9930 = vpack.c.b16 %v9714, %v9710
  %v9931 = vpack.c.b16 %v9719, %v9715
  %v9932 = vpack.c.b16 %v9720, %v9716
  %v9933 = vpack.c.b16 %v9721, %v9717
  %v9934 = vpack.c.b16 %v9722, %v9718
  %v9935 = vpack.c.b16 %v9727, %v9723
  %v9936 = vpack.c.b16 %v9728, %v9724
  %v9937 = vpack.c.b16 %v9729, %v9725
  %v9938 = vpack.c.b16 %v9730, %v9726
  %v9939 = vpack.c.b16 %v9735, %v9731
  %v9940 = vpack.c.b16 %v9736, %v9732
  %v9941 = vpack.c.b16 %v9737, %v9733
  %v9942 = vpack.c.b16 %v9738, %v9734
  %v9943 = vpack.c.b16 %v9743, %v9739
  %v9944 = vpack.c.b16 %v9744, %v9740
  %v9945 = vpack.c.b16 %v9745, %v9741
  %v9946 = vpack.c.b16 %v9746, %v9742
  %v9947 = vpack.c.b16 %v9751, %v9747
  %v9948 = vpack.c.b16 %v9752, %v9748
  %v9949 = vpack.c.b16 %v9753, %v9749
  %v9950 = vpack.c.b16 %v9754, %v9750
  %v9951 = vpack.c.b16 %v9759, %v9755
  %v9952 = vpack.c.b16 %v9760, %v9756
  %v9953 = vpack.c.b16 %v9761, %v9757
  %v9954 = vpack.c.b16 %v9762, %v9758
  %v9955 = vpack.c.b16 %v9767, %v9763
  %v9956 = vpack.c.b16 %v9768, %v9764
  %v9957 = vpack.c.b16 %v9769, %v9765
  %v9958 = vpack.c.b16 %v9770, %v9766
  %v9959 = vpack.c.b16 %v9775, %v9771
  %v9960 = vpack.c.b16 %v9776, %v9772
  %v9961 = vpack.c.b16 %v9777, %v9773
  %v9962 = vpack.c.b16 %v9778, %v9774
  %v9963 = vpack.c.b16 %v9783, %v9779
  %v9964 = vpack.c.b16 %v9784, %v9780
  %v9965 = vpack.c.b16 %v9785, %v9781
  %v9966 = vpack.c.b16 %v9786, %v9782
  %v9967 = vpack.c.b16 %v9791, %v9787
  %v9968 = vpack.c.b16 %v9792, %v9788
  %v9969 = vpack.c.b16 %v9793, %v9789
  %v9970 = vpack.c.b16 %v9794, %v9790
  %v9971 = vpack.c.b16 %v9799, %v9795
  %v9972 = vpack.c.b16 %v9800, %v9796
  %v9973 = vpack.c.b16 %v9801, %v9797
  %v9974 = vpack.c.b16 %v9802, %v9798
  %v9975 = vpack.c.b16 %v9807, %v9803
  %v9976 = vpack.c.b16 %v9808, %v9804
  %v9977 = vpack.c.b16 %v9809, %v9805
  %v9978 = vpack.c.b16 %v9810, %v9806
  %v9979 = vpack.c.b16 %v9815, %v9811
  %v9980 = vpack.c.b16 %v9816, %v9812
  %v9981 = vpack.c.b16 %v9817, %v9813
  %v9982 = vpack.c.b16 %v9818, %v9814
  %v9983 = vpack.c.b16 %v9823, %v9819
  %v9984 = vpack.c.b16 %v9824, %v9820
  %v9985 = vpack.c.b16 %v9825, %v9821
  %v9986 = vpack.c.b16 %v9826, %v9822
  %v9987 = vpack.c.b16 %v9831, %v9827
  %v9988 = vpack.c.b16 %v9832, %v9828
  %v9989 = vpack.c.b16 %v9833, %v9829
  %v9990 = vpack.c.b16 %v9834, %v9830
  %v9991 = vpack.c.b16 %v9839, %v9835
  %v9992 = vpack.c.b16 %v9840, %v9836
  %v9993 = vpack.c.b16 %v9841, %v9837
  %v9994 = vpack.c.b16 %v9842, %v9838
  %v9995 = vpack.c.b16 %v9847, %v9843
  %v9996 = vpack.c.b16 %v9848, %v9844
  %v9997 = vpack.c.b16 %v9849, %v9845
  %v9998 = vpack.c.b16 %v9850, %v9846
  %v9999 = vpack.c.b16 %v9855, %v9851
  %v10000 = vpack.c.b16 %v9856, %v9852
  %v10001 = vpack.c.b16 %v9857, %v9853
  %v10002 = vpack.c.b16 %v9858, %v9854
  %v10003 = vpack.c.b16 %v9863, %v9859
  %v10004 = vpack.c.b16 %v9864, %v9860
  %v10005 = vpack.c.b16 %v9865, %v9861
  %v10006 = vpack.c.b16 %v9866, %v9862
  %v10007 = vpack.c.b16 %v9871, %v9867
  %v10008 = vpack.c.b16 %v9872, %v9868
  %v10009 = vpack.c.b16 %v9873, %v9869
  %v10010 = vpack.c.b16 %v9874, %v9870
  %v10011 = vpack.c.b16 %v9879, %v9875
  %v10012 = vpack.c.b16 %v9880, %v9876
  %v10013 = vpack.c.b16 %v9881, %v9877
  %v10014 = vpack.c.b16 %v9882, %v9878
  %v10015 = vpack.c.b16 %v9887, %v9883
  %v10016 = vpack.c.b16 %v9888, %v9884
  %v10017 = vpack.c.b16 %v9889, %v9885
  %v10018 = vpack.c.b16 %v9890, %v9886
  %10147 = vmatprep.subr.bf16.mxu0 %v9920
  %10148 = vmatpush1.bf16.msra.mxu0 %v9919
  %10149 = vmatprep.subr.bf16.mxu0 %v9916
  %10150 = vmatpush1.bf16.msra.mxu0 %v9915
  %10151 = vmatprep.subr.bf16.mxu0 %v9912
  %10152 = vmatpush1.bf16.msra.mxu0 %v9911
  %10153 = vmatprep.subr.bf16.mxu0 %v9908
  %10154 = vmatpush1.bf16.msra.mxu0 %v9907
  %10155 = vmatprep.subr.bf16.mxu0 %v9904
  %10156 = vmatpush1.bf16.msra.mxu0 %v9903
  %10157 = vmatprep.subr.bf16.mxu0 %v9900
  %10158 = vmatpush1.bf16.msra.mxu0 %v9899
  %10159 = vmatprep.subr.bf16.mxu0 %v9896
  %10160 = vmatpush1.bf16.msra.mxu0 %v9895
  %10161 = vmatprep.subr.bf16.mxu0 %v9892
  %10162 = vmatpush1.bf16.msra.mxu0 %v9891
  %10163 = vmatprep.subr.bf16.mxu0 %v9952
  %10164 = vmatpush2.bf16.msra.mxu0 %v9951
  %10165 = vmatprep.subr.bf16.mxu0 %v9948
  %10166 = vmatpush2.bf16.msra.mxu0 %v9947
  %10167 = vmatprep.subr.bf16.mxu0 %v9944
  %10168 = vmatpush2.bf16.msra.mxu0 %v9943
  %10169 = vmatprep.subr.bf16.mxu0 %v9940
  %10170 = vmatpush2.bf16.msra.mxu0 %v9939
  %10171 = vmatprep.subr.bf16.mxu0 %v9936
  %10172 = vmatpush2.bf16.msra.mxu0 %v9935
  %10173 = vmatprep.subr.bf16.mxu0 %v9932
  %10174 = vmatpush2.bf16.msra.mxu0 %v9931
  %10175 = vmatprep.subr.bf16.mxu0 %v9928
  %10176 = vmatpush2.bf16.msra.mxu0 %v9927
  %10177 = vmatprep.subr.bf16.mxu0 %v9924
  %10178 = vmatpush2.bf16.msra.mxu0 %v9923
  %10179 = vmatprep.mubr.bf16.mxu0 %v9352
  %10180 = vmatmul.mubr.bf16.gmra.mxu0 %v9351
  %v10181 = vpop.f32.mrf.mxu0
  %v10182 = vadd.f32 %v9490, %v10181
  %v10183 = vpop.f32.mrf.mxu0
  %v10184 = vadd.f32 %v9494, %v10183
  %v10185 = vpop.f32.mrf.mxu0
  %v10186 = vpop.f32.mrf.mxu0
  %10187 = vdwg.mxu0
  %10188 = vmatprep.subr.bf16.mxu0 %v9984
  %10189 = vmatpush1.bf16.msra.mxu0 %v9983
  %10190 = vmatprep.subr.bf16.mxu0 %v9980
  %10191 = vmatpush1.bf16.msra.mxu0 %v9979
  %10192 = vmatprep.subr.bf16.mxu0 %v9976
  %10193 = vmatpush1.bf16.msra.mxu0 %v9975
  %10194 = vmatprep.subr.bf16.mxu0 %v9972
  %10195 = vmatpush1.bf16.msra.mxu0 %v9971
  %10196 = vmatprep.subr.bf16.mxu0 %v9968
  %10197 = vmatpush1.bf16.msra.mxu0 %v9967
  %10198 = vmatprep.subr.bf16.mxu0 %v9964
  %10199 = vmatpush1.bf16.msra.mxu0 %v9963
  %10200 = vmatprep.subr.bf16.mxu0 %v9960
  %10201 = vmatpush1.bf16.msra.mxu0 %v9959
  %10202 = vmatprep.subr.bf16.mxu0 %v9956
  %10203 = vmatpush1.bf16.msra.mxu0 %v9955
  %10204 = vmatprep.subr.bf16.mxu0 %v10016
  %10205 = vmatpush2.bf16.msra.mxu0 %v10015
  %10206 = vmatprep.subr.bf16.mxu0 %v10012
  %10207 = vmatpush2.bf16.msra.mxu0 %v10011
  %10208 = vmatprep.subr.bf16.mxu0 %v10008
  %10209 = vmatpush2.bf16.msra.mxu0 %v10007
  %10210 = vmatprep.subr.bf16.mxu0 %v10004
  %10211 = vmatpush2.bf16.msra.mxu0 %v10003
  %10212 = vmatprep.subr.bf16.mxu0 %v10000
  %10213 = vmatpush2.bf16.msra.mxu0 %v9999
  %10214 = vmatprep.subr.bf16.mxu0 %v9996
  %10215 = vmatpush2.bf16.msra.mxu0 %v9995
  %10216 = vmatprep.subr.bf16.mxu0 %v9992
  %10217 = vmatpush2.bf16.msra.mxu0 %v9991
  %10218 = vmatprep.subr.bf16.mxu0 %v9988
  %10219 = vmatpush2.bf16.msra.mxu0 %v9987
  %10220 = vmatprep.mubr.bf16.mxu0 %v9354
  %10221 = vmatmul.mubr.bf16.gmra.mxu0 %v9353
  %v10222 = vpop.f32.mrf.mxu0
  %v10223 = vadd.f32 %v10182, %v10222
  %v10224 = vpop.f32.mrf.mxu0
  %v10225 = vadd.f32 %v10184, %v10224
  %v10226 = vpop.f32.mrf.mxu0
  %v10227 = vpop.f32.mrf.mxu0
  %10228 = vdwg.mxu0
  %10229 = vmatprep.subr.bf16.mxu0 %v9922
  %10230 = vmatpush1.bf16.msra.mxu0 %v9921
  %10231 = vmatprep.subr.bf16.mxu0 %v9918
  %10232 = vmatpush1.bf16.msra.mxu0 %v9917
  %10233 = vmatprep.subr.bf16.mxu0 %v9914
  %10234 = vmatpush1.bf16.msra.mxu0 %v9913
  %10235 = vmatprep.subr.bf16.mxu0 %v9910
  %10236 = vmatpush1.bf16.msra.mxu0 %v9909
  %10237 = vmatprep.subr.bf16.mxu0 %v9906
  %10238 = vmatpush1.bf16.msra.mxu0 %v9905
  %10239 = vmatprep.subr.bf16.mxu0 %v9902
  %10240 = vmatpush1.bf16.msra.mxu0 %v9901
  %10241 = vmatprep.subr.bf16.mxu0 %v9898
  %10242 = vmatpush1.bf16.msra.mxu0 %v9897
  %10243 = vmatprep.subr.bf16.mxu0 %v9894
  %10244 = vmatpush1.bf16.msra.mxu0 %v9893
  %10245 = vmatprep.subr.bf16.mxu0 %v9954
  %10246 = vmatpush2.bf16.msra.mxu0 %v9953
  %10247 = vmatprep.subr.bf16.mxu0 %v9950
  %10248 = vmatpush2.bf16.msra.mxu0 %v9949
  %10249 = vmatprep.subr.bf16.mxu0 %v9946
  %10250 = vmatpush2.bf16.msra.mxu0 %v9945
  %10251 = vmatprep.subr.bf16.mxu0 %v9942
  %10252 = vmatpush2.bf16.msra.mxu0 %v9941
  %10253 = vmatprep.subr.bf16.mxu0 %v9938
  %10254 = vmatpush2.bf16.msra.mxu0 %v9937
  %10255 = vmatprep.subr.bf16.mxu0 %v9934
  %10256 = vmatpush2.bf16.msra.mxu0 %v9933
  %10257 = vmatprep.subr.bf16.mxu0 %v9930
  %10258 = vmatpush2.bf16.msra.mxu0 %v9929
  %10259 = vmatprep.subr.bf16.mxu0 %v9926
  %10260 = vmatpush2.bf16.msra.mxu0 %v9925
  %10261 = vmatprep.mubr.bf16.mxu0 %v9352
  %10262 = vmatmul.mubr.bf16.gmra.mxu0 %v9351
  %v10263 = vpop.f32.mrf.mxu0
  %v10264 = vadd.f32 %v9498, %v10263
  %v10265 = vpop.f32.mrf.mxu0
  %v10266 = vadd.f32 %v9502, %v10265
  %v10267 = vpop.f32.mrf.mxu0
  %v10268 = vpop.f32.mrf.mxu0
  %10269 = vdwg.mxu0
  %10270 = vmatprep.subr.bf16.mxu0 %v9986
  %10271 = vmatpush1.bf16.msra.mxu0 %v9985
  %10272 = vmatprep.subr.bf16.mxu0 %v9982
  %10273 = vmatpush1.bf16.msra.mxu0 %v9981
  %10274 = vmatprep.subr.bf16.mxu0 %v9978
  %10275 = vmatpush1.bf16.msra.mxu0 %v9977
  %10276 = vmatprep.subr.bf16.mxu0 %v9974
  %10277 = vmatpush1.bf16.msra.mxu0 %v9973
  %10278 = vmatprep.subr.bf16.mxu0 %v9970
  %10279 = vmatpush1.bf16.msra.mxu0 %v9969
  %10280 = vmatprep.subr.bf16.mxu0 %v9966
  %10281 = vmatpush1.bf16.msra.mxu0 %v9965
  %10282 = vmatprep.subr.bf16.mxu0 %v9962
  %10283 = vmatpush1.bf16.msra.mxu0 %v9961
  %10284 = vmatprep.subr.bf16.mxu0 %v9958
  %10285 = vmatpush1.bf16.msra.mxu0 %v9957
  %10286 = vmatprep.subr.bf16.mxu0 %v10018
  %10287 = vmatpush2.bf16.msra.mxu0 %v10017
  %10288 = vmatprep.subr.bf16.mxu0 %v10014
  %10289 = vmatpush2.bf16.msra.mxu0 %v10013
  %10290 = vmatprep.subr.bf16.mxu0 %v10010
  %10291 = vmatpush2.bf16.msra.mxu0 %v10009
  %10292 = vmatprep.subr.bf16.mxu0 %v10006
  %10293 = vmatpush2.bf16.msra.mxu0 %v10005
  %10294 = vmatprep.subr.bf16.mxu0 %v10002
  %10295 = vmatpush2.bf16.msra.mxu0 %v10001
  %10296 = vmatprep.subr.bf16.mxu0 %v9998
  %10297 = vmatpush2.bf16.msra.mxu0 %v9997
  %10298 = vmatprep.subr.bf16.mxu0 %v9994
  %10299 = vmatpush2.bf16.msra.mxu0 %v9993
  %10300 = vmatprep.subr.bf16.mxu0 %v9990
  %10301 = vmatpush2.bf16.msra.mxu0 %v9989
  %10302 = vmatprep.mubr.bf16.mxu0 %v9354
  %10303 = vmatmul.mubr.bf16.gmra.mxu0 %v9353
  %v10304 = vpop.f32.mrf.mxu0
  %v10305 = vadd.f32 %v10264, %v10304
  %v10306 = vpop.f32.mrf.mxu0
  %v10307 = vadd.f32 %v10266, %v10306
  %v10308 = vpop.f32.mrf.mxu0
  %v10309 = vpop.f32.mrf.mxu0
  %10310 = vdwg.mxu0
  %s10311 = scalar_lea.vmem %s11, 32
  %10312 = vst [vmem:[%s10311] sm:$0xff] %v10223
  %10313 = vst [vmem:[%s10311 + $0x8] sm:$0xff] %v10225
  %10314 = vst [vmem:[%s10311 + $0x10] sm:$0xff] %v10305
  %10315 = vst [vmem:[%s10311 + $0x18] sm:$0xff] %v10307
  // Predicated region
  $region46: #{rnd_model_forward.1} parent=0 // pred_check
    _
  $region47: #{rnd_model_forward.1} parent=0 // pred_check_branch
    %10317 = sbr.rel (0) target = $region49
  $region48: #{rnd_model_forward.1} parent=0 // pred_region
    _
  $region49: #{rnd_model_forward.1} parent=0 // pred_fallthru
    _
  // Predicated region
  $region50: #{rnd_model_forward.1} parent=0 // pred_check
    _
  $region51: #{rnd_model_forward.1} parent=0 // pred_check_branch
    %10319 = sbr.rel (0) target = $region53
  $region52: #{rnd_model_forward.1} parent=0 // pred_region
    _
  $region53: #{rnd_model_forward.1} parent=0 // pred_fallthru
    _

</llo_original>
